<compile_context>
chip_gen: v6e
topology: v6e:2x2x1
jax: 0.10.0
libtpu: 0.0.40
codegen_flags: <defaults>
</compile_context>

<pallas_src>
import jax
import jax.numpy as jnp
from jax.experimental import pallas as pl
from jax.experimental.pallas import tpu as pltpu

EPS = 1e-7


def _lrelu(x, alpha):
    return jnp.where(x >= 0, x, alpha * x)


def _round_up(x, m):
    return (x + m - 1) // m * m


# --------------------------- fused Ex_Net kernel ---------------------------
def _make_exnet_kernel(B, H, W):
    h, w = H // 2, W // 2
    M1 = B * H * W
    Wp1 = _round_up(W + 2, 8)
    Wp2 = _round_up(w + 2, 8)
    ri = [(i * w) // 3 for i in range(3)]   # torch nearest-resize indices: floor(i * in / out)

    def conv3x3(pad_ref, hh, ww, cin, w_ref, b_ref):
        # unrolled 9-tap accumulation of small dots (no wide-K concat), f32 accumulation
        m = B * hh * ww
        acc = None
        for dy in range(3):
            for dx in range(3):
                tap = pad_ref[:, dy:dy + hh, dx:dx + ww, :].reshape(m, cin)
                k0 = (dy * 3 + dx) * cin
                d = jnp.dot(tap, w_ref[0, k0:k0 + cin, :],
                            preferred_element_type=jnp.float32)
                acc = d if acc is None else acc + d
        return acc + b_ref[0]

    def kernel(xcol_ref, w1_ref, b1_ref, w2_ref, b2_ref, w3_ref, b3_ref,
               o_ref, pad1_ref, pad2_ref):
        # zero only the halo of the bf16 scratch; the interior is fully overwritten each step
        zr1 = jnp.zeros((B, 1, Wp1, 64), jnp.bfloat16)
        zc1 = jnp.zeros((B, H + 2, 1, 64), jnp.bfloat16)
        pad1_ref[:, 0:1, :, :] = zr1
        pad1_ref[:, H + 1:H + 2, :, :] = zr1
        pad1_ref[:, :, 0:1, :] = zc1
        pad1_ref[:, :, W + 1:W + 2, :] = zc1

        zr2 = jnp.zeros((B, 1, Wp2, 64), jnp.bfloat16)
        zc2 = jnp.zeros((B, h + 2, 1, 64), jnp.bfloat16)
        pad2_ref[:, 0:1, :, :] = zr2
        pad2_ref[:, h + 1:h + 2, :, :] = zr2
        pad2_ref[:, :, 0:1, :] = zc2
        pad2_ref[:, :, w + 1:w + 2, :] = zc2

        # conv1: input pre-im2col'ed (and K zero-padded to a 128 multiple) in glue -> one dot
        h1 = jnp.dot(xcol_ref[0], w1_ref[0],
                     preferred_element_type=jnp.float32) + b1_ref[0]
        h1 = _lrelu(h1, 0.5)                                            # (M1, 64) f32

        pad1_ref[:, 1:H + 1, 1:W + 1, :] = h1.astype(jnp.bfloat16).reshape(B, H, W, 64)

        # conv2: 9 unrolled tap dots straight from the padded bf16 scratch
        h2 = _lrelu(conv3x3(pad1_ref, H, W, 64, w2_ref, b2_ref), 0.5)   # (M1, 64)

        # MaxPool2d(2,2) over the (b, i, j) row ordering, then LeakyReLU(0.5)
        h2j = h2.reshape(B * H * (W // 2), 2, 64)
        pj = jnp.maximum(h2j[:, 0, :], h2j[:, 1, :])                    # pool along j
        pj4 = pj.reshape(B * h, 2, w, 64)
        pooled = jnp.maximum(pj4[:, 0, :, :], pj4[:, 1, :, :])          # pool along i
        pooled = _lrelu(pooled, 0.5)                                    # (B*h, w, 64)

        pad2_ref[:, 1:h + 1, 1:w + 1, :] = pooled.astype(jnp.bfloat16).reshape(B, h, w, 64)

        # conv3: 9 unrolled tap dots
        h3 = _lrelu(conv3x3(pad2_ref, h, w, 64, w3_ref, b3_ref), 0.5)   # (B*h*w, 128)

        # write only the 3 nearest-resize columns: o[n, t*B + b, k, c] = fm[b, k, ri[t], c]
        fm = h3.reshape(B, h, w, 128)
        for t in range(3):
            o_ref[0, t * B:(t + 1) * B, :, :] = fm[:, :, ri[t], :]

    return kernel


def exnet_pallas(xcol, w1, b1, w2, b2, w3, b3, B, H, W):
    h, w = H // 2, W // 2
    M1 = B * H * W
    Kp = xcol.shape[-1]
    Wp1 = _round_up(W + 2, 8)
    Wp2 = _round_up(w + 2, 8)
    return pl.pallas_call(
        _make_exnet_kernel(B, H, W),
        out_shape=jax.ShapeDtypeStruct((2, 3 * B, h, 128), jnp.float32),
        grid=(2,),
        in_specs=[
            pl.BlockSpec((1, M1, Kp), lambda n: (n, 0, 0)),
            pl.BlockSpec((1, Kp, 64), lambda n: (n, 0, 0)),
            pl.BlockSpec((1, 1, 64), lambda n: (n, 0, 0)),
            pl.BlockSpec((1, 9 * 64, 64), lambda n: (n, 0, 0)),
            pl.BlockSpec((1, 1, 64), lambda n: (n, 0, 0)),
            pl.BlockSpec((1, 9 * 64, 128), lambda n: (n, 0, 0)),
            pl.BlockSpec((1, 1, 128), lambda n: (n, 0, 0)),
        ],
        out_specs=pl.BlockSpec((1, 3 * B, h, 128), lambda n: (n, 0, 0, 0)),
        scratch_shapes=[
            pltpu.VMEM((B, H + 2, Wp1, 64), jnp.bfloat16),   # padded conv1 output (bf16)
            pltpu.VMEM((B, h + 2, Wp2, 64), jnp.bfloat16),   # padded pooled map (bf16)
        ],
        compiler_params=pltpu.CompilerParams(dimension_semantics=("parallel",)),
    )(xcol, w1, b1, w2, b2, w3, b3)


# --------------------------- fused tail kernel (single step, whole batch) ---------------------------
def _make_tail_kernel(B, h, C):
    def kernel(feats_ref, rgb_ref, wc_ref, wl_ref, bl_ref, o_ref):
        rgb_all = rgb_ref[...]                                            # (B, 9, C)
        rgb_all = jnp.where(jnp.isnan(rgb_all), EPS, rgb_all)             # nan -> epsilon (reference)

        # tmp = (rgb @ We^T) @ Wb with (We^T @ Wb) prefolded in glue; one dot for the whole batch
        tmp_all = jnp.dot(rgb_all.reshape(B * 9, C).astype(jnp.bfloat16), wc_ref[...],
                          preferred_element_type=jnp.float32)             # (9B, C)

        rows = []
        for b in range(B):                                                # B is small -> unrolled
            t1 = [feats_ref[0, t * B + b] for t in range(3)]              # 3 x (h, C)
            t2 = [feats_ref[1, t * B + b] for t in range(3)]
            # per-channel correlation at the 3x3 resize points:
            # hsi[s, c] = sum_k T1[b, k, ri[s//3], c] * T2[b, k, ri[s%3], c]
            hsi = jnp.concatenate(
                [jnp.sum(t1[s // 3] * t2[s % 3], axis=0, keepdims=True) for s in range(9)],
                axis=0)                                                   # (9, C) == hsi^T

            rgb = rgb_all[b]                                              # (9, C)
            tmp = tmp_all[b * 9:(b + 1) * 9]                              # (9, C)
            s_mat = jax.lax.dot_general(tmp, hsi, (((1,), (1,)), ((), ())),
                                        preferred_element_type=jnp.float32)   # (9, 9)
            # exp / sum(exp) of the reference, max-stabilized (identical when no overflow)
            s_mat = s_mat - jnp.max(s_mat, axis=1, keepdims=True)
            e = jnp.exp(s_mat)
            a = e / jnp.sum(e, axis=1, keepdims=True)
            # att^T[s, c] = sum_{s'} A[s', s] * rgb[s', c]
            att_t = jax.lax.dot_general(a, rgb, (((0,), (0,)), ((), ())),
                                        preferred_element_type=jnp.float32)   # (9, C)
            att_t = jnp.where(jnp.isnan(att_t), 0.0, att_t)
            pre = hsi + att_t                                             # diff_feature_hsi + att

            # MaxPool2d(2,2) on the 3x3 map keeps spatial indices {0,1,3,4}
            v = jnp.maximum(jnp.maximum(pre[0:1, :], pre[1:2, :]),
                            jnp.maximum(pre[3:4, :], pre[4:5, :]))        # (1, C)
            v = _lrelu(v, 0.01)                                           # LeakyReLU(0.01)
            v = jnp.where(v < 0, -1.0, 1.0) * jnp.sqrt(jnp.abs(v))        # signed sqrt
            # matches torch.norm(out + eps, 2, 1, True): eps added inside the square
            v = v / jnp.sqrt(jnp.sum((v + EPS) ** 2, axis=1, keepdims=True))
            rows.append(v)

        vs = jnp.concatenate(rows, axis=0)                                # (B, C)
        # lane-dense output: head padded to 128 columns in glue; logits live in lanes 0-1
        o_ref[...] = jnp.dot(vs, wl_ref[...],
                             preferred_element_type=jnp.float32) + bl_ref[...]

    return kernel


def tail_pallas(feats, rgb_t, wcomb, wl_pad, bl_pad):
    _, threeB, h, C = feats.shape
    B = rgb_t.shape[0]
    out = pl.pallas_call(
        _make_tail_kernel(B, h, C),
        out_shape=jax.ShapeDtypeStruct((B, 128), jnp.float32),
        grid=(1,),
        in_specs=[
            pl.BlockSpec((2, threeB, h, C), lambda i: (0, 0, 0, 0)),
            pl.BlockSpec((B, 9, C), lambda i: (0, 0, 0)),
            pl.BlockSpec((C, C), lambda i: (0, 0)),
            pl.BlockSpec((C, 128), lambda i: (0, 0)),
            pl.BlockSpec((1, 128), lambda i: (0, 0)),
        ],
        out_specs=pl.BlockSpec((B, 128), lambda i: (0, 0)),
    )(feats, rgb_t, wcomb, wl_pad, bl_pad)
    return out[:, :2]


# --------------------------- glue ---------------------------
def _im2col3x3(x):
    B, H, W, C = x.shape
    xp = jnp.pad(x, ((0, 0), (1, 1), (1, 1), (0, 0)))
    taps = [xp[:, dy:dy + H, dx:dx + W, :] for dy in range(3) for dx in range(3)]
    return jnp.stack(taps, axis=3).reshape(B * H * W, 9 * C)   # cols ordered (tap, cin)


def forward(params, T1, T2, diff_feature_rgb):
    B, H, W, Cin = T1.shape
    C = 128
    K1 = 9 * Cin
    Kp = _round_up(K1, 128)                       # lane-dense K for the conv1 im2col dot

    # pack both Ex_Nets: leading "net" axis of size 2, conv weights as bf16 im2col matrices
    def pack(p):
        w1 = jnp.pad(p["w1"].reshape(K1, 64), ((0, Kp - K1), (0, 0)))
        return [w1.astype(jnp.bfloat16), p["b1"].reshape(1, 64),
                p["w2"].reshape(9 * 64, 64).astype(jnp.bfloat16), p["b2"].reshape(1, 64),
                p["w3"].reshape(9 * 64, 128).astype(jnp.bfloat16), p["b3"].reshape(1, 128)]

    w1, b1, w2, b2, w3, b3 = [jnp.stack([a, b], axis=0)
                              for a, b in zip(pack(params["cnn1"]), pack(params["cnn2"]))]
    xcol = jnp.stack([_im2col3x3(T1), _im2col3x3(T2)], axis=0)
    xcol = jnp.pad(xcol, ((0, 0), (0, 0), (0, Kp - K1))).astype(jnp.bfloat16)

    # (2, 3*B, h, 128): per net, the 3 nearest-resize-gathered columns, gathered inside the kernel
    feats = exnet_pallas(xcol, w1, b1, w2, b2, w3, b3, B, H, W)

    rgb_t = diff_feature_rgb.reshape(B, 9, C)       # (B, S, C), s = i*3 + j

    # co-learning per-batch weight is a fresh nn.Parameter = 0.001*ones((C,C)) (same for every
    # batch element) -> fold it with linear_e:  (rgb @ We^T) @ Wb == rgb @ (We^T @ Wb)
    wb = jnp.full((C, C), 0.001, jnp.float32)
    wcomb = (params["linear_e_w"].T @ wb).astype(jnp.bfloat16)           # (C, C)

    # lane-dense head: pad 128->2 linear to 128 output lanes, slice the 2 logits after the call
    wl_pad = jnp.pad(params["head_w"], ((0, 0), (0, 128 - 2)))
    bl_pad = jnp.pad(params["head_b"], (0, 128 - 2)).reshape(1, 128)

    return tail_pallas(feats, rgb_t, wcomb, wl_pad, bl_pad)


def init_params(key, channl):
    ks = jax.random.split(key, 16)

    def conv_w(k, cin, cout):
        return jax.random.normal(k, (3, 3, cin, cout), jnp.float32) * 0.05

    def conv_b(k, cout):
        return jax.random.normal(k, (cout,), jnp.float32) * 0.01

    def cnn(kset):
        return {
            "w1": conv_w(kset[0], channl, 64), "b1": conv_b(kset[1], 64),
            "w2": conv_w(kset[2], 64, 64),     "b2": conv_b(kset[3], 64),
            "w3": conv_w(kset[4], 64, 128),    "b3": conv_b(kset[5], 128),
        }

    return {
        "cnn1": cnn(ks[0:6]),
        "cnn2": cnn(ks[6:12]),
        "linear_e_w": jax.random.normal(ks[12], (128, 128), jnp.float32) * 0.05,
        "head_w": jax.random.normal(ks[13], (128, 2), jnp.float32) * 0.1,
        "head_b": jax.random.normal(ks[14], (2,), jnp.float32) * 0.01,
    }
    # TODO(synk): CBAMBlock feat1/feat2 and conv5 (plus the maxpool3-before-conv5 branch) are
    # declared in the reference __init__ but never used in forward(); intentionally omitted.


if __name__ == "__main__":
    key = jax.random.PRNGKey(0)
    k_p, k1, k2, k3 = jax.random.split(key, 4)

    B, channl, H, W = 2, 4, 8, 8
    params = init_params(k_p, channl)

    T1 = jax.random.normal(k1, (B, H, W, channl), jnp.float32)           # NHWC
    T2 = jax.random.normal(k2, (B, H, W, channl), jnp.float32)           # NHWC
    diff_rgb = jax.random.normal(k3, (B, 3, 3, 128), jnp.float32) * 0.1  # NHWC
    # exercise the NaN-handling path of the co-learning layer
    diff_rgb = diff_rgb.at[0, 0, 0, 0].set(jnp.nan)

    out = jax.jit(forward)(params, T1, T2, diff_rgb)
    out = jax.block_until_ready(out)

    assert out.shape == (B, 2), out.shape
    assert bool(jnp.all(jnp.isfinite(out)))
    print("KERNEL_OK")
</pallas_src>

<mosaic_0001>
module attributes {stable_mosaic.version = 11 : i64} {
  func.func @kernel(%arg0: i32, %arg1: memref<1x128x128xbf16, #tpu.memory_space<vmem>>, %arg2: memref<1x128x64xbf16, #tpu.memory_space<vmem>>, %arg3: memref<1x1x64xf32, #tpu.memory_space<vmem>>, %arg4: memref<1x576x64xbf16, #tpu.memory_space<vmem>>, %arg5: memref<1x1x64xf32, #tpu.memory_space<vmem>>, %arg6: memref<1x576x128xbf16, #tpu.memory_space<vmem>>, %arg7: memref<1x1x128xf32, #tpu.memory_space<vmem>>, %arg8: memref<1x6x4x128xf32, #tpu.memory_space<vmem>>, %arg9: memref<2x10x16x64xbf16, #tpu.memory_space<vmem>>, %arg10: memref<2x6x8x64xbf16, #tpu.memory_space<vmem>>) attributes {dimension_semantics = [#tpu.dimension_semantics<parallel>], iteration_bounds = array<i64: 2>, scalar_prefetch = 0 : i64, scratch_operands = 2 : i64, tpu.core_type = #tpu.core_type<tc>, window_params = [{transform_indices = @transform_0, window_bounds = array<i64: 1, 128, 128>}, {transform_indices = @transform_1, window_bounds = array<i64: 1, 128, 64>}, {transform_indices = @transform_2, window_bounds = array<i64: 1, 1, 64>}, {transform_indices = @transform_3, window_bounds = array<i64: 1, 576, 64>}, {transform_indices = @transform_4, window_bounds = array<i64: 1, 1, 64>}, {transform_indices = @transform_5, window_bounds = array<i64: 1, 576, 128>}, {transform_indices = @transform_6, window_bounds = array<i64: 1, 1, 128>}, {transform_indices = @transform_7, window_bounds = array<i64: 1, 6, 4, 128>}]} {
    %cst = arith.constant 0.000000e+00 : bf16
    %0 = vector.broadcast %cst : bf16 to vector<2x1x16x64xbf16>
    %cst_0 = arith.constant 0.000000e+00 : bf16
    %1 = vector.broadcast %cst_0 : bf16 to vector<2x10x1x64xbf16>
    %c0 = arith.constant 0 : index
    %c0_1 = arith.constant 0 : index
    %c0_2 = arith.constant 0 : index
    %c0_3 = arith.constant 0 : index
    %2 = vector.load %arg9[%c0, %c0_1, %c0_2, %c0_3] : memref<2x10x16x64xbf16, #tpu.memory_space<vmem>>, vector<2x1x16x64xbf16>
    tpu.vector_store %arg9[%c0, %c0_1, %c0_2, %c0_3], %0 {strides = array<i32>} : memref<2x10x16x64xbf16, #tpu.memory_space<vmem>>, vector<2x1x16x64xbf16>,
    %c0_4 = arith.constant 0 : index
    %c9 = arith.constant 9 : index
    %c0_5 = arith.constant 0 : index
    %c0_6 = arith.constant 0 : index
    %3 = vector.load %arg9[%c0_4, %c9, %c0_5, %c0_6] : memref<2x10x16x64xbf16, #tpu.memory_space<vmem>>, vector<2x1x16x64xbf16>
    tpu.vector_store %arg9[%c0_4, %c9, %c0_5, %c0_6], %0 {strides = array<i32>} : memref<2x10x16x64xbf16, #tpu.memory_space<vmem>>, vector<2x1x16x64xbf16>,
    %c0_7 = arith.constant 0 : index
    %c0_8 = arith.constant 0 : index
    %c0_9 = arith.constant 0 : index
    %c0_10 = arith.constant 0 : index
    %4 = vector.load %arg9[%c0_7, %c0_8, %c0_9, %c0_10] : memref<2x10x16x64xbf16, #tpu.memory_space<vmem>>, vector<2x10x1x64xbf16>
    tpu.vector_store %arg9[%c0_7, %c0_8, %c0_9, %c0_10], %1 {strides = array<i32>} : memref<2x10x16x64xbf16, #tpu.memory_space<vmem>>, vector<2x10x1x64xbf16>,
    %c0_11 = arith.constant 0 : index
    %c0_12 = arith.constant 0 : index
    %c9_13 = arith.constant 9 : index
    %c0_14 = arith.constant 0 : index
    %5 = vector.load %arg9[%c0_11, %c0_12, %c9_13, %c0_14] : memref<2x10x16x64xbf16, #tpu.memory_space<vmem>>, vector<2x10x1x64xbf16>
    tpu.vector_store %arg9[%c0_11, %c0_12, %c9_13, %c0_14], %1 {strides = array<i32>} : memref<2x10x16x64xbf16, #tpu.memory_space<vmem>>, vector<2x10x1x64xbf16>,
    %cst_15 = arith.constant 0.000000e+00 : bf16
    %6 = vector.broadcast %cst_15 : bf16 to vector<2x1x8x64xbf16>
    %cst_16 = arith.constant 0.000000e+00 : bf16
    %7 = vector.broadcast %cst_16 : bf16 to vector<2x6x1x64xbf16>
    %c0_17 = arith.constant 0 : index
    %c0_18 = arith.constant 0 : index
    %c0_19 = arith.constant 0 : index
    %c0_20 = arith.constant 0 : index
    %8 = vector.load %arg10[%c0_17, %c0_18, %c0_19, %c0_20] : memref<2x6x8x64xbf16, #tpu.memory_space<vmem>>, vector<2x1x8x64xbf16>
    tpu.vector_store %arg10[%c0_17, %c0_18, %c0_19, %c0_20], %6 {strides = array<i32>} : memref<2x6x8x64xbf16, #tpu.memory_space<vmem>>, vector<2x1x8x64xbf16>,
    %c0_21 = arith.constant 0 : index
    %c5 = arith.constant 5 : index
    %c0_22 = arith.constant 0 : index
    %c0_23 = arith.constant 0 : index
    %9 = vector.load %arg10[%c0_21, %c5, %c0_22, %c0_23] : memref<2x6x8x64xbf16, #tpu.memory_space<vmem>>, vector<2x1x8x64xbf16>
    tpu.vector_store %arg10[%c0_21, %c5, %c0_22, %c0_23], %6 {strides = array<i32>} : memref<2x6x8x64xbf16, #tpu.memory_space<vmem>>, vector<2x1x8x64xbf16>,
    %c0_24 = arith.constant 0 : index
    %c0_25 = arith.constant 0 : index
    %c0_26 = arith.constant 0 : index
    %c0_27 = arith.constant 0 : index
    %10 = vector.load %arg10[%c0_24, %c0_25, %c0_26, %c0_27] : memref<2x6x8x64xbf16, #tpu.memory_space<vmem>>, vector<2x6x1x64xbf16>
    tpu.vector_store %arg10[%c0_24, %c0_25, %c0_26, %c0_27], %7 {strides = array<i32>} : memref<2x6x8x64xbf16, #tpu.memory_space<vmem>>, vector<2x6x1x64xbf16>,
    %c0_28 = arith.constant 0 : index
    %c0_29 = arith.constant 0 : index
    %c5_30 = arith.constant 5 : index
    %c0_31 = arith.constant 0 : index
    %11 = vector.load %arg10[%c0_28, %c0_29, %c5_30, %c0_31] : memref<2x6x8x64xbf16, #tpu.memory_space<vmem>>, vector<2x6x1x64xbf16>
    tpu.vector_store %arg10[%c0_28, %c0_29, %c5_30, %c0_31], %7 {strides = array<i32>} : memref<2x6x8x64xbf16, #tpu.memory_space<vmem>>, vector<2x6x1x64xbf16>,
    %c0_32 = arith.constant 0 : index
    %c0_33 = arith.constant 0 : index
    %c0_34 = arith.constant 0 : index
    %12 = vector.load %arg1[%c0_32, %c0_33, %c0_34] : memref<1x128x128xbf16, #tpu.memory_space<vmem>>, vector<1x128x128xbf16>
    %13 = vector.shape_cast %12 : vector<1x128x128xbf16> to vector<128x128xbf16>
    %c0_35 = arith.constant 0 : index
    %c0_36 = arith.constant 0 : index
    %c0_37 = arith.constant 0 : index
    %14 = vector.load %arg2[%c0_35, %c0_36, %c0_37] : memref<1x128x64xbf16, #tpu.memory_space<vmem>>, vector<1x128x64xbf16>
    %15 = vector.shape_cast %14 : vector<1x128x64xbf16> to vector<128x64xbf16>
    %cst_38 = arith.constant dense<0.000000e+00> : vector<128x64xf32>
    %16 = tpu.matmul %13, %15, %cst_38 {dimension_numbers = #tpu.dot_dimension_numbers<[1], [0], [0], [1], [0, 0, 1, 1], [], []>} : vector<128x128xbf16>, vector<128x64xbf16>, vector<128x64xf32> -> vector<128x64xf32>
    %c0_39 = arith.constant 0 : index
    %c0_40 = arith.constant 0 : index
    %c0_41 = arith.constant 0 : index
    %17 = vector.load %arg3[%c0_39, %c0_40, %c0_41] : memref<1x1x64xf32, #tpu.memory_space<vmem>>, vector<1x1x64xf32>
    %18 = vector.shape_cast %17 : vector<1x1x64xf32> to vector<1x64xf32>
    %19 = vector.broadcast %18 : vector<1x64xf32> to vector<128x64xf32>
    %20 = arith.addf %16, %19 : vector<128x64xf32>
    %cst_42 = arith.constant 0.000000e+00 : f32
    %21 = vector.broadcast %cst_42 : f32 to vector<128x64xf32>
    %22 = arith.cmpf oge, %20, %21 : vector<128x64xf32>
    %cst_43 = arith.constant 5.000000e-01 : f32
    %23 = vector.broadcast %cst_43 : f32 to vector<128x64xf32>
    %24 = arith.mulf %23, %20 : vector<128x64xf32>
    %25 = arith.select %22, %20, %24 : vector<128x64xi1>, vector<128x64xf32>
    %26 = arith.truncf %25 : vector<128x64xf32> to vector<128x64xbf16>
    %27 = vector.shape_cast %26 : vector<128x64xbf16> to vector<2x8x8x64xbf16>
    %c0_44 = arith.constant 0 : index
    %c1 = arith.constant 1 : index
    %c1_45 = arith.constant 1 : index
    %c0_46 = arith.constant 0 : index
    %28 = vector.load %arg9[%c0_44, %c1, %c1_45, %c0_46] : memref<2x10x16x64xbf16, #tpu.memory_space<vmem>>, vector<2x8x8x64xbf16>
    tpu.vector_store %arg9[%c0_44, %c1, %c1_45, %c0_46], %27 {strides = array<i32>} : memref<2x10x16x64xbf16, #tpu.memory_space<vmem>>, vector<2x8x8x64xbf16>,
    %c0_47 = arith.constant 0 : index
    %c0_48 = arith.constant 0 : index
    %c0_49 = arith.constant 0 : index
    %c0_50 = arith.constant 0 : index
    %29 = vector.load %arg9[%c0_47, %c0_48, %c0_49, %c0_50] : memref<2x10x16x64xbf16, #tpu.memory_space<vmem>>, vector<2x8x8x64xbf16>
    %30 = vector.shape_cast %29 : vector<2x8x8x64xbf16> to vector<128x64xbf16>
    %c0_51 = arith.constant 0 : index
    %c0_52 = arith.constant 0 : index
    %c0_53 = arith.constant 0 : index
    %31 = vector.load %arg4[%c0_51, %c0_52, %c0_53] : memref<1x576x64xbf16, #tpu.memory_space<vmem>>, vector<1x64x64xbf16>
    %32 = vector.shape_cast %31 : vector<1x64x64xbf16> to vector<64x64xbf16>
    %cst_54 = arith.constant dense<0.000000e+00> : vector<128x64xf32>
    %33 = tpu.matmul %30, %32, %cst_54 {dimension_numbers = #tpu.dot_dimension_numbers<[1], [0], [0], [1], [0, 0, 1, 1], [], []>} : vector<128x64xbf16>, vector<64x64xbf16>, vector<128x64xf32> -> vector<128x64xf32>
    %c0_55 = arith.constant 0 : index
    %c0_56 = arith.constant 0 : index
    %c1_57 = arith.constant 1 : index
    %c0_58 = arith.constant 0 : index
    %34 = vector.load %arg9[%c0_55, %c0_56, %c1_57, %c0_58] : memref<2x10x16x64xbf16, #tpu.memory_space<vmem>>, vector<2x8x8x64xbf16>
    %35 = vector.shape_cast %34 : vector<2x8x8x64xbf16> to vector<128x64xbf16>
    %c0_59 = arith.constant 0 : index
    %c64 = arith.constant 64 : index
    %c0_60 = arith.constant 0 : index
    %36 = vector.load %arg4[%c0_59, %c64, %c0_60] : memref<1x576x64xbf16, #tpu.memory_space<vmem>>, vector<1x64x64xbf16>
    %37 = vector.shape_cast %36 : vector<1x64x64xbf16> to vector<64x64xbf16>
    %cst_61 = arith.constant dense<0.000000e+00> : vector<128x64xf32>
    %38 = tpu.matmul %35, %37, %cst_61 {dimension_numbers = #tpu.dot_dimension_numbers<[1], [0], [0], [1], [0, 0, 1, 1], [], []>} : vector<128x64xbf16>, vector<64x64xbf16>, vector<128x64xf32> -> vector<128x64xf32>
    %39 = arith.addf %33, %38 : vector<128x64xf32>
    %c0_62 = arith.constant 0 : index
    %c0_63 = arith.constant 0 : index
    %c2 = arith.constant 2 : index
    %c0_64 = arith.constant 0 : index
    %40 = vector.load %arg9[%c0_62, %c0_63, %c2, %c0_64] : memref<2x10x16x64xbf16, #tpu.memory_space<vmem>>, vector<2x8x8x64xbf16>
    %41 = vector.shape_cast %40 : vector<2x8x8x64xbf16> to vector<128x64xbf16>
    %c0_65 = arith.constant 0 : index
    %c128 = arith.constant 128 : index
    %c0_66 = arith.constant 0 : index
    %42 = vector.load %arg4[%c0_65, %c128, %c0_66] : memref<1x576x64xbf16, #tpu.memory_space<vmem>>, vector<1x64x64xbf16>
    %43 = vector.shape_cast %42 : vector<1x64x64xbf16> to vector<64x64xbf16>
    %cst_67 = arith.constant dense<0.000000e+00> : vector<128x64xf32>
    %44 = tpu.matmul %41, %43, %cst_67 {dimension_numbers = #tpu.dot_dimension_numbers<[1], [0], [0], [1], [0, 0, 1, 1], [], []>} : vector<128x64xbf16>, vector<64x64xbf16>, vector<128x64xf32> -> vector<128x64xf32>
    %45 = arith.addf %39, %44 : vector<128x64xf32>
    %c0_68 = arith.constant 0 : index
    %c1_69 = arith.constant 1 : index
    %c0_70 = arith.constant 0 : index
    %c0_71 = arith.constant 0 : index
    %46 = vector.load %arg9[%c0_68, %c1_69, %c0_70, %c0_71] : memref<2x10x16x64xbf16, #tpu.memory_space<vmem>>, vector<2x8x8x64xbf16>
    %47 = vector.shape_cast %46 : vector<2x8x8x64xbf16> to vector<128x64xbf16>
    %c0_72 = arith.constant 0 : index
    %c192 = arith.constant 192 : index
    %c0_73 = arith.constant 0 : index
    %48 = vector.load %arg4[%c0_72, %c192, %c0_73] : memref<1x576x64xbf16, #tpu.memory_space<vmem>>, vector<1x64x64xbf16>
    %49 = vector.shape_cast %48 : vector<1x64x64xbf16> to vector<64x64xbf16>
    %cst_74 = arith.constant dense<0.000000e+00> : vector<128x64xf32>
    %50 = tpu.matmul %47, %49, %cst_74 {dimension_numbers = #tpu.dot_dimension_numbers<[1], [0], [0], [1], [0, 0, 1, 1], [], []>} : vector<128x64xbf16>, vector<64x64xbf16>, vector<128x64xf32> -> vector<128x64xf32>
    %51 = arith.addf %45, %50 : vector<128x64xf32>
    %c0_75 = arith.constant 0 : index
    %c1_76 = arith.constant 1 : index
    %c1_77 = arith.constant 1 : index
    %c0_78 = arith.constant 0 : index
    %52 = vector.load %arg9[%c0_75, %c1_76, %c1_77, %c0_78] : memref<2x10x16x64xbf16, #tpu.memory_space<vmem>>, vector<2x8x8x64xbf16>
    %53 = vector.shape_cast %52 : vector<2x8x8x64xbf16> to vector<128x64xbf16>
    %c0_79 = arith.constant 0 : index
    %c256 = arith.constant 256 : index
    %c0_80 = arith.constant 0 : index
    %54 = vector.load %arg4[%c0_79, %c256, %c0_80] : memref<1x576x64xbf16, #tpu.memory_space<vmem>>, vector<1x64x64xbf16>
    %55 = vector.shape_cast %54 : vector<1x64x64xbf16> to vector<64x64xbf16>
    %cst_81 = arith.constant dense<0.000000e+00> : vector<128x64xf32>
    %56 = tpu.matmul %53, %55, %cst_81 {dimension_numbers = #tpu.dot_dimension_numbers<[1], [0], [0], [1], [0, 0, 1, 1], [], []>} : vector<128x64xbf16>, vector<64x64xbf16>, vector<128x64xf32> -> vector<128x64xf32>
    %57 = arith.addf %51, %56 : vector<128x64xf32>
    %c0_82 = arith.constant 0 : index
    %c1_83 = arith.constant 1 : index
    %c2_84 = arith.constant 2 : index
    %c0_85 = arith.constant 0 : index
    %58 = vector.load %arg9[%c0_82, %c1_83, %c2_84, %c0_85] : memref<2x10x16x64xbf16, #tpu.memory_space<vmem>>, vector<2x8x8x64xbf16>
    %59 = vector.shape_cast %58 : vector<2x8x8x64xbf16> to vector<128x64xbf16>
    %c0_86 = arith.constant 0 : index
    %c320 = arith.constant 320 : index
    %c0_87 = arith.constant 0 : index
    %60 = vector.load %arg4[%c0_86, %c320, %c0_87] : memref<1x576x64xbf16, #tpu.memory_space<vmem>>, vector<1x64x64xbf16>
    %61 = vector.shape_cast %60 : vector<1x64x64xbf16> to vector<64x64xbf16>
    %cst_88 = arith.constant dense<0.000000e+00> : vector<128x64xf32>
    %62 = tpu.matmul %59, %61, %cst_88 {dimension_numbers = #tpu.dot_dimension_numbers<[1], [0], [0], [1], [0, 0, 1, 1], [], []>} : vector<128x64xbf16>, vector<64x64xbf16>, vector<128x64xf32> -> vector<128x64xf32>
    %63 = arith.addf %57, %62 : vector<128x64xf32>
    %c0_89 = arith.constant 0 : index
    %c2_90 = arith.constant 2 : index
    %c0_91 = arith.constant 0 : index
    %c0_92 = arith.constant 0 : index
    %64 = vector.load %arg9[%c0_89, %c2_90, %c0_91, %c0_92] : memref<2x10x16x64xbf16, #tpu.memory_space<vmem>>, vector<2x8x8x64xbf16>
    %65 = vector.shape_cast %64 : vector<2x8x8x64xbf16> to vector<128x64xbf16>
    %c0_93 = arith.constant 0 : index
    %c384 = arith.constant 384 : index
    %c0_94 = arith.constant 0 : index
    %66 = vector.load %arg4[%c0_93, %c384, %c0_94] : memref<1x576x64xbf16, #tpu.memory_space<vmem>>, vector<1x64x64xbf16>
    %67 = vector.shape_cast %66 : vector<1x64x64xbf16> to vector<64x64xbf16>
    %cst_95 = arith.constant dense<0.000000e+00> : vector<128x64xf32>
    %68 = tpu.matmul %65, %67, %cst_95 {dimension_numbers = #tpu.dot_dimension_numbers<[1], [0], [0], [1], [0, 0, 1, 1], [], []>} : vector<128x64xbf16>, vector<64x64xbf16>, vector<128x64xf32> -> vector<128x64xf32>
    %69 = arith.addf %63, %68 : vector<128x64xf32>
    %c0_96 = arith.constant 0 : index
    %c2_97 = arith.constant 2 : index
    %c1_98 = arith.constant 1 : index
    %c0_99 = arith.constant 0 : index
    %70 = vector.load %arg9[%c0_96, %c2_97, %c1_98, %c0_99] : memref<2x10x16x64xbf16, #tpu.memory_space<vmem>>, vector<2x8x8x64xbf16>
    %71 = vector.shape_cast %70 : vector<2x8x8x64xbf16> to vector<128x64xbf16>
    %c0_100 = arith.constant 0 : index
    %c448 = arith.constant 448 : index
    %c0_101 = arith.constant 0 : index
    %72 = vector.load %arg4[%c0_100, %c448, %c0_101] : memref<1x576x64xbf16, #tpu.memory_space<vmem>>, vector<1x64x64xbf16>
    %73 = vector.shape_cast %72 : vector<1x64x64xbf16> to vector<64x64xbf16>
    %cst_102 = arith.constant dense<0.000000e+00> : vector<128x64xf32>
    %74 = tpu.matmul %71, %73, %cst_102 {dimension_numbers = #tpu.dot_dimension_numbers<[1], [0], [0], [1], [0, 0, 1, 1], [], []>} : vector<128x64xbf16>, vector<64x64xbf16>, vector<128x64xf32> -> vector<128x64xf32>
    %75 = arith.addf %69, %74 : vector<128x64xf32>
    %c0_103 = arith.constant 0 : index
    %c2_104 = arith.constant 2 : index
    %c2_105 = arith.constant 2 : index
    %c0_106 = arith.constant 0 : index
    %76 = vector.load %arg9[%c0_103, %c2_104, %c2_105, %c0_106] : memref<2x10x16x64xbf16, #tpu.memory_space<vmem>>, vector<2x8x8x64xbf16>
    %77 = vector.shape_cast %76 : vector<2x8x8x64xbf16> to vector<128x64xbf16>
    %c0_107 = arith.constant 0 : index
    %c512 = arith.constant 512 : index
    %c0_108 = arith.constant 0 : index
    %78 = vector.load %arg4[%c0_107, %c512, %c0_108] : memref<1x576x64xbf16, #tpu.memory_space<vmem>>, vector<1x64x64xbf16>
    %79 = vector.shape_cast %78 : vector<1x64x64xbf16> to vector<64x64xbf16>
    %cst_109 = arith.constant dense<0.000000e+00> : vector<128x64xf32>
    %80 = tpu.matmul %77, %79, %cst_109 {dimension_numbers = #tpu.dot_dimension_numbers<[1], [0], [0], [1], [0, 0, 1, 1], [], []>} : vector<128x64xbf16>, vector<64x64xbf16>, vector<128x64xf32> -> vector<128x64xf32>
    %81 = arith.addf %75, %80 : vector<128x64xf32>
    %c0_110 = arith.constant 0 : index
    %c0_111 = arith.constant 0 : index
    %c0_112 = arith.constant 0 : index
    %82 = vector.load %arg5[%c0_110, %c0_111, %c0_112] : memref<1x1x64xf32, #tpu.memory_space<vmem>>, vector<1x1x64xf32>
    %83 = vector.shape_cast %82 : vector<1x1x64xf32> to vector<1x64xf32>
    %84 = vector.broadcast %83 : vector<1x64xf32> to vector<128x64xf32>
    %85 = arith.addf %81, %84 : vector<128x64xf32>
    %cst_113 = arith.constant 0.000000e+00 : f32
    %86 = vector.broadcast %cst_113 : f32 to vector<128x64xf32>
    %87 = arith.cmpf oge, %85, %86 : vector<128x64xf32>
    %cst_114 = arith.constant 5.000000e-01 : f32
    %88 = vector.broadcast %cst_114 : f32 to vector<128x64xf32>
    %89 = arith.mulf %88, %85 : vector<128x64xf32>
    %90 = arith.select %87, %85, %89 : vector<128x64xi1>, vector<128x64xf32>
    %91 = vector.shape_cast %90 : vector<128x64xf32> to vector<64x2x64xf32>
    %92 = vector.extract_strided_slice %91 {offsets = [0, 0, 0], sizes = [64, 1, 64], strides = [1, 1, 1]} : vector<64x2x64xf32> to vector<64x1x64xf32>
    %93 = vector.shape_cast %92 : vector<64x1x64xf32> to vector<64x64xf32>
    %94 = vector.extract_strided_slice %91 {offsets = [0, 1, 0], sizes = [64, 1, 64], strides = [1, 1, 1]} : vector<64x2x64xf32> to vector<64x1x64xf32>
    %95 = vector.shape_cast %94 : vector<64x1x64xf32> to vector<64x64xf32>
    %96 = arith.maximumf %93, %95 : vector<64x64xf32>
    %97 = vector.shape_cast %96 : vector<64x64xf32> to vector<8x2x4x64xf32>
    %98 = vector.extract_strided_slice %97 {offsets = [0, 0, 0, 0], sizes = [8, 1, 4, 64], strides = [1, 1, 1, 1]} : vector<8x2x4x64xf32> to vector<8x1x4x64xf32>
    %99 = vector.shape_cast %98 : vector<8x1x4x64xf32> to vector<8x4x64xf32>
    %100 = vector.extract_strided_slice %97 {offsets = [0, 1, 0, 0], sizes = [8, 1, 4, 64], strides = [1, 1, 1, 1]} : vector<8x2x4x64xf32> to vector<8x1x4x64xf32>
    %101 = vector.shape_cast %100 : vector<8x1x4x64xf32> to vector<8x4x64xf32>
    %102 = arith.maximumf %99, %101 : vector<8x4x64xf32>
    %cst_115 = arith.constant 0.000000e+00 : f32
    %103 = vector.broadcast %cst_115 : f32 to vector<8x4x64xf32>
    %104 = arith.cmpf oge, %102, %103 : vector<8x4x64xf32>
    %cst_116 = arith.constant 5.000000e-01 : f32
    %105 = vector.broadcast %cst_116 : f32 to vector<8x4x64xf32>
    %106 = arith.mulf %105, %102 : vector<8x4x64xf32>
    %107 = arith.select %104, %102, %106 : vector<8x4x64xi1>, vector<8x4x64xf32>
    %108 = arith.truncf %107 : vector<8x4x64xf32> to vector<8x4x64xbf16>
    %109 = vector.shape_cast %108 : vector<8x4x64xbf16> to vector<2x4x4x64xbf16>
    %c0_117 = arith.constant 0 : index
    %c1_118 = arith.constant 1 : index
    %c1_119 = arith.constant 1 : index
    %c0_120 = arith.constant 0 : index
    %110 = vector.load %arg10[%c0_117, %c1_118, %c1_119, %c0_120] : memref<2x6x8x64xbf16, #tpu.memory_space<vmem>>, vector<2x4x4x64xbf16>
    tpu.vector_store %arg10[%c0_117, %c1_118, %c1_119, %c0_120], %109 {strides = array<i32>} : memref<2x6x8x64xbf16, #tpu.memory_space<vmem>>, vector<2x4x4x64xbf16>,
    %c0_121 = arith.constant 0 : index
    %c0_122 = arith.constant 0 : index
    %c0_123 = arith.constant 0 : index
    %c0_124 = arith.constant 0 : index
    %111 = vector.load %arg10[%c0_121, %c0_122, %c0_123, %c0_124] : memref<2x6x8x64xbf16, #tpu.memory_space<vmem>>, vector<2x4x4x64xbf16>
    %112 = vector.shape_cast %111 : vector<2x4x4x64xbf16> to vector<32x64xbf16>
    %c0_125 = arith.constant 0 : index
    %c0_126 = arith.constant 0 : index
    %c0_127 = arith.constant 0 : index
    %113 = vector.load %arg6[%c0_125, %c0_126, %c0_127] : memref<1x576x128xbf16, #tpu.memory_space<vmem>>, vector<1x64x128xbf16>
    %114 = vector.shape_cast %113 : vector<1x64x128xbf16> to vector<64x128xbf16>
    %cst_128 = arith.constant dense<0.000000e+00> : vector<32x128xf32>
    %115 = tpu.matmul %112, %114, %cst_128 {dimension_numbers = #tpu.dot_dimension_numbers<[1], [0], [0], [1], [0, 0, 1, 1], [], []>} : vector<32x64xbf16>, vector<64x128xbf16>, vector<32x128xf32> -> vector<32x128xf32>
    %c0_129 = arith.constant 0 : index
    %c0_130 = arith.constant 0 : index
    %c1_131 = arith.constant 1 : index
    %c0_132 = arith.constant 0 : index
    %116 = vector.load %arg10[%c0_129, %c0_130, %c1_131, %c0_132] : memref<2x6x8x64xbf16, #tpu.memory_space<vmem>>, vector<2x4x4x64xbf16>
    %117 = vector.shape_cast %116 : vector<2x4x4x64xbf16> to vector<32x64xbf16>
    %c0_133 = arith.constant 0 : index
    %c64_134 = arith.constant 64 : index
    %c0_135 = arith.constant 0 : index
    %118 = vector.load %arg6[%c0_133, %c64_134, %c0_135] : memref<1x576x128xbf16, #tpu.memory_space<vmem>>, vector<1x64x128xbf16>
    %119 = vector.shape_cast %118 : vector<1x64x128xbf16> to vector<64x128xbf16>
    %cst_136 = arith.constant dense<0.000000e+00> : vector<32x128xf32>
    %120 = tpu.matmul %117, %119, %cst_136 {dimension_numbers = #tpu.dot_dimension_numbers<[1], [0], [0], [1], [0, 0, 1, 1], [], []>} : vector<32x64xbf16>, vector<64x128xbf16>, vector<32x128xf32> -> vector<32x128xf32>
    %121 = arith.addf %115, %120 : vector<32x128xf32>
    %c0_137 = arith.constant 0 : index
    %c0_138 = arith.constant 0 : index
    %c2_139 = arith.constant 2 : index
    %c0_140 = arith.constant 0 : index
    %122 = vector.load %arg10[%c0_137, %c0_138, %c2_139, %c0_140] : memref<2x6x8x64xbf16, #tpu.memory_space<vmem>>, vector<2x4x4x64xbf16>
    %123 = vector.shape_cast %122 : vector<2x4x4x64xbf16> to vector<32x64xbf16>
    %c0_141 = arith.constant 0 : index
    %c128_142 = arith.constant 128 : index
    %c0_143 = arith.constant 0 : index
    %124 = vector.load %arg6[%c0_141, %c128_142, %c0_143] : memref<1x576x128xbf16, #tpu.memory_space<vmem>>, vector<1x64x128xbf16>
    %125 = vector.shape_cast %124 : vector<1x64x128xbf16> to vector<64x128xbf16>
    %cst_144 = arith.constant dense<0.000000e+00> : vector<32x128xf32>
    %126 = tpu.matmul %123, %125, %cst_144 {dimension_numbers = #tpu.dot_dimension_numbers<[1], [0], [0], [1], [0, 0, 1, 1], [], []>} : vector<32x64xbf16>, vector<64x128xbf16>, vector<32x128xf32> -> vector<32x128xf32>
    %127 = arith.addf %121, %126 : vector<32x128xf32>
    %c0_145 = arith.constant 0 : index
    %c1_146 = arith.constant 1 : index
    %c0_147 = arith.constant 0 : index
    %c0_148 = arith.constant 0 : index
    %128 = vector.load %arg10[%c0_145, %c1_146, %c0_147, %c0_148] : memref<2x6x8x64xbf16, #tpu.memory_space<vmem>>, vector<2x4x4x64xbf16>
    %129 = vector.shape_cast %128 : vector<2x4x4x64xbf16> to vector<32x64xbf16>
    %c0_149 = arith.constant 0 : index
    %c192_150 = arith.constant 192 : index
    %c0_151 = arith.constant 0 : index
    %130 = vector.load %arg6[%c0_149, %c192_150, %c0_151] : memref<1x576x128xbf16, #tpu.memory_space<vmem>>, vector<1x64x128xbf16>
    %131 = vector.shape_cast %130 : vector<1x64x128xbf16> to vector<64x128xbf16>
    %cst_152 = arith.constant dense<0.000000e+00> : vector<32x128xf32>
    %132 = tpu.matmul %129, %131, %cst_152 {dimension_numbers = #tpu.dot_dimension_numbers<[1], [0], [0], [1], [0, 0, 1, 1], [], []>} : vector<32x64xbf16>, vector<64x128xbf16>, vector<32x128xf32> -> vector<32x128xf32>
    %133 = arith.addf %127, %132 : vector<32x128xf32>
    %c0_153 = arith.constant 0 : index
    %c1_154 = arith.constant 1 : index
    %c1_155 = arith.constant 1 : index
    %c0_156 = arith.constant 0 : index
    %134 = vector.load %arg10[%c0_153, %c1_154, %c1_155, %c0_156] : memref<2x6x8x64xbf16, #tpu.memory_space<vmem>>, vector<2x4x4x64xbf16>
    %135 = vector.shape_cast %134 : vector<2x4x4x64xbf16> to vector<32x64xbf16>
    %c0_157 = arith.constant 0 : index
    %c256_158 = arith.constant 256 : index
    %c0_159 = arith.constant 0 : index
    %136 = vector.load %arg6[%c0_157, %c256_158, %c0_159] : memref<1x576x128xbf16, #tpu.memory_space<vmem>>, vector<1x64x128xbf16>
    %137 = vector.shape_cast %136 : vector<1x64x128xbf16> to vector<64x128xbf16>
    %cst_160 = arith.constant dense<0.000000e+00> : vector<32x128xf32>
    %138 = tpu.matmul %135, %137, %cst_160 {dimension_numbers = #tpu.dot_dimension_numbers<[1], [0], [0], [1], [0, 0, 1, 1], [], []>} : vector<32x64xbf16>, vector<64x128xbf16>, vector<32x128xf32> -> vector<32x128xf32>
    %139 = arith.addf %133, %138 : vector<32x128xf32>
    %c0_161 = arith.constant 0 : index
    %c1_162 = arith.constant 1 : index
    %c2_163 = arith.constant 2 : index
    %c0_164 = arith.constant 0 : index
    %140 = vector.load %arg10[%c0_161, %c1_162, %c2_163, %c0_164] : memref<2x6x8x64xbf16, #tpu.memory_space<vmem>>, vector<2x4x4x64xbf16>
    %141 = vector.shape_cast %140 : vector<2x4x4x64xbf16> to vector<32x64xbf16>
    %c0_165 = arith.constant 0 : index
    %c320_166 = arith.constant 320 : index
    %c0_167 = arith.constant 0 : index
    %142 = vector.load %arg6[%c0_165, %c320_166, %c0_167] : memref<1x576x128xbf16, #tpu.memory_space<vmem>>, vector<1x64x128xbf16>
    %143 = vector.shape_cast %142 : vector<1x64x128xbf16> to vector<64x128xbf16>
    %cst_168 = arith.constant dense<0.000000e+00> : vector<32x128xf32>
    %144 = tpu.matmul %141, %143, %cst_168 {dimension_numbers = #tpu.dot_dimension_numbers<[1], [0], [0], [1], [0, 0, 1, 1], [], []>} : vector<32x64xbf16>, vector<64x128xbf16>, vector<32x128xf32> -> vector<32x128xf32>
    %145 = arith.addf %139, %144 : vector<32x128xf32>
    %c0_169 = arith.constant 0 : index
    %c2_170 = arith.constant 2 : index
    %c0_171 = arith.constant 0 : index
    %c0_172 = arith.constant 0 : index
    %146 = vector.load %arg10[%c0_169, %c2_170, %c0_171, %c0_172] : memref<2x6x8x64xbf16, #tpu.memory_space<vmem>>, vector<2x4x4x64xbf16>
    %147 = vector.shape_cast %146 : vector<2x4x4x64xbf16> to vector<32x64xbf16>
    %c0_173 = arith.constant 0 : index
    %c384_174 = arith.constant 384 : index
    %c0_175 = arith.constant 0 : index
    %148 = vector.load %arg6[%c0_173, %c384_174, %c0_175] : memref<1x576x128xbf16, #tpu.memory_space<vmem>>, vector<1x64x128xbf16>
    %149 = vector.shape_cast %148 : vector<1x64x128xbf16> to vector<64x128xbf16>
    %cst_176 = arith.constant dense<0.000000e+00> : vector<32x128xf32>
    %150 = tpu.matmul %147, %149, %cst_176 {dimension_numbers = #tpu.dot_dimension_numbers<[1], [0], [0], [1], [0, 0, 1, 1], [], []>} : vector<32x64xbf16>, vector<64x128xbf16>, vector<32x128xf32> -> vector<32x128xf32>
    %151 = arith.addf %145, %150 : vector<32x128xf32>
    %c0_177 = arith.constant 0 : index
    %c2_178 = arith.constant 2 : index
    %c1_179 = arith.constant 1 : index
    %c0_180 = arith.constant 0 : index
    %152 = vector.load %arg10[%c0_177, %c2_178, %c1_179, %c0_180] : memref<2x6x8x64xbf16, #tpu.memory_space<vmem>>, vector<2x4x4x64xbf16>
    %153 = vector.shape_cast %152 : vector<2x4x4x64xbf16> to vector<32x64xbf16>
    %c0_181 = arith.constant 0 : index
    %c448_182 = arith.constant 448 : index
    %c0_183 = arith.constant 0 : index
    %154 = vector.load %arg6[%c0_181, %c448_182, %c0_183] : memref<1x576x128xbf16, #tpu.memory_space<vmem>>, vector<1x64x128xbf16>
    %155 = vector.shape_cast %154 : vector<1x64x128xbf16> to vector<64x128xbf16>
    %cst_184 = arith.constant dense<0.000000e+00> : vector<32x128xf32>
    %156 = tpu.matmul %153, %155, %cst_184 {dimension_numbers = #tpu.dot_dimension_numbers<[1], [0], [0], [1], [0, 0, 1, 1], [], []>} : vector<32x64xbf16>, vector<64x128xbf16>, vector<32x128xf32> -> vector<32x128xf32>
    %157 = arith.addf %151, %156 : vector<32x128xf32>
    %c0_185 = arith.constant 0 : index
    %c2_186 = arith.constant 2 : index
    %c2_187 = arith.constant 2 : index
    %c0_188 = arith.constant 0 : index
    %158 = vector.load %arg10[%c0_185, %c2_186, %c2_187, %c0_188] : memref<2x6x8x64xbf16, #tpu.memory_space<vmem>>, vector<2x4x4x64xbf16>
    %159 = vector.shape_cast %158 : vector<2x4x4x64xbf16> to vector<32x64xbf16>
    %c0_189 = arith.constant 0 : index
    %c512_190 = arith.constant 512 : index
    %c0_191 = arith.constant 0 : index
    %160 = vector.load %arg6[%c0_189, %c512_190, %c0_191] : memref<1x576x128xbf16, #tpu.memory_space<vmem>>, vector<1x64x128xbf16>
    %161 = vector.shape_cast %160 : vector<1x64x128xbf16> to vector<64x128xbf16>
    %cst_192 = arith.constant dense<0.000000e+00> : vector<32x128xf32>
    %162 = tpu.matmul %159, %161, %cst_192 {dimension_numbers = #tpu.dot_dimension_numbers<[1], [0], [0], [1], [0, 0, 1, 1], [], []>} : vector<32x64xbf16>, vector<64x128xbf16>, vector<32x128xf32> -> vector<32x128xf32>
    %163 = arith.addf %157, %162 : vector<32x128xf32>
    %c0_193 = arith.constant 0 : index
    %c0_194 = arith.constant 0 : index
    %c0_195 = arith.constant 0 : index
    %164 = vector.load %arg7[%c0_193, %c0_194, %c0_195] : memref<1x1x128xf32, #tpu.memory_space<vmem>>, vector<1x1x128xf32>
    %165 = vector.shape_cast %164 : vector<1x1x128xf32> to vector<1x128xf32>
    %166 = vector.broadcast %165 : vector<1x128xf32> to vector<32x128xf32>
    %167 = arith.addf %163, %166 : vector<32x128xf32>
    %cst_196 = arith.constant 0.000000e+00 : f32
    %168 = vector.broadcast %cst_196 : f32 to vector<32x128xf32>
    %169 = arith.cmpf oge, %167, %168 : vector<32x128xf32>
    %cst_197 = arith.constant 5.000000e-01 : f32
    %170 = vector.broadcast %cst_197 : f32 to vector<32x128xf32>
    %171 = arith.mulf %170, %167 : vector<32x128xf32>
    %172 = arith.select %169, %167, %171 : vector<32x128xi1>, vector<32x128xf32>
    %173 = vector.shape_cast %172 : vector<32x128xf32> to vector<2x4x4x128xf32>
    %174 = vector.extract_strided_slice %173 {offsets = [0, 0, 0, 0], sizes = [2, 4, 1, 128], strides = [1, 1, 1, 1]} : vector<2x4x4x128xf32> to vector<2x4x1x128xf32>
    %175 = vector.shape_cast %174 : vector<2x4x1x128xf32> to vector<2x4x128xf32>
    %c0_198 = arith.constant 0 : index
    %c0_199 = arith.constant 0 : index
    %c0_200 = arith.constant 0 : index
    %c0_201 = arith.constant 0 : index
    %176 = vector.load %arg8[%c0_198, %c0_199, %c0_200, %c0_201] : memref<1x6x4x128xf32, #tpu.memory_space<vmem>>, vector<1x2x4x128xf32>
    %177 = vector.shape_cast %176 : vector<1x2x4x128xf32> to vector<2x4x128xf32>
    %178 = vector.shape_cast %175 : vector<2x4x128xf32> to vector<1x2x4x128xf32>
    tpu.vector_store %arg8[%c0_198, %c0_199, %c0_200, %c0_201], %178 {strides = array<i32>} : memref<1x6x4x128xf32, #tpu.memory_space<vmem>>, vector<1x2x4x128xf32>,
    %179 = vector.extract_strided_slice %173 {offsets = [0, 0, 1, 0], sizes = [2, 4, 1, 128], strides = [1, 1, 1, 1]} : vector<2x4x4x128xf32> to vector<2x4x1x128xf32>
    %180 = vector.shape_cast %179 : vector<2x4x1x128xf32> to vector<2x4x128xf32>
    %c0_202 = arith.constant 0 : index
    %c2_203 = arith.constant 2 : index
    %c0_204 = arith.constant 0 : index
    %c0_205 = arith.constant 0 : index
    %181 = vector.load %arg8[%c0_202, %c2_203, %c0_204, %c0_205] : memref<1x6x4x128xf32, #tpu.memory_space<vmem>>, vector<1x2x4x128xf32>
    %182 = vector.shape_cast %181 : vector<1x2x4x128xf32> to vector<2x4x128xf32>
    %183 = vector.shape_cast %180 : vector<2x4x128xf32> to vector<1x2x4x128xf32>
    tpu.vector_store %arg8[%c0_202, %c2_203, %c0_204, %c0_205], %183 {strides = array<i32>} : memref<1x6x4x128xf32, #tpu.memory_space<vmem>>, vector<1x2x4x128xf32>,
    %184 = vector.extract_strided_slice %173 {offsets = [0, 0, 2, 0], sizes = [2, 4, 1, 128], strides = [1, 1, 1, 1]} : vector<2x4x4x128xf32> to vector<2x4x1x128xf32>
    %185 = vector.shape_cast %184 : vector<2x4x1x128xf32> to vector<2x4x128xf32>
    %c0_206 = arith.constant 0 : index
    %c4 = arith.constant 4 : index
    %c0_207 = arith.constant 0 : index
    %c0_208 = arith.constant 0 : index
    %186 = vector.load %arg8[%c0_206, %c4, %c0_207, %c0_208] : memref<1x6x4x128xf32, #tpu.memory_space<vmem>>, vector<1x2x4x128xf32>
    %187 = vector.shape_cast %186 : vector<1x2x4x128xf32> to vector<2x4x128xf32>
    %188 = vector.shape_cast %185 : vector<2x4x128xf32> to vector<1x2x4x128xf32>
    tpu.vector_store %arg8[%c0_206, %c4, %c0_207, %c0_208], %188 {strides = array<i32>} : memref<1x6x4x128xf32, #tpu.memory_space<vmem>>, vector<1x2x4x128xf32>,
    return
  }
  func.func @transform_0(%arg0: i32) -> (i32, i32, i32) {
    %c0_i32 = arith.constant 0 : i32
    %c0_i32_0 = arith.constant 0 : i32
    %c0_i32_1 = arith.constant 0 : i32
    return %arg0, %c0_i32, %c0_i32_0 : i32, i32, i32
  }
  func.func @transform_1(%arg0: i32) -> (i32, i32, i32) {
    %c0_i32 = arith.constant 0 : i32
    %c0_i32_0 = arith.constant 0 : i32
    %c0_i32_1 = arith.constant 0 : i32
    return %arg0, %c0_i32, %c0_i32_0 : i32, i32, i32
  }
  func.func @transform_2(%arg0: i32) -> (i32, i32, i32) {
    %c0_i32 = arith.constant 0 : i32
    %c0_i32_0 = arith.constant 0 : i32
    %c0_i32_1 = arith.constant 0 : i32
    return %arg0, %c0_i32, %c0_i32_0 : i32, i32, i32
  }
  func.func @transform_3(%arg0: i32) -> (i32, i32, i32) {
    %c0_i32 = arith.constant 0 : i32
    %c0_i32_0 = arith.constant 0 : i32
    %c0_i32_1 = arith.constant 0 : i32
    return %arg0, %c0_i32, %c0_i32_0 : i32, i32, i32
  }
  func.func @transform_4(%arg0: i32) -> (i32, i32, i32) {
    %c0_i32 = arith.constant 0 : i32
    %c0_i32_0 = arith.constant 0 : i32
    %c0_i32_1 = arith.constant 0 : i32
    return %arg0, %c0_i32, %c0_i32_0 : i32, i32, i32
  }
  func.func @transform_5(%arg0: i32) -> (i32, i32, i32) {
    %c0_i32 = arith.constant 0 : i32
    %c0_i32_0 = arith.constant 0 : i32
    %c0_i32_1 = arith.constant 0 : i32
    return %arg0, %c0_i32, %c0_i32_0 : i32, i32, i32
  }
  func.func @transform_6(%arg0: i32) -> (i32, i32, i32) {
    %c0_i32 = arith.constant 0 : i32
    %c0_i32_0 = arith.constant 0 : i32
    %c0_i32_1 = arith.constant 0 : i32
    return %arg0, %c0_i32, %c0_i32_0 : i32, i32, i32
  }
  func.func @transform_7(%arg0: i32) -> (i32, i32, i32, i32) {
    %c0_i32 = arith.constant 0 : i32
    %c0_i32_0 = arith.constant 0 : i32
    %c0_i32_1 = arith.constant 0 : i32
    %c0_i32_2 = arith.constant 0 : i32
    return %arg0, %c0_i32, %c0_i32_0, %c0_i32_1 : i32, i32, i32, i32
  }
}

module attributes {stable_mosaic.version = 11 : i64} {
  func.func @kernel(%arg0: i32, %arg1: memref<2x6x4x128xf32, #tpu.memory_space<vmem>>, %arg2: memref<2x9x128xf32, #tpu.memory_space<vmem>>, %arg3: memref<128x128xbf16, #tpu.memory_space<vmem>>, %arg4: memref<128x128xf32, #tpu.memory_space<vmem>>, %arg5: memref<1x128xf32, #tpu.memory_space<vmem>>, %arg6: memref<2x128xf32, #tpu.memory_space<vmem>>) attributes {dimension_semantics = [#tpu.dimension_semantics<arbitrary>], iteration_bounds = array<i64: 1>, scalar_prefetch = 0 : i64, scratch_operands = 0 : i64, tpu.core_type = #tpu.core_type<tc>, window_params = [{pipeline_mode = #tpu.pipeline_mode<synchronous>, transform_indices = @transform_0, window_bounds = array<i64: 2, 6, 4, 128>}, {pipeline_mode = #tpu.pipeline_mode<synchronous>, transform_indices = @transform_1, window_bounds = array<i64: 2, 9, 128>}, {pipeline_mode = #tpu.pipeline_mode<synchronous>, transform_indices = @transform_2, window_bounds = array<i64: 128, 128>}, {pipeline_mode = #tpu.pipeline_mode<synchronous>, transform_indices = @transform_3, window_bounds = array<i64: 128, 128>}, {pipeline_mode = #tpu.pipeline_mode<synchronous>, transform_indices = @transform_4, window_bounds = array<i64: 1, 128>}, {pipeline_mode = #tpu.pipeline_mode<synchronous>, transform_indices = @transform_5, window_bounds = array<i64: 2, 128>}]} {
    %c0 = arith.constant 0 : index
    %c0_0 = arith.constant 0 : index
    %c0_1 = arith.constant 0 : index
    %0 = vector.load %arg2[%c0, %c0_0, %c0_1] : memref<2x9x128xf32, #tpu.memory_space<vmem>>, vector<2x9x128xf32>
    %1 = arith.cmpf one, %0, %0 : vector<2x9x128xf32>
    %cst = arith.constant 1.000000e-07 : f32
    %2 = vector.broadcast %cst : f32 to vector<2x9x128xf32>
    %3 = arith.select %1, %2, %0 : vector<2x9x128xi1>, vector<2x9x128xf32>
    %4 = vector.shape_cast %3 : vector<2x9x128xf32> to vector<18x128xf32>
    %5 = arith.truncf %4 : vector<18x128xf32> to vector<18x128xbf16>
    %c0_2 = arith.constant 0 : index
    %c0_3 = arith.constant 0 : index
    %6 = vector.load %arg3[%c0_2, %c0_3] : memref<128x128xbf16, #tpu.memory_space<vmem>>, vector<128x128xbf16>
    %cst_4 = arith.constant dense<0.000000e+00> : vector<18x128xf32>
    %7 = tpu.matmul %5, %6, %cst_4 {dimension_numbers = #tpu.dot_dimension_numbers<[1], [0], [0], [1], [0, 0, 1, 1], [], []>} : vector<18x128xbf16>, vector<128x128xbf16>, vector<18x128xf32> -> vector<18x128xf32>
    %c0_5 = arith.constant 0 : index
    %c0_6 = arith.constant 0 : index
    %c0_7 = arith.constant 0 : index
    %c0_8 = arith.constant 0 : index
    %8 = vector.load %arg1[%c0_5, %c0_6, %c0_7, %c0_8] : memref<2x6x4x128xf32, #tpu.memory_space<vmem>>, vector<1x1x4x128xf32>
    %9 = vector.shape_cast %8 : vector<1x1x4x128xf32> to vector<4x128xf32>
    %c0_9 = arith.constant 0 : index
    %c2 = arith.constant 2 : index
    %c0_10 = arith.constant 0 : index
    %c0_11 = arith.constant 0 : index
    %10 = vector.load %arg1[%c0_9, %c2, %c0_10, %c0_11] : memref<2x6x4x128xf32, #tpu.memory_space<vmem>>, vector<1x1x4x128xf32>
    %11 = vector.shape_cast %10 : vector<1x1x4x128xf32> to vector<4x128xf32>
    %c0_12 = arith.constant 0 : index
    %c4 = arith.constant 4 : index
    %c0_13 = arith.constant 0 : index
    %c0_14 = arith.constant 0 : index
    %12 = vector.load %arg1[%c0_12, %c4, %c0_13, %c0_14] : memref<2x6x4x128xf32, #tpu.memory_space<vmem>>, vector<1x1x4x128xf32>
    %13 = vector.shape_cast %12 : vector<1x1x4x128xf32> to vector<4x128xf32>
    %c1 = arith.constant 1 : index
    %c0_15 = arith.constant 0 : index
    %c0_16 = arith.constant 0 : index
    %c0_17 = arith.constant 0 : index
    %14 = vector.load %arg1[%c1, %c0_15, %c0_16, %c0_17] : memref<2x6x4x128xf32, #tpu.memory_space<vmem>>, vector<1x1x4x128xf32>
    %15 = vector.shape_cast %14 : vector<1x1x4x128xf32> to vector<4x128xf32>
    %c1_18 = arith.constant 1 : index
    %c2_19 = arith.constant 2 : index
    %c0_20 = arith.constant 0 : index
    %c0_21 = arith.constant 0 : index
    %16 = vector.load %arg1[%c1_18, %c2_19, %c0_20, %c0_21] : memref<2x6x4x128xf32, #tpu.memory_space<vmem>>, vector<1x1x4x128xf32>
    %17 = vector.shape_cast %16 : vector<1x1x4x128xf32> to vector<4x128xf32>
    %c1_22 = arith.constant 1 : index
    %c4_23 = arith.constant 4 : index
    %c0_24 = arith.constant 0 : index
    %c0_25 = arith.constant 0 : index
    %18 = vector.load %arg1[%c1_22, %c4_23, %c0_24, %c0_25] : memref<2x6x4x128xf32, #tpu.memory_space<vmem>>, vector<1x1x4x128xf32>
    %19 = vector.shape_cast %18 : vector<1x1x4x128xf32> to vector<4x128xf32>
    %20 = arith.mulf %9, %15 : vector<4x128xf32>
    %cst_26 = arith.constant dense<0.000000e+00> : vector<128xf32>
    %21 = vector.multi_reduction <add>, %20, %cst_26 [0] : vector<4x128xf32> to vector<128xf32>
    %22 = vector.shape_cast %21 : vector<128xf32> to vector<1x128xf32>
    %23 = arith.mulf %9, %17 : vector<4x128xf32>
    %cst_27 = arith.constant dense<0.000000e+00> : vector<128xf32>
    %24 = vector.multi_reduction <add>, %23, %cst_27 [0] : vector<4x128xf32> to vector<128xf32>
    %25 = vector.shape_cast %24 : vector<128xf32> to vector<1x128xf32>
    %26 = arith.mulf %9, %19 : vector<4x128xf32>
    %cst_28 = arith.constant dense<0.000000e+00> : vector<128xf32>
    %27 = vector.multi_reduction <add>, %26, %cst_28 [0] : vector<4x128xf32> to vector<128xf32>
    %28 = vector.shape_cast %27 : vector<128xf32> to vector<1x128xf32>
    %29 = arith.mulf %11, %15 : vector<4x128xf32>
    %cst_29 = arith.constant dense<0.000000e+00> : vector<128xf32>
    %30 = vector.multi_reduction <add>, %29, %cst_29 [0] : vector<4x128xf32> to vector<128xf32>
    %31 = vector.shape_cast %30 : vector<128xf32> to vector<1x128xf32>
    %32 = arith.mulf %11, %17 : vector<4x128xf32>
    %cst_30 = arith.constant dense<0.000000e+00> : vector<128xf32>
    %33 = vector.multi_reduction <add>, %32, %cst_30 [0] : vector<4x128xf32> to vector<128xf32>
    %34 = vector.shape_cast %33 : vector<128xf32> to vector<1x128xf32>
    %35 = arith.mulf %11, %19 : vector<4x128xf32>
    %cst_31 = arith.constant dense<0.000000e+00> : vector<128xf32>
    %36 = vector.multi_reduction <add>, %35, %cst_31 [0] : vector<4x128xf32> to vector<128xf32>
    %37 = vector.shape_cast %36 : vector<128xf32> to vector<1x128xf32>
    %38 = arith.mulf %13, %15 : vector<4x128xf32>
    %cst_32 = arith.constant dense<0.000000e+00> : vector<128xf32>
    %39 = vector.multi_reduction <add>, %38, %cst_32 [0] : vector<4x128xf32> to vector<128xf32>
    %40 = vector.shape_cast %39 : vector<128xf32> to vector<1x128xf32>
    %41 = arith.mulf %13, %17 : vector<4x128xf32>
    %cst_33 = arith.constant dense<0.000000e+00> : vector<128xf32>
    %42 = vector.multi_reduction <add>, %41, %cst_33 [0] : vector<4x128xf32> to vector<128xf32>
    %43 = vector.shape_cast %42 : vector<128xf32> to vector<1x128xf32>
    %44 = arith.mulf %13, %19 : vector<4x128xf32>
    %cst_34 = arith.constant dense<0.000000e+00> : vector<128xf32>
    %45 = vector.multi_reduction <add>, %44, %cst_34 [0] : vector<4x128xf32> to vector<128xf32>
    %46 = vector.shape_cast %45 : vector<128xf32> to vector<1x128xf32>
    %47 = tpu.concatenate %22, %25, %28, %31, %34, %37, %40, %43, %46 in 0 : vector<1x128xf32>, vector<1x128xf32>, vector<1x128xf32>, vector<1x128xf32>, vector<1x128xf32>, vector<1x128xf32>, vector<1x128xf32>, vector<1x128xf32>, vector<1x128xf32> -> vector<9x128xf32>
    %48 = vector.extract_strided_slice %3 {offsets = [0, 0, 0], sizes = [1, 9, 128], strides = [1, 1, 1]} : vector<2x9x128xf32> to vector<1x9x128xf32>
    %49 = vector.shape_cast %48 : vector<1x9x128xf32> to vector<9x128xf32>
    %50 = vector.extract_strided_slice %7 {offsets = [0, 0], sizes = [9, 128], strides = [1, 1]} : vector<18x128xf32> to vector<9x128xf32>
    %cst_35 = arith.constant dense<0.000000e+00> : vector<9x9xf32>
    %51 = tpu.matmul %50, %47, %cst_35 {dimension_numbers = #tpu.dot_dimension_numbers<[1], [1], [0], [0], [0, 0, 1, 0], [], []>} : vector<9x128xf32>, vector<9x128xf32>, vector<9x9xf32> -> vector<9x9xf32>
    %cst_36 = arith.constant dense<0xFF800000> : vector<9xf32>
    %52 = vector.multi_reduction <maximumf>, %51, %cst_36 [1] : vector<9x9xf32> to vector<9xf32>
    %53 = vector.shape_cast %52 : vector<9xf32> to vector<9x1xf32>
    %54 = vector.broadcast %53 : vector<9x1xf32> to vector<9x9xf32>
    %55 = arith.subf %51, %54 : vector<9x9xf32>
    %56 = math.exp %55 : vector<9x9xf32>
    %cst_37 = arith.constant dense<0.000000e+00> : vector<9xf32>
    %57 = vector.multi_reduction <add>, %56, %cst_37 [1] : vector<9x9xf32> to vector<9xf32>
    %58 = vector.shape_cast %57 : vector<9xf32> to vector<9x1xf32>
    %59 = vector.broadcast %58 : vector<9x1xf32> to vector<9x9xf32>
    %60 = arith.divf %56, %59 : vector<9x9xf32>
    %cst_38 = arith.constant dense<0.000000e+00> : vector<9x128xf32>
    %61 = tpu.matmul %60, %49, %cst_38 {dimension_numbers = #tpu.dot_dimension_numbers<[0], [0], [1], [1], [0, 1, 1, 1], [], []>} : vector<9x9xf32>, vector<9x128xf32>, vector<9x128xf32> -> vector<9x128xf32>
    %62 = arith.cmpf one, %61, %61 : vector<9x128xf32>
    %cst_39 = arith.constant 0.000000e+00 : f32
    %63 = vector.broadcast %cst_39 : f32 to vector<9x128xf32>
    %64 = arith.select %62, %63, %61 : vector<9x128xi1>, vector<9x128xf32>
    %65 = arith.addf %47, %64 : vector<9x128xf32>
    %66 = vector.extract_strided_slice %65 {offsets = [0, 0], sizes = [1, 128], strides = [1, 1]} : vector<9x128xf32> to vector<1x128xf32>
    %67 = vector.extract_strided_slice %65 {offsets = [1, 0], sizes = [1, 128], strides = [1, 1]} : vector<9x128xf32> to vector<1x128xf32>
    %68 = arith.maximumf %66, %67 : vector<1x128xf32>
    %69 = vector.extract_strided_slice %65 {offsets = [3, 0], sizes = [1, 128], strides = [1, 1]} : vector<9x128xf32> to vector<1x128xf32>
    %70 = vector.extract_strided_slice %65 {offsets = [4, 0], sizes = [1, 128], strides = [1, 1]} : vector<9x128xf32> to vector<1x128xf32>
    %71 = arith.maximumf %69, %70 : vector<1x128xf32>
    %72 = arith.maximumf %68, %71 : vector<1x128xf32>
    %cst_40 = arith.constant 0.000000e+00 : f32
    %73 = vector.broadcast %cst_40 : f32 to vector<1x128xf32>
    %74 = arith.cmpf oge, %72, %73 : vector<1x128xf32>
    %cst_41 = arith.constant 0.00999999977 : f32
    %75 = vector.broadcast %cst_41 : f32 to vector<1x128xf32>
    %76 = arith.mulf %75, %72 : vector<1x128xf32>
    %77 = arith.select %74, %72, %76 : vector<1x128xi1>, vector<1x128xf32>
    %cst_42 = arith.constant 0.000000e+00 : f32
    %78 = vector.broadcast %cst_42 : f32 to vector<1x128xf32>
    %79 = arith.cmpf olt, %77, %78 : vector<1x128xf32>
    %cst_43 = arith.constant -1.000000e+00 : f32
    %cst_44 = arith.constant 1.000000e+00 : f32
    %80 = vector.broadcast %cst_43 : f32 to vector<1x128xf32>
    %81 = vector.broadcast %cst_44 : f32 to vector<1x128xf32>
    %82 = arith.select %79, %80, %81 : vector<1x128xi1>, vector<1x128xf32>
    %83 = math.absf %77 : vector<1x128xf32>
    %84 = math.sqrt %83 : vector<1x128xf32>
    %85 = arith.mulf %82, %84 : vector<1x128xf32>
    %cst_45 = arith.constant 1.000000e-07 : f32
    %86 = vector.broadcast %cst_45 : f32 to vector<1x128xf32>
    %87 = arith.addf %85, %86 : vector<1x128xf32>
    %88 = arith.mulf %87, %87 : vector<1x128xf32>
    %cst_46 = arith.constant dense<0.000000e+00> : vector<1xf32>
    %89 = vector.multi_reduction <add>, %88, %cst_46 [1] : vector<1x128xf32> to vector<1xf32>
    %90 = vector.shape_cast %89 : vector<1xf32> to vector<1x1xf32>
    %91 = math.sqrt %90 : vector<1x1xf32>
    %92 = vector.broadcast %91 : vector<1x1xf32> to vector<1x128xf32>
    %93 = arith.divf %85, %92 : vector<1x128xf32>
    %c0_47 = arith.constant 0 : index
    %c1_48 = arith.constant 1 : index
    %c0_49 = arith.constant 0 : index
    %c0_50 = arith.constant 0 : index
    %94 = vector.load %arg1[%c0_47, %c1_48, %c0_49, %c0_50] : memref<2x6x4x128xf32, #tpu.memory_space<vmem>>, vector<1x1x4x128xf32>
    %95 = vector.shape_cast %94 : vector<1x1x4x128xf32> to vector<4x128xf32>
    %c0_51 = arith.constant 0 : index
    %c3 = arith.constant 3 : index
    %c0_52 = arith.constant 0 : index
    %c0_53 = arith.constant 0 : index
    %96 = vector.load %arg1[%c0_51, %c3, %c0_52, %c0_53] : memref<2x6x4x128xf32, #tpu.memory_space<vmem>>, vector<1x1x4x128xf32>
    %97 = vector.shape_cast %96 : vector<1x1x4x128xf32> to vector<4x128xf32>
    %c0_54 = arith.constant 0 : index
    %c5 = arith.constant 5 : index
    %c0_55 = arith.constant 0 : index
    %c0_56 = arith.constant 0 : index
    %98 = vector.load %arg1[%c0_54, %c5, %c0_55, %c0_56] : memref<2x6x4x128xf32, #tpu.memory_space<vmem>>, vector<1x1x4x128xf32>
    %99 = vector.shape_cast %98 : vector<1x1x4x128xf32> to vector<4x128xf32>
    %c1_57 = arith.constant 1 : index
    %c1_58 = arith.constant 1 : index
    %c0_59 = arith.constant 0 : index
    %c0_60 = arith.constant 0 : index
    %100 = vector.load %arg1[%c1_57, %c1_58, %c0_59, %c0_60] : memref<2x6x4x128xf32, #tpu.memory_space<vmem>>, vector<1x1x4x128xf32>
    %101 = vector.shape_cast %100 : vector<1x1x4x128xf32> to vector<4x128xf32>
    %c1_61 = arith.constant 1 : index
    %c3_62 = arith.constant 3 : index
    %c0_63 = arith.constant 0 : index
    %c0_64 = arith.constant 0 : index
    %102 = vector.load %arg1[%c1_61, %c3_62, %c0_63, %c0_64] : memref<2x6x4x128xf32, #tpu.memory_space<vmem>>, vector<1x1x4x128xf32>
    %103 = vector.shape_cast %102 : vector<1x1x4x128xf32> to vector<4x128xf32>
    %c1_65 = arith.constant 1 : index
    %c5_66 = arith.constant 5 : index
    %c0_67 = arith.constant 0 : index
    %c0_68 = arith.constant 0 : index
    %104 = vector.load %arg1[%c1_65, %c5_66, %c0_67, %c0_68] : memref<2x6x4x128xf32, #tpu.memory_space<vmem>>, vector<1x1x4x128xf32>
    %105 = vector.shape_cast %104 : vector<1x1x4x128xf32> to vector<4x128xf32>
    %106 = arith.mulf %95, %101 : vector<4x128xf32>
    %cst_69 = arith.constant dense<0.000000e+00> : vector<128xf32>
    %107 = vector.multi_reduction <add>, %106, %cst_69 [0] : vector<4x128xf32> to vector<128xf32>
    %108 = vector.shape_cast %107 : vector<128xf32> to vector<1x128xf32>
    %109 = arith.mulf %95, %103 : vector<4x128xf32>
    %cst_70 = arith.constant dense<0.000000e+00> : vector<128xf32>
    %110 = vector.multi_reduction <add>, %109, %cst_70 [0] : vector<4x128xf32> to vector<128xf32>
    %111 = vector.shape_cast %110 : vector<128xf32> to vector<1x128xf32>
    %112 = arith.mulf %95, %105 : vector<4x128xf32>
    %cst_71 = arith.constant dense<0.000000e+00> : vector<128xf32>
    %113 = vector.multi_reduction <add>, %112, %cst_71 [0] : vector<4x128xf32> to vector<128xf32>
    %114 = vector.shape_cast %113 : vector<128xf32> to vector<1x128xf32>
    %115 = arith.mulf %97, %101 : vector<4x128xf32>
    %cst_72 = arith.constant dense<0.000000e+00> : vector<128xf32>
    %116 = vector.multi_reduction <add>, %115, %cst_72 [0] : vector<4x128xf32> to vector<128xf32>
    %117 = vector.shape_cast %116 : vector<128xf32> to vector<1x128xf32>
    %118 = arith.mulf %97, %103 : vector<4x128xf32>
    %cst_73 = arith.constant dense<0.000000e+00> : vector<128xf32>
    %119 = vector.multi_reduction <add>, %118, %cst_73 [0] : vector<4x128xf32> to vector<128xf32>
    %120 = vector.shape_cast %119 : vector<128xf32> to vector<1x128xf32>
    %121 = arith.mulf %97, %105 : vector<4x128xf32>
    %cst_74 = arith.constant dense<0.000000e+00> : vector<128xf32>
    %122 = vector.multi_reduction <add>, %121, %cst_74 [0] : vector<4x128xf32> to vector<128xf32>
    %123 = vector.shape_cast %122 : vector<128xf32> to vector<1x128xf32>
    %124 = arith.mulf %99, %101 : vector<4x128xf32>
    %cst_75 = arith.constant dense<0.000000e+00> : vector<128xf32>
    %125 = vector.multi_reduction <add>, %124, %cst_75 [0] : vector<4x128xf32> to vector<128xf32>
    %126 = vector.shape_cast %125 : vector<128xf32> to vector<1x128xf32>
    %127 = arith.mulf %99, %103 : vector<4x128xf32>
    %cst_76 = arith.constant dense<0.000000e+00> : vector<128xf32>
    %128 = vector.multi_reduction <add>, %127, %cst_76 [0] : vector<4x128xf32> to vector<128xf32>
    %129 = vector.shape_cast %128 : vector<128xf32> to vector<1x128xf32>
    %130 = arith.mulf %99, %105 : vector<4x128xf32>
    %cst_77 = arith.constant dense<0.000000e+00> : vector<128xf32>
    %131 = vector.multi_reduction <add>, %130, %cst_77 [0] : vector<4x128xf32> to vector<128xf32>
    %132 = vector.shape_cast %131 : vector<128xf32> to vector<1x128xf32>
    %133 = tpu.concatenate %108, %111, %114, %117, %120, %123, %126, %129, %132 in 0 : vector<1x128xf32>, vector<1x128xf32>, vector<1x128xf32>, vector<1x128xf32>, vector<1x128xf32>, vector<1x128xf32>, vector<1x128xf32>, vector<1x128xf32>, vector<1x128xf32> -> vector<9x128xf32>
    %134 = vector.extract_strided_slice %3 {offsets = [1, 0, 0], sizes = [1, 9, 128], strides = [1, 1, 1]} : vector<2x9x128xf32> to vector<1x9x128xf32>
    %135 = vector.shape_cast %134 : vector<1x9x128xf32> to vector<9x128xf32>
    %136 = vector.extract_strided_slice %7 {offsets = [9, 0], sizes = [9, 128], strides = [1, 1]} : vector<18x128xf32> to vector<9x128xf32>
    %cst_78 = arith.constant dense<0.000000e+00> : vector<9x9xf32>
    %137 = tpu.matmul %136, %133, %cst_78 {dimension_numbers = #tpu.dot_dimension_numbers<[1], [1], [0], [0], [0, 0, 1, 0], [], []>} : vector<9x128xf32>, vector<9x128xf32>, vector<9x9xf32> -> vector<9x9xf32>
    %cst_79 = arith.constant dense<0xFF800000> : vector<9xf32>
    %138 = vector.multi_reduction <maximumf>, %137, %cst_79 [1] : vector<9x9xf32> to vector<9xf32>
    %139 = vector.shape_cast %138 : vector<9xf32> to vector<9x1xf32>
    %140 = vector.broadcast %139 : vector<9x1xf32> to vector<9x9xf32>
    %141 = arith.subf %137, %140 : vector<9x9xf32>
    %142 = math.exp %141 : vector<9x9xf32>
    %cst_80 = arith.constant dense<0.000000e+00> : vector<9xf32>
    %143 = vector.multi_reduction <add>, %142, %cst_80 [1] : vector<9x9xf32> to vector<9xf32>
    %144 = vector.shape_cast %143 : vector<9xf32> to vector<9x1xf32>
    %145 = vector.broadcast %144 : vector<9x1xf32> to vector<9x9xf32>
    %146 = arith.divf %142, %145 : vector<9x9xf32>
    %cst_81 = arith.constant dense<0.000000e+00> : vector<9x128xf32>
    %147 = tpu.matmul %146, %135, %cst_81 {dimension_numbers = #tpu.dot_dimension_numbers<[0], [0], [1], [1], [0, 1, 1, 1], [], []>} : vector<9x9xf32>, vector<9x128xf32>, vector<9x128xf32> -> vector<9x128xf32>
    %148 = arith.cmpf one, %147, %147 : vector<9x128xf32>
    %cst_82 = arith.constant 0.000000e+00 : f32
    %149 = vector.broadcast %cst_82 : f32 to vector<9x128xf32>
    %150 = arith.select %148, %149, %147 : vector<9x128xi1>, vector<9x128xf32>
    %151 = arith.addf %133, %150 : vector<9x128xf32>
    %152 = vector.extract_strided_slice %151 {offsets = [0, 0], sizes = [1, 128], strides = [1, 1]} : vector<9x128xf32> to vector<1x128xf32>
    %153 = vector.extract_strided_slice %151 {offsets = [1, 0], sizes = [1, 128], strides = [1, 1]} : vector<9x128xf32> to vector<1x128xf32>
    %154 = arith.maximumf %152, %153 : vector<1x128xf32>
    %155 = vector.extract_strided_slice %151 {offsets = [3, 0], sizes = [1, 128], strides = [1, 1]} : vector<9x128xf32> to vector<1x128xf32>
    %156 = vector.extract_strided_slice %151 {offsets = [4, 0], sizes = [1, 128], strides = [1, 1]} : vector<9x128xf32> to vector<1x128xf32>
    %157 = arith.maximumf %155, %156 : vector<1x128xf32>
    %158 = arith.maximumf %154, %157 : vector<1x128xf32>
    %cst_83 = arith.constant 0.000000e+00 : f32
    %159 = vector.broadcast %cst_83 : f32 to vector<1x128xf32>
    %160 = arith.cmpf oge, %158, %159 : vector<1x128xf32>
    %cst_84 = arith.constant 0.00999999977 : f32
    %161 = vector.broadcast %cst_84 : f32 to vector<1x128xf32>
    %162 = arith.mulf %161, %158 : vector<1x128xf32>
    %163 = arith.select %160, %158, %162 : vector<1x128xi1>, vector<1x128xf32>
    %cst_85 = arith.constant 0.000000e+00 : f32
    %164 = vector.broadcast %cst_85 : f32 to vector<1x128xf32>
    %165 = arith.cmpf olt, %163, %164 : vector<1x128xf32>
    %cst_86 = arith.constant -1.000000e+00 : f32
    %cst_87 = arith.constant 1.000000e+00 : f32
    %166 = vector.broadcast %cst_86 : f32 to vector<1x128xf32>
    %167 = vector.broadcast %cst_87 : f32 to vector<1x128xf32>
    %168 = arith.select %165, %166, %167 : vector<1x128xi1>, vector<1x128xf32>
    %169 = math.absf %163 : vector<1x128xf32>
    %170 = math.sqrt %169 : vector<1x128xf32>
    %171 = arith.mulf %168, %170 : vector<1x128xf32>
    %cst_88 = arith.constant 1.000000e-07 : f32
    %172 = vector.broadcast %cst_88 : f32 to vector<1x128xf32>
    %173 = arith.addf %171, %172 : vector<1x128xf32>
    %174 = arith.mulf %173, %173 : vector<1x128xf32>
    %cst_89 = arith.constant dense<0.000000e+00> : vector<1xf32>
    %175 = vector.multi_reduction <add>, %174, %cst_89 [1] : vector<1x128xf32> to vector<1xf32>
    %176 = vector.shape_cast %175 : vector<1xf32> to vector<1x1xf32>
    %177 = math.sqrt %176 : vector<1x1xf32>
    %178 = vector.broadcast %177 : vector<1x1xf32> to vector<1x128xf32>
    %179 = arith.divf %171, %178 : vector<1x128xf32>
    %180 = tpu.concatenate %93, %179 in 0 : vector<1x128xf32>, vector<1x128xf32> -> vector<2x128xf32>
    %c0_90 = arith.constant 0 : index
    %c0_91 = arith.constant 0 : index
    %181 = vector.load %arg4[%c0_90, %c0_91] : memref<128x128xf32, #tpu.memory_space<vmem>>, vector<128x128xf32>
    %cst_92 = arith.constant dense<0.000000e+00> : vector<2x128xf32>
    %182 = tpu.matmul %180, %181, %cst_92 {dimension_numbers = #tpu.dot_dimension_numbers<[1], [0], [0], [1], [0, 0, 1, 1], [], []>} : vector<2x128xf32>, vector<128x128xf32>, vector<2x128xf32> -> vector<2x128xf32>
    %c0_93 = arith.constant 0 : index
    %c0_94 = arith.constant 0 : index
    %183 = vector.load %arg5[%c0_93, %c0_94] : memref<1x128xf32, #tpu.memory_space<vmem>>, vector<1x128xf32>
    %184 = vector.broadcast %183 : vector<1x128xf32> to vector<2x128xf32>
    %185 = arith.addf %182, %184 : vector<2x128xf32>
    %c0_95 = arith.constant 0 : index
    %c0_96 = arith.constant 0 : index
    %186 = vector.load %arg6[%c0_95, %c0_96] : memref<2x128xf32, #tpu.memory_space<vmem>>, vector<2x128xf32>
    tpu.vector_store %arg6[%c0_95, %c0_96], %185 {strides = array<i32>} : memref<2x128xf32, #tpu.memory_space<vmem>>, vector<2x128xf32>,
    return
  }
  func.func @transform_0(%arg0: i32) -> (i32, i32, i32, i32) {
    %c0_i32 = arith.constant 0 : i32
    %c0_i32_0 = arith.constant 0 : i32
    %c0_i32_1 = arith.constant 0 : i32
    %c0_i32_2 = arith.constant 0 : i32
    %c0_i32_3 = arith.constant 0 : i32
    return %c0_i32, %c0_i32_0, %c0_i32_1, %c0_i32_2 : i32, i32, i32, i32
  }
  func.func @transform_1(%arg0: i32) -> (i32, i32, i32) {
    %c0_i32 = arith.constant 0 : i32
    %c0_i32_0 = arith.constant 0 : i32
    %c0_i32_1 = arith.constant 0 : i32
    %c0_i32_2 = arith.constant 0 : i32
    return %c0_i32, %c0_i32_0, %c0_i32_1 : i32, i32, i32
  }
  func.func @transform_2(%arg0: i32) -> (i32, i32) {
    %c0_i32 = arith.constant 0 : i32
    %c0_i32_0 = arith.constant 0 : i32
    %c0_i32_1 = arith.constant 0 : i32
    return %c0_i32, %c0_i32_0 : i32, i32
  }
  func.func @transform_3(%arg0: i32) -> (i32, i32) {
    %c0_i32 = arith.constant 0 : i32
    %c0_i32_0 = arith.constant 0 : i32
    %c0_i32_1 = arith.constant 0 : i32
    return %c0_i32, %c0_i32_0 : i32, i32
  }
  func.func @transform_4(%arg0: i32) -> (i32, i32) {
    %c0_i32 = arith.constant 0 : i32
    %c0_i32_0 = arith.constant 0 : i32
    %c0_i32_1 = arith.constant 0 : i32
    return %c0_i32, %c0_i32_0 : i32, i32
  }
  func.func @transform_5(%arg0: i32) -> (i32, i32) {
    %c0_i32 = arith.constant 0 : i32
    %c0_i32_0 = arith.constant 0 : i32
    %c0_i32_1 = arith.constant 0 : i32
    return %c0_i32, %c0_i32_0 : i32, i32
  }
}

</mosaic_0001>

<llo_original>
// kernel: forward.3
$region0: #{forward.3}
  #allocation0 [shape = 'u32[]', space=smem, size = 0x4, offset = 0x4, fixed_abs, tag = 'smem constant byte address 0x4 - core index']
  #allocation1 [shape = 'u32[144,128]{1,0:T(1,128)}', space=vmem, size = 0x12000, scoped, tag = 'internal scratch']
  %s0 = inlined_call_operand.vmem [shape: f32[2,6,4,128], index: 0, kind: input, shape index: {}]
  %s1 = inlined_call_operand.vmem [shape: f32[2,9,128], index: 1, kind: input, shape index: {}]
  %s2 = inlined_call_operand.vmem [shape: bf16[128,128], index: 2, kind: input, shape index: {}]
  %s3 = inlined_call_operand.vmem [shape: f32[128,128], index: 3, kind: input, shape index: {}]
  %s4 = inlined_call_operand.vmem [shape: f32[1,128], index: 4, kind: input, shape index: {}]
  %s5 = inlined_call_operand.hbm [shape: f32[2,128], index: 5, kind: output, shape index: {}]
  %s6 = sld [smem:[#allocation0]]
  $region30: #{forward.3} parent=0
    _
  %s8 = ssub.s32 1, %s6
  %s9 = scalar_select 0, %s8, %s6
  $region1: #{forward.3} parent=0
    #allocation2 [shape = 'u8[1024]{0}', space=vmem, size = 0x400, scoped, tag = 'output window, operand 0, single buffered']
    #allocation3 [shape = 's32[1]{0}', space=sflag, size = 0x4, scoped, tag = 'scoped memory for forward.3']
    %10 = vsyncpa [#allocation3], 0
    // Predicated region
    $region2: #{forward.3} parent=1 // pred_check
      _
    $region3: #{forward.3} parent=1 // pred_check_branch
      %12 = sbr.rel (0) target = $region5
    $region4: #{forward.3} parent=1 // pred_region
      _
    $region5: #{forward.3} parent=1 // pred_fallthru
      _
    // Predicated region
    $region6: #{forward.3} parent=1 // pred_check
      _
    $region7: #{forward.3} parent=1 // pred_check_branch
      %14 = sbr.rel (0) target = $region9
    $region8: #{forward.3} parent=1 // pred_region
      _
    $region9: #{forward.3} parent=1 // pred_fallthru
      _
    // Predicated region
    $region10: #{forward.3} parent=1 // pred_check
      _
    $region11: #{forward.3} parent=1 // pred_check_branch
      %16 = sbr.rel (0) target = $region13
    $region12: #{forward.3} parent=1 // pred_region
      _
    $region13: #{forward.3} parent=1 // pred_fallthru
      _
    // Predicated region
    $region14: #{forward.3} parent=1 // pred_check
      _
    $region15: #{forward.3} parent=1 // pred_check_branch
      %18 = sbr.rel (0) target = $region17
    $region16: #{forward.3} parent=1 // pred_region
      _
    $region17: #{forward.3} parent=1 // pred_fallthru
      _
    // Predicated region
    $region18: #{forward.3} parent=1 // pred_check
      _
    $region19: #{forward.3} parent=1 // pred_check_branch
      %20 = sbr.rel (0) target = $region21
    $region20: #{forward.3} parent=1 // pred_region
      _
    $region21: #{forward.3} parent=1 // pred_fallthru
      _
    %v22 = vld [vmem:[%s1] sm:$0xff]
    %v23 = vld [vmem:[%s1 + $0x8] sm:$0x1]
    %v24 = vld [vmem:[%s1 + $0x10] sm:$0xff]
    %v25 = vld [vmem:[%s1 + $0x18] sm:$0x1]
    %vm26 = vcmp.ne.f32.partialorder %v22, %v22
    %vm27 = vcmp.ne.f32.partialorder %v23, %v23
    %vm28 = vcmp.ne.f32.partialorder %v24, %v24
    %vm29 = vcmp.ne.f32.partialorder %v25, %v25
    %v30 = vsel %vm26, 1e-07, %v22
    %v31 = vsel %vm27, 1e-07, %v23
    %v32 = vsel %vm28, 1e-07, %v24
    %v33 = vsel %vm29, 1e-07, %v25
    %v38 = vcombine.high %v30, %v30
    %v40 = vunpack.c.l.s4 1966171168
    %v41 = vunpack.c.0.s8 %v40
    %v42 = vlaneseq
    %v43 = vshrl.u32 %v42, 7
    %v44 = vsub.s32 %v41, %v43
    %v45 = vrot.slane %v30, %v44
    %v47 = vunpack.c.l.s4 1966171168
    %v48 = vunpack.c.0.s8 %v47
    %v49 = vlaneseq
    %v50 = vshrl.u32 %v49, 7
    %v51 = vsub.s32 %v48, %v50
    %v52 = vrot.slane %v38, %v51
    %v53 = vcombine.high %v45, %v45
    %v54 = vcombine.high %v52, %v52
    %v56 = vunpack.c.l.s4 1966171168
    %v57 = vunpack.c.0.s8 %v56
    %v58 = vlaneseq
    %v59 = vshrl.u32 %v58, 7
    %v60 = vsub.s32 %v57, %v59
    %v61 = vrot.slane %v45, %v60
    %v63 = vunpack.c.l.s4 1966171168
    %v64 = vunpack.c.0.s8 %v63
    %v65 = vlaneseq
    %v66 = vshrl.u32 %v65, 7
    %v67 = vsub.s32 %v64, %v66
    %v68 = vrot.slane %v52, %v67
    %v70 = vunpack.c.l.s4 1966171168
    %v71 = vunpack.c.0.s8 %v70
    %v72 = vlaneseq
    %v73 = vshrl.u32 %v72, 7
    %v74 = vsub.s32 %v71, %v73
    %v75 = vrot.slane %v53, %v74
    %v77 = vunpack.c.l.s4 1966171168
    %v78 = vunpack.c.0.s8 %v77
    %v79 = vlaneseq
    %v80 = vshrl.u32 %v79, 7
    %v81 = vsub.s32 %v78, %v80
    %v82 = vrot.slane %v54, %v81
    %v83 = vcombine.high %v61, %v61
    %v84 = vcombine.high %v68, %v68
    %v85 = vcombine.high %v75, %v75
    %v86 = vcombine.high %v82, %v82
    %v88 = vunpack.c.l.s4 1966171168
    %v89 = vunpack.c.0.s8 %v88
    %v90 = vlaneseq
    %v91 = vshrl.u32 %v90, 7
    %v92 = vsub.s32 %v89, %v91
    %v93 = vrot.slane %v31, %v92
    %v95 = vunpack.c.l.s4 1966171168
    %v96 = vunpack.c.0.s8 %v95
    %v97 = vlaneseq
    %v98 = vshrl.u32 %v97, 7
    %v99 = vsub.s32 %v96, %v98
    %v100 = vrot.slane %v93, %v99
    %v101 = vcombine.high %v32, %v32
    %v103 = vunpack.c.l.s4 1966171168
    %v104 = vunpack.c.0.s8 %v103
    %v105 = vlaneseq
    %v106 = vshrl.u32 %v105, 7
    %v107 = vsub.s32 %v104, %v106
    %v108 = vrot.slane %v32, %v107
    %v110 = vunpack.c.l.s4 1966171168
    %v111 = vunpack.c.0.s8 %v110
    %v112 = vlaneseq
    %v113 = vshrl.u32 %v112, 7
    %v114 = vsub.s32 %v111, %v113
    %v115 = vrot.slane %v101, %v114
    %v116 = vcombine.high %v108, %v108
    %v117 = vcombine.high %v115, %v115
    %v119 = vunpack.c.l.s4 1966171168
    %v120 = vunpack.c.0.s8 %v119
    %v121 = vlaneseq
    %v122 = vshrl.u32 %v121, 7
    %v123 = vsub.s32 %v120, %v122
    %v124 = vrot.slane %v108, %v123
    %v126 = vunpack.c.l.s4 1966171168
    %v127 = vunpack.c.0.s8 %v126
    %v128 = vlaneseq
    %v129 = vshrl.u32 %v128, 7
    %v130 = vsub.s32 %v127, %v129
    %v131 = vrot.slane %v115, %v130
    %v133 = vunpack.c.l.s4 1966171168
    %v134 = vunpack.c.0.s8 %v133
    %v135 = vlaneseq
    %v136 = vshrl.u32 %v135, 7
    %v137 = vsub.s32 %v134, %v136
    %v138 = vrot.slane %v116, %v137
    %v140 = vunpack.c.l.s4 1966171168
    %v141 = vunpack.c.0.s8 %v140
    %v142 = vlaneseq
    %v143 = vshrl.u32 %v142, 7
    %v144 = vsub.s32 %v141, %v143
    %v145 = vrot.slane %v117, %v144
    %v146 = vcombine.high %v124, %v124
    %v147 = vcombine.high %v131, %v131
    %v148 = vcombine.high %v138, %v138
    %v149 = vcombine.high %v145, %v145
    %v151 = vunpack.c.l.s4 1966171168
    %v152 = vunpack.c.0.s8 %v151
    %v153 = vlaneseq
    %v154 = vshrl.u32 %v153, 7
    %v155 = vsub.s32 %v152, %v154
    %v156 = vrot.slane %v33, %v155
    %v158 = vunpack.c.l.s4 1966171168
    %v159 = vunpack.c.0.s8 %v158
    %v160 = vlaneseq
    %v161 = vshrl.u32 %v160, 7
    %v162 = vsub.s32 %v159, %v161
    %v163 = vrot.slane %v156, %v162
    %v164 = vcombine.low %v61, %v75
    %v165 = vcombine.low %v83, %v85
    %v166 = vcombine.low %v68, %v82
    %v167 = vcombine.low %v84, %v86
    %v169 = vunpack.c.l.s4 1966171168
    %v170 = vunpack.c.0.s8 %v169
    %v171 = vlaneseq
    %v172 = vshrl.u32 %v171, 7
    %v173 = vsub.s32 %v170, %v172
    %v174 = vrot.slane %v164, %v173
    %v176 = vunpack.c.l.s4 1966171168
    %v177 = vunpack.c.0.s8 %v176
    %v178 = vlaneseq
    %v179 = vshrl.u32 %v178, 7
    %v180 = vsub.s32 %v177, %v179
    %v181 = vrot.slane %v165, %v180
    %v183 = vunpack.c.l.s4 1966171168
    %v184 = vunpack.c.0.s8 %v183
    %v185 = vlaneseq
    %v186 = vshrl.u32 %v185, 7
    %v187 = vsub.s32 %v184, %v186
    %v188 = vrot.slane %v166, %v187
    %v190 = vunpack.c.l.s4 1966171168
    %v191 = vunpack.c.0.s8 %v190
    %v192 = vlaneseq
    %v193 = vshrl.u32 %v192, 7
    %v194 = vsub.s32 %v191, %v193
    %v195 = vrot.slane %v167, %v194
    %v196 = vcombine.low %v174, %v181
    %v197 = vcombine.low %v188, %v195
    %v199 = vunpack.c.l.s4 1966171168
    %v200 = vunpack.c.0.s8 %v199
    %v201 = vlaneseq
    %v202 = vshrl.u32 %v201, 7
    %v203 = vsub.s32 %v200, %v202
    %v204 = vrot.slane %v196, %v203
    %v206 = vunpack.c.l.s4 1966171168
    %v207 = vunpack.c.0.s8 %v206
    %v208 = vlaneseq
    %v209 = vshrl.u32 %v208, 7
    %v210 = vsub.s32 %v207, %v209
    %v211 = vrot.slane %v197, %v210
    %v212 = vcombine.low %v204, %v211
    %v213 = vcombine.low %v100, %v124
    %v214 = vcombine.low %v138, %v146
    %v215 = vcombine.low %v148, %v131
    %v216 = vcombine.low %v145, %v147
    %v218 = vunpack.c.l.s4 1966171168
    %v219 = vunpack.c.0.s8 %v218
    %v220 = vlaneseq
    %v221 = vshrl.u32 %v220, 7
    %v222 = vsub.s32 %v219, %v221
    %v223 = vrot.slane %v213, %v222
    %v225 = vunpack.c.l.s4 1966171168
    %v226 = vunpack.c.0.s8 %v225
    %v227 = vlaneseq
    %v228 = vshrl.u32 %v227, 7
    %v229 = vsub.s32 %v226, %v228
    %v230 = vrot.slane %v214, %v229
    %v232 = vunpack.c.l.s4 1966171168
    %v233 = vunpack.c.0.s8 %v232
    %v234 = vlaneseq
    %v235 = vshrl.u32 %v234, 7
    %v236 = vsub.s32 %v233, %v235
    %v237 = vrot.slane %v215, %v236
    %v239 = vunpack.c.l.s4 1966171168
    %v240 = vunpack.c.0.s8 %v239
    %v241 = vlaneseq
    %v242 = vshrl.u32 %v241, 7
    %v243 = vsub.s32 %v240, %v242
    %v244 = vrot.slane %v216, %v243
    %v245 = vcombine.low %v223, %v230
    %v246 = vcombine.low %v237, %v244
    %v248 = vunpack.c.l.s4 1966171168
    %v249 = vunpack.c.0.s8 %v248
    %v250 = vlaneseq
    %v251 = vshrl.u32 %v250, 7
    %v252 = vsub.s32 %v249, %v251
    %v253 = vrot.slane %v245, %v252
    %v255 = vunpack.c.l.s4 1966171168
    %v256 = vunpack.c.0.s8 %v255
    %v257 = vlaneseq
    %v258 = vshrl.u32 %v257, 7
    %v259 = vsub.s32 %v256, %v258
    %v260 = vrot.slane %v246, %v259
    %v261 = vcombine.low %v253, %v260
    %v262 = vcombine.low %v149, %v163
    %v264 = vunpack.c.l.s4 1966171168
    %v265 = vunpack.c.0.s8 %v264
    %v266 = vlaneseq
    %v267 = vshrl.u32 %v266, 7
    %v268 = vsub.s32 %v265, %v267
    %v269 = vrot.slane %v262, %v268
    %v271 = vunpack.c.l.s4 1966171168
    %v272 = vunpack.c.0.s8 %v271
    %v273 = vlaneseq
    %v274 = vshrl.u32 %v273, 7
    %v275 = vsub.s32 %v272, %v274
    %v276 = vrot.slane %v269, %v275
    %v280 = vpack.c.bf16 %v261, %v212
    %v281 = vpack.c.bf16 %v276, %v276
    %v282 = vld [vmem:[%s2] sm:$0xf]
    %v283 = vld [vmem:[%s2 + $0x4] sm:$0xf]
    %v284 = vld [vmem:[%s2 + $0x8] sm:$0xf]
    %v285 = vld [vmem:[%s2 + $0xc] sm:$0xf]
    %v286 = vld [vmem:[%s2 + $0x10] sm:$0xf]
    %v287 = vld [vmem:[%s2 + $0x14] sm:$0xf]
    %v288 = vld [vmem:[%s2 + $0x18] sm:$0xf]
    %v289 = vld [vmem:[%s2 + $0x1c] sm:$0xf]
    %v290 = vld [vmem:[%s2 + $0x20] sm:$0xf]
    %v291 = vld [vmem:[%s2 + $0x24] sm:$0xf]
    %v292 = vld [vmem:[%s2 + $0x28] sm:$0xf]
    %v293 = vld [vmem:[%s2 + $0x2c] sm:$0xf]
    %v294 = vld [vmem:[%s2 + $0x30] sm:$0xf]
    %v295 = vld [vmem:[%s2 + $0x34] sm:$0xf]
    %v296 = vld [vmem:[%s2 + $0x38] sm:$0xf]
    %v297 = vld [vmem:[%s2 + $0x3c] sm:$0xf]
    %v314 = vunpack.c.l.b16 %v282
    %v315 = vunpack.c.l.b16 %v283
    %v316 = vunpack.c.l.b16 %v284
    %v317 = vunpack.c.l.b16 %v285
    %v318 = vunpack.c.l.b16 %v286
    %v319 = vunpack.c.l.b16 %v287
    %v320 = vunpack.c.l.b16 %v288
    %v321 = vunpack.c.l.b16 %v289
    %v322 = vunpack.c.l.b16 %v290
    %v323 = vunpack.c.l.b16 %v291
    %v324 = vunpack.c.l.b16 %v292
    %v325 = vunpack.c.l.b16 %v293
    %v326 = vunpack.c.l.b16 %v294
    %v327 = vunpack.c.l.b16 %v295
    %v328 = vunpack.c.l.b16 %v296
    %v329 = vunpack.c.l.b16 %v297
    %v330 = vpack.c.b16 %v315, %v314
    %v331 = vpack.c.b16 %v317, %v316
    %v332 = vpack.c.b16 %v319, %v318
    %v333 = vpack.c.b16 %v321, %v320
    %v334 = vpack.c.b16 %v323, %v322
    %v335 = vpack.c.b16 %v325, %v324
    %v336 = vpack.c.b16 %v327, %v326
    %v337 = vpack.c.b16 %v329, %v328
    %346 = vmatprep.subr.bf16.mxu0 0
    %347 = vmatpush1.bf16.msra.mxu0 %v337
    %348 = vmatprep.subr.bf16.mxu0 0
    %349 = vmatpush1.bf16.msra.mxu0 %v336
    %350 = vmatprep.subr.bf16.mxu0 0
    %351 = vmatpush1.bf16.msra.mxu0 %v335
    %352 = vmatprep.subr.bf16.mxu0 0
    %353 = vmatpush1.bf16.msra.mxu0 %v334
    %354 = vmatprep.subr.bf16.mxu0 0
    %355 = vmatpush1.bf16.msra.mxu0 %v333
    %356 = vmatprep.subr.bf16.mxu0 0
    %357 = vmatpush1.bf16.msra.mxu0 %v332
    %358 = vmatprep.subr.bf16.mxu0 0
    %359 = vmatpush1.bf16.msra.mxu0 %v331
    %360 = vmatprep.subr.bf16.mxu0 0
    %361 = vmatpush1.bf16.msra.mxu0 %v330
    %362 = vmatprep.subr.bf16.mxu0 0
    %363 = vmatpush2.bf16.msra.mxu0 0
    %364 = vmatprep.subr.bf16.mxu0 0
    %365 = vmatpush2.bf16.msra.mxu0 0
    %366 = vmatprep.subr.bf16.mxu0 0
    %367 = vmatpush2.bf16.msra.mxu0 0
    %368 = vmatprep.subr.bf16.mxu0 0
    %369 = vmatpush2.bf16.msra.mxu0 0
    %370 = vmatprep.subr.bf16.mxu0 0
    %371 = vmatpush2.bf16.msra.mxu0 0
    %372 = vmatprep.subr.bf16.mxu0 0
    %373 = vmatpush2.bf16.msra.mxu0 0
    %374 = vmatprep.subr.bf16.mxu0 0
    %375 = vmatpush2.bf16.msra.mxu0 0
    %376 = vmatprep.subr.bf16.mxu0 0
    %377 = vmatpush2.bf16.msra.mxu0 0
    %378 = vmatprep.mubr.bf16.mxu0 0
    %379 = vmatmul.mubr.bf16.gmra.mxu0 %v280
    %v380 = vpop.f32.mrf.mxu0
    %v381 = vadd.f32 0.0, %v380
    %v382 = vpop.f32.mrf.mxu0
    %v383 = vpop.f32.mrf.mxu0
    %v384 = vadd.f32 0.0, %v383
    %v385 = vpop.f32.mrf.mxu0
    %386 = vmatprep.mubr.bf16.mxu0 0
    %387 = vmatmul.mubr.bf16.gmra.mxu0 %v281
    %v388 = vpop.f32.mrf.mxu0
    %v389 = vadd.f32 0.0, %v388
    %v390 = vpop.f32.mrf.mxu0
    %v391 = vpop.f32.mrf.mxu0
    %v392 = vpop.f32.mrf.mxu0
    %393 = vdwg.mxu0
    %v394 = vld [vmem:[%s0] sm:$0xf]
    %s395 = scalar_lea.vmem %s0, 8
    %v396 = vld [vmem:[%s395] sm:$0xf]
    %s397 = scalar_lea.vmem %s0, 16
    %v398 = vld [vmem:[%s397] sm:$0xf]
    %s399 = scalar_lea.vmem %s0, 24
    %v400 = vld [vmem:[%s399] sm:$0xf]
    %s401 = scalar_lea.vmem %s0, 32
    %v402 = vld [vmem:[%s401] sm:$0xf]
    %s403 = scalar_lea.vmem %s0, 40
    %v404 = vld [vmem:[%s403] sm:$0xf]
    %v405 = vmul.f32 %v394, %v400
    %vm406 = vcmask 1043456
    %v407 = vsel %vm406, %v405, 0.0
    %v408 = vrot.slane %v407, 4
    %v409 = vadd.f32 %v407, %v408
    %v410 = vrot.slane %v409, 2
    %v411 = vadd.f32 %v409, %v410
    %v412 = vrot.slane %v411, 1
    %v413 = vadd.f32 %v411, %v412
    %v414 = vmul.f32 %v394, %v402
    %v415 = vsel %vm406, %v414, 0.0
    %v416 = vrot.slane %v415, 4
    %v417 = vadd.f32 %v415, %v416
    %v418 = vrot.slane %v417, 2
    %v419 = vadd.f32 %v417, %v418
    %v420 = vrot.slane %v419, 1
    %v421 = vadd.f32 %v419, %v420
    %v422 = vmul.f32 %v394, %v404
    %v423 = vsel %vm406, %v422, 0.0
    %v424 = vrot.slane %v423, 4
    %v425 = vadd.f32 %v423, %v424
    %v426 = vrot.slane %v425, 2
    %v427 = vadd.f32 %v425, %v426
    %v428 = vrot.slane %v427, 1
    %v429 = vadd.f32 %v427, %v428
    %v430 = vmul.f32 %v396, %v400
    %v431 = vsel %vm406, %v430, 0.0
    %v432 = vrot.slane %v431, 4
    %v433 = vadd.f32 %v431, %v432
    %v434 = vrot.slane %v433, 2
    %v435 = vadd.f32 %v433, %v434
    %v436 = vrot.slane %v435, 1
    %v437 = vadd.f32 %v435, %v436
    %v438 = vmul.f32 %v396, %v402
    %v439 = vsel %vm406, %v438, 0.0
    %v440 = vrot.slane %v439, 4
    %v441 = vadd.f32 %v439, %v440
    %v442 = vrot.slane %v441, 2
    %v443 = vadd.f32 %v441, %v442
    %v444 = vrot.slane %v443, 1
    %v445 = vadd.f32 %v443, %v444
    %v446 = vmul.f32 %v396, %v404
    %v447 = vsel %vm406, %v446, 0.0
    %v448 = vrot.slane %v447, 4
    %v449 = vadd.f32 %v447, %v448
    %v450 = vrot.slane %v449, 2
    %v451 = vadd.f32 %v449, %v450
    %v452 = vrot.slane %v451, 1
    %v453 = vadd.f32 %v451, %v452
    %v454 = vmul.f32 %v398, %v400
    %v455 = vsel %vm406, %v454, 0.0
    %v456 = vrot.slane %v455, 4
    %v457 = vadd.f32 %v455, %v456
    %v458 = vrot.slane %v457, 2
    %v459 = vadd.f32 %v457, %v458
    %v460 = vrot.slane %v459, 1
    %v461 = vadd.f32 %v459, %v460
    %v462 = vmul.f32 %v398, %v402
    %v463 = vsel %vm406, %v462, 0.0
    %v464 = vrot.slane %v463, 4
    %v465 = vadd.f32 %v463, %v464
    %v466 = vrot.slane %v465, 2
    %v467 = vadd.f32 %v465, %v466
    %v468 = vrot.slane %v467, 1
    %v469 = vadd.f32 %v467, %v468
    %v470 = vmul.f32 %v398, %v404
    %v471 = vsel %vm406, %v470, 0.0
    %v472 = vrot.slane %v471, 4
    %v473 = vadd.f32 %v471, %v472
    %v474 = vrot.slane %v473, 2
    %v475 = vadd.f32 %v473, %v474
    %v476 = vrot.slane %v475, 1
    %v477 = vadd.f32 %v475, %v476
    %vm478 = vcmask 1040384
    %v479 = vsel %vm478, %v413, %v421
    %vm480 = vcmask 1041408
    %v481 = vsel %vm480, %v479, %v429
    %vm482 = vcmask 1042432
    %v483 = vsel %vm482, %v481, %v437
    %v484 = vsel %vm406, %v483, %v445
    %vm485 = vcmask 1044480
    %v486 = vsel %vm485, %v484, %v453
    %vm487 = vcmask 1045504
    %v488 = vsel %vm487, %v486, %v461
    %vm489 = vcmask 1046528
    %v490 = vsel %vm489, %v488, %v469
    %491 = vmatprep.subr.mxu0 0.0
    %492 = vmatpush1.xpose.msra.mxu0 0.0
    %493 = vmatprep.subr.mxu0 0.0
    %494 = vmatpush1.xpose.msra.mxu0 0.0
    %495 = vmatprep.subr.mxu0 0.0
    %496 = vmatpush1.xpose.msra.mxu0 0.0
    %497 = vmatprep.subr.mxu0 0.0
    %498 = vmatpush1.xpose.msra.mxu0 0.0
    %499 = vmatprep.subr.mxu0 0.0
    %500 = vmatpush1.xpose.msra.mxu0 0.0
    %501 = vmatprep.subr.mxu0 0.0
    %502 = vmatpush1.xpose.msra.mxu0 0.0
    %503 = vmatprep.subr.mxu0 0.0
    %504 = vmatpush1.xpose.msra.mxu0 0.0
    %505 = vmatprep.subr.mxu0 0.0
    %506 = vmatpush1.xpose.msra.mxu0 0.0
    %507 = vmatprep.subr.mxu0 0.0
    %508 = vmatpush1.xpose.msra.mxu0 0.0
    %509 = vmatprep.subr.mxu0 0.0
    %510 = vmatpush1.xpose.msra.mxu0 0.0
    %511 = vmatprep.subr.mxu0 0.0
    %512 = vmatpush1.xpose.msra.mxu0 0.0
    %513 = vmatprep.subr.mxu0 0.0
    %514 = vmatpush1.xpose.msra.mxu0 0.0
    %515 = vmatprep.subr.mxu0 0.0
    %516 = vmatpush1.xpose.msra.mxu0 0.0
    %517 = vmatprep.subr.mxu0 0.0
    %518 = vmatpush1.xpose.msra.mxu0 0.0
    %519 = vmatprep.subr.mxu0 0.0
    %520 = vmatpush1.xpose.msra.mxu0 %v477
    %521 = vmatprep.subr.mxu0 0.0
    %522 = vmatpush1.xpose.msra.mxu0 %v490
    %523 = vmatprep.subr.mxu0 0.0
    %524 = vmatpush2.xpose.msra.mxu0 0.0
    %525 = vmatprep.subr.mxu0 0.0
    %526 = vmatpush2.xpose.msra.mxu0 0.0
    %527 = vmatprep.subr.mxu0 0.0
    %528 = vmatpush2.xpose.msra.mxu0 0.0
    %529 = vmatprep.subr.mxu0 0.0
    %530 = vmatpush2.xpose.msra.mxu0 0.0
    %531 = vmatprep.subr.mxu0 0.0
    %532 = vmatpush2.xpose.msra.mxu0 0.0
    %533 = vmatprep.subr.mxu0 0.0
    %534 = vmatpush2.xpose.msra.mxu0 0.0
    %535 = vmatprep.subr.mxu0 0.0
    %536 = vmatpush2.xpose.msra.mxu0 0.0
    %537 = vmatprep.subr.mxu0 0.0
    %538 = vmatpush2.xpose.msra.mxu0 0.0
    %539 = vmatprep.subr.mxu0 0.0
    %540 = vmatpush2.xpose.msra.mxu0 0.0
    %541 = vmatprep.subr.mxu0 0.0
    %542 = vmatpush2.xpose.msra.mxu0 0.0
    %543 = vmatprep.subr.mxu0 0.0
    %544 = vmatpush2.xpose.msra.mxu0 0.0
    %545 = vmatprep.subr.mxu0 0.0
    %546 = vmatpush2.xpose.msra.mxu0 0.0
    %547 = vmatprep.subr.mxu0 0.0
    %548 = vmatpush2.xpose.msra.mxu0 0.0
    %549 = vmatprep.subr.mxu0 0.0
    %550 = vmatpush2.xpose.msra.mxu0 0.0
    %551 = vmatprep.subr.mxu0 0.0
    %552 = vmatpush2.xpose.msra.mxu0 0.0
    %553 = vmatprep.subr.mxu0 0.0
    %554 = vmatpush2.xpose.msra.mxu0 0.0
    %555 = vmatprep.mubr.f32.mxu0 0.0
    %556 = vmatmul.mubr.f32.gmra.mxu0 %v381
    %v557 = vpop.f32.mrf.mxu0
    %v558 = vadd.f32 0.0, %v557
    %v559 = vpop.f32.mrf.mxu0
    %560 = vmatprep.mubr.f32.mxu0 0.0
    %561 = vmatmul.mubr.f32.gmra.mxu0 %v384
    %v562 = vpop.f32.mrf.mxu0
    %v563 = vadd.f32 0.0, %v562
    %v564 = vpop.f32.mrf.mxu0
    %565 = vdwg.mxu0
    %vm566 = vcmask 72704
    %v567 = vsel %vm566, %v558, -inf
    %568 = vmax.xlane.f32.xlu0 %v567
    %v569 = vpop.xlane.xlu0 %568
    %vm570 = vcmask 65536
    %v571 = vsel %vm570, %v563, -inf
    %572 = vmax.xlane.f32.xlu0 %v571
    %v573 = vpop.xlane.xlu0 %572
    %v574 = vsub.f32 %v558, %v569
    %v575 = vsub.f32 %v563, %v573
    %v576 = vmul.f32 %v574, 1.442695
    %v577 = vpow.pop %v576
    %v578 = vmul.f32 %v575, 1.442695
    %v579 = vpow.pop %v578
    %v580 = vsel %vm566, %v577, 0.0
    %581 = vadd.xlane.f32.xlu0 %v580
    %v582 = vpop.xlane.xlu0 %581
    %v583 = vsel %vm570, %v579, 0.0
    %584 = vadd.xlane.f32.xlu0 %v583
    %v585 = vpop.xlane.xlu0 %584
    %v586 = vrcp.pop %v582
    %v587 = vmul.f32 %v577, %v586
    %v588 = vrcp.pop %v585
    %v589 = vmul.f32 %v579, %v588
    %590 = vxpose.xlu0.b32.start [1/16] %v587, 128
    %591 = vxpose.xlu0.b32.cont [2/16] %v589, 128
    %592 = vxpose.xlu0.b32.cont [3/16] 0.0, 128
    %593 = vxpose.xlu0.b32.cont [4/16] 0.0, 128
    %594 = vxpose.xlu0.b32.cont [5/16] 0.0, 128
    %595 = vxpose.xlu0.b32.cont [6/16] 0.0, 128
    %596 = vxpose.xlu0.b32.cont [7/16] 0.0, 128
    %597 = vxpose.xlu0.b32.cont [8/16] 0.0, 128
    %598 = vxpose.xlu0.b32.cont [9/16] 0.0, 128
    %599 = vxpose.xlu0.b32.cont [10/16] 0.0, 128
    %600 = vxpose.xlu0.b32.cont [11/16] 0.0, 128
    %601 = vxpose.xlu0.b32.cont [12/16] 0.0, 128
    %602 = vxpose.xlu0.b32.cont [13/16] 0.0, 128
    %603 = vxpose.xlu0.b32.cont [14/16] 0.0, 128
    %604 = vxpose.xlu0.b32.cont [15/16] 0.0, 128
    %605 = vxpose.xlu0.b32.end [16/16] 0.0, 128
    %v606 = vpop.trf.xlu0
    %v607 = vpop.trf.xlu0
    %v608 = vpop.trf.xlu0
    %v609 = vpop.trf.xlu0
    %v610 = vpop.trf.xlu0
    %v611 = vpop.trf.xlu0
    %v612 = vpop.trf.xlu0
    %v613 = vpop.trf.xlu0
    %v614 = vpop.trf.xlu0
    %v615 = vpop.trf.xlu0
    %v616 = vpop.trf.xlu0
    %v617 = vpop.trf.xlu0
    %v618 = vpop.trf.xlu0
    %v619 = vpop.trf.xlu0
    %v620 = vpop.trf.xlu0
    %v621 = vpop.trf.xlu0
    %v623 = vsel %vm566, %v606, 0
    %v626 = vsel %vm566, %v607, 0
    %v628 = vsel %vm478, %v31, 0
    %630 = vmatprep.subr.mxu0 0.0
    %631 = vmatpush1.msra.mxu0 0.0
    %632 = vmatprep.subr.mxu0 0.0
    %633 = vmatpush1.msra.mxu0 0.0
    %634 = vmatprep.subr.mxu0 0.0
    %635 = vmatpush1.msra.mxu0 0.0
    %636 = vmatprep.subr.mxu0 0.0
    %637 = vmatpush1.msra.mxu0 0.0
    %638 = vmatprep.subr.mxu0 0.0
    %639 = vmatpush1.msra.mxu0 0.0
    %640 = vmatprep.subr.mxu0 0.0
    %641 = vmatpush1.msra.mxu0 0.0
    %642 = vmatprep.subr.mxu0 0.0
    %643 = vmatpush1.msra.mxu0 0.0
    %644 = vmatprep.subr.mxu0 0.0
    %645 = vmatpush1.msra.mxu0 0.0
    %646 = vmatprep.subr.mxu0 0.0
    %647 = vmatpush1.msra.mxu0 0.0
    %648 = vmatprep.subr.mxu0 0.0
    %649 = vmatpush1.msra.mxu0 0.0
    %650 = vmatprep.subr.mxu0 0.0
    %651 = vmatpush1.msra.mxu0 0.0
    %652 = vmatprep.subr.mxu0 0.0
    %653 = vmatpush1.msra.mxu0 0.0
    %654 = vmatprep.subr.mxu0 0.0
    %655 = vmatpush1.msra.mxu0 0.0
    %656 = vmatprep.subr.mxu0 0.0
    %657 = vmatpush1.msra.mxu0 0.0
    %658 = vmatprep.subr.mxu0 0.0
    %659 = vmatpush1.msra.mxu0 %v628
    %660 = vmatprep.subr.mxu0 0.0
    %661 = vmatpush1.msra.mxu0 %v30
    %662 = vmatprep.subr.mxu0 0.0
    %663 = vmatpush2.msra.mxu0 0.0
    %664 = vmatprep.subr.mxu0 0.0
    %665 = vmatpush2.msra.mxu0 0.0
    %666 = vmatprep.subr.mxu0 0.0
    %667 = vmatpush2.msra.mxu0 0.0
    %668 = vmatprep.subr.mxu0 0.0
    %669 = vmatpush2.msra.mxu0 0.0
    %670 = vmatprep.subr.mxu0 0.0
    %671 = vmatpush2.msra.mxu0 0.0
    %672 = vmatprep.subr.mxu0 0.0
    %673 = vmatpush2.msra.mxu0 0.0
    %674 = vmatprep.subr.mxu0 0.0
    %675 = vmatpush2.msra.mxu0 0.0
    %676 = vmatprep.subr.mxu0 0.0
    %677 = vmatpush2.msra.mxu0 0.0
    %678 = vmatprep.subr.mxu0 0.0
    %679 = vmatpush2.msra.mxu0 0.0
    %680 = vmatprep.subr.mxu0 0.0
    %681 = vmatpush2.msra.mxu0 0.0
    %682 = vmatprep.subr.mxu0 0.0
    %683 = vmatpush2.msra.mxu0 0.0
    %684 = vmatprep.subr.mxu0 0.0
    %685 = vmatpush2.msra.mxu0 0.0
    %686 = vmatprep.subr.mxu0 0.0
    %687 = vmatpush2.msra.mxu0 0.0
    %688 = vmatprep.subr.mxu0 0.0
    %689 = vmatpush2.msra.mxu0 0.0
    %690 = vmatprep.subr.mxu0 0.0
    %691 = vmatpush2.msra.mxu0 0.0
    %692 = vmatprep.subr.mxu0 0.0
    %693 = vmatpush2.msra.mxu0 0.0
    %694 = vmatprep.mubr.f32.mxu0 0.0
    %695 = vmatmul.mubr.f32.gmra.mxu0 %v623
    %v696 = vpop.f32.mrf.mxu0
    %v697 = vadd.f32 0.0, %v696
    %v698 = vpop.f32.mrf.mxu0
    %699 = vmatprep.mubr.f32.mxu0 0.0
    %700 = vmatmul.mubr.f32.gmra.mxu0 %v626
    %v701 = vpop.f32.mrf.mxu0
    %v702 = vpop.f32.mrf.mxu0
    %703 = vdwg.mxu0
    %vm704 = vcmp.ne.f32.partialorder %v697, %v697
    %v705 = vsel %vm704, 0.0, %v697
    %v706 = vadd.f32 %v490, %v705
    %v708 = vrot.slane %v706, 1
    %v710 = vmax.f32 %v706, %v708
    %v712 = vrot.slane %v710, 3
    %v714 = vmax.f32 %v710, %v712
    %vm715 = vcmp.ge.f32.partialorder %v714, 0.0
    %v716 = vmul.f32 %v714, 0.01
    %v717 = vsel %vm715, %v714, %v716
    %vm718 = vcmp.lt.f32.partialorder %v717, 0.0
    %v719 = vsel %vm718, -1.0, 1.0
    %v720 = vand.u32 2147483647, %v717
    %v721 = vrsqrt.pop %v720
    %v722 = vmul.f32 %v720, %v721
    %vm723 = vcmp.eq.f32.partialorder %v720, inf
    %v724 = vsel %vm723, %v720, %v722
    %vm725 = vcmp.eq.f32.partialorder %v720, 0.0
    %v726 = vand.u32 %v720, 2147483648
    %v727 = vsel %vm725, %v726, %v724
    %v728 = vmul.f32 %v719, %v727
    %v729 = vadd.f32 %v728, 1e-07
    %v730 = vmul.f32 %v729, %v729
    %v731 = vsel %vm478, %v730, 0.0
    %732 = vadd.xlane.f32.xlu0 %v731
    %v733 = vpop.xlane.xlu0 %732
    %v734 = vrsqrt.pop %v733
    %v735 = vmul.f32 %v733, %v734
    %vm736 = vcmp.eq.f32.partialorder %v733, inf
    %v737 = vsel %vm736, %v733, %v735
    %vm738 = vcmp.eq.f32.partialorder %v733, 0.0
    %v739 = vand.u32 %v733, 2147483648
    %v740 = vsel %vm738, %v739, %v737
    %v741 = vrcp.pop %v740
    %v742 = vmul.f32 %v728, %v741
    %s743 = scalar_lea.vmem %s0, 4
    %v744 = vld [vmem:[%s743] sm:$0xf]
    %s745 = scalar_lea.vmem %s0, 12
    %v746 = vld [vmem:[%s745] sm:$0xf]
    %s747 = scalar_lea.vmem %s0, 20
    %v748 = vld [vmem:[%s747] sm:$0xf]
    %s749 = scalar_lea.vmem %s0, 28
    %v750 = vld [vmem:[%s749] sm:$0xf]
    %s751 = scalar_lea.vmem %s0, 36
    %v752 = vld [vmem:[%s751] sm:$0xf]
    %s753 = scalar_lea.vmem %s0, 44
    %v754 = vld [vmem:[%s753] sm:$0xf]
    %v755 = vmul.f32 %v744, %v750
    %v756 = vsel %vm406, %v755, 0.0
    %v757 = vrot.slane %v756, 4
    %v758 = vadd.f32 %v756, %v757
    %v759 = vrot.slane %v758, 2
    %v760 = vadd.f32 %v758, %v759
    %v761 = vrot.slane %v760, 1
    %v762 = vadd.f32 %v760, %v761
    %v763 = vmul.f32 %v744, %v752
    %v764 = vsel %vm406, %v763, 0.0
    %v765 = vrot.slane %v764, 4
    %v766 = vadd.f32 %v764, %v765
    %v767 = vrot.slane %v766, 2
    %v768 = vadd.f32 %v766, %v767
    %v769 = vrot.slane %v768, 1
    %v770 = vadd.f32 %v768, %v769
    %v771 = vmul.f32 %v744, %v754
    %v772 = vsel %vm406, %v771, 0.0
    %v773 = vrot.slane %v772, 4
    %v774 = vadd.f32 %v772, %v773
    %v775 = vrot.slane %v774, 2
    %v776 = vadd.f32 %v774, %v775
    %v777 = vrot.slane %v776, 1
    %v778 = vadd.f32 %v776, %v777
    %v779 = vmul.f32 %v746, %v750
    %v780 = vsel %vm406, %v779, 0.0
    %v781 = vrot.slane %v780, 4
    %v782 = vadd.f32 %v780, %v781
    %v783 = vrot.slane %v782, 2
    %v784 = vadd.f32 %v782, %v783
    %v785 = vrot.slane %v784, 1
    %v786 = vadd.f32 %v784, %v785
    %v787 = vmul.f32 %v746, %v752
    %v788 = vsel %vm406, %v787, 0.0
    %v789 = vrot.slane %v788, 4
    %v790 = vadd.f32 %v788, %v789
    %v791 = vrot.slane %v790, 2
    %v792 = vadd.f32 %v790, %v791
    %v793 = vrot.slane %v792, 1
    %v794 = vadd.f32 %v792, %v793
    %v795 = vmul.f32 %v746, %v754
    %v796 = vsel %vm406, %v795, 0.0
    %v797 = vrot.slane %v796, 4
    %v798 = vadd.f32 %v796, %v797
    %v799 = vrot.slane %v798, 2
    %v800 = vadd.f32 %v798, %v799
    %v801 = vrot.slane %v800, 1
    %v802 = vadd.f32 %v800, %v801
    %v803 = vmul.f32 %v748, %v750
    %v804 = vsel %vm406, %v803, 0.0
    %v805 = vrot.slane %v804, 4
    %v806 = vadd.f32 %v804, %v805
    %v807 = vrot.slane %v806, 2
    %v808 = vadd.f32 %v806, %v807
    %v809 = vrot.slane %v808, 1
    %v810 = vadd.f32 %v808, %v809
    %v811 = vmul.f32 %v748, %v752
    %v812 = vsel %vm406, %v811, 0.0
    %v813 = vrot.slane %v812, 4
    %v814 = vadd.f32 %v812, %v813
    %v815 = vrot.slane %v814, 2
    %v816 = vadd.f32 %v814, %v815
    %v817 = vrot.slane %v816, 1
    %v818 = vadd.f32 %v816, %v817
    %v819 = vmul.f32 %v748, %v754
    %v820 = vsel %vm406, %v819, 0.0
    %v821 = vrot.slane %v820, 4
    %v822 = vadd.f32 %v820, %v821
    %v823 = vrot.slane %v822, 2
    %v824 = vadd.f32 %v822, %v823
    %v825 = vrot.slane %v824, 1
    %v826 = vadd.f32 %v824, %v825
    %v827 = vsel %vm478, %v762, %v770
    %v828 = vsel %vm480, %v827, %v778
    %v829 = vsel %vm482, %v828, %v786
    %v830 = vsel %vm406, %v829, %v794
    %v831 = vsel %vm485, %v830, %v802
    %v832 = vsel %vm487, %v831, %v810
    %v833 = vsel %vm489, %v832, %v818
    %v836 = vrot.slane %v384, 1
    %v837 = vrot.slane %v389, 1
    %v838 = vsel %vm489, %v836, %v837
    %841 = vmatprep.subr.mxu0 0.0
    %842 = vmatpush1.xpose.msra.mxu0 0.0
    %843 = vmatprep.subr.mxu0 0.0
    %844 = vmatpush1.xpose.msra.mxu0 0.0
    %845 = vmatprep.subr.mxu0 0.0
    %846 = vmatpush1.xpose.msra.mxu0 0.0
    %847 = vmatprep.subr.mxu0 0.0
    %848 = vmatpush1.xpose.msra.mxu0 0.0
    %849 = vmatprep.subr.mxu0 0.0
    %850 = vmatpush1.xpose.msra.mxu0 0.0
    %851 = vmatprep.subr.mxu0 0.0
    %852 = vmatpush1.xpose.msra.mxu0 0.0
    %853 = vmatprep.subr.mxu0 0.0
    %854 = vmatpush1.xpose.msra.mxu0 0.0
    %855 = vmatprep.subr.mxu0 0.0
    %856 = vmatpush1.xpose.msra.mxu0 0.0
    %857 = vmatprep.subr.mxu0 0.0
    %858 = vmatpush1.xpose.msra.mxu0 0.0
    %859 = vmatprep.subr.mxu0 0.0
    %860 = vmatpush1.xpose.msra.mxu0 0.0
    %861 = vmatprep.subr.mxu0 0.0
    %862 = vmatpush1.xpose.msra.mxu0 0.0
    %863 = vmatprep.subr.mxu0 0.0
    %864 = vmatpush1.xpose.msra.mxu0 0.0
    %865 = vmatprep.subr.mxu0 0.0
    %866 = vmatpush1.xpose.msra.mxu0 0.0
    %867 = vmatprep.subr.mxu0 0.0
    %868 = vmatpush1.xpose.msra.mxu0 0.0
    %869 = vmatprep.subr.mxu0 0.0
    %870 = vmatpush1.xpose.msra.mxu0 %v826
    %871 = vmatprep.subr.mxu0 0.0
    %872 = vmatpush1.xpose.msra.mxu0 %v833
    %873 = vmatprep.subr.mxu0 0.0
    %874 = vmatpush2.xpose.msra.mxu0 0.0
    %875 = vmatprep.subr.mxu0 0.0
    %876 = vmatpush2.xpose.msra.mxu0 0.0
    %877 = vmatprep.subr.mxu0 0.0
    %878 = vmatpush2.xpose.msra.mxu0 0.0
    %879 = vmatprep.subr.mxu0 0.0
    %880 = vmatpush2.xpose.msra.mxu0 0.0
    %881 = vmatprep.subr.mxu0 0.0
    %882 = vmatpush2.xpose.msra.mxu0 0.0
    %883 = vmatprep.subr.mxu0 0.0
    %884 = vmatpush2.xpose.msra.mxu0 0.0
    %885 = vmatprep.subr.mxu0 0.0
    %886 = vmatpush2.xpose.msra.mxu0 0.0
    %887 = vmatprep.subr.mxu0 0.0
    %888 = vmatpush2.xpose.msra.mxu0 0.0
    %889 = vmatprep.subr.mxu0 0.0
    %890 = vmatpush2.xpose.msra.mxu0 0.0
    %891 = vmatprep.subr.mxu0 0.0
    %892 = vmatpush2.xpose.msra.mxu0 0.0
    %893 = vmatprep.subr.mxu0 0.0
    %894 = vmatpush2.xpose.msra.mxu0 0.0
    %895 = vmatprep.subr.mxu0 0.0
    %896 = vmatpush2.xpose.msra.mxu0 0.0
    %897 = vmatprep.subr.mxu0 0.0
    %898 = vmatpush2.xpose.msra.mxu0 0.0
    %899 = vmatprep.subr.mxu0 0.0
    %900 = vmatpush2.xpose.msra.mxu0 0.0
    %901 = vmatprep.subr.mxu0 0.0
    %902 = vmatpush2.xpose.msra.mxu0 0.0
    %903 = vmatprep.subr.mxu0 0.0
    %904 = vmatpush2.xpose.msra.mxu0 0.0
    %905 = vmatprep.mubr.f32.mxu0 0.0
    %906 = vmatmul.mubr.f32.gmra.mxu0 %v838
    %v907 = vpop.f32.mrf.mxu0
    %v908 = vadd.f32 0.0, %v907
    %v909 = vpop.f32.mrf.mxu0
    %910 = vmatprep.mubr.f32.mxu0 0.0
    %911 = vmatmul.mubr.f32.gmra.mxu0 %v837
    %v912 = vpop.f32.mrf.mxu0
    %v913 = vadd.f32 0.0, %v912
    %v914 = vpop.f32.mrf.mxu0
    %915 = vdwg.mxu0
    %v916 = vsel %vm566, %v908, -inf
    %917 = vmax.xlane.f32.xlu0 %v916
    %v918 = vpop.xlane.xlu0 %917
    %v919 = vsel %vm570, %v913, -inf
    %920 = vmax.xlane.f32.xlu0 %v919
    %v921 = vpop.xlane.xlu0 %920
    %v922 = vsub.f32 %v908, %v918
    %v923 = vsub.f32 %v913, %v921
    %v924 = vmul.f32 %v922, 1.442695
    %v925 = vpow.pop %v924
    %v926 = vmul.f32 %v923, 1.442695
    %v927 = vpow.pop %v926
    %v928 = vsel %vm566, %v925, 0.0
    %929 = vadd.xlane.f32.xlu0 %v928
    %v930 = vpop.xlane.xlu0 %929
    %v931 = vsel %vm570, %v927, 0.0
    %932 = vadd.xlane.f32.xlu0 %v931
    %v933 = vpop.xlane.xlu0 %932
    %v934 = vrcp.pop %v930
    %v935 = vmul.f32 %v925, %v934
    %v936 = vrcp.pop %v933
    %v937 = vmul.f32 %v927, %v936
    %938 = vxpose.xlu0.b32.start [1/16] %v935, 128
    %939 = vxpose.xlu0.b32.cont [2/16] %v937, 128
    %940 = vxpose.xlu0.b32.cont [3/16] 0.0, 128
    %941 = vxpose.xlu0.b32.cont [4/16] 0.0, 128
    %942 = vxpose.xlu0.b32.cont [5/16] 0.0, 128
    %943 = vxpose.xlu0.b32.cont [6/16] 0.0, 128
    %944 = vxpose.xlu0.b32.cont [7/16] 0.0, 128
    %945 = vxpose.xlu0.b32.cont [8/16] 0.0, 128
    %946 = vxpose.xlu0.b32.cont [9/16] 0.0, 128
    %947 = vxpose.xlu0.b32.cont [10/16] 0.0, 128
    %948 = vxpose.xlu0.b32.cont [11/16] 0.0, 128
    %949 = vxpose.xlu0.b32.cont [12/16] 0.0, 128
    %950 = vxpose.xlu0.b32.cont [13/16] 0.0, 128
    %951 = vxpose.xlu0.b32.cont [14/16] 0.0, 128
    %952 = vxpose.xlu0.b32.cont [15/16] 0.0, 128
    %953 = vxpose.xlu0.b32.end [16/16] 0.0, 128
    %v954 = vpop.trf.xlu0
    %v955 = vpop.trf.xlu0
    %v956 = vpop.trf.xlu0
    %v957 = vpop.trf.xlu0
    %v958 = vpop.trf.xlu0
    %v959 = vpop.trf.xlu0
    %v960 = vpop.trf.xlu0
    %v961 = vpop.trf.xlu0
    %v962 = vpop.trf.xlu0
    %v963 = vpop.trf.xlu0
    %v964 = vpop.trf.xlu0
    %v965 = vpop.trf.xlu0
    %v966 = vpop.trf.xlu0
    %v967 = vpop.trf.xlu0
    %v968 = vpop.trf.xlu0
    %v969 = vpop.trf.xlu0
    %v971 = vsel %vm566, %v954, 0
    %v974 = vsel %vm566, %v955, 0
    %v976 = vsel %vm478, %v33, 0
    %978 = vmatprep.subr.mxu0 0.0
    %979 = vmatpush1.msra.mxu0 0.0
    %980 = vmatprep.subr.mxu0 0.0
    %981 = vmatpush1.msra.mxu0 0.0
    %982 = vmatprep.subr.mxu0 0.0
    %983 = vmatpush1.msra.mxu0 0.0
    %984 = vmatprep.subr.mxu0 0.0
    %985 = vmatpush1.msra.mxu0 0.0
    %986 = vmatprep.subr.mxu0 0.0
    %987 = vmatpush1.msra.mxu0 0.0
    %988 = vmatprep.subr.mxu0 0.0
    %989 = vmatpush1.msra.mxu0 0.0
    %990 = vmatprep.subr.mxu0 0.0
    %991 = vmatpush1.msra.mxu0 0.0
    %992 = vmatprep.subr.mxu0 0.0
    %993 = vmatpush1.msra.mxu0 0.0
    %994 = vmatprep.subr.mxu0 0.0
    %995 = vmatpush1.msra.mxu0 0.0
    %996 = vmatprep.subr.mxu0 0.0
    %997 = vmatpush1.msra.mxu0 0.0
    %998 = vmatprep.subr.mxu0 0.0
    %999 = vmatpush1.msra.mxu0 0.0
    %1000 = vmatprep.subr.mxu0 0.0
    %1001 = vmatpush1.msra.mxu0 0.0
    %1002 = vmatprep.subr.mxu0 0.0
    %1003 = vmatpush1.msra.mxu0 0.0
    %1004 = vmatprep.subr.mxu0 0.0
    %1005 = vmatpush1.msra.mxu0 0.0
    %1006 = vmatprep.subr.mxu0 0.0
    %1007 = vmatpush1.msra.mxu0 %v976
    %1008 = vmatprep.subr.mxu0 0.0
    %1009 = vmatpush1.msra.mxu0 %v32
    %1010 = vmatprep.subr.mxu0 0.0
    %1011 = vmatpush2.msra.mxu0 0.0
    %1012 = vmatprep.subr.mxu0 0.0
    %1013 = vmatpush2.msra.mxu0 0.0
    %1014 = vmatprep.subr.mxu0 0.0
    %1015 = vmatpush2.msra.mxu0 0.0
    %1016 = vmatprep.subr.mxu0 0.0
    %1017 = vmatpush2.msra.mxu0 0.0
    %1018 = vmatprep.subr.mxu0 0.0
    %1019 = vmatpush2.msra.mxu0 0.0
    %1020 = vmatprep.subr.mxu0 0.0
    %1021 = vmatpush2.msra.mxu0 0.0
    %1022 = vmatprep.subr.mxu0 0.0
    %1023 = vmatpush2.msra.mxu0 0.0
    %1024 = vmatprep.subr.mxu0 0.0
    %1025 = vmatpush2.msra.mxu0 0.0
    %1026 = vmatprep.subr.mxu0 0.0
    %1027 = vmatpush2.msra.mxu0 0.0
    %1028 = vmatprep.subr.mxu0 0.0
    %1029 = vmatpush2.msra.mxu0 0.0
    %1030 = vmatprep.subr.mxu0 0.0
    %1031 = vmatpush2.msra.mxu0 0.0
    %1032 = vmatprep.subr.mxu0 0.0
    %1033 = vmatpush2.msra.mxu0 0.0
    %1034 = vmatprep.subr.mxu0 0.0
    %1035 = vmatpush2.msra.mxu0 0.0
    %1036 = vmatprep.subr.mxu0 0.0
    %1037 = vmatpush2.msra.mxu0 0.0
    %1038 = vmatprep.subr.mxu0 0.0
    %1039 = vmatpush2.msra.mxu0 0.0
    %1040 = vmatprep.subr.mxu0 0.0
    %1041 = vmatpush2.msra.mxu0 0.0
    %1042 = vmatprep.mubr.f32.mxu0 0.0
    %1043 = vmatmul.mubr.f32.gmra.mxu0 %v971
    %v1044 = vpop.f32.mrf.mxu0
    %v1045 = vadd.f32 0.0, %v1044
    %v1046 = vpop.f32.mrf.mxu0
    %1047 = vmatprep.mubr.f32.mxu0 0.0
    %1048 = vmatmul.mubr.f32.gmra.mxu0 %v974
    %v1049 = vpop.f32.mrf.mxu0
    %v1050 = vpop.f32.mrf.mxu0
    %1051 = vdwg.mxu0
    %vm1052 = vcmp.ne.f32.partialorder %v1045, %v1045
    %v1053 = vsel %vm1052, 0.0, %v1045
    %v1054 = vadd.f32 %v833, %v1053
    %v1056 = vrot.slane %v1054, 1
    %v1058 = vmax.f32 %v1054, %v1056
    %v1060 = vrot.slane %v1058, 3
    %v1062 = vmax.f32 %v1058, %v1060
    %vm1063 = vcmp.ge.f32.partialorder %v1062, 0.0
    %v1064 = vmul.f32 %v1062, 0.01
    %v1065 = vsel %vm1063, %v1062, %v1064
    %vm1066 = vcmp.lt.f32.partialorder %v1065, 0.0
    %v1067 = vsel %vm1066, -1.0, 1.0
    %v1068 = vand.u32 2147483647, %v1065
    %v1069 = vrsqrt.pop %v1068
    %v1070 = vmul.f32 %v1068, %v1069
    %vm1071 = vcmp.eq.f32.partialorder %v1068, inf
    %v1072 = vsel %vm1071, %v1068, %v1070
    %vm1073 = vcmp.eq.f32.partialorder %v1068, 0.0
    %v1074 = vand.u32 %v1068, 2147483648
    %v1075 = vsel %vm1073, %v1074, %v1072
    %v1076 = vmul.f32 %v1067, %v1075
    %v1077 = vadd.f32 %v1076, 1e-07
    %v1078 = vmul.f32 %v1077, %v1077
    %v1079 = vsel %vm478, %v1078, 0.0
    %1080 = vadd.xlane.f32.xlu0 %v1079
    %v1081 = vpop.xlane.xlu0 %1080
    %v1082 = vrsqrt.pop %v1081
    %v1083 = vmul.f32 %v1081, %v1082
    %vm1084 = vcmp.eq.f32.partialorder %v1081, inf
    %v1085 = vsel %vm1084, %v1081, %v1083
    %vm1086 = vcmp.eq.f32.partialorder %v1081, 0.0
    %v1087 = vand.u32 %v1081, 2147483648
    %v1088 = vsel %vm1086, %v1087, %v1085
    %v1089 = vrcp.pop %v1088
    %v1090 = vmul.f32 %v1076, %v1089
    %v1092 = vrot.slane %v1090, 7
    %v1094 = vsel %vm478, %v742, %v1092
    %v1095 = vld [vmem:[%s3] sm:$0xff]
    %v1096 = vld [vmem:[%s3 + $0x8] sm:$0xff]
    %v1097 = vld [vmem:[%s3 + $0x10] sm:$0xff]
    %v1098 = vld [vmem:[%s3 + $0x18] sm:$0xff]
    %v1099 = vld [vmem:[%s3 + $0x20] sm:$0xff]
    %v1100 = vld [vmem:[%s3 + $0x28] sm:$0xff]
    %v1101 = vld [vmem:[%s3 + $0x30] sm:$0xff]
    %v1102 = vld [vmem:[%s3 + $0x38] sm:$0xff]
    %v1103 = vld [vmem:[%s3 + $0x40] sm:$0xff]
    %v1104 = vld [vmem:[%s3 + $0x48] sm:$0xff]
    %v1105 = vld [vmem:[%s3 + $0x50] sm:$0xff]
    %v1106 = vld [vmem:[%s3 + $0x58] sm:$0xff]
    %v1107 = vld [vmem:[%s3 + $0x60] sm:$0xff]
    %v1108 = vld [vmem:[%s3 + $0x68] sm:$0xff]
    %v1109 = vld [vmem:[%s3 + $0x70] sm:$0xff]
    %v1110 = vld [vmem:[%s3 + $0x78] sm:$0xff]
    %v1111 = vld [vmem:[%s4] sm:$0x1]
    %v1113 = vlaneseq
    %v1114 = vshrl.u32 %v1113, 7
    %v1115 = vsub.s32 0, %v1114
    %v1116 = vrot.slane %v1111, %v1115
    %1118 = vmatprep.subr.mxu0 0.0
    %1119 = vmatpush1.msra.mxu0 %v1110
    %1120 = vmatprep.subr.mxu0 0.0
    %1121 = vmatpush1.msra.mxu0 %v1109
    %1122 = vmatprep.subr.mxu0 0.0
    %1123 = vmatpush1.msra.mxu0 %v1108
    %1124 = vmatprep.subr.mxu0 0.0
    %1125 = vmatpush1.msra.mxu0 %v1107
    %1126 = vmatprep.subr.mxu0 0.0
    %1127 = vmatpush1.msra.mxu0 %v1106
    %1128 = vmatprep.subr.mxu0 0.0
    %1129 = vmatpush1.msra.mxu0 %v1105
    %1130 = vmatprep.subr.mxu0 0.0
    %1131 = vmatpush1.msra.mxu0 %v1104
    %1132 = vmatprep.subr.mxu0 0.0
    %1133 = vmatpush1.msra.mxu0 %v1103
    %1134 = vmatprep.subr.mxu0 0.0
    %1135 = vmatpush1.msra.mxu0 %v1102
    %1136 = vmatprep.subr.mxu0 0.0
    %1137 = vmatpush1.msra.mxu0 %v1101
    %1138 = vmatprep.subr.mxu0 0.0
    %1139 = vmatpush1.msra.mxu0 %v1100
    %1140 = vmatprep.subr.mxu0 0.0
    %1141 = vmatpush1.msra.mxu0 %v1099
    %1142 = vmatprep.subr.mxu0 0.0
    %1143 = vmatpush1.msra.mxu0 %v1098
    %1144 = vmatprep.subr.mxu0 0.0
    %1145 = vmatpush1.msra.mxu0 %v1097
    %1146 = vmatprep.subr.mxu0 0.0
    %1147 = vmatpush1.msra.mxu0 %v1096
    %1148 = vmatprep.subr.mxu0 0.0
    %1149 = vmatpush1.msra.mxu0 %v1095
    %1150 = vmatprep.subr.mxu0 0.0
    %1151 = vmatpush2.msra.mxu0 0.0
    %1152 = vmatprep.subr.mxu0 0.0
    %1153 = vmatpush2.msra.mxu0 0.0
    %1154 = vmatprep.subr.mxu0 0.0
    %1155 = vmatpush2.msra.mxu0 0.0
    %1156 = vmatprep.subr.mxu0 0.0
    %1157 = vmatpush2.msra.mxu0 0.0
    %1158 = vmatprep.subr.mxu0 0.0
    %1159 = vmatpush2.msra.mxu0 0.0
    %1160 = vmatprep.subr.mxu0 0.0
    %1161 = vmatpush2.msra.mxu0 0.0
    %1162 = vmatprep.subr.mxu0 0.0
    %1163 = vmatpush2.msra.mxu0 0.0
    %1164 = vmatprep.subr.mxu0 0.0
    %1165 = vmatpush2.msra.mxu0 0.0
    %1166 = vmatprep.subr.mxu0 0.0
    %1167 = vmatpush2.msra.mxu0 0.0
    %1168 = vmatprep.subr.mxu0 0.0
    %1169 = vmatpush2.msra.mxu0 0.0
    %1170 = vmatprep.subr.mxu0 0.0
    %1171 = vmatpush2.msra.mxu0 0.0
    %1172 = vmatprep.subr.mxu0 0.0
    %1173 = vmatpush2.msra.mxu0 0.0
    %1174 = vmatprep.subr.mxu0 0.0
    %1175 = vmatpush2.msra.mxu0 0.0
    %1176 = vmatprep.subr.mxu0 0.0
    %1177 = vmatpush2.msra.mxu0 0.0
    %1178 = vmatprep.subr.mxu0 0.0
    %1179 = vmatpush2.msra.mxu0 0.0
    %1180 = vmatprep.subr.mxu0 0.0
    %1181 = vmatpush2.msra.mxu0 0.0
    %1182 = vmatprep.mubr.f32.mxu0 0.0
    %1183 = vmatmul.mubr.f32.gmra.mxu0 %v1094
    %v1184 = vpop.f32.mrf.mxu0
    %v1185 = vadd.f32 %v1116, %v1184
    %v1186 = vpop.f32.mrf.mxu0
    %1187 = vdwg.mxu0
    %1188 = vst [vmem:[#allocation2] sm:$0x3] %v1185
    // Predicated region
    $region22: #{forward.3} parent=1 // pred_check
      _
    $region23: #{forward.3} parent=1 // pred_check_branch
      %1190 = sbr.rel (0) target = $region25
    $region24: #{forward.3} parent=1 // pred_region
      %s1192 = ssub.s32 32, 32
      %1193 = vsyncadd [#allocation3], %s1192
      %s1195 = sshll.u32 [#allocation2], 4
      %s1196 = int_to_ptr.vmem [resolvable:$true] %s1195
      %1198 = dma.vmem_to_hbm [thread:$0]  %s1196, 32, %s5, [#allocation3]
    $region25: #{forward.3} parent=1 // pred_fallthru
      _
    // Predicated region
    $region26: #{forward.3} parent=1 // pred_check
      _
    $region27: #{forward.3} parent=1 // pred_check_branch
      %1200 = sbr.rel (0) target = $region29
    $region28: #{forward.3} parent=1 // pred_region
      %1201 = dma.done [#allocation3], 32
    $region29: #{forward.3} parent=1 // pred_fallthru
      _
    %1202 = vsyncpa [#allocation3], 1

// kernel: forward.2
$region0: #{forward.2}
  #allocation0 [shape = 'u32[]', space=smem, size = 0x4, offset = 0x4, fixed_abs, tag = 'smem constant byte address 0x4 - core index']
  #allocation1 [shape = 'u32[144,128]{1,0:T(1,128)}', space=vmem, size = 0x12000, scoped, tag = 'internal scratch']
  #allocation2 [shape = 'bf16[2,10,16,64]{3,2,1,0:T(8,128)(2,1)}', space=vmem, size = 0x14000, scoped, tag = 'scratch operand']
  #allocation3 [shape = 'bf16[2,6,8,64]{3,2,1,0:T(8,128)(2,1)}', space=vmem, size = 0x6000, scoped, tag = 'scratch operand']
  %s0 = inlined_call_operand.vmem [shape: bf16[2,128,128], index: 0, kind: input, shape index: {}]
  %s1 = inlined_call_operand.vmem [shape: bf16[2,128,64], index: 1, kind: input, shape index: {}]
  %s2 = inlined_call_operand.vmem [shape: f32[2,1,64], index: 2, kind: input, shape index: {}]
  %s3 = inlined_call_operand.vmem [shape: bf16[2,576,64], index: 3, kind: input, shape index: {}]
  %s4 = inlined_call_operand.vmem [shape: f32[2,1,64], index: 4, kind: input, shape index: {}]
  %s5 = inlined_call_operand.vmem [shape: bf16[2,576,128], index: 5, kind: input, shape index: {}]
  %s6 = inlined_call_operand.vmem [shape: f32[2,1,128], index: 6, kind: input, shape index: {}]
  %s7 = inlined_call_operand.vmem [shape: f32[2,6,4,128], index: 7, kind: output, shape index: {}]
  %s8 = sld [smem:[#allocation0]]
  $region61: #{forward.2} parent=0
    _
  %s10 = ssub.s32 1, %s8
  %s11 = scalar_select 0, %s10, %s8
  loop: start=0, step=1, limit=4
  $region2: #{forward.2} parent=0 // loop_pre_header
    _
  $region3: #{forward.2} parent=0 // loop_header
    %s13 = sphi 0, %s17
    %p14 = scmp.ge.s32.totalorder %s13, 4
    %s23 = sphi 0, %s25
    %s26 = sphi 0, %s23
    %s27 = sphi 0, %s26
    %s43 = sphi 0, %s27
    %s49 = sphi 0, %s51
    %s52 = sphi 0, %s49
    %s53 = sphi 0, %s52
    %s69 = sphi 0, %s53
    %s75 = sphi 0, %s77
    %s78 = sphi 0, %s75
    %s79 = sphi 0, %s78
    %s95 = sphi 0, %s79
    %s101 = sphi 0, %s103
    %s104 = sphi 0, %s101
    %s105 = sphi 0, %s104
    %s121 = sphi 0, %s105
    %s127 = sphi 0, %s129
    %s130 = sphi 0, %s127
    %s131 = sphi 0, %s130
    %s147 = sphi 0, %s131
    %s153 = sphi 0, %s155
    %s156 = sphi 0, %s153
    %s157 = sphi 0, %s156
    %s173 = sphi 0, %s157
    %s179 = sphi 0, %s181
    %s182 = sphi 0, %s179
    %s183 = sphi 0, %s182
    %s199 = sphi 0, %s183
    %s205 = sphi 0, %s207
    %s208 = sphi 0, %s205
    %s209 = sphi 0, %s208
    %s225 = sphi 0, %s209
  $region4: #{forward.2} parent=0 // loop_header_branch
    %16 = sbr.rel (%p14) target = $region8
  $region5: #{forward.2} parent=0 // loop_body
    %s18 = ssub.s32 %s13, 1
    %s19 = ssub.s32 %s13, 2
    %s20 = sadd.s32 %s13, 1
    %s21 = ssub.s32 %s13, %s20
    %p22 = scmp.eq.s32.totalorder %s21, 0
    %s24 = sadd.s32 %s23, 1
    %s25 = scalar_select %p22, %s23, %s24
    %p28 = pneg %p22
    %p29 = scmp.eq.s32.totalorder %s13, 1
    %p30 = por %p28, %p29
    %p31 = scmp.ne.s32.totalorder %s23, %s26
    %p32 = scmp.eq.s32.totalorder %s13, 0
    %p33 = por %p31, %p32
    %p34 = scmp.ne.s32.totalorder %s23, %s26
    %p35 = scmp.eq.s32.totalorder %s18, 1
    %p36 = por %p34, %p35
    %p37 = scmp.ne.s32.totalorder %s26, %s27
    %p38 = scmp.eq.s32.totalorder %s18, 0
    %p39 = por %p37, %p38
    %p40 = scmp.ne.s32.totalorder %s26, %s27
    %p41 = scmp.eq.s32.totalorder %s19, 1
    %p42 = por %p40, %p41
    %p44 = scmp.ne.s32.totalorder %s27, %s43
    %p45 = scmp.eq.s32.totalorder %s19, 0
    %p46 = por %p44, %p45
    %s47 = ssub.s32 %s13, %s20
    %p48 = scmp.eq.s32.totalorder %s47, 0
    %s50 = sadd.s32 %s49, 1
    %s51 = scalar_select %p48, %s49, %s50
    %p54 = pneg %p48
    %p55 = scmp.eq.s32.totalorder %s13, 1
    %p56 = por %p54, %p55
    %p57 = scmp.ne.s32.totalorder %s49, %s52
    %p58 = scmp.eq.s32.totalorder %s13, 0
    %p59 = por %p57, %p58
    %p60 = scmp.ne.s32.totalorder %s49, %s52
    %p61 = scmp.eq.s32.totalorder %s18, 1
    %p62 = por %p60, %p61
    %p63 = scmp.ne.s32.totalorder %s52, %s53
    %p64 = scmp.eq.s32.totalorder %s18, 0
    %p65 = por %p63, %p64
    %p66 = scmp.ne.s32.totalorder %s52, %s53
    %p67 = scmp.eq.s32.totalorder %s19, 1
    %p68 = por %p66, %p67
    %p70 = scmp.ne.s32.totalorder %s53, %s69
    %p71 = scmp.eq.s32.totalorder %s19, 0
    %p72 = por %p70, %p71
    %s73 = ssub.s32 %s13, %s20
    %p74 = scmp.eq.s32.totalorder %s73, 0
    %s76 = sadd.s32 %s75, 1
    %s77 = scalar_select %p74, %s75, %s76
    %p80 = pneg %p74
    %p81 = scmp.eq.s32.totalorder %s13, 1
    %p82 = por %p80, %p81
    %p83 = scmp.ne.s32.totalorder %s75, %s78
    %p84 = scmp.eq.s32.totalorder %s13, 0
    %p85 = por %p83, %p84
    %p86 = scmp.ne.s32.totalorder %s75, %s78
    %p87 = scmp.eq.s32.totalorder %s18, 1
    %p88 = por %p86, %p87
    %p89 = scmp.ne.s32.totalorder %s78, %s79
    %p90 = scmp.eq.s32.totalorder %s18, 0
    %p91 = por %p89, %p90
    %p92 = scmp.ne.s32.totalorder %s78, %s79
    %p93 = scmp.eq.s32.totalorder %s19, 1
    %p94 = por %p92, %p93
    %p96 = scmp.ne.s32.totalorder %s79, %s95
    %p97 = scmp.eq.s32.totalorder %s19, 0
    %p98 = por %p96, %p97
    %s99 = ssub.s32 %s13, %s20
    %p100 = scmp.eq.s32.totalorder %s99, 0
    %s102 = sadd.s32 %s101, 1
    %s103 = scalar_select %p100, %s101, %s102
    %p106 = pneg %p100
    %p107 = scmp.eq.s32.totalorder %s13, 1
    %p108 = por %p106, %p107
    %p109 = scmp.ne.s32.totalorder %s101, %s104
    %p110 = scmp.eq.s32.totalorder %s13, 0
    %p111 = por %p109, %p110
    %p112 = scmp.ne.s32.totalorder %s101, %s104
    %p113 = scmp.eq.s32.totalorder %s18, 1
    %p114 = por %p112, %p113
    %p115 = scmp.ne.s32.totalorder %s104, %s105
    %p116 = scmp.eq.s32.totalorder %s18, 0
    %p117 = por %p115, %p116
    %p118 = scmp.ne.s32.totalorder %s104, %s105
    %p119 = scmp.eq.s32.totalorder %s19, 1
    %p120 = por %p118, %p119
    %p122 = scmp.ne.s32.totalorder %s105, %s121
    %p123 = scmp.eq.s32.totalorder %s19, 0
    %p124 = por %p122, %p123
    %s125 = ssub.s32 %s13, %s20
    %p126 = scmp.eq.s32.totalorder %s125, 0
    %s128 = sadd.s32 %s127, 1
    %s129 = scalar_select %p126, %s127, %s128
    %p132 = pneg %p126
    %p133 = scmp.eq.s32.totalorder %s13, 1
    %p134 = por %p132, %p133
    %p135 = scmp.ne.s32.totalorder %s127, %s130
    %p136 = scmp.eq.s32.totalorder %s13, 0
    %p137 = por %p135, %p136
    %p138 = scmp.ne.s32.totalorder %s127, %s130
    %p139 = scmp.eq.s32.totalorder %s18, 1
    %p140 = por %p138, %p139
    %p141 = scmp.ne.s32.totalorder %s130, %s131
    %p142 = scmp.eq.s32.totalorder %s18, 0
    %p143 = por %p141, %p142
    %p144 = scmp.ne.s32.totalorder %s130, %s131
    %p145 = scmp.eq.s32.totalorder %s19, 1
    %p146 = por %p144, %p145
    %p148 = scmp.ne.s32.totalorder %s131, %s147
    %p149 = scmp.eq.s32.totalorder %s19, 0
    %p150 = por %p148, %p149
    %s151 = ssub.s32 %s13, %s20
    %p152 = scmp.eq.s32.totalorder %s151, 0
    %s154 = sadd.s32 %s153, 1
    %s155 = scalar_select %p152, %s153, %s154
    %p158 = pneg %p152
    %p159 = scmp.eq.s32.totalorder %s13, 1
    %p160 = por %p158, %p159
    %p161 = scmp.ne.s32.totalorder %s153, %s156
    %p162 = scmp.eq.s32.totalorder %s13, 0
    %p163 = por %p161, %p162
    %p164 = scmp.ne.s32.totalorder %s153, %s156
    %p165 = scmp.eq.s32.totalorder %s18, 1
    %p166 = por %p164, %p165
    %p167 = scmp.ne.s32.totalorder %s156, %s157
    %p168 = scmp.eq.s32.totalorder %s18, 0
    %p169 = por %p167, %p168
    %p170 = scmp.ne.s32.totalorder %s156, %s157
    %p171 = scmp.eq.s32.totalorder %s19, 1
    %p172 = por %p170, %p171
    %p174 = scmp.ne.s32.totalorder %s157, %s173
    %p175 = scmp.eq.s32.totalorder %s19, 0
    %p176 = por %p174, %p175
    %s177 = ssub.s32 %s13, %s20
    %p178 = scmp.eq.s32.totalorder %s177, 0
    %s180 = sadd.s32 %s179, 1
    %s181 = scalar_select %p178, %s179, %s180
    %p184 = pneg %p178
    %p185 = scmp.eq.s32.totalorder %s13, 1
    %p186 = por %p184, %p185
    %p187 = scmp.ne.s32.totalorder %s179, %s182
    %p188 = scmp.eq.s32.totalorder %s13, 0
    %p189 = por %p187, %p188
    %p190 = scmp.ne.s32.totalorder %s179, %s182
    %p191 = scmp.eq.s32.totalorder %s18, 1
    %p192 = por %p190, %p191
    %p193 = scmp.ne.s32.totalorder %s182, %s183
    %p194 = scmp.eq.s32.totalorder %s18, 0
    %p195 = por %p193, %p194
    %p196 = scmp.ne.s32.totalorder %s182, %s183
    %p197 = scmp.eq.s32.totalorder %s19, 1
    %p198 = por %p196, %p197
    %p200 = scmp.ne.s32.totalorder %s183, %s199
    %p201 = scmp.eq.s32.totalorder %s19, 0
    %p202 = por %p200, %p201
    %s203 = ssub.s32 %s13, %s20
    %p204 = scmp.eq.s32.totalorder %s203, 0
    %s206 = sadd.s32 %s205, 1
    %s207 = scalar_select %p204, %s205, %s206
    %p210 = pneg %p204
    %p211 = scmp.eq.s32.totalorder %s13, 1
    %p212 = por %p210, %p211
    %p213 = scmp.ne.s32.totalorder %s205, %s208
    %p214 = scmp.eq.s32.totalorder %s13, 0
    %p215 = por %p213, %p214
    %p216 = scmp.ne.s32.totalorder %s205, %s208
    %p217 = scmp.eq.s32.totalorder %s18, 1
    %p218 = por %p216, %p217
    %p219 = scmp.ne.s32.totalorder %s208, %s209
    %p220 = scmp.eq.s32.totalorder %s18, 0
    %p221 = por %p219, %p220
    %p222 = scmp.ne.s32.totalorder %s208, %s209
    %p223 = scmp.eq.s32.totalorder %s19, 1
    %p224 = por %p222, %p223
    %p226 = scmp.ne.s32.totalorder %s209, %s225
    %p227 = scmp.eq.s32.totalorder %s19, 0
    %p228 = por %p226, %p227
    %p229 = scmp.le.s32.totalorder 1, %s13
    %p230 = scmp.lt.s32.totalorder %s13, 3
    %p231 = pnand %p229, %p230
    %p232 = pneg %p231
    // Predicated region
    $region9: #{forward.2} parent=5 // pred_check
      _
    $region10: #{forward.2} parent=5 // pred_check_branch
      %234 = sbr.rel (%p231) target = $region12
    $region11: #{forward.2} parent=5 // pred_region
      %s235 = ssub.s32 %s13, 1
    $region12: #{forward.2} parent=5 // pred_fallthru
      _
    %p236 = scmp.lt.s32.totalorder %s13, 2
    // Predicated region
    $region13: #{forward.2} parent=5 // pred_check
      %p237 = pneg %p236
    $region14: #{forward.2} parent=5 // pred_check_branch
      %239 = sbr.rel (%p237) target = $region16
    $region15: #{forward.2} parent=5 // pred_region
      // Predicated region
      $region17: #{forward.2} parent=15 // pred_check
        %p240 = pneg %p33
      $region18: #{forward.2} parent=15 // pred_check_branch
        %242 = sbr.rel (%p240) target = $region20
      $region19: #{forward.2} parent=15 // pred_region
        %p243 = scmp.lt.s32.totalorder %s13, 1
        %s244 = scalar_select %p243, %s13, 1
        %s245 = smul.addr %s244, 16
        %s246 = smul.addr %s245, 4
        %s247 = scalar_lea.vmem %s0, %s246
      $region20: #{forward.2} parent=15 // pred_fallthru
        _
      // Predicated region
      $region21: #{forward.2} parent=15 // pred_check
        %p248 = pneg %p59
      $region22: #{forward.2} parent=15 // pred_check_branch
        %250 = sbr.rel (%p248) target = $region24
      $region23: #{forward.2} parent=15 // pred_region
        %p251 = scmp.lt.s32.totalorder %s13, 1
        %s252 = scalar_select %p251, %s13, 1
        %s253 = smul.addr %s252, 16
        %s254 = smul.addr %s253, 4
        %s255 = scalar_lea.vmem %s1, %s254
      $region24: #{forward.2} parent=15 // pred_fallthru
        _
      // Predicated region
      $region25: #{forward.2} parent=15 // pred_check
        %p256 = pneg %p85
      $region26: #{forward.2} parent=15 // pred_check_branch
        %258 = sbr.rel (%p256) target = $region28
      $region27: #{forward.2} parent=15 // pred_region
        %p259 = scmp.lt.s32.totalorder %s13, 1
        %s260 = scalar_select %p259, %s13, 1
        %s261 = scalar_lea.vmem %s2, %s260
      $region28: #{forward.2} parent=15 // pred_fallthru
        _
      // Predicated region
      $region29: #{forward.2} parent=15 // pred_check
        %p262 = pneg %p111
      $region30: #{forward.2} parent=15 // pred_check_branch
        %264 = sbr.rel (%p262) target = $region32
      $region31: #{forward.2} parent=15 // pred_region
        %p265 = scmp.lt.s32.totalorder %s13, 1
        %s266 = scalar_select %p265, %s13, 1
        %s267 = smul.addr %s266, 72
        %s268 = smul.addr %s267, 4
        %s269 = scalar_lea.vmem %s3, %s268
      $region32: #{forward.2} parent=15 // pred_fallthru
        _
      // Predicated region
      $region33: #{forward.2} parent=15 // pred_check
        %p270 = pneg %p137
      $region34: #{forward.2} parent=15 // pred_check_branch
        %272 = sbr.rel (%p270) target = $region36
      $region35: #{forward.2} parent=15 // pred_region
        %p273 = scmp.lt.s32.totalorder %s13, 1
        %s274 = scalar_select %p273, %s13, 1
        %s275 = scalar_lea.vmem %s4, %s274
      $region36: #{forward.2} parent=15 // pred_fallthru
        _
      // Predicated region
      $region37: #{forward.2} parent=15 // pred_check
        %p276 = pneg %p163
      $region38: #{forward.2} parent=15 // pred_check_branch
        %278 = sbr.rel (%p276) target = $region40
      $region39: #{forward.2} parent=15 // pred_region
        %p279 = scmp.lt.s32.totalorder %s13, 1
        %s280 = scalar_select %p279, %s13, 1
        %s281 = smul.addr %s280, 72
        %s282 = smul.addr %s281, 4
        %s283 = scalar_lea.vmem %s5, %s282
      $region40: #{forward.2} parent=15 // pred_fallthru
        _
      // Predicated region
      $region41: #{forward.2} parent=15 // pred_check
        %p284 = pneg %p189
      $region42: #{forward.2} parent=15 // pred_check_branch
        %286 = sbr.rel (%p284) target = $region44
      $region43: #{forward.2} parent=15 // pred_region
        %p287 = scmp.lt.s32.totalorder %s13, 1
        %s288 = scalar_select %p287, %s13, 1
        %s289 = scalar_lea.vmem %s6, %s288
      $region44: #{forward.2} parent=15 // pred_fallthru
        _
    $region16: #{forward.2} parent=5 // pred_fallthru
      _
    %p290 = scmp.le.s32.totalorder 1, %s13
    %p291 = scmp.lt.s32.totalorder %s13, 3
    %p292 = pnand %p290, %p291
    %p293 = pneg %p292
    // Predicated region
    $region45: #{forward.2} parent=5 // pred_check
      _
    $region46: #{forward.2} parent=5 // pred_check_branch
      %295 = sbr.rel (%p292) target = $region48
    $region47: #{forward.2} parent=5 // pred_region
      %s296 = ssub.s32 %s13, 1
      %p297 = scmp.lt.s32.totalorder %s18, 1
      %s298 = scalar_select %p297, %s18, 1
      %s299 = smul.addr %s298, 16
      %s300 = smul.addr %s299, 4
      %s301 = scalar_lea.vmem %s0, %s300
      %p302 = pneg %p39
      %p303 = pneg %p36
      %p304 = scmp.lt.s32.totalorder %s18, 1
      %s305 = scalar_select %p304, %s18, 1
      %s306 = smul.addr %s305, 16
      %s307 = smul.addr %s306, 4
      %s308 = scalar_lea.vmem %s1, %s307
      %p309 = pneg %p65
      %p310 = pneg %p62
      %p311 = scmp.lt.s32.totalorder %s18, 1
      %s312 = scalar_select %p311, %s18, 1
      %s313 = scalar_lea.vmem %s2, %s312
      %p314 = pneg %p91
      %p315 = pneg %p88
      %p316 = scmp.lt.s32.totalorder %s18, 1
      %s317 = scalar_select %p316, %s18, 1
      %s318 = smul.addr %s317, 72
      %s319 = smul.addr %s318, 4
      %s320 = scalar_lea.vmem %s3, %s319
      %p321 = pneg %p117
      %p322 = pneg %p114
      %p323 = scmp.lt.s32.totalorder %s18, 1
      %s324 = scalar_select %p323, %s18, 1
      %s325 = scalar_lea.vmem %s4, %s324
      %p326 = pneg %p143
      %p327 = pneg %p140
      %p328 = scmp.lt.s32.totalorder %s18, 1
      %s329 = scalar_select %p328, %s18, 1
      %s330 = smul.addr %s329, 72
      %s331 = smul.addr %s330, 4
      %s332 = scalar_lea.vmem %s5, %s331
      %p333 = pneg %p169
      %p334 = pneg %p166
      %p335 = scmp.lt.s32.totalorder %s18, 1
      %s336 = scalar_select %p335, %s18, 1
      %s337 = scalar_lea.vmem %s6, %s336
      %p338 = pneg %p195
      %p339 = pneg %p192
      %p340 = pneg %p221
      %p341 = pneg %p218
      %p342 = scmp.lt.s32.totalorder %s18, 1
      %s343 = scalar_select %p342, %s18, 1
      %s344 = smul.addr %s343, 6
      %s345 = smul.addr %s344, 4
      %s346 = scalar_lea.vmem %s7, %s345
      %p347 = scmp.lt.s32.totalorder %s18, 1
      %s348 = scalar_select %p347, %s18, 1
      %s349 = smul.addr %s348, 16
      %s350 = smul.addr %s349, 4
      %s351 = scalar_lea.vmem %s0, %s350
      %p352 = scmp.lt.s32.totalorder %s18, 1
      %s353 = scalar_select %p352, %s18, 1
      %s354 = smul.addr %s353, 16
      %s355 = smul.addr %s354, 4
      %s356 = scalar_lea.vmem %s1, %s355
      %p357 = scmp.lt.s32.totalorder %s18, 1
      %s358 = scalar_select %p357, %s18, 1
      %s359 = scalar_lea.vmem %s2, %s358
      %p360 = scmp.lt.s32.totalorder %s18, 1
      %s361 = scalar_select %p360, %s18, 1
      %s362 = smul.addr %s361, 72
      %s363 = smul.addr %s362, 4
      %s364 = scalar_lea.vmem %s3, %s363
      %p365 = scmp.lt.s32.totalorder %s18, 1
      %s366 = scalar_select %p365, %s18, 1
      %s367 = scalar_lea.vmem %s4, %s366
      %p368 = scmp.lt.s32.totalorder %s18, 1
      %s369 = scalar_select %p368, %s18, 1
      %s370 = smul.addr %s369, 72
      %s371 = smul.addr %s370, 4
      %s372 = scalar_lea.vmem %s5, %s371
      %p373 = scmp.lt.s32.totalorder %s18, 1
      %s374 = scalar_select %p373, %s18, 1
      %s375 = scalar_lea.vmem %s6, %s374
      %p376 = scmp.lt.s32.totalorder %s18, 1
      %s377 = scalar_select %p376, %s18, 1
      %s378 = smul.addr %s377, 6
      %s379 = smul.addr %s378, 4
      %s380 = scalar_lea.vmem %s7, %s379
      %vm382 = vcmask 519168
      %383 = vst.msk [vmem:[#allocation2] sm:$0xf] %vm382, 0
      %384 = vst.msk [vmem:[#allocation2 + $0x4] sm:$0xf] %vm382, 0
      %385 = vst.msk [vmem:[#allocation2 + $0x50] sm:$0xf] %vm382, 0
      %386 = vst.msk [vmem:[#allocation2 + $0x54] sm:$0xf] %vm382, 0
      %s387 = scalar_lea.vmem [#allocation2], 72
      %388 = vst.msk [vmem:[%s387] sm:$0xf] %vm382, 0
      %389 = vst.msk [vmem:[%s387 + $0x4] sm:$0xf] %vm382, 0
      %390 = vst.msk [vmem:[%s387 + $0x50] sm:$0xf] %vm382, 0
      %391 = vst.msk [vmem:[%s387 + $0x54] sm:$0xf] %vm382, 0
      %vm392 = vcmask 516096
      %vm393 = vsmask.f32 256
      %vm394 = vmand %vm392, %vm393
      %v395 = vld [vmem:[#allocation2] sm:$0x1]
      %v396 = vsel %vm394, 0, %v395
      %397 = vst [vmem:[#allocation2] sm:$0x1] %v396
      %v398 = vld [vmem:[#allocation2 + $0x8] sm:$0x1]
      %v399 = vsel %vm394, 0, %v398
      %400 = vst [vmem:[#allocation2 + $0x8] sm:$0x1] %v399
      %v401 = vld [vmem:[#allocation2 + $0x10] sm:$0x1]
      %v402 = vsel %vm394, 0, %v401
      %403 = vst [vmem:[#allocation2 + $0x10] sm:$0x1] %v402
      %v404 = vld [vmem:[#allocation2 + $0x18] sm:$0x1]
      %v405 = vsel %vm394, 0, %v404
      %406 = vst [vmem:[#allocation2 + $0x18] sm:$0x1] %v405
      %v407 = vld [vmem:[#allocation2 + $0x20] sm:$0x1]
      %v408 = vsel %vm394, 0, %v407
      %409 = vst [vmem:[#allocation2 + $0x20] sm:$0x1] %v408
      %v410 = vld [vmem:[#allocation2 + $0x28] sm:$0x1]
      %v411 = vsel %vm394, 0, %v410
      %412 = vst [vmem:[#allocation2 + $0x28] sm:$0x1] %v411
      %v413 = vld [vmem:[#allocation2 + $0x30] sm:$0x1]
      %v414 = vsel %vm394, 0, %v413
      %415 = vst [vmem:[#allocation2 + $0x30] sm:$0x1] %v414
      %v416 = vld [vmem:[#allocation2 + $0x38] sm:$0x1]
      %v417 = vsel %vm394, 0, %v416
      %418 = vst [vmem:[#allocation2 + $0x38] sm:$0x1] %v417
      %v419 = vld [vmem:[#allocation2 + $0x40] sm:$0x1]
      %v420 = vsel %vm394, 0, %v419
      %421 = vst [vmem:[#allocation2 + $0x40] sm:$0x1] %v420
      %v422 = vld [vmem:[#allocation2 + $0x48] sm:$0x1]
      %v423 = vsel %vm394, 0, %v422
      %424 = vst [vmem:[#allocation2 + $0x48] sm:$0x1] %v423
      %v425 = vld [vmem:[#allocation2 + $0x50] sm:$0x1]
      %v426 = vsel %vm394, 0, %v425
      %427 = vst [vmem:[#allocation2 + $0x50] sm:$0x1] %v426
      %v428 = vld [vmem:[#allocation2 + $0x58] sm:$0x1]
      %v429 = vsel %vm394, 0, %v428
      %430 = vst [vmem:[#allocation2 + $0x58] sm:$0x1] %v429
      %v431 = vld [vmem:[#allocation2 + $0x60] sm:$0x1]
      %v432 = vsel %vm394, 0, %v431
      %433 = vst [vmem:[#allocation2 + $0x60] sm:$0x1] %v432
      %v434 = vld [vmem:[#allocation2 + $0x68] sm:$0x1]
      %v435 = vsel %vm394, 0, %v434
      %436 = vst [vmem:[#allocation2 + $0x68] sm:$0x1] %v435
      %v437 = vld [vmem:[#allocation2 + $0x70] sm:$0x1]
      %v438 = vsel %vm394, 0, %v437
      %439 = vst [vmem:[#allocation2 + $0x70] sm:$0x1] %v438
      %v440 = vld [vmem:[#allocation2 + $0x78] sm:$0x1]
      %v441 = vsel %vm394, 0, %v440
      %442 = vst [vmem:[#allocation2 + $0x78] sm:$0x1] %v441
      %v443 = vld [vmem:[#allocation2 + $0x80] sm:$0x1]
      %v444 = vsel %vm394, 0, %v443
      %445 = vst [vmem:[#allocation2 + $0x80] sm:$0x1] %v444
      %v446 = vld [vmem:[#allocation2 + $0x88] sm:$0x1]
      %v447 = vsel %vm394, 0, %v446
      %448 = vst [vmem:[#allocation2 + $0x88] sm:$0x1] %v447
      %v449 = vld [vmem:[#allocation2 + $0x90] sm:$0x1]
      %v450 = vsel %vm394, 0, %v449
      %451 = vst [vmem:[#allocation2 + $0x90] sm:$0x1] %v450
      %v452 = vld [vmem:[#allocation2 + $0x98] sm:$0x1]
      %v453 = vsel %vm394, 0, %v452
      %454 = vst [vmem:[#allocation2 + $0x98] sm:$0x1] %v453
      %vm455 = vsmask.f32 7938
      %vm456 = vmand %vm392, %vm455
      %v457 = vld [vmem:[#allocation2 + $0x4] sm:$0x1]
      %v458 = vsel %vm456, 0, %v457
      %459 = vst [vmem:[#allocation2 + $0x4] sm:$0x1] %v458
      %v460 = vld [vmem:[#allocation2 + $0xc] sm:$0x1]
      %v461 = vsel %vm456, 0, %v460
      %462 = vst [vmem:[#allocation2 + $0xc] sm:$0x1] %v461
      %v463 = vld [vmem:[#allocation2 + $0x14] sm:$0x1]
      %v464 = vsel %vm456, 0, %v463
      %465 = vst [vmem:[#allocation2 + $0x14] sm:$0x1] %v464
      %v466 = vld [vmem:[#allocation2 + $0x1c] sm:$0x1]
      %v467 = vsel %vm456, 0, %v466
      %468 = vst [vmem:[#allocation2 + $0x1c] sm:$0x1] %v467
      %v469 = vld [vmem:[#allocation2 + $0x24] sm:$0x1]
      %v470 = vsel %vm456, 0, %v469
      %471 = vst [vmem:[#allocation2 + $0x24] sm:$0x1] %v470
      %v472 = vld [vmem:[#allocation2 + $0x2c] sm:$0x1]
      %v473 = vsel %vm456, 0, %v472
      %474 = vst [vmem:[#allocation2 + $0x2c] sm:$0x1] %v473
      %v475 = vld [vmem:[#allocation2 + $0x34] sm:$0x1]
      %v476 = vsel %vm456, 0, %v475
      %477 = vst [vmem:[#allocation2 + $0x34] sm:$0x1] %v476
      %v478 = vld [vmem:[#allocation2 + $0x3c] sm:$0x1]
      %v479 = vsel %vm456, 0, %v478
      %480 = vst [vmem:[#allocation2 + $0x3c] sm:$0x1] %v479
      %v481 = vld [vmem:[#allocation2 + $0x44] sm:$0x1]
      %v482 = vsel %vm456, 0, %v481
      %483 = vst [vmem:[#allocation2 + $0x44] sm:$0x1] %v482
      %v484 = vld [vmem:[#allocation2 + $0x4c] sm:$0x1]
      %v485 = vsel %vm456, 0, %v484
      %486 = vst [vmem:[#allocation2 + $0x4c] sm:$0x1] %v485
      %v487 = vld [vmem:[#allocation2 + $0x54] sm:$0x1]
      %v488 = vsel %vm456, 0, %v487
      %489 = vst [vmem:[#allocation2 + $0x54] sm:$0x1] %v488
      %v490 = vld [vmem:[#allocation2 + $0x5c] sm:$0x1]
      %v491 = vsel %vm456, 0, %v490
      %492 = vst [vmem:[#allocation2 + $0x5c] sm:$0x1] %v491
      %v493 = vld [vmem:[#allocation2 + $0x64] sm:$0x1]
      %v494 = vsel %vm456, 0, %v493
      %495 = vst [vmem:[#allocation2 + $0x64] sm:$0x1] %v494
      %v496 = vld [vmem:[#allocation2 + $0x6c] sm:$0x1]
      %v497 = vsel %vm456, 0, %v496
      %498 = vst [vmem:[#allocation2 + $0x6c] sm:$0x1] %v497
      %v499 = vld [vmem:[#allocation2 + $0x74] sm:$0x1]
      %v500 = vsel %vm456, 0, %v499
      %501 = vst [vmem:[#allocation2 + $0x74] sm:$0x1] %v500
      %v502 = vld [vmem:[#allocation2 + $0x7c] sm:$0x1]
      %v503 = vsel %vm456, 0, %v502
      %504 = vst [vmem:[#allocation2 + $0x7c] sm:$0x1] %v503
      %v505 = vld [vmem:[#allocation2 + $0x84] sm:$0x1]
      %v506 = vsel %vm456, 0, %v505
      %507 = vst [vmem:[#allocation2 + $0x84] sm:$0x1] %v506
      %v508 = vld [vmem:[#allocation2 + $0x8c] sm:$0x1]
      %v509 = vsel %vm456, 0, %v508
      %510 = vst [vmem:[#allocation2 + $0x8c] sm:$0x1] %v509
      %v511 = vld [vmem:[#allocation2 + $0x94] sm:$0x1]
      %v512 = vsel %vm456, 0, %v511
      %513 = vst [vmem:[#allocation2 + $0x94] sm:$0x1] %v512
      %v514 = vld [vmem:[#allocation2 + $0x9c] sm:$0x1]
      %v515 = vsel %vm456, 0, %v514
      %516 = vst [vmem:[#allocation2 + $0x9c] sm:$0x1] %v515
      %517 = vst.msk [vmem:[#allocation3] sm:$0xf] %vm382, 0
      %518 = vst.msk [vmem:[#allocation3 + $0x18] sm:$0xf] %vm382, 0
      %s519 = scalar_lea.vmem [#allocation3], 20
      %520 = vst.msk [vmem:[%s519] sm:$0xf] %vm382, 0
      %521 = vst.msk [vmem:[%s519 + $0x18] sm:$0xf] %vm382, 0
      %v522 = vld [vmem:[#allocation3] sm:$0x1]
      %v523 = vsel %vm394, 0, %v522
      %524 = vst [vmem:[#allocation3] sm:$0x1] %v523
      %v525 = vld [vmem:[#allocation3 + $0x4] sm:$0x1]
      %v526 = vsel %vm394, 0, %v525
      %527 = vst [vmem:[#allocation3 + $0x4] sm:$0x1] %v526
      %v528 = vld [vmem:[#allocation3 + $0x8] sm:$0x1]
      %v529 = vsel %vm394, 0, %v528
      %530 = vst [vmem:[#allocation3 + $0x8] sm:$0x1] %v529
      %v531 = vld [vmem:[#allocation3 + $0xc] sm:$0x1]
      %v532 = vsel %vm394, 0, %v531
      %533 = vst [vmem:[#allocation3 + $0xc] sm:$0x1] %v532
      %v534 = vld [vmem:[#allocation3 + $0x10] sm:$0x1]
      %v535 = vsel %vm394, 0, %v534
      %536 = vst [vmem:[#allocation3 + $0x10] sm:$0x1] %v535
      %v537 = vld [vmem:[#allocation3 + $0x14] sm:$0x1]
      %v538 = vsel %vm394, 0, %v537
      %539 = vst [vmem:[#allocation3 + $0x14] sm:$0x1] %v538
      %v540 = vld [vmem:[#allocation3 + $0x18] sm:$0x1]
      %v541 = vsel %vm394, 0, %v540
      %542 = vst [vmem:[#allocation3 + $0x18] sm:$0x1] %v541
      %v543 = vld [vmem:[#allocation3 + $0x1c] sm:$0x1]
      %v544 = vsel %vm394, 0, %v543
      %545 = vst [vmem:[#allocation3 + $0x1c] sm:$0x1] %v544
      %v546 = vld [vmem:[#allocation3 + $0x20] sm:$0x1]
      %v547 = vsel %vm394, 0, %v546
      %548 = vst [vmem:[#allocation3 + $0x20] sm:$0x1] %v547
      %v549 = vld [vmem:[#allocation3 + $0x24] sm:$0x1]
      %v550 = vsel %vm394, 0, %v549
      %551 = vst [vmem:[#allocation3 + $0x24] sm:$0x1] %v550
      %v552 = vld [vmem:[#allocation3 + $0x28] sm:$0x1]
      %v553 = vsel %vm394, 0, %v552
      %554 = vst [vmem:[#allocation3 + $0x28] sm:$0x1] %v553
      %v555 = vld [vmem:[#allocation3 + $0x2c] sm:$0x1]
      %v556 = vsel %vm394, 0, %v555
      %557 = vst [vmem:[#allocation3 + $0x2c] sm:$0x1] %v556
      %vm558 = vcmask 518146
      %vm559 = vsmask.f32 7946
      %vm560 = vmand %vm558, %vm559
      %v561 = vld [vmem:[#allocation3] sm:$0x4]
      %v562 = vsel %vm560, 0, %v561
      %563 = vst [vmem:[#allocation3] sm:$0x4] %v562
      %v564 = vld [vmem:[#allocation3 + $0x4] sm:$0x4]
      %v565 = vsel %vm560, 0, %v564
      %566 = vst [vmem:[#allocation3 + $0x4] sm:$0x4] %v565
      %v567 = vld [vmem:[#allocation3 + $0x8] sm:$0x4]
      %v568 = vsel %vm560, 0, %v567
      %569 = vst [vmem:[#allocation3 + $0x8] sm:$0x4] %v568
      %v570 = vld [vmem:[#allocation3 + $0xc] sm:$0x4]
      %v571 = vsel %vm560, 0, %v570
      %572 = vst [vmem:[#allocation3 + $0xc] sm:$0x4] %v571
      %v573 = vld [vmem:[#allocation3 + $0x10] sm:$0x4]
      %v574 = vsel %vm560, 0, %v573
      %575 = vst [vmem:[#allocation3 + $0x10] sm:$0x4] %v574
      %v576 = vld [vmem:[#allocation3 + $0x14] sm:$0x4]
      %v577 = vsel %vm560, 0, %v576
      %578 = vst [vmem:[#allocation3 + $0x14] sm:$0x4] %v577
      %v579 = vld [vmem:[#allocation3 + $0x18] sm:$0x4]
      %v580 = vsel %vm560, 0, %v579
      %581 = vst [vmem:[#allocation3 + $0x18] sm:$0x4] %v580
      %v582 = vld [vmem:[#allocation3 + $0x1c] sm:$0x4]
      %v583 = vsel %vm560, 0, %v582
      %584 = vst [vmem:[#allocation3 + $0x1c] sm:$0x4] %v583
      %v585 = vld [vmem:[#allocation3 + $0x20] sm:$0x4]
      %v586 = vsel %vm560, 0, %v585
      %587 = vst [vmem:[#allocation3 + $0x20] sm:$0x4] %v586
      %v588 = vld [vmem:[#allocation3 + $0x24] sm:$0x4]
      %v589 = vsel %vm560, 0, %v588
      %590 = vst [vmem:[#allocation3 + $0x24] sm:$0x4] %v589
      %v591 = vld [vmem:[#allocation3 + $0x28] sm:$0x4]
      %v592 = vsel %vm560, 0, %v591
      %593 = vst [vmem:[#allocation3 + $0x28] sm:$0x4] %v592
      %v594 = vld [vmem:[#allocation3 + $0x2c] sm:$0x4]
      %v595 = vsel %vm560, 0, %v594
      %596 = vst [vmem:[#allocation3 + $0x2c] sm:$0x4] %v595
      %v597 = vld [vmem:[%s351] sm:$0xf]
      %v598 = vld [vmem:[%s351 + $0x4] sm:$0xf]
      %v599 = vld [vmem:[%s351 + $0x8] sm:$0xf]
      %v600 = vld [vmem:[%s351 + $0xc] sm:$0xf]
      %v601 = vld [vmem:[%s351 + $0x10] sm:$0xf]
      %v602 = vld [vmem:[%s351 + $0x14] sm:$0xf]
      %v603 = vld [vmem:[%s351 + $0x18] sm:$0xf]
      %v604 = vld [vmem:[%s351 + $0x1c] sm:$0xf]
      %v605 = vld [vmem:[%s351 + $0x20] sm:$0xf]
      %v606 = vld [vmem:[%s351 + $0x24] sm:$0xf]
      %v607 = vld [vmem:[%s351 + $0x28] sm:$0xf]
      %v608 = vld [vmem:[%s351 + $0x2c] sm:$0xf]
      %v609 = vld [vmem:[%s351 + $0x30] sm:$0xf]
      %v610 = vld [vmem:[%s351 + $0x34] sm:$0xf]
      %v611 = vld [vmem:[%s351 + $0x38] sm:$0xf]
      %v612 = vld [vmem:[%s351 + $0x3c] sm:$0xf]
      %v613 = vld [vmem:[%s356] sm:$0xf]
      %v614 = vld [vmem:[%s356 + $0x4] sm:$0xf]
      %v615 = vld [vmem:[%s356 + $0x8] sm:$0xf]
      %v616 = vld [vmem:[%s356 + $0xc] sm:$0xf]
      %v617 = vld [vmem:[%s356 + $0x10] sm:$0xf]
      %v618 = vld [vmem:[%s356 + $0x14] sm:$0xf]
      %v619 = vld [vmem:[%s356 + $0x18] sm:$0xf]
      %v620 = vld [vmem:[%s356 + $0x1c] sm:$0xf]
      %v621 = vld [vmem:[%s356 + $0x20] sm:$0xf]
      %v622 = vld [vmem:[%s356 + $0x24] sm:$0xf]
      %v623 = vld [vmem:[%s356 + $0x28] sm:$0xf]
      %v624 = vld [vmem:[%s356 + $0x2c] sm:$0xf]
      %v625 = vld [vmem:[%s356 + $0x30] sm:$0xf]
      %v626 = vld [vmem:[%s356 + $0x34] sm:$0xf]
      %v627 = vld [vmem:[%s356 + $0x38] sm:$0xf]
      %v628 = vld [vmem:[%s356 + $0x3c] sm:$0xf]
      %v629 = vld [vmem:[%s359] sm:$0x1]
      %v631 = vlaneseq
      %v632 = vshrl.u32 %v631, 7
      %v633 = vsub.s32 0, %v632
      %v634 = vrot.slane %v629, %v633
      %v652 = vunpack.c.l.b16 %v597
      %v653 = vunpack.c.l.b16 %v598
      %v654 = vunpack.c.l.b16 %v599
      %v655 = vunpack.c.l.b16 %v600
      %v656 = vunpack.c.l.b16 %v601
      %v657 = vunpack.c.l.b16 %v602
      %v658 = vunpack.c.l.b16 %v603
      %v659 = vunpack.c.l.b16 %v604
      %v660 = vunpack.c.l.b16 %v605
      %v661 = vunpack.c.l.b16 %v606
      %v662 = vunpack.c.l.b16 %v607
      %v663 = vunpack.c.l.b16 %v608
      %v664 = vunpack.c.l.b16 %v609
      %v665 = vunpack.c.l.b16 %v610
      %v666 = vunpack.c.l.b16 %v611
      %v667 = vunpack.c.l.b16 %v612
      %v668 = vpack.c.b16 %v653, %v652
      %v669 = vpack.c.b16 %v655, %v654
      %v670 = vpack.c.b16 %v657, %v656
      %v671 = vpack.c.b16 %v659, %v658
      %v672 = vpack.c.b16 %v661, %v660
      %v673 = vpack.c.b16 %v663, %v662
      %v674 = vpack.c.b16 %v665, %v664
      %v675 = vpack.c.b16 %v667, %v666
      %v700 = vunpack.c.l.b16 %v613
      %v701 = vunpack.c.l.b16 %v614
      %v702 = vunpack.c.l.b16 %v615
      %v703 = vunpack.c.l.b16 %v616
      %v704 = vunpack.c.l.b16 %v617
      %v705 = vunpack.c.l.b16 %v618
      %v706 = vunpack.c.l.b16 %v619
      %v707 = vunpack.c.l.b16 %v620
      %v708 = vunpack.c.l.b16 %v621
      %v709 = vunpack.c.l.b16 %v622
      %v710 = vunpack.c.l.b16 %v623
      %v711 = vunpack.c.l.b16 %v624
      %v712 = vunpack.c.l.b16 %v625
      %v713 = vunpack.c.l.b16 %v626
      %v714 = vunpack.c.l.b16 %v627
      %v715 = vunpack.c.l.b16 %v628
      %v716 = vpack.c.b16 %v701, %v700
      %v717 = vpack.c.b16 %v703, %v702
      %v718 = vpack.c.b16 %v705, %v704
      %v719 = vpack.c.b16 %v707, %v706
      %v720 = vpack.c.b16 %v709, %v708
      %v721 = vpack.c.b16 %v711, %v710
      %v722 = vpack.c.b16 %v713, %v712
      %v723 = vpack.c.b16 %v715, %v714
      %732 = vmatprep.subr.bf16.mxu0 0
      %733 = vmatpush1.bf16.msra.mxu0 %v723
      %734 = vmatprep.subr.bf16.mxu0 0
      %735 = vmatpush1.bf16.msra.mxu0 %v722
      %736 = vmatprep.subr.bf16.mxu0 0
      %737 = vmatpush1.bf16.msra.mxu0 %v721
      %738 = vmatprep.subr.bf16.mxu0 0
      %739 = vmatpush1.bf16.msra.mxu0 %v720
      %740 = vmatprep.subr.bf16.mxu0 0
      %741 = vmatpush1.bf16.msra.mxu0 %v719
      %742 = vmatprep.subr.bf16.mxu0 0
      %743 = vmatpush1.bf16.msra.mxu0 %v718
      %744 = vmatprep.subr.bf16.mxu0 0
      %745 = vmatpush1.bf16.msra.mxu0 %v717
      %746 = vmatprep.subr.bf16.mxu0 0
      %747 = vmatpush1.bf16.msra.mxu0 %v716
      %748 = vmatprep.subr.bf16.mxu0 0
      %749 = vmatpush2.bf16.msra.mxu0 0
      %750 = vmatprep.subr.bf16.mxu0 0
      %751 = vmatpush2.bf16.msra.mxu0 0
      %752 = vmatprep.subr.bf16.mxu0 0
      %753 = vmatpush2.bf16.msra.mxu0 0
      %754 = vmatprep.subr.bf16.mxu0 0
      %755 = vmatpush2.bf16.msra.mxu0 0
      %756 = vmatprep.subr.bf16.mxu0 0
      %757 = vmatpush2.bf16.msra.mxu0 0
      %758 = vmatprep.subr.bf16.mxu0 0
      %759 = vmatpush2.bf16.msra.mxu0 0
      %760 = vmatprep.subr.bf16.mxu0 0
      %761 = vmatpush2.bf16.msra.mxu0 0
      %762 = vmatprep.subr.bf16.mxu0 0
      %763 = vmatpush2.bf16.msra.mxu0 0
      %764 = vmatprep.mubr.bf16.mxu0 0
      %765 = vmatmul.mubr.bf16.gmra.mxu0 %v668
      %v766 = vpop.f32.mrf.mxu0
      %v767 = vadd.f32 %v634, %v766
      %v768 = vpop.f32.mrf.mxu0
      %v769 = vpop.f32.mrf.mxu0
      %v770 = vadd.f32 %v634, %v769
      %v771 = vpop.f32.mrf.mxu0
      %772 = vmatprep.mubr.bf16.mxu0 0
      %773 = vmatmul.mubr.bf16.gmra.mxu0 %v669
      %v774 = vpop.f32.mrf.mxu0
      %v775 = vadd.f32 %v634, %v774
      %v776 = vpop.f32.mrf.mxu0
      %v777 = vpop.f32.mrf.mxu0
      %v778 = vadd.f32 %v634, %v777
      %v779 = vpop.f32.mrf.mxu0
      %780 = vmatprep.mubr.bf16.mxu0 0
      %781 = vmatmul.mubr.bf16.gmra.mxu0 %v670
      %v782 = vpop.f32.mrf.mxu0
      %v783 = vadd.f32 %v634, %v782
      %v784 = vpop.f32.mrf.mxu0
      %v785 = vpop.f32.mrf.mxu0
      %v786 = vadd.f32 %v634, %v785
      %v787 = vpop.f32.mrf.mxu0
      %788 = vmatprep.mubr.bf16.mxu0 0
      %789 = vmatmul.mubr.bf16.gmra.mxu0 %v671
      %v790 = vpop.f32.mrf.mxu0
      %v791 = vadd.f32 %v634, %v790
      %v792 = vpop.f32.mrf.mxu0
      %v793 = vpop.f32.mrf.mxu0
      %v794 = vadd.f32 %v634, %v793
      %v795 = vpop.f32.mrf.mxu0
      %796 = vmatprep.mubr.bf16.mxu0 0
      %797 = vmatmul.mubr.bf16.gmra.mxu0 %v672
      %v798 = vpop.f32.mrf.mxu0
      %v799 = vadd.f32 %v634, %v798
      %v800 = vpop.f32.mrf.mxu0
      %v801 = vpop.f32.mrf.mxu0
      %v802 = vadd.f32 %v634, %v801
      %v803 = vpop.f32.mrf.mxu0
      %804 = vmatprep.mubr.bf16.mxu0 0
      %805 = vmatmul.mubr.bf16.gmra.mxu0 %v673
      %v806 = vpop.f32.mrf.mxu0
      %v807 = vadd.f32 %v634, %v806
      %v808 = vpop.f32.mrf.mxu0
      %v809 = vpop.f32.mrf.mxu0
      %v810 = vadd.f32 %v634, %v809
      %v811 = vpop.f32.mrf.mxu0
      %812 = vmatprep.mubr.bf16.mxu0 0
      %813 = vmatmul.mubr.bf16.gmra.mxu0 %v674
      %v814 = vpop.f32.mrf.mxu0
      %v815 = vadd.f32 %v634, %v814
      %v816 = vpop.f32.mrf.mxu0
      %v817 = vpop.f32.mrf.mxu0
      %v818 = vadd.f32 %v634, %v817
      %v819 = vpop.f32.mrf.mxu0
      %820 = vmatprep.mubr.bf16.mxu0 0
      %821 = vmatmul.mubr.bf16.gmra.mxu0 %v675
      %v822 = vpop.f32.mrf.mxu0
      %v823 = vadd.f32 %v634, %v822
      %v824 = vpop.f32.mrf.mxu0
      %v825 = vpop.f32.mrf.mxu0
      %v826 = vadd.f32 %v634, %v825
      %v827 = vpop.f32.mrf.mxu0
      %828 = vdwg.mxu0
      %vm829 = vcmp.ge.f32.partialorder %v767, 0.0
      %vm830 = vcmp.ge.f32.partialorder %v770, 0.0
      %vm831 = vcmp.ge.f32.partialorder %v775, 0.0
      %vm832 = vcmp.ge.f32.partialorder %v778, 0.0
      %vm833 = vcmp.ge.f32.partialorder %v783, 0.0
      %vm834 = vcmp.ge.f32.partialorder %v786, 0.0
      %vm835 = vcmp.ge.f32.partialorder %v791, 0.0
      %vm836 = vcmp.ge.f32.partialorder %v794, 0.0
      %vm837 = vcmp.ge.f32.partialorder %v799, 0.0
      %vm838 = vcmp.ge.f32.partialorder %v802, 0.0
      %vm839 = vcmp.ge.f32.partialorder %v807, 0.0
      %vm840 = vcmp.ge.f32.partialorder %v810, 0.0
      %vm841 = vcmp.ge.f32.partialorder %v815, 0.0
      %vm842 = vcmp.ge.f32.partialorder %v818, 0.0
      %vm843 = vcmp.ge.f32.partialorder %v823, 0.0
      %vm844 = vcmp.ge.f32.partialorder %v826, 0.0
      %v845 = vmul.f32 %v767, 0.5
      %v846 = vmul.f32 %v770, 0.5
      %v847 = vmul.f32 %v775, 0.5
      %v848 = vmul.f32 %v778, 0.5
      %v849 = vmul.f32 %v783, 0.5
      %v850 = vmul.f32 %v786, 0.5
      %v851 = vmul.f32 %v791, 0.5
      %v852 = vmul.f32 %v794, 0.5
      %v853 = vmul.f32 %v799, 0.5
      %v854 = vmul.f32 %v802, 0.5
      %v855 = vmul.f32 %v807, 0.5
      %v856 = vmul.f32 %v810, 0.5
      %v857 = vmul.f32 %v815, 0.5
      %v858 = vmul.f32 %v818, 0.5
      %v859 = vmul.f32 %v823, 0.5
      %v860 = vmul.f32 %v826, 0.5
      %v861 = vsel %vm829, %v767, %v845
      %v862 = vsel %vm830, %v770, %v846
      %v863 = vsel %vm831, %v775, %v847
      %v864 = vsel %vm832, %v778, %v848
      %v865 = vsel %vm833, %v783, %v849
      %v866 = vsel %vm834, %v786, %v850
      %v867 = vsel %vm835, %v791, %v851
      %v868 = vsel %vm836, %v794, %v852
      %v869 = vsel %vm837, %v799, %v853
      %v870 = vsel %vm838, %v802, %v854
      %v871 = vsel %vm839, %v807, %v855
      %v872 = vsel %vm840, %v810, %v856
      %v873 = vsel %vm841, %v815, %v857
      %v874 = vsel %vm842, %v818, %v858
      %v875 = vsel %vm843, %v823, %v859
      %v876 = vsel %vm844, %v826, %v860
      %v877 = vpack.c.bf16 %v862, %v861
      %v878 = vpack.c.bf16 %v864, %v863
      %v879 = vpack.c.bf16 %v866, %v865
      %v880 = vpack.c.bf16 %v868, %v867
      %v881 = vpack.c.bf16 %v870, %v869
      %v882 = vpack.c.bf16 %v872, %v871
      %v883 = vpack.c.bf16 %v874, %v873
      %v884 = vpack.c.bf16 %v876, %v875
      %v893 = vunpack.c.l.b16 %v877
      %v894 = vunpack.c.h.b16 %v877
      %v895 = vunpack.c.l.b16 %v878
      %v896 = vunpack.c.h.b16 %v878
      %v897 = vunpack.c.l.b16 %v879
      %v898 = vunpack.c.h.b16 %v879
      %v899 = vunpack.c.l.b16 %v880
      %v900 = vunpack.c.h.b16 %v880
      %v901 = vunpack.c.l.b16 %v881
      %v902 = vunpack.c.h.b16 %v881
      %v903 = vunpack.c.l.b16 %v882
      %v904 = vunpack.c.h.b16 %v882
      %v905 = vunpack.c.l.b16 %v883
      %v906 = vunpack.c.h.b16 %v883
      %v907 = vunpack.c.l.b16 %v884
      %v908 = vunpack.c.h.b16 %v884
      %v909 = vpack.c.b16 %v893, %v893
      %v910 = vpack.c.b16 %v894, %v894
      %v911 = vpack.c.b16 %v895, %v895
      %v912 = vpack.c.b16 %v896, %v896
      %v913 = vpack.c.b16 %v897, %v897
      %v914 = vpack.c.b16 %v898, %v898
      %v915 = vpack.c.b16 %v899, %v899
      %v916 = vpack.c.b16 %v900, %v900
      %v917 = vpack.c.b16 %v901, %v901
      %v918 = vpack.c.b16 %v902, %v902
      %v919 = vpack.c.b16 %v903, %v903
      %v920 = vpack.c.b16 %v904, %v904
      %v921 = vpack.c.b16 %v905, %v905
      %v922 = vpack.c.b16 %v906, %v906
      %v923 = vpack.c.b16 %v907, %v907
      %v924 = vpack.c.b16 %v908, %v908
      %v926 = vshrl.u32 %v909, 16
      %v928 = vrot.slane %v926, 7
      %v929 = vshll.u32 %v909, 16
      %v931 = vor.u32 %v928, %v929
      %v932 = vrot.slane %v928, 4
      %v934 = vshrl.u32 %v910, 16
      %v936 = vrot.slane %v934, 7
      %v937 = vshll.u32 %v910, 16
      %v939 = vor.u32 %v936, %v937
      %v940 = vrot.slane %v936, 4
      %v942 = vshrl.u32 %v911, 16
      %v944 = vrot.slane %v942, 7
      %v945 = vshll.u32 %v911, 16
      %v947 = vor.u32 %v944, %v945
      %v948 = vrot.slane %v944, 4
      %v950 = vshrl.u32 %v912, 16
      %v952 = vrot.slane %v950, 7
      %v953 = vshll.u32 %v912, 16
      %v955 = vor.u32 %v952, %v953
      %v956 = vrot.slane %v952, 4
      %v958 = vshrl.u32 %v913, 16
      %v960 = vrot.slane %v958, 7
      %v961 = vshll.u32 %v913, 16
      %v963 = vor.u32 %v960, %v961
      %v964 = vrot.slane %v960, 4
      %v966 = vshrl.u32 %v914, 16
      %v968 = vrot.slane %v966, 7
      %v969 = vshll.u32 %v914, 16
      %v971 = vor.u32 %v968, %v969
      %v972 = vrot.slane %v968, 4
      %v974 = vshrl.u32 %v915, 16
      %v976 = vrot.slane %v974, 7
      %v977 = vshll.u32 %v915, 16
      %v979 = vor.u32 %v976, %v977
      %v980 = vrot.slane %v976, 4
      %v982 = vshrl.u32 %v916, 16
      %v984 = vrot.slane %v982, 7
      %v985 = vshll.u32 %v916, 16
      %v987 = vor.u32 %v984, %v985
      %v988 = vrot.slane %v984, 4
      %v990 = vshrl.u32 %v917, 16
      %v992 = vrot.slane %v990, 7
      %v993 = vshll.u32 %v917, 16
      %v995 = vor.u32 %v992, %v993
      %v996 = vrot.slane %v992, 4
      %v998 = vshrl.u32 %v918, 16
      %v1000 = vrot.slane %v998, 7
      %v1001 = vshll.u32 %v918, 16
      %v1003 = vor.u32 %v1000, %v1001
      %v1004 = vrot.slane %v1000, 4
      %v1006 = vshrl.u32 %v919, 16
      %v1008 = vrot.slane %v1006, 7
      %v1009 = vshll.u32 %v919, 16
      %v1011 = vor.u32 %v1008, %v1009
      %v1012 = vrot.slane %v1008, 4
      %v1014 = vshrl.u32 %v920, 16
      %v1016 = vrot.slane %v1014, 7
      %v1017 = vshll.u32 %v920, 16
      %v1019 = vor.u32 %v1016, %v1017
      %v1020 = vrot.slane %v1016, 4
      %v1022 = vshrl.u32 %v921, 16
      %v1024 = vrot.slane %v1022, 7
      %v1025 = vshll.u32 %v921, 16
      %v1027 = vor.u32 %v1024, %v1025
      %v1028 = vrot.slane %v1024, 4
      %v1030 = vshrl.u32 %v922, 16
      %v1032 = vrot.slane %v1030, 7
      %v1033 = vshll.u32 %v922, 16
      %v1035 = vor.u32 %v1032, %v1033
      %v1036 = vrot.slane %v1032, 4
      %v1038 = vshrl.u32 %v923, 16
      %v1040 = vrot.slane %v1038, 7
      %v1041 = vshll.u32 %v923, 16
      %v1043 = vor.u32 %v1040, %v1041
      %v1044 = vrot.slane %v1040, 4
      %v1046 = vshrl.u32 %v924, 16
      %v1048 = vrot.slane %v1046, 7
      %v1049 = vshll.u32 %v924, 16
      %v1051 = vor.u32 %v1048, %v1049
      %v1052 = vrot.slane %v1048, 4
      %s1085 = scalar_lea.vmem [#allocation2], 8
      %vm1086 = vcmask 519168
      %vm1087 = vmand %vm1086, %vm455
      %v1088 = vld [vmem:[%s1085] sm:$0xf]
      %v1089 = vsel %vm1087, %v931, %v1088
      %1090 = vst [vmem:[%s1085] sm:$0xf] %v1089
      %v1091 = vld [vmem:[%s1085 + $0x4] sm:$0x1]
      %v1092 = vsel %vm394, %v932, %v1091
      %1093 = vst [vmem:[%s1085 + $0x4] sm:$0x1] %v1092
      %v1094 = vld [vmem:[%s1085 + $0x8] sm:$0xf]
      %v1095 = vsel %vm1087, %v939, %v1094
      %1096 = vst [vmem:[%s1085 + $0x8] sm:$0xf] %v1095
      %v1097 = vld [vmem:[%s1085 + $0xc] sm:$0x1]
      %v1098 = vsel %vm394, %v940, %v1097
      %1099 = vst [vmem:[%s1085 + $0xc] sm:$0x1] %v1098
      %v1100 = vld [vmem:[%s1085 + $0x10] sm:$0xf]
      %v1101 = vsel %vm1087, %v947, %v1100
      %1102 = vst [vmem:[%s1085 + $0x10] sm:$0xf] %v1101
      %v1103 = vld [vmem:[%s1085 + $0x14] sm:$0x1]
      %v1104 = vsel %vm394, %v948, %v1103
      %1105 = vst [vmem:[%s1085 + $0x14] sm:$0x1] %v1104
      %v1106 = vld [vmem:[%s1085 + $0x18] sm:$0xf]
      %v1107 = vsel %vm1087, %v955, %v1106
      %1108 = vst [vmem:[%s1085 + $0x18] sm:$0xf] %v1107
      %v1109 = vld [vmem:[%s1085 + $0x1c] sm:$0x1]
      %v1110 = vsel %vm394, %v956, %v1109
      %1111 = vst [vmem:[%s1085 + $0x1c] sm:$0x1] %v1110
      %v1112 = vld [vmem:[%s1085 + $0x20] sm:$0xf]
      %v1113 = vsel %vm1087, %v963, %v1112
      %1114 = vst [vmem:[%s1085 + $0x20] sm:$0xf] %v1113
      %v1115 = vld [vmem:[%s1085 + $0x24] sm:$0x1]
      %v1116 = vsel %vm394, %v964, %v1115
      %1117 = vst [vmem:[%s1085 + $0x24] sm:$0x1] %v1116
      %v1118 = vld [vmem:[%s1085 + $0x28] sm:$0xf]
      %v1119 = vsel %vm1087, %v971, %v1118
      %1120 = vst [vmem:[%s1085 + $0x28] sm:$0xf] %v1119
      %v1121 = vld [vmem:[%s1085 + $0x2c] sm:$0x1]
      %v1122 = vsel %vm394, %v972, %v1121
      %1123 = vst [vmem:[%s1085 + $0x2c] sm:$0x1] %v1122
      %v1124 = vld [vmem:[%s1085 + $0x30] sm:$0xf]
      %v1125 = vsel %vm1087, %v979, %v1124
      %1126 = vst [vmem:[%s1085 + $0x30] sm:$0xf] %v1125
      %v1127 = vld [vmem:[%s1085 + $0x34] sm:$0x1]
      %v1128 = vsel %vm394, %v980, %v1127
      %1129 = vst [vmem:[%s1085 + $0x34] sm:$0x1] %v1128
      %v1130 = vld [vmem:[%s1085 + $0x38] sm:$0xf]
      %v1131 = vsel %vm1087, %v987, %v1130
      %1132 = vst [vmem:[%s1085 + $0x38] sm:$0xf] %v1131
      %v1133 = vld [vmem:[%s1085 + $0x3c] sm:$0x1]
      %v1134 = vsel %vm394, %v988, %v1133
      %1135 = vst [vmem:[%s1085 + $0x3c] sm:$0x1] %v1134
      %v1136 = vld [vmem:[%s1085 + $0x50] sm:$0xf]
      %v1137 = vsel %vm1087, %v995, %v1136
      %1138 = vst [vmem:[%s1085 + $0x50] sm:$0xf] %v1137
      %v1139 = vld [vmem:[%s1085 + $0x54] sm:$0x1]
      %v1140 = vsel %vm394, %v996, %v1139
      %1141 = vst [vmem:[%s1085 + $0x54] sm:$0x1] %v1140
      %v1142 = vld [vmem:[%s1085 + $0x58] sm:$0xf]
      %v1143 = vsel %vm1087, %v1003, %v1142
      %1144 = vst [vmem:[%s1085 + $0x58] sm:$0xf] %v1143
      %v1145 = vld [vmem:[%s1085 + $0x5c] sm:$0x1]
      %v1146 = vsel %vm394, %v1004, %v1145
      %1147 = vst [vmem:[%s1085 + $0x5c] sm:$0x1] %v1146
      %v1148 = vld [vmem:[%s1085 + $0x60] sm:$0xf]
      %v1149 = vsel %vm1087, %v1011, %v1148
      %1150 = vst [vmem:[%s1085 + $0x60] sm:$0xf] %v1149
      %v1151 = vld [vmem:[%s1085 + $0x64] sm:$0x1]
      %v1152 = vsel %vm394, %v1012, %v1151
      %1153 = vst [vmem:[%s1085 + $0x64] sm:$0x1] %v1152
      %v1154 = vld [vmem:[%s1085 + $0x68] sm:$0xf]
      %v1155 = vsel %vm1087, %v1019, %v1154
      %1156 = vst [vmem:[%s1085 + $0x68] sm:$0xf] %v1155
      %v1157 = vld [vmem:[%s1085 + $0x6c] sm:$0x1]
      %v1158 = vsel %vm394, %v1020, %v1157
      %1159 = vst [vmem:[%s1085 + $0x6c] sm:$0x1] %v1158
      %v1160 = vld [vmem:[%s1085 + $0x70] sm:$0xf]
      %v1161 = vsel %vm1087, %v1027, %v1160
      %1162 = vst [vmem:[%s1085 + $0x70] sm:$0xf] %v1161
      %v1163 = vld [vmem:[%s1085 + $0x74] sm:$0x1]
      %v1164 = vsel %vm394, %v1028, %v1163
      %1165 = vst [vmem:[%s1085 + $0x74] sm:$0x1] %v1164
      %v1166 = vld [vmem:[%s1085 + $0x78] sm:$0xf]
      %v1167 = vsel %vm1087, %v1035, %v1166
      %1168 = vst [vmem:[%s1085 + $0x78] sm:$0xf] %v1167
      %v1169 = vld [vmem:[%s1085 + $0x7c] sm:$0x1]
      %v1170 = vsel %vm394, %v1036, %v1169
      %1171 = vst [vmem:[%s1085 + $0x7c] sm:$0x1] %v1170
      %v1172 = vld [vmem:[%s1085 + $0x80] sm:$0xf]
      %v1173 = vsel %vm1087, %v1043, %v1172
      %1174 = vst [vmem:[%s1085 + $0x80] sm:$0xf] %v1173
      %v1175 = vld [vmem:[%s1085 + $0x84] sm:$0x1]
      %v1176 = vsel %vm394, %v1044, %v1175
      %1177 = vst [vmem:[%s1085 + $0x84] sm:$0x1] %v1176
      %v1178 = vld [vmem:[%s1085 + $0x88] sm:$0xf]
      %v1179 = vsel %vm1087, %v1051, %v1178
      %1180 = vst [vmem:[%s1085 + $0x88] sm:$0xf] %v1179
      %v1181 = vld [vmem:[%s1085 + $0x8c] sm:$0x1]
      %v1182 = vsel %vm394, %v1052, %v1181
      %1183 = vst [vmem:[%s1085 + $0x8c] sm:$0x1] %v1182
      %v1184 = vld [vmem:[#allocation2] sm:$0xf]
      %v1185 = vld [vmem:[#allocation2 + $0x8] sm:$0xf]
      %v1186 = vld [vmem:[#allocation2 + $0x10] sm:$0xf]
      %v1187 = vld [vmem:[#allocation2 + $0x18] sm:$0xf]
      %v1188 = vld [vmem:[#allocation2 + $0x20] sm:$0xf]
      %v1189 = vld [vmem:[#allocation2 + $0x28] sm:$0xf]
      %v1190 = vld [vmem:[#allocation2 + $0x30] sm:$0xf]
      %v1191 = vld [vmem:[#allocation2 + $0x38] sm:$0xf]
      %v1192 = vld [vmem:[#allocation2 + $0x50] sm:$0xf]
      %v1193 = vld [vmem:[#allocation2 + $0x58] sm:$0xf]
      %v1194 = vld [vmem:[#allocation2 + $0x60] sm:$0xf]
      %v1195 = vld [vmem:[#allocation2 + $0x68] sm:$0xf]
      %v1196 = vld [vmem:[#allocation2 + $0x70] sm:$0xf]
      %v1197 = vld [vmem:[#allocation2 + $0x78] sm:$0xf]
      %v1198 = vld [vmem:[#allocation2 + $0x80] sm:$0xf]
      %v1199 = vld [vmem:[#allocation2 + $0x88] sm:$0xf]
      %v1200 = vld [vmem:[%s364] sm:$0xf]
      %v1201 = vld [vmem:[%s364 + $0x4] sm:$0xf]
      %v1202 = vld [vmem:[%s364 + $0x8] sm:$0xf]
      %v1203 = vld [vmem:[%s364 + $0xc] sm:$0xf]
      %v1204 = vld [vmem:[%s364 + $0x10] sm:$0xf]
      %v1205 = vld [vmem:[%s364 + $0x14] sm:$0xf]
      %v1206 = vld [vmem:[%s364 + $0x18] sm:$0xf]
      %v1207 = vld [vmem:[%s364 + $0x1c] sm:$0xf]
      %v1208 = vld [vmem:[#allocation2 + $0x4] sm:$0x1]
      %v1209 = vld [vmem:[#allocation2 + $0xc] sm:$0x1]
      %v1210 = vld [vmem:[#allocation2 + $0x14] sm:$0x1]
      %v1211 = vld [vmem:[#allocation2 + $0x1c] sm:$0x1]
      %v1212 = vld [vmem:[#allocation2 + $0x24] sm:$0x1]
      %v1213 = vld [vmem:[#allocation2 + $0x2c] sm:$0x1]
      %v1214 = vld [vmem:[#allocation2 + $0x34] sm:$0x1]
      %v1215 = vld [vmem:[#allocation2 + $0x3c] sm:$0x1]
      %v1216 = vld [vmem:[#allocation2 + $0x54] sm:$0x1]
      %v1217 = vld [vmem:[#allocation2 + $0x5c] sm:$0x1]
      %v1218 = vld [vmem:[#allocation2 + $0x64] sm:$0x1]
      %v1219 = vld [vmem:[#allocation2 + $0x6c] sm:$0x1]
      %v1220 = vld [vmem:[#allocation2 + $0x74] sm:$0x1]
      %v1221 = vld [vmem:[#allocation2 + $0x7c] sm:$0x1]
      %v1222 = vld [vmem:[#allocation2 + $0x84] sm:$0x1]
      %v1223 = vld [vmem:[#allocation2 + $0x8c] sm:$0x1]
      %vm1224 = vsmask.f32 3328
      %vm1225 = vsmask.f32 7440
      %vm1226 = vmor %vm1224, %vm1225
      %v1228 = vshrl.u32 %v1184, 16
      %v1230 = vrot.slane %v1228, 4
      %v1231 = vshll.u32 %v1184, 16
      %v1233 = vrot.slane %v1231, 5
      %v1234 = vor.u32 %v1230, %v1233
      %v1235 = vrot.slane %v1234, 4
      %v1237 = vshll.u32 %v1208, 16
      %v1239 = vrot.slane %v1237, 5
      %v1240 = vsel %vm1226, %v1235, %v1239
      %v1242 = vshrl.u32 %v1185, 16
      %v1244 = vrot.slane %v1242, 4
      %v1245 = vshll.u32 %v1185, 16
      %v1247 = vrot.slane %v1245, 5
      %v1248 = vor.u32 %v1244, %v1247
      %v1249 = vrot.slane %v1248, 4
      %v1251 = vshll.u32 %v1209, 16
      %v1253 = vrot.slane %v1251, 5
      %v1254 = vsel %vm1226, %v1249, %v1253
      %v1256 = vshrl.u32 %v1186, 16
      %v1258 = vrot.slane %v1256, 4
      %v1259 = vshll.u32 %v1186, 16
      %v1261 = vrot.slane %v1259, 5
      %v1262 = vor.u32 %v1258, %v1261
      %v1263 = vrot.slane %v1262, 4
      %v1265 = vshll.u32 %v1210, 16
      %v1267 = vrot.slane %v1265, 5
      %v1268 = vsel %vm1226, %v1263, %v1267
      %v1270 = vshrl.u32 %v1187, 16
      %v1272 = vrot.slane %v1270, 4
      %v1273 = vshll.u32 %v1187, 16
      %v1275 = vrot.slane %v1273, 5
      %v1276 = vor.u32 %v1272, %v1275
      %v1277 = vrot.slane %v1276, 4
      %v1279 = vshll.u32 %v1211, 16
      %v1281 = vrot.slane %v1279, 5
      %v1282 = vsel %vm1226, %v1277, %v1281
      %v1284 = vshrl.u32 %v1188, 16
      %v1286 = vrot.slane %v1284, 4
      %v1287 = vshll.u32 %v1188, 16
      %v1289 = vrot.slane %v1287, 5
      %v1290 = vor.u32 %v1286, %v1289
      %v1291 = vrot.slane %v1290, 4
      %v1293 = vshll.u32 %v1212, 16
      %v1295 = vrot.slane %v1293, 5
      %v1296 = vsel %vm1226, %v1291, %v1295
      %v1298 = vshrl.u32 %v1189, 16
      %v1300 = vrot.slane %v1298, 4
      %v1301 = vshll.u32 %v1189, 16
      %v1303 = vrot.slane %v1301, 5
      %v1304 = vor.u32 %v1300, %v1303
      %v1305 = vrot.slane %v1304, 4
      %v1307 = vshll.u32 %v1213, 16
      %v1309 = vrot.slane %v1307, 5
      %v1310 = vsel %vm1226, %v1305, %v1309
      %v1312 = vshrl.u32 %v1190, 16
      %v1314 = vrot.slane %v1312, 4
      %v1315 = vshll.u32 %v1190, 16
      %v1317 = vrot.slane %v1315, 5
      %v1318 = vor.u32 %v1314, %v1317
      %v1319 = vrot.slane %v1318, 4
      %v1321 = vshll.u32 %v1214, 16
      %v1323 = vrot.slane %v1321, 5
      %v1324 = vsel %vm1226, %v1319, %v1323
      %v1326 = vshrl.u32 %v1191, 16
      %v1328 = vrot.slane %v1326, 4
      %v1329 = vshll.u32 %v1191, 16
      %v1331 = vrot.slane %v1329, 5
      %v1332 = vor.u32 %v1328, %v1331
      %v1333 = vrot.slane %v1332, 4
      %v1335 = vshll.u32 %v1215, 16
      %v1337 = vrot.slane %v1335, 5
      %v1338 = vsel %vm1226, %v1333, %v1337
      %v1340 = vshrl.u32 %v1192, 16
      %v1342 = vrot.slane %v1340, 4
      %v1343 = vshll.u32 %v1192, 16
      %v1345 = vrot.slane %v1343, 5
      %v1346 = vor.u32 %v1342, %v1345
      %v1347 = vrot.slane %v1346, 4
      %v1349 = vshll.u32 %v1216, 16
      %v1351 = vrot.slane %v1349, 5
      %v1352 = vsel %vm1226, %v1347, %v1351
      %v1354 = vshrl.u32 %v1193, 16
      %v1356 = vrot.slane %v1354, 4
      %v1357 = vshll.u32 %v1193, 16
      %v1359 = vrot.slane %v1357, 5
      %v1360 = vor.u32 %v1356, %v1359
      %v1361 = vrot.slane %v1360, 4
      %v1363 = vshll.u32 %v1217, 16
      %v1365 = vrot.slane %v1363, 5
      %v1366 = vsel %vm1226, %v1361, %v1365
      %v1368 = vshrl.u32 %v1194, 16
      %v1370 = vrot.slane %v1368, 4
      %v1371 = vshll.u32 %v1194, 16
      %v1373 = vrot.slane %v1371, 5
      %v1374 = vor.u32 %v1370, %v1373
      %v1375 = vrot.slane %v1374, 4
      %v1377 = vshll.u32 %v1218, 16
      %v1379 = vrot.slane %v1377, 5
      %v1380 = vsel %vm1226, %v1375, %v1379
      %v1382 = vshrl.u32 %v1195, 16
      %v1384 = vrot.slane %v1382, 4
      %v1385 = vshll.u32 %v1195, 16
      %v1387 = vrot.slane %v1385, 5
      %v1388 = vor.u32 %v1384, %v1387
      %v1389 = vrot.slane %v1388, 4
      %v1391 = vshll.u32 %v1219, 16
      %v1393 = vrot.slane %v1391, 5
      %v1394 = vsel %vm1226, %v1389, %v1393
      %v1396 = vshrl.u32 %v1196, 16
      %v1398 = vrot.slane %v1396, 4
      %v1399 = vshll.u32 %v1196, 16
      %v1401 = vrot.slane %v1399, 5
      %v1402 = vor.u32 %v1398, %v1401
      %v1403 = vrot.slane %v1402, 4
      %v1405 = vshll.u32 %v1220, 16
      %v1407 = vrot.slane %v1405, 5
      %v1408 = vsel %vm1226, %v1403, %v1407
      %v1410 = vshrl.u32 %v1197, 16
      %v1412 = vrot.slane %v1410, 4
      %v1413 = vshll.u32 %v1197, 16
      %v1415 = vrot.slane %v1413, 5
      %v1416 = vor.u32 %v1412, %v1415
      %v1417 = vrot.slane %v1416, 4
      %v1419 = vshll.u32 %v1221, 16
      %v1421 = vrot.slane %v1419, 5
      %v1422 = vsel %vm1226, %v1417, %v1421
      %v1424 = vshrl.u32 %v1198, 16
      %v1426 = vrot.slane %v1424, 4
      %v1427 = vshll.u32 %v1198, 16
      %v1429 = vrot.slane %v1427, 5
      %v1430 = vor.u32 %v1426, %v1429
      %v1431 = vrot.slane %v1430, 4
      %v1433 = vshll.u32 %v1222, 16
      %v1435 = vrot.slane %v1433, 5
      %v1436 = vsel %vm1226, %v1431, %v1435
      %v1438 = vshrl.u32 %v1199, 16
      %v1440 = vrot.slane %v1438, 4
      %v1441 = vshll.u32 %v1199, 16
      %v1443 = vrot.slane %v1441, 5
      %v1444 = vor.u32 %v1440, %v1443
      %v1445 = vrot.slane %v1444, 4
      %v1447 = vshll.u32 %v1223, 16
      %v1449 = vrot.slane %v1447, 5
      %v1450 = vsel %vm1226, %v1445, %v1449
      %v1451 = vld [vmem:[%s364 + $0x20] sm:$0xf]
      %v1452 = vld [vmem:[%s364 + $0x24] sm:$0xf]
      %v1453 = vld [vmem:[%s364 + $0x28] sm:$0xf]
      %v1454 = vld [vmem:[%s364 + $0x2c] sm:$0xf]
      %v1455 = vld [vmem:[%s364 + $0x30] sm:$0xf]
      %v1456 = vld [vmem:[%s364 + $0x34] sm:$0xf]
      %v1457 = vld [vmem:[%s364 + $0x38] sm:$0xf]
      %v1458 = vld [vmem:[%s364 + $0x3c] sm:$0xf]
      %v1459 = vunpack.c.l.b16 %v1240
      %v1460 = vunpack.c.l.b16 %v1254
      %v1461 = vunpack.c.l.b16 %v1268
      %v1462 = vunpack.c.l.b16 %v1282
      %v1463 = vunpack.c.l.b16 %v1296
      %v1464 = vunpack.c.l.b16 %v1310
      %v1465 = vunpack.c.l.b16 %v1324
      %v1466 = vunpack.c.l.b16 %v1338
      %v1467 = vunpack.c.l.b16 %v1352
      %v1468 = vunpack.c.l.b16 %v1366
      %v1469 = vunpack.c.l.b16 %v1380
      %v1470 = vunpack.c.l.b16 %v1394
      %v1471 = vunpack.c.l.b16 %v1408
      %v1472 = vunpack.c.l.b16 %v1422
      %v1473 = vunpack.c.l.b16 %v1436
      %v1474 = vunpack.c.l.b16 %v1450
      %v1475 = vpack.c.b16 %v1460, %v1459
      %v1476 = vpack.c.b16 %v1462, %v1461
      %v1477 = vpack.c.b16 %v1464, %v1463
      %v1478 = vpack.c.b16 %v1466, %v1465
      %v1479 = vpack.c.b16 %v1468, %v1467
      %v1480 = vpack.c.b16 %v1470, %v1469
      %v1481 = vpack.c.b16 %v1472, %v1471
      %v1482 = vpack.c.b16 %v1474, %v1473
      %v1491 = vunpack.c.l.b16 %v1451
      %v1492 = vunpack.c.l.b16 %v1452
      %v1493 = vunpack.c.l.b16 %v1453
      %v1494 = vunpack.c.l.b16 %v1454
      %v1495 = vunpack.c.l.b16 %v1455
      %v1496 = vunpack.c.l.b16 %v1456
      %v1497 = vunpack.c.l.b16 %v1457
      %v1498 = vunpack.c.l.b16 %v1458
      %v1499 = vpack.c.b16 %v1492, %v1491
      %v1500 = vpack.c.b16 %v1494, %v1493
      %v1501 = vpack.c.b16 %v1496, %v1495
      %v1502 = vpack.c.b16 %v1498, %v1497
      %vm1507 = vcmask 523264
      %v1509 = vsel %vm1507, %v1475, 0
      %v1512 = vsel %vm1507, %v1476, 0
      %v1515 = vsel %vm1507, %v1477, 0
      %v1518 = vsel %vm1507, %v1478, 0
      %v1521 = vsel %vm1507, %v1479, 0
      %v1524 = vsel %vm1507, %v1480, 0
      %v1527 = vsel %vm1507, %v1481, 0
      %v1530 = vsel %vm1507, %v1482, 0
      %1532 = vmatprep.subr.bf16.mxu0 0
      %1533 = vmatpush1.bf16.msra.mxu0 0
      %1534 = vmatprep.subr.bf16.mxu0 0
      %1535 = vmatpush1.bf16.msra.mxu0 0
      %1536 = vmatprep.subr.bf16.mxu0 0
      %1537 = vmatpush1.bf16.msra.mxu0 0
      %1538 = vmatprep.subr.bf16.mxu0 0
      %1539 = vmatpush1.bf16.msra.mxu0 0
      %1540 = vmatprep.subr.bf16.mxu0 0
      %1541 = vmatpush1.bf16.msra.mxu0 %v1502
      %1542 = vmatprep.subr.bf16.mxu0 0
      %1543 = vmatpush1.bf16.msra.mxu0 %v1501
      %1544 = vmatprep.subr.bf16.mxu0 0
      %1545 = vmatpush1.bf16.msra.mxu0 %v1500
      %1546 = vmatprep.subr.bf16.mxu0 0
      %1547 = vmatpush1.bf16.msra.mxu0 %v1499
      %1548 = vmatprep.subr.bf16.mxu0 0
      %1549 = vmatpush2.bf16.msra.mxu0 0
      %1550 = vmatprep.subr.bf16.mxu0 0
      %1551 = vmatpush2.bf16.msra.mxu0 0
      %1552 = vmatprep.subr.bf16.mxu0 0
      %1553 = vmatpush2.bf16.msra.mxu0 0
      %1554 = vmatprep.subr.bf16.mxu0 0
      %1555 = vmatpush2.bf16.msra.mxu0 0
      %1556 = vmatprep.subr.bf16.mxu0 0
      %1557 = vmatpush2.bf16.msra.mxu0 0
      %1558 = vmatprep.subr.bf16.mxu0 0
      %1559 = vmatpush2.bf16.msra.mxu0 0
      %1560 = vmatprep.subr.bf16.mxu0 0
      %1561 = vmatpush2.bf16.msra.mxu0 0
      %1562 = vmatprep.subr.bf16.mxu0 0
      %1563 = vmatpush2.bf16.msra.mxu0 0
      %1564 = vmatprep.mubr.bf16.mxu0 0
      %1565 = vmatmul.mubr.bf16.gmra.mxu0 %v1509
      %v1566 = vpop.f32.mrf.mxu0
      %v1567 = vadd.f32 0.0, %v1566
      %v1568 = vpop.f32.mrf.mxu0
      %v1569 = vpop.f32.mrf.mxu0
      %v1570 = vadd.f32 0.0, %v1569
      %v1571 = vpop.f32.mrf.mxu0
      %1572 = vmatprep.mubr.bf16.mxu0 0
      %1573 = vmatmul.mubr.bf16.gmra.mxu0 %v1512
      %v1574 = vpop.f32.mrf.mxu0
      %v1575 = vadd.f32 0.0, %v1574
      %v1576 = vpop.f32.mrf.mxu0
      %v1577 = vpop.f32.mrf.mxu0
      %v1578 = vadd.f32 0.0, %v1577
      %v1579 = vpop.f32.mrf.mxu0
      %1580 = vmatprep.mubr.bf16.mxu0 0
      %1581 = vmatmul.mubr.bf16.gmra.mxu0 %v1515
      %v1582 = vpop.f32.mrf.mxu0
      %v1583 = vadd.f32 0.0, %v1582
      %v1584 = vpop.f32.mrf.mxu0
      %v1585 = vpop.f32.mrf.mxu0
      %v1586 = vadd.f32 0.0, %v1585
      %v1587 = vpop.f32.mrf.mxu0
      %1588 = vmatprep.mubr.bf16.mxu0 0
      %1589 = vmatmul.mubr.bf16.gmra.mxu0 %v1518
      %v1590 = vpop.f32.mrf.mxu0
      %v1591 = vadd.f32 0.0, %v1590
      %v1592 = vpop.f32.mrf.mxu0
      %v1593 = vpop.f32.mrf.mxu0
      %v1594 = vadd.f32 0.0, %v1593
      %v1595 = vpop.f32.mrf.mxu0
      %1596 = vmatprep.mubr.bf16.mxu0 0
      %1597 = vmatmul.mubr.bf16.gmra.mxu0 %v1521
      %v1598 = vpop.f32.mrf.mxu0
      %v1599 = vadd.f32 0.0, %v1598
      %v1600 = vpop.f32.mrf.mxu0
      %v1601 = vpop.f32.mrf.mxu0
      %v1602 = vadd.f32 0.0, %v1601
      %v1603 = vpop.f32.mrf.mxu0
      %1604 = vmatprep.mubr.bf16.mxu0 0
      %1605 = vmatmul.mubr.bf16.gmra.mxu0 %v1524
      %v1606 = vpop.f32.mrf.mxu0
      %v1607 = vadd.f32 0.0, %v1606
      %v1608 = vpop.f32.mrf.mxu0
      %v1609 = vpop.f32.mrf.mxu0
      %v1610 = vadd.f32 0.0, %v1609
      %v1611 = vpop.f32.mrf.mxu0
      %1612 = vmatprep.mubr.bf16.mxu0 0
      %1613 = vmatmul.mubr.bf16.gmra.mxu0 %v1527
      %v1614 = vpop.f32.mrf.mxu0
      %v1615 = vadd.f32 0.0, %v1614
      %v1616 = vpop.f32.mrf.mxu0
      %v1617 = vpop.f32.mrf.mxu0
      %v1618 = vadd.f32 0.0, %v1617
      %v1619 = vpop.f32.mrf.mxu0
      %1620 = vmatprep.mubr.bf16.mxu0 0
      %1621 = vmatmul.mubr.bf16.gmra.mxu0 %v1530
      %v1622 = vpop.f32.mrf.mxu0
      %v1623 = vadd.f32 0.0, %v1622
      %v1624 = vpop.f32.mrf.mxu0
      %v1625 = vpop.f32.mrf.mxu0
      %v1626 = vadd.f32 0.0, %v1625
      %v1627 = vpop.f32.mrf.mxu0
      %1628 = vdwg.mxu0
      %v1645 = vunpack.c.l.b16 %v1184
      %v1646 = vunpack.c.l.b16 %v1185
      %v1647 = vunpack.c.l.b16 %v1186
      %v1648 = vunpack.c.l.b16 %v1187
      %v1649 = vunpack.c.l.b16 %v1188
      %v1650 = vunpack.c.l.b16 %v1189
      %v1651 = vunpack.c.l.b16 %v1190
      %v1652 = vunpack.c.l.b16 %v1191
      %v1653 = vunpack.c.l.b16 %v1192
      %v1654 = vunpack.c.l.b16 %v1193
      %v1655 = vunpack.c.l.b16 %v1194
      %v1656 = vunpack.c.l.b16 %v1195
      %v1657 = vunpack.c.l.b16 %v1196
      %v1658 = vunpack.c.l.b16 %v1197
      %v1659 = vunpack.c.l.b16 %v1198
      %v1660 = vunpack.c.l.b16 %v1199
      %v1661 = vpack.c.b16 %v1646, %v1645
      %v1662 = vpack.c.b16 %v1648, %v1647
      %v1663 = vpack.c.b16 %v1650, %v1649
      %v1664 = vpack.c.b16 %v1652, %v1651
      %v1665 = vpack.c.b16 %v1654, %v1653
      %v1666 = vpack.c.b16 %v1656, %v1655
      %v1667 = vpack.c.b16 %v1658, %v1657
      %v1668 = vpack.c.b16 %v1660, %v1659
      %v1677 = vunpack.c.l.b16 %v1200
      %v1678 = vunpack.c.l.b16 %v1201
      %v1679 = vunpack.c.l.b16 %v1202
      %v1680 = vunpack.c.l.b16 %v1203
      %v1681 = vunpack.c.l.b16 %v1204
      %v1682 = vunpack.c.l.b16 %v1205
      %v1683 = vunpack.c.l.b16 %v1206
      %v1684 = vunpack.c.l.b16 %v1207
      %v1685 = vpack.c.b16 %v1678, %v1677
      %v1686 = vpack.c.b16 %v1680, %v1679
      %v1687 = vpack.c.b16 %v1682, %v1681
      %v1688 = vpack.c.b16 %v1684, %v1683
      %v1694 = vsel %vm1507, %v1661, 0
      %v1697 = vsel %vm1507, %v1662, 0
      %v1700 = vsel %vm1507, %v1663, 0
      %v1703 = vsel %vm1507, %v1664, 0
      %v1706 = vsel %vm1507, %v1665, 0
      %v1709 = vsel %vm1507, %v1666, 0
      %v1712 = vsel %vm1507, %v1667, 0
      %v1715 = vsel %vm1507, %v1668, 0
      %1717 = vmatprep.subr.bf16.mxu0 0
      %1718 = vmatpush1.bf16.msra.mxu0 0
      %1719 = vmatprep.subr.bf16.mxu0 0
      %1720 = vmatpush1.bf16.msra.mxu0 0
      %1721 = vmatprep.subr.bf16.mxu0 0
      %1722 = vmatpush1.bf16.msra.mxu0 0
      %1723 = vmatprep.subr.bf16.mxu0 0
      %1724 = vmatpush1.bf16.msra.mxu0 0
      %1725 = vmatprep.subr.bf16.mxu0 0
      %1726 = vmatpush1.bf16.msra.mxu0 %v1688
      %1727 = vmatprep.subr.bf16.mxu0 0
      %1728 = vmatpush1.bf16.msra.mxu0 %v1687
      %1729 = vmatprep.subr.bf16.mxu0 0
      %1730 = vmatpush1.bf16.msra.mxu0 %v1686
      %1731 = vmatprep.subr.bf16.mxu0 0
      %1732 = vmatpush1.bf16.msra.mxu0 %v1685
      %1733 = vmatprep.subr.bf16.mxu0 0
      %1734 = vmatpush2.bf16.msra.mxu0 0
      %1735 = vmatprep.subr.bf16.mxu0 0
      %1736 = vmatpush2.bf16.msra.mxu0 0
      %1737 = vmatprep.subr.bf16.mxu0 0
      %1738 = vmatpush2.bf16.msra.mxu0 0
      %1739 = vmatprep.subr.bf16.mxu0 0
      %1740 = vmatpush2.bf16.msra.mxu0 0
      %1741 = vmatprep.subr.bf16.mxu0 0
      %1742 = vmatpush2.bf16.msra.mxu0 0
      %1743 = vmatprep.subr.bf16.mxu0 0
      %1744 = vmatpush2.bf16.msra.mxu0 0
      %1745 = vmatprep.subr.bf16.mxu0 0
      %1746 = vmatpush2.bf16.msra.mxu0 0
      %1747 = vmatprep.subr.bf16.mxu0 0
      %1748 = vmatpush2.bf16.msra.mxu0 0
      %1749 = vmatprep.mubr.bf16.mxu0 0
      %1750 = vmatmul.mubr.bf16.gmra.mxu0 %v1694
      %v1751 = vpop.f32.mrf.mxu0
      %v1752 = vadd.f32 %v1567, %v1751
      %v1753 = vpop.f32.mrf.mxu0
      %v1754 = vpop.f32.mrf.mxu0
      %v1755 = vadd.f32 %v1570, %v1754
      %v1756 = vpop.f32.mrf.mxu0
      %1757 = vmatprep.mubr.bf16.mxu0 0
      %1758 = vmatmul.mubr.bf16.gmra.mxu0 %v1697
      %v1759 = vpop.f32.mrf.mxu0
      %v1760 = vadd.f32 %v1575, %v1759
      %v1761 = vpop.f32.mrf.mxu0
      %v1762 = vpop.f32.mrf.mxu0
      %v1763 = vadd.f32 %v1578, %v1762
      %v1764 = vpop.f32.mrf.mxu0
      %1765 = vmatprep.mubr.bf16.mxu0 0
      %1766 = vmatmul.mubr.bf16.gmra.mxu0 %v1700
      %v1767 = vpop.f32.mrf.mxu0
      %v1768 = vadd.f32 %v1583, %v1767
      %v1769 = vpop.f32.mrf.mxu0
      %v1770 = vpop.f32.mrf.mxu0
      %v1771 = vadd.f32 %v1586, %v1770
      %v1772 = vpop.f32.mrf.mxu0
      %1773 = vmatprep.mubr.bf16.mxu0 0
      %1774 = vmatmul.mubr.bf16.gmra.mxu0 %v1703
      %v1775 = vpop.f32.mrf.mxu0
      %v1776 = vadd.f32 %v1591, %v1775
      %v1777 = vpop.f32.mrf.mxu0
      %v1778 = vpop.f32.mrf.mxu0
      %v1779 = vadd.f32 %v1594, %v1778
      %v1780 = vpop.f32.mrf.mxu0
      %1781 = vmatprep.mubr.bf16.mxu0 0
      %1782 = vmatmul.mubr.bf16.gmra.mxu0 %v1706
      %v1783 = vpop.f32.mrf.mxu0
      %v1784 = vadd.f32 %v1599, %v1783
      %v1785 = vpop.f32.mrf.mxu0
      %v1786 = vpop.f32.mrf.mxu0
      %v1787 = vadd.f32 %v1602, %v1786
      %v1788 = vpop.f32.mrf.mxu0
      %1789 = vmatprep.mubr.bf16.mxu0 0
      %1790 = vmatmul.mubr.bf16.gmra.mxu0 %v1709
      %v1791 = vpop.f32.mrf.mxu0
      %v1792 = vadd.f32 %v1607, %v1791
      %v1793 = vpop.f32.mrf.mxu0
      %v1794 = vpop.f32.mrf.mxu0
      %v1795 = vadd.f32 %v1610, %v1794
      %v1796 = vpop.f32.mrf.mxu0
      %1797 = vmatprep.mubr.bf16.mxu0 0
      %1798 = vmatmul.mubr.bf16.gmra.mxu0 %v1712
      %v1799 = vpop.f32.mrf.mxu0
      %v1800 = vadd.f32 %v1615, %v1799
      %v1801 = vpop.f32.mrf.mxu0
      %v1802 = vpop.f32.mrf.mxu0
      %v1803 = vadd.f32 %v1618, %v1802
      %v1804 = vpop.f32.mrf.mxu0
      %1805 = vmatprep.mubr.bf16.mxu0 0
      %1806 = vmatmul.mubr.bf16.gmra.mxu0 %v1715
      %v1807 = vpop.f32.mrf.mxu0
      %v1808 = vadd.f32 %v1623, %v1807
      %v1809 = vpop.f32.mrf.mxu0
      %v1810 = vpop.f32.mrf.mxu0
      %v1811 = vadd.f32 %v1626, %v1810
      %v1812 = vpop.f32.mrf.mxu0
      %1813 = vdwg.mxu0
      %v1814 = vld [vmem:[#allocation2] sm:$0xe]
      %v1815 = vld [vmem:[#allocation2 + $0x8] sm:$0xe]
      %v1816 = vld [vmem:[#allocation2 + $0x10] sm:$0xe]
      %v1817 = vld [vmem:[#allocation2 + $0x18] sm:$0xe]
      %v1818 = vld [vmem:[#allocation2 + $0x20] sm:$0xe]
      %v1819 = vld [vmem:[#allocation2 + $0x28] sm:$0xe]
      %v1820 = vld [vmem:[#allocation2 + $0x30] sm:$0xe]
      %v1821 = vld [vmem:[#allocation2 + $0x38] sm:$0xe]
      %v1822 = vld [vmem:[#allocation2 + $0x50] sm:$0xe]
      %v1823 = vld [vmem:[#allocation2 + $0x58] sm:$0xe]
      %v1824 = vld [vmem:[#allocation2 + $0x60] sm:$0xe]
      %v1825 = vld [vmem:[#allocation2 + $0x68] sm:$0xe]
      %v1826 = vld [vmem:[#allocation2 + $0x70] sm:$0xe]
      %v1827 = vld [vmem:[#allocation2 + $0x78] sm:$0xe]
      %v1828 = vld [vmem:[#allocation2 + $0x80] sm:$0xe]
      %v1829 = vld [vmem:[#allocation2 + $0x88] sm:$0xe]
      %vm1862 = vcmask 1042432
      %vm1863 = vcmask 1046532
      %vm1864 = vmor %vm1862, %vm1863
      %v1865 = vrot.slane %v1814, 5
      %v1866 = vrot.slane %v1865, 4
      %v1867 = vrot.slane %v1208, 5
      %v1868 = vsel %vm1864, %v1866, %v1867
      %v1869 = vrot.slane %v1815, 5
      %v1870 = vrot.slane %v1869, 4
      %v1871 = vrot.slane %v1209, 5
      %v1872 = vsel %vm1864, %v1870, %v1871
      %v1873 = vrot.slane %v1816, 5
      %v1874 = vrot.slane %v1873, 4
      %v1875 = vrot.slane %v1210, 5
      %v1876 = vsel %vm1864, %v1874, %v1875
      %v1877 = vrot.slane %v1817, 5
      %v1878 = vrot.slane %v1877, 4
      %v1879 = vrot.slane %v1211, 5
      %v1880 = vsel %vm1864, %v1878, %v1879
      %v1881 = vrot.slane %v1818, 5
      %v1882 = vrot.slane %v1881, 4
      %v1883 = vrot.slane %v1212, 5
      %v1884 = vsel %vm1864, %v1882, %v1883
      %v1885 = vrot.slane %v1819, 5
      %v1886 = vrot.slane %v1885, 4
      %v1887 = vrot.slane %v1213, 5
      %v1888 = vsel %vm1864, %v1886, %v1887
      %v1889 = vrot.slane %v1820, 5
      %v1890 = vrot.slane %v1889, 4
      %v1891 = vrot.slane %v1214, 5
      %v1892 = vsel %vm1864, %v1890, %v1891
      %v1893 = vrot.slane %v1821, 5
      %v1894 = vrot.slane %v1893, 4
      %v1895 = vrot.slane %v1215, 5
      %v1896 = vsel %vm1864, %v1894, %v1895
      %v1897 = vrot.slane %v1822, 5
      %v1898 = vrot.slane %v1897, 4
      %v1899 = vrot.slane %v1216, 5
      %v1900 = vsel %vm1864, %v1898, %v1899
      %v1901 = vrot.slane %v1823, 5
      %v1902 = vrot.slane %v1901, 4
      %v1903 = vrot.slane %v1217, 5
      %v1904 = vsel %vm1864, %v1902, %v1903
      %v1905 = vrot.slane %v1824, 5
      %v1906 = vrot.slane %v1905, 4
      %v1907 = vrot.slane %v1218, 5
      %v1908 = vsel %vm1864, %v1906, %v1907
      %v1909 = vrot.slane %v1825, 5
      %v1910 = vrot.slane %v1909, 4
      %v1911 = vrot.slane %v1219, 5
      %v1912 = vsel %vm1864, %v1910, %v1911
      %v1913 = vrot.slane %v1826, 5
      %v1914 = vrot.slane %v1913, 4
      %v1915 = vrot.slane %v1220, 5
      %v1916 = vsel %vm1864, %v1914, %v1915
      %v1917 = vrot.slane %v1827, 5
      %v1918 = vrot.slane %v1917, 4
      %v1919 = vrot.slane %v1221, 5
      %v1920 = vsel %vm1864, %v1918, %v1919
      %v1921 = vrot.slane %v1828, 5
      %v1922 = vrot.slane %v1921, 4
      %v1923 = vrot.slane %v1222, 5
      %v1924 = vsel %vm1864, %v1922, %v1923
      %v1925 = vrot.slane %v1829, 5
      %v1926 = vrot.slane %v1925, 4
      %v1927 = vrot.slane %v1223, 5
      %v1928 = vsel %vm1864, %v1926, %v1927
      %v1929 = vld [vmem:[%s364 + $0x40] sm:$0xf]
      %v1930 = vld [vmem:[%s364 + $0x44] sm:$0xf]
      %v1931 = vld [vmem:[%s364 + $0x48] sm:$0xf]
      %v1932 = vld [vmem:[%s364 + $0x4c] sm:$0xf]
      %v1933 = vld [vmem:[%s364 + $0x50] sm:$0xf]
      %v1934 = vld [vmem:[%s364 + $0x54] sm:$0xf]
      %v1935 = vld [vmem:[%s364 + $0x58] sm:$0xf]
      %v1936 = vld [vmem:[%s364 + $0x5c] sm:$0xf]
      %v1937 = vunpack.c.l.b16 %v1868
      %v1938 = vunpack.c.l.b16 %v1872
      %v1939 = vunpack.c.l.b16 %v1876
      %v1940 = vunpack.c.l.b16 %v1880
      %v1941 = vunpack.c.l.b16 %v1884
      %v1942 = vunpack.c.l.b16 %v1888
      %v1943 = vunpack.c.l.b16 %v1892
      %v1944 = vunpack.c.l.b16 %v1896
      %v1945 = vunpack.c.l.b16 %v1900
      %v1946 = vunpack.c.l.b16 %v1904
      %v1947 = vunpack.c.l.b16 %v1908
      %v1948 = vunpack.c.l.b16 %v1912
      %v1949 = vunpack.c.l.b16 %v1916
      %v1950 = vunpack.c.l.b16 %v1920
      %v1951 = vunpack.c.l.b16 %v1924
      %v1952 = vunpack.c.l.b16 %v1928
      %v1953 = vpack.c.b16 %v1938, %v1937
      %v1954 = vpack.c.b16 %v1940, %v1939
      %v1955 = vpack.c.b16 %v1942, %v1941
      %v1956 = vpack.c.b16 %v1944, %v1943
      %v1957 = vpack.c.b16 %v1946, %v1945
      %v1958 = vpack.c.b16 %v1948, %v1947
      %v1959 = vpack.c.b16 %v1950, %v1949
      %v1960 = vpack.c.b16 %v1952, %v1951
      %v1969 = vunpack.c.l.b16 %v1929
      %v1970 = vunpack.c.l.b16 %v1930
      %v1971 = vunpack.c.l.b16 %v1931
      %v1972 = vunpack.c.l.b16 %v1932
      %v1973 = vunpack.c.l.b16 %v1933
      %v1974 = vunpack.c.l.b16 %v1934
      %v1975 = vunpack.c.l.b16 %v1935
      %v1976 = vunpack.c.l.b16 %v1936
      %v1977 = vpack.c.b16 %v1970, %v1969
      %v1978 = vpack.c.b16 %v1972, %v1971
      %v1979 = vpack.c.b16 %v1974, %v1973
      %v1980 = vpack.c.b16 %v1976, %v1975
      %v1986 = vsel %vm1507, %v1953, 0
      %v1989 = vsel %vm1507, %v1954, 0
      %v1992 = vsel %vm1507, %v1955, 0
      %v1995 = vsel %vm1507, %v1956, 0
      %v1998 = vsel %vm1507, %v1957, 0
      %v2001 = vsel %vm1507, %v1958, 0
      %v2004 = vsel %vm1507, %v1959, 0
      %v2007 = vsel %vm1507, %v1960, 0
      %2009 = vmatprep.subr.bf16.mxu0 0
      %2010 = vmatpush1.bf16.msra.mxu0 0
      %2011 = vmatprep.subr.bf16.mxu0 0
      %2012 = vmatpush1.bf16.msra.mxu0 0
      %2013 = vmatprep.subr.bf16.mxu0 0
      %2014 = vmatpush1.bf16.msra.mxu0 0
      %2015 = vmatprep.subr.bf16.mxu0 0
      %2016 = vmatpush1.bf16.msra.mxu0 0
      %2017 = vmatprep.subr.bf16.mxu0 0
      %2018 = vmatpush1.bf16.msra.mxu0 %v1980
      %2019 = vmatprep.subr.bf16.mxu0 0
      %2020 = vmatpush1.bf16.msra.mxu0 %v1979
      %2021 = vmatprep.subr.bf16.mxu0 0
      %2022 = vmatpush1.bf16.msra.mxu0 %v1978
      %2023 = vmatprep.subr.bf16.mxu0 0
      %2024 = vmatpush1.bf16.msra.mxu0 %v1977
      %2025 = vmatprep.subr.bf16.mxu0 0
      %2026 = vmatpush2.bf16.msra.mxu0 0
      %2027 = vmatprep.subr.bf16.mxu0 0
      %2028 = vmatpush2.bf16.msra.mxu0 0
      %2029 = vmatprep.subr.bf16.mxu0 0
      %2030 = vmatpush2.bf16.msra.mxu0 0
      %2031 = vmatprep.subr.bf16.mxu0 0
      %2032 = vmatpush2.bf16.msra.mxu0 0
      %2033 = vmatprep.subr.bf16.mxu0 0
      %2034 = vmatpush2.bf16.msra.mxu0 0
      %2035 = vmatprep.subr.bf16.mxu0 0
      %2036 = vmatpush2.bf16.msra.mxu0 0
      %2037 = vmatprep.subr.bf16.mxu0 0
      %2038 = vmatpush2.bf16.msra.mxu0 0
      %2039 = vmatprep.subr.bf16.mxu0 0
      %2040 = vmatpush2.bf16.msra.mxu0 0
      %2041 = vmatprep.mubr.bf16.mxu0 0
      %2042 = vmatmul.mubr.bf16.gmra.mxu0 %v1986
      %v2043 = vpop.f32.mrf.mxu0
      %v2044 = vadd.f32 0.0, %v2043
      %v2045 = vpop.f32.mrf.mxu0
      %v2046 = vpop.f32.mrf.mxu0
      %v2047 = vadd.f32 0.0, %v2046
      %v2048 = vpop.f32.mrf.mxu0
      %2049 = vmatprep.mubr.bf16.mxu0 0
      %2050 = vmatmul.mubr.bf16.gmra.mxu0 %v1989
      %v2051 = vpop.f32.mrf.mxu0
      %v2052 = vadd.f32 0.0, %v2051
      %v2053 = vpop.f32.mrf.mxu0
      %v2054 = vpop.f32.mrf.mxu0
      %v2055 = vadd.f32 0.0, %v2054
      %v2056 = vpop.f32.mrf.mxu0
      %2057 = vmatprep.mubr.bf16.mxu0 0
      %2058 = vmatmul.mubr.bf16.gmra.mxu0 %v1992
      %v2059 = vpop.f32.mrf.mxu0
      %v2060 = vadd.f32 0.0, %v2059
      %v2061 = vpop.f32.mrf.mxu0
      %v2062 = vpop.f32.mrf.mxu0
      %v2063 = vadd.f32 0.0, %v2062
      %v2064 = vpop.f32.mrf.mxu0
      %2065 = vmatprep.mubr.bf16.mxu0 0
      %2066 = vmatmul.mubr.bf16.gmra.mxu0 %v1995
      %v2067 = vpop.f32.mrf.mxu0
      %v2068 = vadd.f32 0.0, %v2067
      %v2069 = vpop.f32.mrf.mxu0
      %v2070 = vpop.f32.mrf.mxu0
      %v2071 = vadd.f32 0.0, %v2070
      %v2072 = vpop.f32.mrf.mxu0
      %2073 = vmatprep.mubr.bf16.mxu0 0
      %2074 = vmatmul.mubr.bf16.gmra.mxu0 %v1998
      %v2075 = vpop.f32.mrf.mxu0
      %v2076 = vadd.f32 0.0, %v2075
      %v2077 = vpop.f32.mrf.mxu0
      %v2078 = vpop.f32.mrf.mxu0
      %v2079 = vadd.f32 0.0, %v2078
      %v2080 = vpop.f32.mrf.mxu0
      %2081 = vmatprep.mubr.bf16.mxu0 0
      %2082 = vmatmul.mubr.bf16.gmra.mxu0 %v2001
      %v2083 = vpop.f32.mrf.mxu0
      %v2084 = vadd.f32 0.0, %v2083
      %v2085 = vpop.f32.mrf.mxu0
      %v2086 = vpop.f32.mrf.mxu0
      %v2087 = vadd.f32 0.0, %v2086
      %v2088 = vpop.f32.mrf.mxu0
      %2089 = vmatprep.mubr.bf16.mxu0 0
      %2090 = vmatmul.mubr.bf16.gmra.mxu0 %v2004
      %v2091 = vpop.f32.mrf.mxu0
      %v2092 = vadd.f32 0.0, %v2091
      %v2093 = vpop.f32.mrf.mxu0
      %v2094 = vpop.f32.mrf.mxu0
      %v2095 = vadd.f32 0.0, %v2094
      %v2096 = vpop.f32.mrf.mxu0
      %2097 = vmatprep.mubr.bf16.mxu0 0
      %2098 = vmatmul.mubr.bf16.gmra.mxu0 %v2007
      %v2099 = vpop.f32.mrf.mxu0
      %v2100 = vadd.f32 0.0, %v2099
      %v2101 = vpop.f32.mrf.mxu0
      %v2102 = vpop.f32.mrf.mxu0
      %v2103 = vadd.f32 0.0, %v2102
      %v2104 = vpop.f32.mrf.mxu0
      %2105 = vdwg.mxu0
      %v2106 = vadd.f32 %v1752, %v2044
      %v2107 = vadd.f32 %v1755, %v2047
      %v2108 = vadd.f32 %v1760, %v2052
      %v2109 = vadd.f32 %v1763, %v2055
      %v2110 = vadd.f32 %v1768, %v2060
      %v2111 = vadd.f32 %v1771, %v2063
      %v2112 = vadd.f32 %v1776, %v2068
      %v2113 = vadd.f32 %v1779, %v2071
      %v2114 = vadd.f32 %v1784, %v2076
      %v2115 = vadd.f32 %v1787, %v2079
      %v2116 = vadd.f32 %v1792, %v2084
      %v2117 = vadd.f32 %v1795, %v2087
      %v2118 = vadd.f32 %v1800, %v2092
      %v2119 = vadd.f32 %v1803, %v2095
      %v2120 = vadd.f32 %v1808, %v2100
      %v2121 = vadd.f32 %v1811, %v2103
      %v2122 = vld [vmem:[%s1085] sm:$0xf]
      %v2123 = vld [vmem:[%s1085 + $0x8] sm:$0xf]
      %v2124 = vld [vmem:[%s1085 + $0x10] sm:$0xf]
      %v2125 = vld [vmem:[%s1085 + $0x18] sm:$0xf]
      %v2126 = vld [vmem:[%s1085 + $0x20] sm:$0xf]
      %v2127 = vld [vmem:[%s1085 + $0x28] sm:$0xf]
      %v2128 = vld [vmem:[%s1085 + $0x30] sm:$0xf]
      %v2129 = vld [vmem:[%s1085 + $0x38] sm:$0xf]
      %v2130 = vld [vmem:[%s1085 + $0x50] sm:$0xf]
      %v2131 = vld [vmem:[%s1085 + $0x58] sm:$0xf]
      %v2132 = vld [vmem:[%s1085 + $0x60] sm:$0xf]
      %v2133 = vld [vmem:[%s1085 + $0x68] sm:$0xf]
      %v2134 = vld [vmem:[%s1085 + $0x70] sm:$0xf]
      %v2135 = vld [vmem:[%s1085 + $0x78] sm:$0xf]
      %v2136 = vld [vmem:[%s1085 + $0x80] sm:$0xf]
      %v2137 = vld [vmem:[%s1085 + $0x88] sm:$0xf]
      %v2138 = vld [vmem:[%s364 + $0x60] sm:$0xf]
      %v2139 = vld [vmem:[%s364 + $0x64] sm:$0xf]
      %v2140 = vld [vmem:[%s364 + $0x68] sm:$0xf]
      %v2141 = vld [vmem:[%s364 + $0x6c] sm:$0xf]
      %v2142 = vld [vmem:[%s364 + $0x70] sm:$0xf]
      %v2143 = vld [vmem:[%s364 + $0x74] sm:$0xf]
      %v2144 = vld [vmem:[%s364 + $0x78] sm:$0xf]
      %v2145 = vld [vmem:[%s364 + $0x7c] sm:$0xf]
      %v2162 = vunpack.c.l.b16 %v2122
      %v2163 = vunpack.c.l.b16 %v2123
      %v2164 = vunpack.c.l.b16 %v2124
      %v2165 = vunpack.c.l.b16 %v2125
      %v2166 = vunpack.c.l.b16 %v2126
      %v2167 = vunpack.c.l.b16 %v2127
      %v2168 = vunpack.c.l.b16 %v2128
      %v2169 = vunpack.c.l.b16 %v2129
      %v2170 = vunpack.c.l.b16 %v2130
      %v2171 = vunpack.c.l.b16 %v2131
      %v2172 = vunpack.c.l.b16 %v2132
      %v2173 = vunpack.c.l.b16 %v2133
      %v2174 = vunpack.c.l.b16 %v2134
      %v2175 = vunpack.c.l.b16 %v2135
      %v2176 = vunpack.c.l.b16 %v2136
      %v2177 = vunpack.c.l.b16 %v2137
      %v2178 = vpack.c.b16 %v2163, %v2162
      %v2179 = vpack.c.b16 %v2165, %v2164
      %v2180 = vpack.c.b16 %v2167, %v2166
      %v2181 = vpack.c.b16 %v2169, %v2168
      %v2182 = vpack.c.b16 %v2171, %v2170
      %v2183 = vpack.c.b16 %v2173, %v2172
      %v2184 = vpack.c.b16 %v2175, %v2174
      %v2185 = vpack.c.b16 %v2177, %v2176
      %v2194 = vunpack.c.l.b16 %v2138
      %v2195 = vunpack.c.l.b16 %v2139
      %v2196 = vunpack.c.l.b16 %v2140
      %v2197 = vunpack.c.l.b16 %v2141
      %v2198 = vunpack.c.l.b16 %v2142
      %v2199 = vunpack.c.l.b16 %v2143
      %v2200 = vunpack.c.l.b16 %v2144
      %v2201 = vunpack.c.l.b16 %v2145
      %v2202 = vpack.c.b16 %v2195, %v2194
      %v2203 = vpack.c.b16 %v2197, %v2196
      %v2204 = vpack.c.b16 %v2199, %v2198
      %v2205 = vpack.c.b16 %v2201, %v2200
      %v2211 = vsel %vm1507, %v2178, 0
      %v2214 = vsel %vm1507, %v2179, 0
      %v2217 = vsel %vm1507, %v2180, 0
      %v2220 = vsel %vm1507, %v2181, 0
      %v2223 = vsel %vm1507, %v2182, 0
      %v2226 = vsel %vm1507, %v2183, 0
      %v2229 = vsel %vm1507, %v2184, 0
      %v2232 = vsel %vm1507, %v2185, 0
      %2234 = vmatprep.subr.bf16.mxu0 0
      %2235 = vmatpush1.bf16.msra.mxu0 0
      %2236 = vmatprep.subr.bf16.mxu0 0
      %2237 = vmatpush1.bf16.msra.mxu0 0
      %2238 = vmatprep.subr.bf16.mxu0 0
      %2239 = vmatpush1.bf16.msra.mxu0 0
      %2240 = vmatprep.subr.bf16.mxu0 0
      %2241 = vmatpush1.bf16.msra.mxu0 0
      %2242 = vmatprep.subr.bf16.mxu0 0
      %2243 = vmatpush1.bf16.msra.mxu0 %v2205
      %2244 = vmatprep.subr.bf16.mxu0 0
      %2245 = vmatpush1.bf16.msra.mxu0 %v2204
      %2246 = vmatprep.subr.bf16.mxu0 0
      %2247 = vmatpush1.bf16.msra.mxu0 %v2203
      %2248 = vmatprep.subr.bf16.mxu0 0
      %2249 = vmatpush1.bf16.msra.mxu0 %v2202
      %2250 = vmatprep.subr.bf16.mxu0 0
      %2251 = vmatpush2.bf16.msra.mxu0 0
      %2252 = vmatprep.subr.bf16.mxu0 0
      %2253 = vmatpush2.bf16.msra.mxu0 0
      %2254 = vmatprep.subr.bf16.mxu0 0
      %2255 = vmatpush2.bf16.msra.mxu0 0
      %2256 = vmatprep.subr.bf16.mxu0 0
      %2257 = vmatpush2.bf16.msra.mxu0 0
      %2258 = vmatprep.subr.bf16.mxu0 0
      %2259 = vmatpush2.bf16.msra.mxu0 0
      %2260 = vmatprep.subr.bf16.mxu0 0
      %2261 = vmatpush2.bf16.msra.mxu0 0
      %2262 = vmatprep.subr.bf16.mxu0 0
      %2263 = vmatpush2.bf16.msra.mxu0 0
      %2264 = vmatprep.subr.bf16.mxu0 0
      %2265 = vmatpush2.bf16.msra.mxu0 0
      %2266 = vmatprep.mubr.bf16.mxu0 0
      %2267 = vmatmul.mubr.bf16.gmra.mxu0 %v2211
      %v2268 = vpop.f32.mrf.mxu0
      %v2269 = vadd.f32 0.0, %v2268
      %v2270 = vpop.f32.mrf.mxu0
      %v2271 = vpop.f32.mrf.mxu0
      %v2272 = vadd.f32 0.0, %v2271
      %v2273 = vpop.f32.mrf.mxu0
      %2274 = vmatprep.mubr.bf16.mxu0 0
      %2275 = vmatmul.mubr.bf16.gmra.mxu0 %v2214
      %v2276 = vpop.f32.mrf.mxu0
      %v2277 = vadd.f32 0.0, %v2276
      %v2278 = vpop.f32.mrf.mxu0
      %v2279 = vpop.f32.mrf.mxu0
      %v2280 = vadd.f32 0.0, %v2279
      %v2281 = vpop.f32.mrf.mxu0
      %2282 = vmatprep.mubr.bf16.mxu0 0
      %2283 = vmatmul.mubr.bf16.gmra.mxu0 %v2217
      %v2284 = vpop.f32.mrf.mxu0
      %v2285 = vadd.f32 0.0, %v2284
      %v2286 = vpop.f32.mrf.mxu0
      %v2287 = vpop.f32.mrf.mxu0
      %v2288 = vadd.f32 0.0, %v2287
      %v2289 = vpop.f32.mrf.mxu0
      %2290 = vmatprep.mubr.bf16.mxu0 0
      %2291 = vmatmul.mubr.bf16.gmra.mxu0 %v2220
      %v2292 = vpop.f32.mrf.mxu0
      %v2293 = vadd.f32 0.0, %v2292
      %v2294 = vpop.f32.mrf.mxu0
      %v2295 = vpop.f32.mrf.mxu0
      %v2296 = vadd.f32 0.0, %v2295
      %v2297 = vpop.f32.mrf.mxu0
      %2298 = vmatprep.mubr.bf16.mxu0 0
      %2299 = vmatmul.mubr.bf16.gmra.mxu0 %v2223
      %v2300 = vpop.f32.mrf.mxu0
      %v2301 = vadd.f32 0.0, %v2300
      %v2302 = vpop.f32.mrf.mxu0
      %v2303 = vpop.f32.mrf.mxu0
      %v2304 = vadd.f32 0.0, %v2303
      %v2305 = vpop.f32.mrf.mxu0
      %2306 = vmatprep.mubr.bf16.mxu0 0
      %2307 = vmatmul.mubr.bf16.gmra.mxu0 %v2226
      %v2308 = vpop.f32.mrf.mxu0
      %v2309 = vadd.f32 0.0, %v2308
      %v2310 = vpop.f32.mrf.mxu0
      %v2311 = vpop.f32.mrf.mxu0
      %v2312 = vadd.f32 0.0, %v2311
      %v2313 = vpop.f32.mrf.mxu0
      %2314 = vmatprep.mubr.bf16.mxu0 0
      %2315 = vmatmul.mubr.bf16.gmra.mxu0 %v2229
      %v2316 = vpop.f32.mrf.mxu0
      %v2317 = vadd.f32 0.0, %v2316
      %v2318 = vpop.f32.mrf.mxu0
      %v2319 = vpop.f32.mrf.mxu0
      %v2320 = vadd.f32 0.0, %v2319
      %v2321 = vpop.f32.mrf.mxu0
      %2322 = vmatprep.mubr.bf16.mxu0 0
      %2323 = vmatmul.mubr.bf16.gmra.mxu0 %v2232
      %v2324 = vpop.f32.mrf.mxu0
      %v2325 = vadd.f32 0.0, %v2324
      %v2326 = vpop.f32.mrf.mxu0
      %v2327 = vpop.f32.mrf.mxu0
      %v2328 = vadd.f32 0.0, %v2327
      %v2329 = vpop.f32.mrf.mxu0
      %2330 = vdwg.mxu0
      %v2331 = vadd.f32 %v2106, %v2269
      %v2332 = vadd.f32 %v2107, %v2272
      %v2333 = vadd.f32 %v2108, %v2277
      %v2334 = vadd.f32 %v2109, %v2280
      %v2335 = vadd.f32 %v2110, %v2285
      %v2336 = vadd.f32 %v2111, %v2288
      %v2337 = vadd.f32 %v2112, %v2293
      %v2338 = vadd.f32 %v2113, %v2296
      %v2339 = vadd.f32 %v2114, %v2301
      %v2340 = vadd.f32 %v2115, %v2304
      %v2341 = vadd.f32 %v2116, %v2309
      %v2342 = vadd.f32 %v2117, %v2312
      %v2343 = vadd.f32 %v2118, %v2317
      %v2344 = vadd.f32 %v2119, %v2320
      %v2345 = vadd.f32 %v2120, %v2325
      %v2346 = vadd.f32 %v2121, %v2328
      %v2347 = vld [vmem:[%s1085] sm:$0xf]
      %v2348 = vld [vmem:[%s1085 + $0x4] sm:$0x1]
      %v2349 = vld [vmem:[%s1085 + $0x8] sm:$0xf]
      %v2350 = vld [vmem:[%s1085 + $0xc] sm:$0x1]
      %v2351 = vld [vmem:[%s1085 + $0x10] sm:$0xf]
      %v2352 = vld [vmem:[%s1085 + $0x14] sm:$0x1]
      %v2353 = vld [vmem:[%s1085 + $0x18] sm:$0xf]
      %v2354 = vld [vmem:[%s1085 + $0x1c] sm:$0x1]
      %v2355 = vld [vmem:[%s1085 + $0x20] sm:$0xf]
      %v2356 = vld [vmem:[%s1085 + $0x24] sm:$0x1]
      %v2357 = vld [vmem:[%s1085 + $0x28] sm:$0xf]
      %v2358 = vld [vmem:[%s1085 + $0x2c] sm:$0x1]
      %v2359 = vld [vmem:[%s1085 + $0x30] sm:$0xf]
      %v2360 = vld [vmem:[%s1085 + $0x34] sm:$0x1]
      %v2361 = vld [vmem:[%s1085 + $0x38] sm:$0xf]
      %v2362 = vld [vmem:[%s1085 + $0x3c] sm:$0x1]
      %v2363 = vld [vmem:[%s1085 + $0x50] sm:$0xf]
      %v2364 = vld [vmem:[%s1085 + $0x54] sm:$0x1]
      %v2365 = vld [vmem:[%s1085 + $0x58] sm:$0xf]
      %v2366 = vld [vmem:[%s1085 + $0x5c] sm:$0x1]
      %v2367 = vld [vmem:[%s1085 + $0x60] sm:$0xf]
      %v2368 = vld [vmem:[%s1085 + $0x64] sm:$0x1]
      %v2369 = vld [vmem:[%s1085 + $0x68] sm:$0xf]
      %v2370 = vld [vmem:[%s1085 + $0x6c] sm:$0x1]
      %v2371 = vld [vmem:[%s1085 + $0x70] sm:$0xf]
      %v2372 = vld [vmem:[%s1085 + $0x74] sm:$0x1]
      %v2373 = vld [vmem:[%s1085 + $0x78] sm:$0xf]
      %v2374 = vld [vmem:[%s1085 + $0x7c] sm:$0x1]
      %v2375 = vld [vmem:[%s1085 + $0x80] sm:$0xf]
      %v2376 = vld [vmem:[%s1085 + $0x84] sm:$0x1]
      %v2377 = vld [vmem:[%s1085 + $0x88] sm:$0xf]
      %v2378 = vld [vmem:[%s1085 + $0x8c] sm:$0x1]
      %v2380 = vshrl.u32 %v2347, 16
      %v2382 = vrot.slane %v2380, 4
      %v2383 = vshll.u32 %v2347, 16
      %v2385 = vrot.slane %v2383, 5
      %v2386 = vor.u32 %v2382, %v2385
      %v2387 = vrot.slane %v2386, 4
      %v2389 = vshll.u32 %v2348, 16
      %v2391 = vrot.slane %v2389, 5
      %v2392 = vsel %vm1226, %v2387, %v2391
      %v2394 = vshrl.u32 %v2349, 16
      %v2396 = vrot.slane %v2394, 4
      %v2397 = vshll.u32 %v2349, 16
      %v2399 = vrot.slane %v2397, 5
      %v2400 = vor.u32 %v2396, %v2399
      %v2401 = vrot.slane %v2400, 4
      %v2403 = vshll.u32 %v2350, 16
      %v2405 = vrot.slane %v2403, 5
      %v2406 = vsel %vm1226, %v2401, %v2405
      %v2408 = vshrl.u32 %v2351, 16
      %v2410 = vrot.slane %v2408, 4
      %v2411 = vshll.u32 %v2351, 16
      %v2413 = vrot.slane %v2411, 5
      %v2414 = vor.u32 %v2410, %v2413
      %v2415 = vrot.slane %v2414, 4
      %v2417 = vshll.u32 %v2352, 16
      %v2419 = vrot.slane %v2417, 5
      %v2420 = vsel %vm1226, %v2415, %v2419
      %v2422 = vshrl.u32 %v2353, 16
      %v2424 = vrot.slane %v2422, 4
      %v2425 = vshll.u32 %v2353, 16
      %v2427 = vrot.slane %v2425, 5
      %v2428 = vor.u32 %v2424, %v2427
      %v2429 = vrot.slane %v2428, 4
      %v2431 = vshll.u32 %v2354, 16
      %v2433 = vrot.slane %v2431, 5
      %v2434 = vsel %vm1226, %v2429, %v2433
      %v2436 = vshrl.u32 %v2355, 16
      %v2438 = vrot.slane %v2436, 4
      %v2439 = vshll.u32 %v2355, 16
      %v2441 = vrot.slane %v2439, 5
      %v2442 = vor.u32 %v2438, %v2441
      %v2443 = vrot.slane %v2442, 4
      %v2445 = vshll.u32 %v2356, 16
      %v2447 = vrot.slane %v2445, 5
      %v2448 = vsel %vm1226, %v2443, %v2447
      %v2450 = vshrl.u32 %v2357, 16
      %v2452 = vrot.slane %v2450, 4
      %v2453 = vshll.u32 %v2357, 16
      %v2455 = vrot.slane %v2453, 5
      %v2456 = vor.u32 %v2452, %v2455
      %v2457 = vrot.slane %v2456, 4
      %v2459 = vshll.u32 %v2358, 16
      %v2461 = vrot.slane %v2459, 5
      %v2462 = vsel %vm1226, %v2457, %v2461
      %v2464 = vshrl.u32 %v2359, 16
      %v2466 = vrot.slane %v2464, 4
      %v2467 = vshll.u32 %v2359, 16
      %v2469 = vrot.slane %v2467, 5
      %v2470 = vor.u32 %v2466, %v2469
      %v2471 = vrot.slane %v2470, 4
      %v2473 = vshll.u32 %v2360, 16
      %v2475 = vrot.slane %v2473, 5
      %v2476 = vsel %vm1226, %v2471, %v2475
      %v2478 = vshrl.u32 %v2361, 16
      %v2480 = vrot.slane %v2478, 4
      %v2481 = vshll.u32 %v2361, 16
      %v2483 = vrot.slane %v2481, 5
      %v2484 = vor.u32 %v2480, %v2483
      %v2485 = vrot.slane %v2484, 4
      %v2487 = vshll.u32 %v2362, 16
      %v2489 = vrot.slane %v2487, 5
      %v2490 = vsel %vm1226, %v2485, %v2489
      %v2492 = vshrl.u32 %v2363, 16
      %v2494 = vrot.slane %v2492, 4
      %v2495 = vshll.u32 %v2363, 16
      %v2497 = vrot.slane %v2495, 5
      %v2498 = vor.u32 %v2494, %v2497
      %v2499 = vrot.slane %v2498, 4
      %v2501 = vshll.u32 %v2364, 16
      %v2503 = vrot.slane %v2501, 5
      %v2504 = vsel %vm1226, %v2499, %v2503
      %v2506 = vshrl.u32 %v2365, 16
      %v2508 = vrot.slane %v2506, 4
      %v2509 = vshll.u32 %v2365, 16
      %v2511 = vrot.slane %v2509, 5
      %v2512 = vor.u32 %v2508, %v2511
      %v2513 = vrot.slane %v2512, 4
      %v2515 = vshll.u32 %v2366, 16
      %v2517 = vrot.slane %v2515, 5
      %v2518 = vsel %vm1226, %v2513, %v2517
      %v2520 = vshrl.u32 %v2367, 16
      %v2522 = vrot.slane %v2520, 4
      %v2523 = vshll.u32 %v2367, 16
      %v2525 = vrot.slane %v2523, 5
      %v2526 = vor.u32 %v2522, %v2525
      %v2527 = vrot.slane %v2526, 4
      %v2529 = vshll.u32 %v2368, 16
      %v2531 = vrot.slane %v2529, 5
      %v2532 = vsel %vm1226, %v2527, %v2531
      %v2534 = vshrl.u32 %v2369, 16
      %v2536 = vrot.slane %v2534, 4
      %v2537 = vshll.u32 %v2369, 16
      %v2539 = vrot.slane %v2537, 5
      %v2540 = vor.u32 %v2536, %v2539
      %v2541 = vrot.slane %v2540, 4
      %v2543 = vshll.u32 %v2370, 16
      %v2545 = vrot.slane %v2543, 5
      %v2546 = vsel %vm1226, %v2541, %v2545
      %v2548 = vshrl.u32 %v2371, 16
      %v2550 = vrot.slane %v2548, 4
      %v2551 = vshll.u32 %v2371, 16
      %v2553 = vrot.slane %v2551, 5
      %v2554 = vor.u32 %v2550, %v2553
      %v2555 = vrot.slane %v2554, 4
      %v2557 = vshll.u32 %v2372, 16
      %v2559 = vrot.slane %v2557, 5
      %v2560 = vsel %vm1226, %v2555, %v2559
      %v2562 = vshrl.u32 %v2373, 16
      %v2564 = vrot.slane %v2562, 4
      %v2565 = vshll.u32 %v2373, 16
      %v2567 = vrot.slane %v2565, 5
      %v2568 = vor.u32 %v2564, %v2567
      %v2569 = vrot.slane %v2568, 4
      %v2571 = vshll.u32 %v2374, 16
      %v2573 = vrot.slane %v2571, 5
      %v2574 = vsel %vm1226, %v2569, %v2573
      %v2576 = vshrl.u32 %v2375, 16
      %v2578 = vrot.slane %v2576, 4
      %v2579 = vshll.u32 %v2375, 16
      %v2581 = vrot.slane %v2579, 5
      %v2582 = vor.u32 %v2578, %v2581
      %v2583 = vrot.slane %v2582, 4
      %v2585 = vshll.u32 %v2376, 16
      %v2587 = vrot.slane %v2585, 5
      %v2588 = vsel %vm1226, %v2583, %v2587
      %v2590 = vshrl.u32 %v2377, 16
      %v2592 = vrot.slane %v2590, 4
      %v2593 = vshll.u32 %v2377, 16
      %v2595 = vrot.slane %v2593, 5
      %v2596 = vor.u32 %v2592, %v2595
      %v2597 = vrot.slane %v2596, 4
      %v2599 = vshll.u32 %v2378, 16
      %v2601 = vrot.slane %v2599, 5
      %v2602 = vsel %vm1226, %v2597, %v2601
      %v2603 = vld [vmem:[%s364 + $0x80] sm:$0xf]
      %v2604 = vld [vmem:[%s364 + $0x84] sm:$0xf]
      %v2605 = vld [vmem:[%s364 + $0x88] sm:$0xf]
      %v2606 = vld [vmem:[%s364 + $0x8c] sm:$0xf]
      %v2607 = vld [vmem:[%s364 + $0x90] sm:$0xf]
      %v2608 = vld [vmem:[%s364 + $0x94] sm:$0xf]
      %v2609 = vld [vmem:[%s364 + $0x98] sm:$0xf]
      %v2610 = vld [vmem:[%s364 + $0x9c] sm:$0xf]
      %v2611 = vunpack.c.l.b16 %v2392
      %v2612 = vunpack.c.l.b16 %v2406
      %v2613 = vunpack.c.l.b16 %v2420
      %v2614 = vunpack.c.l.b16 %v2434
      %v2615 = vunpack.c.l.b16 %v2448
      %v2616 = vunpack.c.l.b16 %v2462
      %v2617 = vunpack.c.l.b16 %v2476
      %v2618 = vunpack.c.l.b16 %v2490
      %v2619 = vunpack.c.l.b16 %v2504
      %v2620 = vunpack.c.l.b16 %v2518
      %v2621 = vunpack.c.l.b16 %v2532
      %v2622 = vunpack.c.l.b16 %v2546
      %v2623 = vunpack.c.l.b16 %v2560
      %v2624 = vunpack.c.l.b16 %v2574
      %v2625 = vunpack.c.l.b16 %v2588
      %v2626 = vunpack.c.l.b16 %v2602
      %v2627 = vpack.c.b16 %v2612, %v2611
      %v2628 = vpack.c.b16 %v2614, %v2613
      %v2629 = vpack.c.b16 %v2616, %v2615
      %v2630 = vpack.c.b16 %v2618, %v2617
      %v2631 = vpack.c.b16 %v2620, %v2619
      %v2632 = vpack.c.b16 %v2622, %v2621
      %v2633 = vpack.c.b16 %v2624, %v2623
      %v2634 = vpack.c.b16 %v2626, %v2625
      %v2643 = vunpack.c.l.b16 %v2603
      %v2644 = vunpack.c.l.b16 %v2604
      %v2645 = vunpack.c.l.b16 %v2605
      %v2646 = vunpack.c.l.b16 %v2606
      %v2647 = vunpack.c.l.b16 %v2607
      %v2648 = vunpack.c.l.b16 %v2608
      %v2649 = vunpack.c.l.b16 %v2609
      %v2650 = vunpack.c.l.b16 %v2610
      %v2651 = vpack.c.b16 %v2644, %v2643
      %v2652 = vpack.c.b16 %v2646, %v2645
      %v2653 = vpack.c.b16 %v2648, %v2647
      %v2654 = vpack.c.b16 %v2650, %v2649
      %v2660 = vsel %vm1507, %v2627, 0
      %v2663 = vsel %vm1507, %v2628, 0
      %v2666 = vsel %vm1507, %v2629, 0
      %v2669 = vsel %vm1507, %v2630, 0
      %v2672 = vsel %vm1507, %v2631, 0
      %v2675 = vsel %vm1507, %v2632, 0
      %v2678 = vsel %vm1507, %v2633, 0
      %v2681 = vsel %vm1507, %v2634, 0
      %2683 = vmatprep.subr.bf16.mxu0 0
      %2684 = vmatpush1.bf16.msra.mxu0 0
      %2685 = vmatprep.subr.bf16.mxu0 0
      %2686 = vmatpush1.bf16.msra.mxu0 0
      %2687 = vmatprep.subr.bf16.mxu0 0
      %2688 = vmatpush1.bf16.msra.mxu0 0
      %2689 = vmatprep.subr.bf16.mxu0 0
      %2690 = vmatpush1.bf16.msra.mxu0 0
      %2691 = vmatprep.subr.bf16.mxu0 0
      %2692 = vmatpush1.bf16.msra.mxu0 %v2654
      %2693 = vmatprep.subr.bf16.mxu0 0
      %2694 = vmatpush1.bf16.msra.mxu0 %v2653
      %2695 = vmatprep.subr.bf16.mxu0 0
      %2696 = vmatpush1.bf16.msra.mxu0 %v2652
      %2697 = vmatprep.subr.bf16.mxu0 0
      %2698 = vmatpush1.bf16.msra.mxu0 %v2651
      %2699 = vmatprep.subr.bf16.mxu0 0
      %2700 = vmatpush2.bf16.msra.mxu0 0
      %2701 = vmatprep.subr.bf16.mxu0 0
      %2702 = vmatpush2.bf16.msra.mxu0 0
      %2703 = vmatprep.subr.bf16.mxu0 0
      %2704 = vmatpush2.bf16.msra.mxu0 0
      %2705 = vmatprep.subr.bf16.mxu0 0
      %2706 = vmatpush2.bf16.msra.mxu0 0
      %2707 = vmatprep.subr.bf16.mxu0 0
      %2708 = vmatpush2.bf16.msra.mxu0 0
      %2709 = vmatprep.subr.bf16.mxu0 0
      %2710 = vmatpush2.bf16.msra.mxu0 0
      %2711 = vmatprep.subr.bf16.mxu0 0
      %2712 = vmatpush2.bf16.msra.mxu0 0
      %2713 = vmatprep.subr.bf16.mxu0 0
      %2714 = vmatpush2.bf16.msra.mxu0 0
      %2715 = vmatprep.mubr.bf16.mxu0 0
      %2716 = vmatmul.mubr.bf16.gmra.mxu0 %v2660
      %v2717 = vpop.f32.mrf.mxu0
      %v2718 = vadd.f32 0.0, %v2717
      %v2719 = vpop.f32.mrf.mxu0
      %v2720 = vpop.f32.mrf.mxu0
      %v2721 = vadd.f32 0.0, %v2720
      %v2722 = vpop.f32.mrf.mxu0
      %2723 = vmatprep.mubr.bf16.mxu0 0
      %2724 = vmatmul.mubr.bf16.gmra.mxu0 %v2663
      %v2725 = vpop.f32.mrf.mxu0
      %v2726 = vadd.f32 0.0, %v2725
      %v2727 = vpop.f32.mrf.mxu0
      %v2728 = vpop.f32.mrf.mxu0
      %v2729 = vadd.f32 0.0, %v2728
      %v2730 = vpop.f32.mrf.mxu0
      %2731 = vmatprep.mubr.bf16.mxu0 0
      %2732 = vmatmul.mubr.bf16.gmra.mxu0 %v2666
      %v2733 = vpop.f32.mrf.mxu0
      %v2734 = vadd.f32 0.0, %v2733
      %v2735 = vpop.f32.mrf.mxu0
      %v2736 = vpop.f32.mrf.mxu0
      %v2737 = vadd.f32 0.0, %v2736
      %v2738 = vpop.f32.mrf.mxu0
      %2739 = vmatprep.mubr.bf16.mxu0 0
      %2740 = vmatmul.mubr.bf16.gmra.mxu0 %v2669
      %v2741 = vpop.f32.mrf.mxu0
      %v2742 = vadd.f32 0.0, %v2741
      %v2743 = vpop.f32.mrf.mxu0
      %v2744 = vpop.f32.mrf.mxu0
      %v2745 = vadd.f32 0.0, %v2744
      %v2746 = vpop.f32.mrf.mxu0
      %2747 = vmatprep.mubr.bf16.mxu0 0
      %2748 = vmatmul.mubr.bf16.gmra.mxu0 %v2672
      %v2749 = vpop.f32.mrf.mxu0
      %v2750 = vadd.f32 0.0, %v2749
      %v2751 = vpop.f32.mrf.mxu0
      %v2752 = vpop.f32.mrf.mxu0
      %v2753 = vadd.f32 0.0, %v2752
      %v2754 = vpop.f32.mrf.mxu0
      %2755 = vmatprep.mubr.bf16.mxu0 0
      %2756 = vmatmul.mubr.bf16.gmra.mxu0 %v2675
      %v2757 = vpop.f32.mrf.mxu0
      %v2758 = vadd.f32 0.0, %v2757
      %v2759 = vpop.f32.mrf.mxu0
      %v2760 = vpop.f32.mrf.mxu0
      %v2761 = vadd.f32 0.0, %v2760
      %v2762 = vpop.f32.mrf.mxu0
      %2763 = vmatprep.mubr.bf16.mxu0 0
      %2764 = vmatmul.mubr.bf16.gmra.mxu0 %v2678
      %v2765 = vpop.f32.mrf.mxu0
      %v2766 = vadd.f32 0.0, %v2765
      %v2767 = vpop.f32.mrf.mxu0
      %v2768 = vpop.f32.mrf.mxu0
      %v2769 = vadd.f32 0.0, %v2768
      %v2770 = vpop.f32.mrf.mxu0
      %2771 = vmatprep.mubr.bf16.mxu0 0
      %2772 = vmatmul.mubr.bf16.gmra.mxu0 %v2681
      %v2773 = vpop.f32.mrf.mxu0
      %v2774 = vadd.f32 0.0, %v2773
      %v2775 = vpop.f32.mrf.mxu0
      %v2776 = vpop.f32.mrf.mxu0
      %v2777 = vadd.f32 0.0, %v2776
      %v2778 = vpop.f32.mrf.mxu0
      %2779 = vdwg.mxu0
      %v2780 = vadd.f32 %v2331, %v2718
      %v2781 = vadd.f32 %v2332, %v2721
      %v2782 = vadd.f32 %v2333, %v2726
      %v2783 = vadd.f32 %v2334, %v2729
      %v2784 = vadd.f32 %v2335, %v2734
      %v2785 = vadd.f32 %v2336, %v2737
      %v2786 = vadd.f32 %v2337, %v2742
      %v2787 = vadd.f32 %v2338, %v2745
      %v2788 = vadd.f32 %v2339, %v2750
      %v2789 = vadd.f32 %v2340, %v2753
      %v2790 = vadd.f32 %v2341, %v2758
      %v2791 = vadd.f32 %v2342, %v2761
      %v2792 = vadd.f32 %v2343, %v2766
      %v2793 = vadd.f32 %v2344, %v2769
      %v2794 = vadd.f32 %v2345, %v2774
      %v2795 = vadd.f32 %v2346, %v2777
      %v2796 = vld [vmem:[%s1085] sm:$0xe]
      %v2797 = vld [vmem:[%s1085 + $0x8] sm:$0xe]
      %v2798 = vld [vmem:[%s1085 + $0x10] sm:$0xe]
      %v2799 = vld [vmem:[%s1085 + $0x18] sm:$0xe]
      %v2800 = vld [vmem:[%s1085 + $0x20] sm:$0xe]
      %v2801 = vld [vmem:[%s1085 + $0x28] sm:$0xe]
      %v2802 = vld [vmem:[%s1085 + $0x30] sm:$0xe]
      %v2803 = vld [vmem:[%s1085 + $0x38] sm:$0xe]
      %v2804 = vld [vmem:[%s1085 + $0x50] sm:$0xe]
      %v2805 = vld [vmem:[%s1085 + $0x58] sm:$0xe]
      %v2806 = vld [vmem:[%s1085 + $0x60] sm:$0xe]
      %v2807 = vld [vmem:[%s1085 + $0x68] sm:$0xe]
      %v2808 = vld [vmem:[%s1085 + $0x70] sm:$0xe]
      %v2809 = vld [vmem:[%s1085 + $0x78] sm:$0xe]
      %v2810 = vld [vmem:[%s1085 + $0x80] sm:$0xe]
      %v2811 = vld [vmem:[%s1085 + $0x88] sm:$0xe]
      %v2844 = vrot.slane %v2796, 5
      %v2845 = vrot.slane %v2844, 4
      %v2846 = vrot.slane %v2348, 5
      %v2847 = vsel %vm1864, %v2845, %v2846
      %v2848 = vrot.slane %v2797, 5
      %v2849 = vrot.slane %v2848, 4
      %v2850 = vrot.slane %v2350, 5
      %v2851 = vsel %vm1864, %v2849, %v2850
      %v2852 = vrot.slane %v2798, 5
      %v2853 = vrot.slane %v2852, 4
      %v2854 = vrot.slane %v2352, 5
      %v2855 = vsel %vm1864, %v2853, %v2854
      %v2856 = vrot.slane %v2799, 5
      %v2857 = vrot.slane %v2856, 4
      %v2858 = vrot.slane %v2354, 5
      %v2859 = vsel %vm1864, %v2857, %v2858
      %v2860 = vrot.slane %v2800, 5
      %v2861 = vrot.slane %v2860, 4
      %v2862 = vrot.slane %v2356, 5
      %v2863 = vsel %vm1864, %v2861, %v2862
      %v2864 = vrot.slane %v2801, 5
      %v2865 = vrot.slane %v2864, 4
      %v2866 = vrot.slane %v2358, 5
      %v2867 = vsel %vm1864, %v2865, %v2866
      %v2868 = vrot.slane %v2802, 5
      %v2869 = vrot.slane %v2868, 4
      %v2870 = vrot.slane %v2360, 5
      %v2871 = vsel %vm1864, %v2869, %v2870
      %v2872 = vrot.slane %v2803, 5
      %v2873 = vrot.slane %v2872, 4
      %v2874 = vrot.slane %v2362, 5
      %v2875 = vsel %vm1864, %v2873, %v2874
      %v2876 = vrot.slane %v2804, 5
      %v2877 = vrot.slane %v2876, 4
      %v2878 = vrot.slane %v2364, 5
      %v2879 = vsel %vm1864, %v2877, %v2878
      %v2880 = vrot.slane %v2805, 5
      %v2881 = vrot.slane %v2880, 4
      %v2882 = vrot.slane %v2366, 5
      %v2883 = vsel %vm1864, %v2881, %v2882
      %v2884 = vrot.slane %v2806, 5
      %v2885 = vrot.slane %v2884, 4
      %v2886 = vrot.slane %v2368, 5
      %v2887 = vsel %vm1864, %v2885, %v2886
      %v2888 = vrot.slane %v2807, 5
      %v2889 = vrot.slane %v2888, 4
      %v2890 = vrot.slane %v2370, 5
      %v2891 = vsel %vm1864, %v2889, %v2890
      %v2892 = vrot.slane %v2808, 5
      %v2893 = vrot.slane %v2892, 4
      %v2894 = vrot.slane %v2372, 5
      %v2895 = vsel %vm1864, %v2893, %v2894
      %v2896 = vrot.slane %v2809, 5
      %v2897 = vrot.slane %v2896, 4
      %v2898 = vrot.slane %v2374, 5
      %v2899 = vsel %vm1864, %v2897, %v2898
      %v2900 = vrot.slane %v2810, 5
      %v2901 = vrot.slane %v2900, 4
      %v2902 = vrot.slane %v2376, 5
      %v2903 = vsel %vm1864, %v2901, %v2902
      %v2904 = vrot.slane %v2811, 5
      %v2905 = vrot.slane %v2904, 4
      %v2906 = vrot.slane %v2378, 5
      %v2907 = vsel %vm1864, %v2905, %v2906
      %v2908 = vld [vmem:[%s364 + $0xa0] sm:$0xf]
      %v2909 = vld [vmem:[%s364 + $0xa4] sm:$0xf]
      %v2910 = vld [vmem:[%s364 + $0xa8] sm:$0xf]
      %v2911 = vld [vmem:[%s364 + $0xac] sm:$0xf]
      %v2912 = vld [vmem:[%s364 + $0xb0] sm:$0xf]
      %v2913 = vld [vmem:[%s364 + $0xb4] sm:$0xf]
      %v2914 = vld [vmem:[%s364 + $0xb8] sm:$0xf]
      %v2915 = vld [vmem:[%s364 + $0xbc] sm:$0xf]
      %v2916 = vunpack.c.l.b16 %v2847
      %v2917 = vunpack.c.l.b16 %v2851
      %v2918 = vunpack.c.l.b16 %v2855
      %v2919 = vunpack.c.l.b16 %v2859
      %v2920 = vunpack.c.l.b16 %v2863
      %v2921 = vunpack.c.l.b16 %v2867
      %v2922 = vunpack.c.l.b16 %v2871
      %v2923 = vunpack.c.l.b16 %v2875
      %v2924 = vunpack.c.l.b16 %v2879
      %v2925 = vunpack.c.l.b16 %v2883
      %v2926 = vunpack.c.l.b16 %v2887
      %v2927 = vunpack.c.l.b16 %v2891
      %v2928 = vunpack.c.l.b16 %v2895
      %v2929 = vunpack.c.l.b16 %v2899
      %v2930 = vunpack.c.l.b16 %v2903
      %v2931 = vunpack.c.l.b16 %v2907
      %v2932 = vpack.c.b16 %v2917, %v2916
      %v2933 = vpack.c.b16 %v2919, %v2918
      %v2934 = vpack.c.b16 %v2921, %v2920
      %v2935 = vpack.c.b16 %v2923, %v2922
      %v2936 = vpack.c.b16 %v2925, %v2924
      %v2937 = vpack.c.b16 %v2927, %v2926
      %v2938 = vpack.c.b16 %v2929, %v2928
      %v2939 = vpack.c.b16 %v2931, %v2930
      %v2948 = vunpack.c.l.b16 %v2908
      %v2949 = vunpack.c.l.b16 %v2909
      %v2950 = vunpack.c.l.b16 %v2910
      %v2951 = vunpack.c.l.b16 %v2911
      %v2952 = vunpack.c.l.b16 %v2912
      %v2953 = vunpack.c.l.b16 %v2913
      %v2954 = vunpack.c.l.b16 %v2914
      %v2955 = vunpack.c.l.b16 %v2915
      %v2956 = vpack.c.b16 %v2949, %v2948
      %v2957 = vpack.c.b16 %v2951, %v2950
      %v2958 = vpack.c.b16 %v2953, %v2952
      %v2959 = vpack.c.b16 %v2955, %v2954
      %v2965 = vsel %vm1507, %v2932, 0
      %v2968 = vsel %vm1507, %v2933, 0
      %v2971 = vsel %vm1507, %v2934, 0
      %v2974 = vsel %vm1507, %v2935, 0
      %v2977 = vsel %vm1507, %v2936, 0
      %v2980 = vsel %vm1507, %v2937, 0
      %v2983 = vsel %vm1507, %v2938, 0
      %v2986 = vsel %vm1507, %v2939, 0
      %2988 = vmatprep.subr.bf16.mxu0 0
      %2989 = vmatpush1.bf16.msra.mxu0 0
      %2990 = vmatprep.subr.bf16.mxu0 0
      %2991 = vmatpush1.bf16.msra.mxu0 0
      %2992 = vmatprep.subr.bf16.mxu0 0
      %2993 = vmatpush1.bf16.msra.mxu0 0
      %2994 = vmatprep.subr.bf16.mxu0 0
      %2995 = vmatpush1.bf16.msra.mxu0 0
      %2996 = vmatprep.subr.bf16.mxu0 0
      %2997 = vmatpush1.bf16.msra.mxu0 %v2959
      %2998 = vmatprep.subr.bf16.mxu0 0
      %2999 = vmatpush1.bf16.msra.mxu0 %v2958
      %3000 = vmatprep.subr.bf16.mxu0 0
      %3001 = vmatpush1.bf16.msra.mxu0 %v2957
      %3002 = vmatprep.subr.bf16.mxu0 0
      %3003 = vmatpush1.bf16.msra.mxu0 %v2956
      %3004 = vmatprep.subr.bf16.mxu0 0
      %3005 = vmatpush2.bf16.msra.mxu0 0
      %3006 = vmatprep.subr.bf16.mxu0 0
      %3007 = vmatpush2.bf16.msra.mxu0 0
      %3008 = vmatprep.subr.bf16.mxu0 0
      %3009 = vmatpush2.bf16.msra.mxu0 0
      %3010 = vmatprep.subr.bf16.mxu0 0
      %3011 = vmatpush2.bf16.msra.mxu0 0
      %3012 = vmatprep.subr.bf16.mxu0 0
      %3013 = vmatpush2.bf16.msra.mxu0 0
      %3014 = vmatprep.subr.bf16.mxu0 0
      %3015 = vmatpush2.bf16.msra.mxu0 0
      %3016 = vmatprep.subr.bf16.mxu0 0
      %3017 = vmatpush2.bf16.msra.mxu0 0
      %3018 = vmatprep.subr.bf16.mxu0 0
      %3019 = vmatpush2.bf16.msra.mxu0 0
      %3020 = vmatprep.mubr.bf16.mxu0 0
      %3021 = vmatmul.mubr.bf16.gmra.mxu0 %v2965
      %v3022 = vpop.f32.mrf.mxu0
      %v3023 = vadd.f32 0.0, %v3022
      %v3024 = vpop.f32.mrf.mxu0
      %v3025 = vpop.f32.mrf.mxu0
      %v3026 = vadd.f32 0.0, %v3025
      %v3027 = vpop.f32.mrf.mxu0
      %3028 = vmatprep.mubr.bf16.mxu0 0
      %3029 = vmatmul.mubr.bf16.gmra.mxu0 %v2968
      %v3030 = vpop.f32.mrf.mxu0
      %v3031 = vadd.f32 0.0, %v3030
      %v3032 = vpop.f32.mrf.mxu0
      %v3033 = vpop.f32.mrf.mxu0
      %v3034 = vadd.f32 0.0, %v3033
      %v3035 = vpop.f32.mrf.mxu0
      %3036 = vmatprep.mubr.bf16.mxu0 0
      %3037 = vmatmul.mubr.bf16.gmra.mxu0 %v2971
      %v3038 = vpop.f32.mrf.mxu0
      %v3039 = vadd.f32 0.0, %v3038
      %v3040 = vpop.f32.mrf.mxu0
      %v3041 = vpop.f32.mrf.mxu0
      %v3042 = vadd.f32 0.0, %v3041
      %v3043 = vpop.f32.mrf.mxu0
      %3044 = vmatprep.mubr.bf16.mxu0 0
      %3045 = vmatmul.mubr.bf16.gmra.mxu0 %v2974
      %v3046 = vpop.f32.mrf.mxu0
      %v3047 = vadd.f32 0.0, %v3046
      %v3048 = vpop.f32.mrf.mxu0
      %v3049 = vpop.f32.mrf.mxu0
      %v3050 = vadd.f32 0.0, %v3049
      %v3051 = vpop.f32.mrf.mxu0
      %3052 = vmatprep.mubr.bf16.mxu0 0
      %3053 = vmatmul.mubr.bf16.gmra.mxu0 %v2977
      %v3054 = vpop.f32.mrf.mxu0
      %v3055 = vadd.f32 0.0, %v3054
      %v3056 = vpop.f32.mrf.mxu0
      %v3057 = vpop.f32.mrf.mxu0
      %v3058 = vadd.f32 0.0, %v3057
      %v3059 = vpop.f32.mrf.mxu0
      %3060 = vmatprep.mubr.bf16.mxu0 0
      %3061 = vmatmul.mubr.bf16.gmra.mxu0 %v2980
      %v3062 = vpop.f32.mrf.mxu0
      %v3063 = vadd.f32 0.0, %v3062
      %v3064 = vpop.f32.mrf.mxu0
      %v3065 = vpop.f32.mrf.mxu0
      %v3066 = vadd.f32 0.0, %v3065
      %v3067 = vpop.f32.mrf.mxu0
      %3068 = vmatprep.mubr.bf16.mxu0 0
      %3069 = vmatmul.mubr.bf16.gmra.mxu0 %v2983
      %v3070 = vpop.f32.mrf.mxu0
      %v3071 = vadd.f32 0.0, %v3070
      %v3072 = vpop.f32.mrf.mxu0
      %v3073 = vpop.f32.mrf.mxu0
      %v3074 = vadd.f32 0.0, %v3073
      %v3075 = vpop.f32.mrf.mxu0
      %3076 = vmatprep.mubr.bf16.mxu0 0
      %3077 = vmatmul.mubr.bf16.gmra.mxu0 %v2986
      %v3078 = vpop.f32.mrf.mxu0
      %v3079 = vadd.f32 0.0, %v3078
      %v3080 = vpop.f32.mrf.mxu0
      %v3081 = vpop.f32.mrf.mxu0
      %v3082 = vadd.f32 0.0, %v3081
      %v3083 = vpop.f32.mrf.mxu0
      %3084 = vdwg.mxu0
      %v3085 = vadd.f32 %v2780, %v3023
      %v3086 = vadd.f32 %v2781, %v3026
      %v3087 = vadd.f32 %v2782, %v3031
      %v3088 = vadd.f32 %v2783, %v3034
      %v3089 = vadd.f32 %v2784, %v3039
      %v3090 = vadd.f32 %v2785, %v3042
      %v3091 = vadd.f32 %v2786, %v3047
      %v3092 = vadd.f32 %v2787, %v3050
      %v3093 = vadd.f32 %v2788, %v3055
      %v3094 = vadd.f32 %v2789, %v3058
      %v3095 = vadd.f32 %v2790, %v3063
      %v3096 = vadd.f32 %v2791, %v3066
      %v3097 = vadd.f32 %v2792, %v3071
      %v3098 = vadd.f32 %v2793, %v3074
      %v3099 = vadd.f32 %v2794, %v3079
      %v3100 = vadd.f32 %v2795, %v3082
      %s3101 = scalar_lea.vmem [#allocation2], 16
      %v3102 = vld [vmem:[%s3101] sm:$0xf]
      %v3103 = vld [vmem:[%s3101 + $0x8] sm:$0xf]
      %v3104 = vld [vmem:[%s3101 + $0x10] sm:$0xf]
      %v3105 = vld [vmem:[%s3101 + $0x18] sm:$0xf]
      %v3106 = vld [vmem:[%s3101 + $0x20] sm:$0xf]
      %v3107 = vld [vmem:[%s3101 + $0x28] sm:$0xf]
      %v3108 = vld [vmem:[%s3101 + $0x30] sm:$0xf]
      %v3109 = vld [vmem:[%s3101 + $0x38] sm:$0xf]
      %v3110 = vld [vmem:[%s3101 + $0x50] sm:$0xf]
      %v3111 = vld [vmem:[%s3101 + $0x58] sm:$0xf]
      %v3112 = vld [vmem:[%s3101 + $0x60] sm:$0xf]
      %v3113 = vld [vmem:[%s3101 + $0x68] sm:$0xf]
      %v3114 = vld [vmem:[%s3101 + $0x70] sm:$0xf]
      %v3115 = vld [vmem:[%s3101 + $0x78] sm:$0xf]
      %v3116 = vld [vmem:[%s3101 + $0x80] sm:$0xf]
      %v3117 = vld [vmem:[%s3101 + $0x88] sm:$0xf]
      %v3118 = vld [vmem:[%s364 + $0xc0] sm:$0xf]
      %v3119 = vld [vmem:[%s364 + $0xc4] sm:$0xf]
      %v3120 = vld [vmem:[%s364 + $0xc8] sm:$0xf]
      %v3121 = vld [vmem:[%s364 + $0xcc] sm:$0xf]
      %v3122 = vld [vmem:[%s364 + $0xd0] sm:$0xf]
      %v3123 = vld [vmem:[%s364 + $0xd4] sm:$0xf]
      %v3124 = vld [vmem:[%s364 + $0xd8] sm:$0xf]
      %v3125 = vld [vmem:[%s364 + $0xdc] sm:$0xf]
      %v3142 = vunpack.c.l.b16 %v3102
      %v3143 = vunpack.c.l.b16 %v3103
      %v3144 = vunpack.c.l.b16 %v3104
      %v3145 = vunpack.c.l.b16 %v3105
      %v3146 = vunpack.c.l.b16 %v3106
      %v3147 = vunpack.c.l.b16 %v3107
      %v3148 = vunpack.c.l.b16 %v3108
      %v3149 = vunpack.c.l.b16 %v3109
      %v3150 = vunpack.c.l.b16 %v3110
      %v3151 = vunpack.c.l.b16 %v3111
      %v3152 = vunpack.c.l.b16 %v3112
      %v3153 = vunpack.c.l.b16 %v3113
      %v3154 = vunpack.c.l.b16 %v3114
      %v3155 = vunpack.c.l.b16 %v3115
      %v3156 = vunpack.c.l.b16 %v3116
      %v3157 = vunpack.c.l.b16 %v3117
      %v3158 = vpack.c.b16 %v3143, %v3142
      %v3159 = vpack.c.b16 %v3145, %v3144
      %v3160 = vpack.c.b16 %v3147, %v3146
      %v3161 = vpack.c.b16 %v3149, %v3148
      %v3162 = vpack.c.b16 %v3151, %v3150
      %v3163 = vpack.c.b16 %v3153, %v3152
      %v3164 = vpack.c.b16 %v3155, %v3154
      %v3165 = vpack.c.b16 %v3157, %v3156
      %v3174 = vunpack.c.l.b16 %v3118
      %v3175 = vunpack.c.l.b16 %v3119
      %v3176 = vunpack.c.l.b16 %v3120
      %v3177 = vunpack.c.l.b16 %v3121
      %v3178 = vunpack.c.l.b16 %v3122
      %v3179 = vunpack.c.l.b16 %v3123
      %v3180 = vunpack.c.l.b16 %v3124
      %v3181 = vunpack.c.l.b16 %v3125
      %v3182 = vpack.c.b16 %v3175, %v3174
      %v3183 = vpack.c.b16 %v3177, %v3176
      %v3184 = vpack.c.b16 %v3179, %v3178
      %v3185 = vpack.c.b16 %v3181, %v3180
      %v3191 = vsel %vm1507, %v3158, 0
      %v3194 = vsel %vm1507, %v3159, 0
      %v3197 = vsel %vm1507, %v3160, 0
      %v3200 = vsel %vm1507, %v3161, 0
      %v3203 = vsel %vm1507, %v3162, 0
      %v3206 = vsel %vm1507, %v3163, 0
      %v3209 = vsel %vm1507, %v3164, 0
      %v3212 = vsel %vm1507, %v3165, 0
      %3214 = vmatprep.subr.bf16.mxu0 0
      %3215 = vmatpush1.bf16.msra.mxu0 0
      %3216 = vmatprep.subr.bf16.mxu0 0
      %3217 = vmatpush1.bf16.msra.mxu0 0
      %3218 = vmatprep.subr.bf16.mxu0 0
      %3219 = vmatpush1.bf16.msra.mxu0 0
      %3220 = vmatprep.subr.bf16.mxu0 0
      %3221 = vmatpush1.bf16.msra.mxu0 0
      %3222 = vmatprep.subr.bf16.mxu0 0
      %3223 = vmatpush1.bf16.msra.mxu0 %v3185
      %3224 = vmatprep.subr.bf16.mxu0 0
      %3225 = vmatpush1.bf16.msra.mxu0 %v3184
      %3226 = vmatprep.subr.bf16.mxu0 0
      %3227 = vmatpush1.bf16.msra.mxu0 %v3183
      %3228 = vmatprep.subr.bf16.mxu0 0
      %3229 = vmatpush1.bf16.msra.mxu0 %v3182
      %3230 = vmatprep.subr.bf16.mxu0 0
      %3231 = vmatpush2.bf16.msra.mxu0 0
      %3232 = vmatprep.subr.bf16.mxu0 0
      %3233 = vmatpush2.bf16.msra.mxu0 0
      %3234 = vmatprep.subr.bf16.mxu0 0
      %3235 = vmatpush2.bf16.msra.mxu0 0
      %3236 = vmatprep.subr.bf16.mxu0 0
      %3237 = vmatpush2.bf16.msra.mxu0 0
      %3238 = vmatprep.subr.bf16.mxu0 0
      %3239 = vmatpush2.bf16.msra.mxu0 0
      %3240 = vmatprep.subr.bf16.mxu0 0
      %3241 = vmatpush2.bf16.msra.mxu0 0
      %3242 = vmatprep.subr.bf16.mxu0 0
      %3243 = vmatpush2.bf16.msra.mxu0 0
      %3244 = vmatprep.subr.bf16.mxu0 0
      %3245 = vmatpush2.bf16.msra.mxu0 0
      %3246 = vmatprep.mubr.bf16.mxu0 0
      %3247 = vmatmul.mubr.bf16.gmra.mxu0 %v3191
      %v3248 = vpop.f32.mrf.mxu0
      %v3249 = vadd.f32 0.0, %v3248
      %v3250 = vpop.f32.mrf.mxu0
      %v3251 = vpop.f32.mrf.mxu0
      %v3252 = vadd.f32 0.0, %v3251
      %v3253 = vpop.f32.mrf.mxu0
      %3254 = vmatprep.mubr.bf16.mxu0 0
      %3255 = vmatmul.mubr.bf16.gmra.mxu0 %v3194
      %v3256 = vpop.f32.mrf.mxu0
      %v3257 = vadd.f32 0.0, %v3256
      %v3258 = vpop.f32.mrf.mxu0
      %v3259 = vpop.f32.mrf.mxu0
      %v3260 = vadd.f32 0.0, %v3259
      %v3261 = vpop.f32.mrf.mxu0
      %3262 = vmatprep.mubr.bf16.mxu0 0
      %3263 = vmatmul.mubr.bf16.gmra.mxu0 %v3197
      %v3264 = vpop.f32.mrf.mxu0
      %v3265 = vadd.f32 0.0, %v3264
      %v3266 = vpop.f32.mrf.mxu0
      %v3267 = vpop.f32.mrf.mxu0
      %v3268 = vadd.f32 0.0, %v3267
      %v3269 = vpop.f32.mrf.mxu0
      %3270 = vmatprep.mubr.bf16.mxu0 0
      %3271 = vmatmul.mubr.bf16.gmra.mxu0 %v3200
      %v3272 = vpop.f32.mrf.mxu0
      %v3273 = vadd.f32 0.0, %v3272
      %v3274 = vpop.f32.mrf.mxu0
      %v3275 = vpop.f32.mrf.mxu0
      %v3276 = vadd.f32 0.0, %v3275
      %v3277 = vpop.f32.mrf.mxu0
      %3278 = vmatprep.mubr.bf16.mxu0 0
      %3279 = vmatmul.mubr.bf16.gmra.mxu0 %v3203
      %v3280 = vpop.f32.mrf.mxu0
      %v3281 = vadd.f32 0.0, %v3280
      %v3282 = vpop.f32.mrf.mxu0
      %v3283 = vpop.f32.mrf.mxu0
      %v3284 = vadd.f32 0.0, %v3283
      %v3285 = vpop.f32.mrf.mxu0
      %3286 = vmatprep.mubr.bf16.mxu0 0
      %3287 = vmatmul.mubr.bf16.gmra.mxu0 %v3206
      %v3288 = vpop.f32.mrf.mxu0
      %v3289 = vadd.f32 0.0, %v3288
      %v3290 = vpop.f32.mrf.mxu0
      %v3291 = vpop.f32.mrf.mxu0
      %v3292 = vadd.f32 0.0, %v3291
      %v3293 = vpop.f32.mrf.mxu0
      %3294 = vmatprep.mubr.bf16.mxu0 0
      %3295 = vmatmul.mubr.bf16.gmra.mxu0 %v3209
      %v3296 = vpop.f32.mrf.mxu0
      %v3297 = vadd.f32 0.0, %v3296
      %v3298 = vpop.f32.mrf.mxu0
      %v3299 = vpop.f32.mrf.mxu0
      %v3300 = vadd.f32 0.0, %v3299
      %v3301 = vpop.f32.mrf.mxu0
      %3302 = vmatprep.mubr.bf16.mxu0 0
      %3303 = vmatmul.mubr.bf16.gmra.mxu0 %v3212
      %v3304 = vpop.f32.mrf.mxu0
      %v3305 = vadd.f32 0.0, %v3304
      %v3306 = vpop.f32.mrf.mxu0
      %v3307 = vpop.f32.mrf.mxu0
      %v3308 = vadd.f32 0.0, %v3307
      %v3309 = vpop.f32.mrf.mxu0
      %3310 = vdwg.mxu0
      %v3311 = vadd.f32 %v3085, %v3249
      %v3312 = vadd.f32 %v3086, %v3252
      %v3313 = vadd.f32 %v3087, %v3257
      %v3314 = vadd.f32 %v3088, %v3260
      %v3315 = vadd.f32 %v3089, %v3265
      %v3316 = vadd.f32 %v3090, %v3268
      %v3317 = vadd.f32 %v3091, %v3273
      %v3318 = vadd.f32 %v3092, %v3276
      %v3319 = vadd.f32 %v3093, %v3281
      %v3320 = vadd.f32 %v3094, %v3284
      %v3321 = vadd.f32 %v3095, %v3289
      %v3322 = vadd.f32 %v3096, %v3292
      %v3323 = vadd.f32 %v3097, %v3297
      %v3324 = vadd.f32 %v3098, %v3300
      %v3325 = vadd.f32 %v3099, %v3305
      %v3326 = vadd.f32 %v3100, %v3308
      %v3327 = vld [vmem:[%s3101] sm:$0xf]
      %v3328 = vld [vmem:[%s3101 + $0x4] sm:$0x1]
      %v3329 = vld [vmem:[%s3101 + $0x8] sm:$0xf]
      %v3330 = vld [vmem:[%s3101 + $0xc] sm:$0x1]
      %v3331 = vld [vmem:[%s3101 + $0x10] sm:$0xf]
      %v3332 = vld [vmem:[%s3101 + $0x14] sm:$0x1]
      %v3333 = vld [vmem:[%s3101 + $0x18] sm:$0xf]
      %v3334 = vld [vmem:[%s3101 + $0x1c] sm:$0x1]
      %v3335 = vld [vmem:[%s3101 + $0x20] sm:$0xf]
      %v3336 = vld [vmem:[%s3101 + $0x24] sm:$0x1]
      %v3337 = vld [vmem:[%s3101 + $0x28] sm:$0xf]
      %v3338 = vld [vmem:[%s3101 + $0x2c] sm:$0x1]
      %v3339 = vld [vmem:[%s3101 + $0x30] sm:$0xf]
      %v3340 = vld [vmem:[%s3101 + $0x34] sm:$0x1]
      %v3341 = vld [vmem:[%s3101 + $0x38] sm:$0xf]
      %v3342 = vld [vmem:[%s3101 + $0x3c] sm:$0x1]
      %v3343 = vld [vmem:[%s3101 + $0x50] sm:$0xf]
      %v3344 = vld [vmem:[%s3101 + $0x54] sm:$0x1]
      %v3345 = vld [vmem:[%s3101 + $0x58] sm:$0xf]
      %v3346 = vld [vmem:[%s3101 + $0x5c] sm:$0x1]
      %v3347 = vld [vmem:[%s3101 + $0x60] sm:$0xf]
      %v3348 = vld [vmem:[%s3101 + $0x64] sm:$0x1]
      %v3349 = vld [vmem:[%s3101 + $0x68] sm:$0xf]
      %v3350 = vld [vmem:[%s3101 + $0x6c] sm:$0x1]
      %v3351 = vld [vmem:[%s3101 + $0x70] sm:$0xf]
      %v3352 = vld [vmem:[%s3101 + $0x74] sm:$0x1]
      %v3353 = vld [vmem:[%s3101 + $0x78] sm:$0xf]
      %v3354 = vld [vmem:[%s3101 + $0x7c] sm:$0x1]
      %v3355 = vld [vmem:[%s3101 + $0x80] sm:$0xf]
      %v3356 = vld [vmem:[%s3101 + $0x84] sm:$0x1]
      %v3357 = vld [vmem:[%s3101 + $0x88] sm:$0xf]
      %v3358 = vld [vmem:[%s3101 + $0x8c] sm:$0x1]
      %v3360 = vshrl.u32 %v3327, 16
      %v3362 = vrot.slane %v3360, 4
      %v3363 = vshll.u32 %v3327, 16
      %v3365 = vrot.slane %v3363, 5
      %v3366 = vor.u32 %v3362, %v3365
      %v3367 = vrot.slane %v3366, 4
      %v3369 = vshll.u32 %v3328, 16
      %v3371 = vrot.slane %v3369, 5
      %v3372 = vsel %vm1226, %v3367, %v3371
      %v3374 = vshrl.u32 %v3329, 16
      %v3376 = vrot.slane %v3374, 4
      %v3377 = vshll.u32 %v3329, 16
      %v3379 = vrot.slane %v3377, 5
      %v3380 = vor.u32 %v3376, %v3379
      %v3381 = vrot.slane %v3380, 4
      %v3383 = vshll.u32 %v3330, 16
      %v3385 = vrot.slane %v3383, 5
      %v3386 = vsel %vm1226, %v3381, %v3385
      %v3388 = vshrl.u32 %v3331, 16
      %v3390 = vrot.slane %v3388, 4
      %v3391 = vshll.u32 %v3331, 16
      %v3393 = vrot.slane %v3391, 5
      %v3394 = vor.u32 %v3390, %v3393
      %v3395 = vrot.slane %v3394, 4
      %v3397 = vshll.u32 %v3332, 16
      %v3399 = vrot.slane %v3397, 5
      %v3400 = vsel %vm1226, %v3395, %v3399
      %v3402 = vshrl.u32 %v3333, 16
      %v3404 = vrot.slane %v3402, 4
      %v3405 = vshll.u32 %v3333, 16
      %v3407 = vrot.slane %v3405, 5
      %v3408 = vor.u32 %v3404, %v3407
      %v3409 = vrot.slane %v3408, 4
      %v3411 = vshll.u32 %v3334, 16
      %v3413 = vrot.slane %v3411, 5
      %v3414 = vsel %vm1226, %v3409, %v3413
      %v3416 = vshrl.u32 %v3335, 16
      %v3418 = vrot.slane %v3416, 4
      %v3419 = vshll.u32 %v3335, 16
      %v3421 = vrot.slane %v3419, 5
      %v3422 = vor.u32 %v3418, %v3421
      %v3423 = vrot.slane %v3422, 4
      %v3425 = vshll.u32 %v3336, 16
      %v3427 = vrot.slane %v3425, 5
      %v3428 = vsel %vm1226, %v3423, %v3427
      %v3430 = vshrl.u32 %v3337, 16
      %v3432 = vrot.slane %v3430, 4
      %v3433 = vshll.u32 %v3337, 16
      %v3435 = vrot.slane %v3433, 5
      %v3436 = vor.u32 %v3432, %v3435
      %v3437 = vrot.slane %v3436, 4
      %v3439 = vshll.u32 %v3338, 16
      %v3441 = vrot.slane %v3439, 5
      %v3442 = vsel %vm1226, %v3437, %v3441
      %v3444 = vshrl.u32 %v3339, 16
      %v3446 = vrot.slane %v3444, 4
      %v3447 = vshll.u32 %v3339, 16
      %v3449 = vrot.slane %v3447, 5
      %v3450 = vor.u32 %v3446, %v3449
      %v3451 = vrot.slane %v3450, 4
      %v3453 = vshll.u32 %v3340, 16
      %v3455 = vrot.slane %v3453, 5
      %v3456 = vsel %vm1226, %v3451, %v3455
      %v3458 = vshrl.u32 %v3341, 16
      %v3460 = vrot.slane %v3458, 4
      %v3461 = vshll.u32 %v3341, 16
      %v3463 = vrot.slane %v3461, 5
      %v3464 = vor.u32 %v3460, %v3463
      %v3465 = vrot.slane %v3464, 4
      %v3467 = vshll.u32 %v3342, 16
      %v3469 = vrot.slane %v3467, 5
      %v3470 = vsel %vm1226, %v3465, %v3469
      %v3472 = vshrl.u32 %v3343, 16
      %v3474 = vrot.slane %v3472, 4
      %v3475 = vshll.u32 %v3343, 16
      %v3477 = vrot.slane %v3475, 5
      %v3478 = vor.u32 %v3474, %v3477
      %v3479 = vrot.slane %v3478, 4
      %v3481 = vshll.u32 %v3344, 16
      %v3483 = vrot.slane %v3481, 5
      %v3484 = vsel %vm1226, %v3479, %v3483
      %v3486 = vshrl.u32 %v3345, 16
      %v3488 = vrot.slane %v3486, 4
      %v3489 = vshll.u32 %v3345, 16
      %v3491 = vrot.slane %v3489, 5
      %v3492 = vor.u32 %v3488, %v3491
      %v3493 = vrot.slane %v3492, 4
      %v3495 = vshll.u32 %v3346, 16
      %v3497 = vrot.slane %v3495, 5
      %v3498 = vsel %vm1226, %v3493, %v3497
      %v3500 = vshrl.u32 %v3347, 16
      %v3502 = vrot.slane %v3500, 4
      %v3503 = vshll.u32 %v3347, 16
      %v3505 = vrot.slane %v3503, 5
      %v3506 = vor.u32 %v3502, %v3505
      %v3507 = vrot.slane %v3506, 4
      %v3509 = vshll.u32 %v3348, 16
      %v3511 = vrot.slane %v3509, 5
      %v3512 = vsel %vm1226, %v3507, %v3511
      %v3514 = vshrl.u32 %v3349, 16
      %v3516 = vrot.slane %v3514, 4
      %v3517 = vshll.u32 %v3349, 16
      %v3519 = vrot.slane %v3517, 5
      %v3520 = vor.u32 %v3516, %v3519
      %v3521 = vrot.slane %v3520, 4
      %v3523 = vshll.u32 %v3350, 16
      %v3525 = vrot.slane %v3523, 5
      %v3526 = vsel %vm1226, %v3521, %v3525
      %v3528 = vshrl.u32 %v3351, 16
      %v3530 = vrot.slane %v3528, 4
      %v3531 = vshll.u32 %v3351, 16
      %v3533 = vrot.slane %v3531, 5
      %v3534 = vor.u32 %v3530, %v3533
      %v3535 = vrot.slane %v3534, 4
      %v3537 = vshll.u32 %v3352, 16
      %v3539 = vrot.slane %v3537, 5
      %v3540 = vsel %vm1226, %v3535, %v3539
      %v3542 = vshrl.u32 %v3353, 16
      %v3544 = vrot.slane %v3542, 4
      %v3545 = vshll.u32 %v3353, 16
      %v3547 = vrot.slane %v3545, 5
      %v3548 = vor.u32 %v3544, %v3547
      %v3549 = vrot.slane %v3548, 4
      %v3551 = vshll.u32 %v3354, 16
      %v3553 = vrot.slane %v3551, 5
      %v3554 = vsel %vm1226, %v3549, %v3553
      %v3556 = vshrl.u32 %v3355, 16
      %v3558 = vrot.slane %v3556, 4
      %v3559 = vshll.u32 %v3355, 16
      %v3561 = vrot.slane %v3559, 5
      %v3562 = vor.u32 %v3558, %v3561
      %v3563 = vrot.slane %v3562, 4
      %v3565 = vshll.u32 %v3356, 16
      %v3567 = vrot.slane %v3565, 5
      %v3568 = vsel %vm1226, %v3563, %v3567
      %v3570 = vshrl.u32 %v3357, 16
      %v3572 = vrot.slane %v3570, 4
      %v3573 = vshll.u32 %v3357, 16
      %v3575 = vrot.slane %v3573, 5
      %v3576 = vor.u32 %v3572, %v3575
      %v3577 = vrot.slane %v3576, 4
      %v3579 = vshll.u32 %v3358, 16
      %v3581 = vrot.slane %v3579, 5
      %v3582 = vsel %vm1226, %v3577, %v3581
      %v3583 = vld [vmem:[%s364 + $0xe0] sm:$0xf]
      %v3584 = vld [vmem:[%s364 + $0xe4] sm:$0xf]
      %v3585 = vld [vmem:[%s364 + $0xe8] sm:$0xf]
      %v3586 = vld [vmem:[%s364 + $0xec] sm:$0xf]
      %v3587 = vld [vmem:[%s364 + $0xf0] sm:$0xf]
      %v3588 = vld [vmem:[%s364 + $0xf4] sm:$0xf]
      %v3589 = vld [vmem:[%s364 + $0xf8] sm:$0xf]
      %v3590 = vld [vmem:[%s364 + $0xfc] sm:$0xf]
      %v3591 = vunpack.c.l.b16 %v3372
      %v3592 = vunpack.c.l.b16 %v3386
      %v3593 = vunpack.c.l.b16 %v3400
      %v3594 = vunpack.c.l.b16 %v3414
      %v3595 = vunpack.c.l.b16 %v3428
      %v3596 = vunpack.c.l.b16 %v3442
      %v3597 = vunpack.c.l.b16 %v3456
      %v3598 = vunpack.c.l.b16 %v3470
      %v3599 = vunpack.c.l.b16 %v3484
      %v3600 = vunpack.c.l.b16 %v3498
      %v3601 = vunpack.c.l.b16 %v3512
      %v3602 = vunpack.c.l.b16 %v3526
      %v3603 = vunpack.c.l.b16 %v3540
      %v3604 = vunpack.c.l.b16 %v3554
      %v3605 = vunpack.c.l.b16 %v3568
      %v3606 = vunpack.c.l.b16 %v3582
      %v3607 = vpack.c.b16 %v3592, %v3591
      %v3608 = vpack.c.b16 %v3594, %v3593
      %v3609 = vpack.c.b16 %v3596, %v3595
      %v3610 = vpack.c.b16 %v3598, %v3597
      %v3611 = vpack.c.b16 %v3600, %v3599
      %v3612 = vpack.c.b16 %v3602, %v3601
      %v3613 = vpack.c.b16 %v3604, %v3603
      %v3614 = vpack.c.b16 %v3606, %v3605
      %v3623 = vunpack.c.l.b16 %v3583
      %v3624 = vunpack.c.l.b16 %v3584
      %v3625 = vunpack.c.l.b16 %v3585
      %v3626 = vunpack.c.l.b16 %v3586
      %v3627 = vunpack.c.l.b16 %v3587
      %v3628 = vunpack.c.l.b16 %v3588
      %v3629 = vunpack.c.l.b16 %v3589
      %v3630 = vunpack.c.l.b16 %v3590
      %v3631 = vpack.c.b16 %v3624, %v3623
      %v3632 = vpack.c.b16 %v3626, %v3625
      %v3633 = vpack.c.b16 %v3628, %v3627
      %v3634 = vpack.c.b16 %v3630, %v3629
      %v3640 = vsel %vm1507, %v3607, 0
      %v3643 = vsel %vm1507, %v3608, 0
      %v3646 = vsel %vm1507, %v3609, 0
      %v3649 = vsel %vm1507, %v3610, 0
      %v3652 = vsel %vm1507, %v3611, 0
      %v3655 = vsel %vm1507, %v3612, 0
      %v3658 = vsel %vm1507, %v3613, 0
      %v3661 = vsel %vm1507, %v3614, 0
      %3663 = vmatprep.subr.bf16.mxu0 0
      %3664 = vmatpush1.bf16.msra.mxu0 0
      %3665 = vmatprep.subr.bf16.mxu0 0
      %3666 = vmatpush1.bf16.msra.mxu0 0
      %3667 = vmatprep.subr.bf16.mxu0 0
      %3668 = vmatpush1.bf16.msra.mxu0 0
      %3669 = vmatprep.subr.bf16.mxu0 0
      %3670 = vmatpush1.bf16.msra.mxu0 0
      %3671 = vmatprep.subr.bf16.mxu0 0
      %3672 = vmatpush1.bf16.msra.mxu0 %v3634
      %3673 = vmatprep.subr.bf16.mxu0 0
      %3674 = vmatpush1.bf16.msra.mxu0 %v3633
      %3675 = vmatprep.subr.bf16.mxu0 0
      %3676 = vmatpush1.bf16.msra.mxu0 %v3632
      %3677 = vmatprep.subr.bf16.mxu0 0
      %3678 = vmatpush1.bf16.msra.mxu0 %v3631
      %3679 = vmatprep.subr.bf16.mxu0 0
      %3680 = vmatpush2.bf16.msra.mxu0 0
      %3681 = vmatprep.subr.bf16.mxu0 0
      %3682 = vmatpush2.bf16.msra.mxu0 0
      %3683 = vmatprep.subr.bf16.mxu0 0
      %3684 = vmatpush2.bf16.msra.mxu0 0
      %3685 = vmatprep.subr.bf16.mxu0 0
      %3686 = vmatpush2.bf16.msra.mxu0 0
      %3687 = vmatprep.subr.bf16.mxu0 0
      %3688 = vmatpush2.bf16.msra.mxu0 0
      %3689 = vmatprep.subr.bf16.mxu0 0
      %3690 = vmatpush2.bf16.msra.mxu0 0
      %3691 = vmatprep.subr.bf16.mxu0 0
      %3692 = vmatpush2.bf16.msra.mxu0 0
      %3693 = vmatprep.subr.bf16.mxu0 0
      %3694 = vmatpush2.bf16.msra.mxu0 0
      %3695 = vmatprep.mubr.bf16.mxu0 0
      %3696 = vmatmul.mubr.bf16.gmra.mxu0 %v3640
      %v3697 = vpop.f32.mrf.mxu0
      %v3698 = vadd.f32 0.0, %v3697
      %v3699 = vpop.f32.mrf.mxu0
      %v3700 = vpop.f32.mrf.mxu0
      %v3701 = vadd.f32 0.0, %v3700
      %v3702 = vpop.f32.mrf.mxu0
      %3703 = vmatprep.mubr.bf16.mxu0 0
      %3704 = vmatmul.mubr.bf16.gmra.mxu0 %v3643
      %v3705 = vpop.f32.mrf.mxu0
      %v3706 = vadd.f32 0.0, %v3705
      %v3707 = vpop.f32.mrf.mxu0
      %v3708 = vpop.f32.mrf.mxu0
      %v3709 = vadd.f32 0.0, %v3708
      %v3710 = vpop.f32.mrf.mxu0
      %3711 = vmatprep.mubr.bf16.mxu0 0
      %3712 = vmatmul.mubr.bf16.gmra.mxu0 %v3646
      %v3713 = vpop.f32.mrf.mxu0
      %v3714 = vadd.f32 0.0, %v3713
      %v3715 = vpop.f32.mrf.mxu0
      %v3716 = vpop.f32.mrf.mxu0
      %v3717 = vadd.f32 0.0, %v3716
      %v3718 = vpop.f32.mrf.mxu0
      %3719 = vmatprep.mubr.bf16.mxu0 0
      %3720 = vmatmul.mubr.bf16.gmra.mxu0 %v3649
      %v3721 = vpop.f32.mrf.mxu0
      %v3722 = vadd.f32 0.0, %v3721
      %v3723 = vpop.f32.mrf.mxu0
      %v3724 = vpop.f32.mrf.mxu0
      %v3725 = vadd.f32 0.0, %v3724
      %v3726 = vpop.f32.mrf.mxu0
      %3727 = vmatprep.mubr.bf16.mxu0 0
      %3728 = vmatmul.mubr.bf16.gmra.mxu0 %v3652
      %v3729 = vpop.f32.mrf.mxu0
      %v3730 = vadd.f32 0.0, %v3729
      %v3731 = vpop.f32.mrf.mxu0
      %v3732 = vpop.f32.mrf.mxu0
      %v3733 = vadd.f32 0.0, %v3732
      %v3734 = vpop.f32.mrf.mxu0
      %3735 = vmatprep.mubr.bf16.mxu0 0
      %3736 = vmatmul.mubr.bf16.gmra.mxu0 %v3655
      %v3737 = vpop.f32.mrf.mxu0
      %v3738 = vadd.f32 0.0, %v3737
      %v3739 = vpop.f32.mrf.mxu0
      %v3740 = vpop.f32.mrf.mxu0
      %v3741 = vadd.f32 0.0, %v3740
      %v3742 = vpop.f32.mrf.mxu0
      %3743 = vmatprep.mubr.bf16.mxu0 0
      %3744 = vmatmul.mubr.bf16.gmra.mxu0 %v3658
      %v3745 = vpop.f32.mrf.mxu0
      %v3746 = vadd.f32 0.0, %v3745
      %v3747 = vpop.f32.mrf.mxu0
      %v3748 = vpop.f32.mrf.mxu0
      %v3749 = vadd.f32 0.0, %v3748
      %v3750 = vpop.f32.mrf.mxu0
      %3751 = vmatprep.mubr.bf16.mxu0 0
      %3752 = vmatmul.mubr.bf16.gmra.mxu0 %v3661
      %v3753 = vpop.f32.mrf.mxu0
      %v3754 = vadd.f32 0.0, %v3753
      %v3755 = vpop.f32.mrf.mxu0
      %v3756 = vpop.f32.mrf.mxu0
      %v3757 = vadd.f32 0.0, %v3756
      %v3758 = vpop.f32.mrf.mxu0
      %3759 = vdwg.mxu0
      %v3760 = vadd.f32 %v3311, %v3698
      %v3761 = vadd.f32 %v3312, %v3701
      %v3762 = vadd.f32 %v3313, %v3706
      %v3763 = vadd.f32 %v3314, %v3709
      %v3764 = vadd.f32 %v3315, %v3714
      %v3765 = vadd.f32 %v3316, %v3717
      %v3766 = vadd.f32 %v3317, %v3722
      %v3767 = vadd.f32 %v3318, %v3725
      %v3768 = vadd.f32 %v3319, %v3730
      %v3769 = vadd.f32 %v3320, %v3733
      %v3770 = vadd.f32 %v3321, %v3738
      %v3771 = vadd.f32 %v3322, %v3741
      %v3772 = vadd.f32 %v3323, %v3746
      %v3773 = vadd.f32 %v3324, %v3749
      %v3774 = vadd.f32 %v3325, %v3754
      %v3775 = vadd.f32 %v3326, %v3757
      %v3776 = vld [vmem:[%s3101] sm:$0xe]
      %v3777 = vld [vmem:[%s3101 + $0x8] sm:$0xe]
      %v3778 = vld [vmem:[%s3101 + $0x10] sm:$0xe]
      %v3779 = vld [vmem:[%s3101 + $0x18] sm:$0xe]
      %v3780 = vld [vmem:[%s3101 + $0x20] sm:$0xe]
      %v3781 = vld [vmem:[%s3101 + $0x28] sm:$0xe]
      %v3782 = vld [vmem:[%s3101 + $0x30] sm:$0xe]
      %v3783 = vld [vmem:[%s3101 + $0x38] sm:$0xe]
      %v3784 = vld [vmem:[%s3101 + $0x50] sm:$0xe]
      %v3785 = vld [vmem:[%s3101 + $0x58] sm:$0xe]
      %v3786 = vld [vmem:[%s3101 + $0x60] sm:$0xe]
      %v3787 = vld [vmem:[%s3101 + $0x68] sm:$0xe]
      %v3788 = vld [vmem:[%s3101 + $0x70] sm:$0xe]
      %v3789 = vld [vmem:[%s3101 + $0x78] sm:$0xe]
      %v3790 = vld [vmem:[%s3101 + $0x80] sm:$0xe]
      %v3791 = vld [vmem:[%s3101 + $0x88] sm:$0xe]
      %v3824 = vrot.slane %v3776, 5
      %v3825 = vrot.slane %v3824, 4
      %v3826 = vrot.slane %v3328, 5
      %v3827 = vsel %vm1864, %v3825, %v3826
      %v3828 = vrot.slane %v3777, 5
      %v3829 = vrot.slane %v3828, 4
      %v3830 = vrot.slane %v3330, 5
      %v3831 = vsel %vm1864, %v3829, %v3830
      %v3832 = vrot.slane %v3778, 5
      %v3833 = vrot.slane %v3832, 4
      %v3834 = vrot.slane %v3332, 5
      %v3835 = vsel %vm1864, %v3833, %v3834
      %v3836 = vrot.slane %v3779, 5
      %v3837 = vrot.slane %v3836, 4
      %v3838 = vrot.slane %v3334, 5
      %v3839 = vsel %vm1864, %v3837, %v3838
      %v3840 = vrot.slane %v3780, 5
      %v3841 = vrot.slane %v3840, 4
      %v3842 = vrot.slane %v3336, 5
      %v3843 = vsel %vm1864, %v3841, %v3842
      %v3844 = vrot.slane %v3781, 5
      %v3845 = vrot.slane %v3844, 4
      %v3846 = vrot.slane %v3338, 5
      %v3847 = vsel %vm1864, %v3845, %v3846
      %v3848 = vrot.slane %v3782, 5
      %v3849 = vrot.slane %v3848, 4
      %v3850 = vrot.slane %v3340, 5
      %v3851 = vsel %vm1864, %v3849, %v3850
      %v3852 = vrot.slane %v3783, 5
      %v3853 = vrot.slane %v3852, 4
      %v3854 = vrot.slane %v3342, 5
      %v3855 = vsel %vm1864, %v3853, %v3854
      %v3856 = vrot.slane %v3784, 5
      %v3857 = vrot.slane %v3856, 4
      %v3858 = vrot.slane %v3344, 5
      %v3859 = vsel %vm1864, %v3857, %v3858
      %v3860 = vrot.slane %v3785, 5
      %v3861 = vrot.slane %v3860, 4
      %v3862 = vrot.slane %v3346, 5
      %v3863 = vsel %vm1864, %v3861, %v3862
      %v3864 = vrot.slane %v3786, 5
      %v3865 = vrot.slane %v3864, 4
      %v3866 = vrot.slane %v3348, 5
      %v3867 = vsel %vm1864, %v3865, %v3866
      %v3868 = vrot.slane %v3787, 5
      %v3869 = vrot.slane %v3868, 4
      %v3870 = vrot.slane %v3350, 5
      %v3871 = vsel %vm1864, %v3869, %v3870
      %v3872 = vrot.slane %v3788, 5
      %v3873 = vrot.slane %v3872, 4
      %v3874 = vrot.slane %v3352, 5
      %v3875 = vsel %vm1864, %v3873, %v3874
      %v3876 = vrot.slane %v3789, 5
      %v3877 = vrot.slane %v3876, 4
      %v3878 = vrot.slane %v3354, 5
      %v3879 = vsel %vm1864, %v3877, %v3878
      %v3880 = vrot.slane %v3790, 5
      %v3881 = vrot.slane %v3880, 4
      %v3882 = vrot.slane %v3356, 5
      %v3883 = vsel %vm1864, %v3881, %v3882
      %v3884 = vrot.slane %v3791, 5
      %v3885 = vrot.slane %v3884, 4
      %v3886 = vrot.slane %v3358, 5
      %v3887 = vsel %vm1864, %v3885, %v3886
      %v3888 = vld [vmem:[%s364 + $0x100] sm:$0xf]
      %v3889 = vld [vmem:[%s364 + $0x104] sm:$0xf]
      %v3890 = vld [vmem:[%s364 + $0x108] sm:$0xf]
      %v3891 = vld [vmem:[%s364 + $0x10c] sm:$0xf]
      %v3892 = vld [vmem:[%s364 + $0x110] sm:$0xf]
      %v3893 = vld [vmem:[%s364 + $0x114] sm:$0xf]
      %v3894 = vld [vmem:[%s364 + $0x118] sm:$0xf]
      %v3895 = vld [vmem:[%s364 + $0x11c] sm:$0xf]
      %v3896 = vunpack.c.l.b16 %v3827
      %v3897 = vunpack.c.l.b16 %v3831
      %v3898 = vunpack.c.l.b16 %v3835
      %v3899 = vunpack.c.l.b16 %v3839
      %v3900 = vunpack.c.l.b16 %v3843
      %v3901 = vunpack.c.l.b16 %v3847
      %v3902 = vunpack.c.l.b16 %v3851
      %v3903 = vunpack.c.l.b16 %v3855
      %v3904 = vunpack.c.l.b16 %v3859
      %v3905 = vunpack.c.l.b16 %v3863
      %v3906 = vunpack.c.l.b16 %v3867
      %v3907 = vunpack.c.l.b16 %v3871
      %v3908 = vunpack.c.l.b16 %v3875
      %v3909 = vunpack.c.l.b16 %v3879
      %v3910 = vunpack.c.l.b16 %v3883
      %v3911 = vunpack.c.l.b16 %v3887
      %v3912 = vpack.c.b16 %v3897, %v3896
      %v3913 = vpack.c.b16 %v3899, %v3898
      %v3914 = vpack.c.b16 %v3901, %v3900
      %v3915 = vpack.c.b16 %v3903, %v3902
      %v3916 = vpack.c.b16 %v3905, %v3904
      %v3917 = vpack.c.b16 %v3907, %v3906
      %v3918 = vpack.c.b16 %v3909, %v3908
      %v3919 = vpack.c.b16 %v3911, %v3910
      %v3928 = vunpack.c.l.b16 %v3888
      %v3929 = vunpack.c.l.b16 %v3889
      %v3930 = vunpack.c.l.b16 %v3890
      %v3931 = vunpack.c.l.b16 %v3891
      %v3932 = vunpack.c.l.b16 %v3892
      %v3933 = vunpack.c.l.b16 %v3893
      %v3934 = vunpack.c.l.b16 %v3894
      %v3935 = vunpack.c.l.b16 %v3895
      %v3936 = vpack.c.b16 %v3929, %v3928
      %v3937 = vpack.c.b16 %v3931, %v3930
      %v3938 = vpack.c.b16 %v3933, %v3932
      %v3939 = vpack.c.b16 %v3935, %v3934
      %v3945 = vsel %vm1507, %v3912, 0
      %v3948 = vsel %vm1507, %v3913, 0
      %v3951 = vsel %vm1507, %v3914, 0
      %v3954 = vsel %vm1507, %v3915, 0
      %v3957 = vsel %vm1507, %v3916, 0
      %v3960 = vsel %vm1507, %v3917, 0
      %v3963 = vsel %vm1507, %v3918, 0
      %v3966 = vsel %vm1507, %v3919, 0
      %3968 = vmatprep.subr.bf16.mxu0 0
      %3969 = vmatpush1.bf16.msra.mxu0 0
      %3970 = vmatprep.subr.bf16.mxu0 0
      %3971 = vmatpush1.bf16.msra.mxu0 0
      %3972 = vmatprep.subr.bf16.mxu0 0
      %3973 = vmatpush1.bf16.msra.mxu0 0
      %3974 = vmatprep.subr.bf16.mxu0 0
      %3975 = vmatpush1.bf16.msra.mxu0 0
      %3976 = vmatprep.subr.bf16.mxu0 0
      %3977 = vmatpush1.bf16.msra.mxu0 %v3939
      %3978 = vmatprep.subr.bf16.mxu0 0
      %3979 = vmatpush1.bf16.msra.mxu0 %v3938
      %3980 = vmatprep.subr.bf16.mxu0 0
      %3981 = vmatpush1.bf16.msra.mxu0 %v3937
      %3982 = vmatprep.subr.bf16.mxu0 0
      %3983 = vmatpush1.bf16.msra.mxu0 %v3936
      %3984 = vmatprep.subr.bf16.mxu0 0
      %3985 = vmatpush2.bf16.msra.mxu0 0
      %3986 = vmatprep.subr.bf16.mxu0 0
      %3987 = vmatpush2.bf16.msra.mxu0 0
      %3988 = vmatprep.subr.bf16.mxu0 0
      %3989 = vmatpush2.bf16.msra.mxu0 0
      %3990 = vmatprep.subr.bf16.mxu0 0
      %3991 = vmatpush2.bf16.msra.mxu0 0
      %3992 = vmatprep.subr.bf16.mxu0 0
      %3993 = vmatpush2.bf16.msra.mxu0 0
      %3994 = vmatprep.subr.bf16.mxu0 0
      %3995 = vmatpush2.bf16.msra.mxu0 0
      %3996 = vmatprep.subr.bf16.mxu0 0
      %3997 = vmatpush2.bf16.msra.mxu0 0
      %3998 = vmatprep.subr.bf16.mxu0 0
      %3999 = vmatpush2.bf16.msra.mxu0 0
      %4000 = vmatprep.mubr.bf16.mxu0 0
      %4001 = vmatmul.mubr.bf16.gmra.mxu0 %v3945
      %v4002 = vpop.f32.mrf.mxu0
      %v4003 = vadd.f32 0.0, %v4002
      %v4004 = vpop.f32.mrf.mxu0
      %v4005 = vpop.f32.mrf.mxu0
      %v4006 = vadd.f32 0.0, %v4005
      %v4007 = vpop.f32.mrf.mxu0
      %4008 = vmatprep.mubr.bf16.mxu0 0
      %4009 = vmatmul.mubr.bf16.gmra.mxu0 %v3948
      %v4010 = vpop.f32.mrf.mxu0
      %v4011 = vadd.f32 0.0, %v4010
      %v4012 = vpop.f32.mrf.mxu0
      %v4013 = vpop.f32.mrf.mxu0
      %v4014 = vadd.f32 0.0, %v4013
      %v4015 = vpop.f32.mrf.mxu0
      %4016 = vmatprep.mubr.bf16.mxu0 0
      %4017 = vmatmul.mubr.bf16.gmra.mxu0 %v3951
      %v4018 = vpop.f32.mrf.mxu0
      %v4019 = vadd.f32 0.0, %v4018
      %v4020 = vpop.f32.mrf.mxu0
      %v4021 = vpop.f32.mrf.mxu0
      %v4022 = vadd.f32 0.0, %v4021
      %v4023 = vpop.f32.mrf.mxu0
      %4024 = vmatprep.mubr.bf16.mxu0 0
      %4025 = vmatmul.mubr.bf16.gmra.mxu0 %v3954
      %v4026 = vpop.f32.mrf.mxu0
      %v4027 = vadd.f32 0.0, %v4026
      %v4028 = vpop.f32.mrf.mxu0
      %v4029 = vpop.f32.mrf.mxu0
      %v4030 = vadd.f32 0.0, %v4029
      %v4031 = vpop.f32.mrf.mxu0
      %4032 = vmatprep.mubr.bf16.mxu0 0
      %4033 = vmatmul.mubr.bf16.gmra.mxu0 %v3957
      %v4034 = vpop.f32.mrf.mxu0
      %v4035 = vadd.f32 0.0, %v4034
      %v4036 = vpop.f32.mrf.mxu0
      %v4037 = vpop.f32.mrf.mxu0
      %v4038 = vadd.f32 0.0, %v4037
      %v4039 = vpop.f32.mrf.mxu0
      %4040 = vmatprep.mubr.bf16.mxu0 0
      %4041 = vmatmul.mubr.bf16.gmra.mxu0 %v3960
      %v4042 = vpop.f32.mrf.mxu0
      %v4043 = vadd.f32 0.0, %v4042
      %v4044 = vpop.f32.mrf.mxu0
      %v4045 = vpop.f32.mrf.mxu0
      %v4046 = vadd.f32 0.0, %v4045
      %v4047 = vpop.f32.mrf.mxu0
      %4048 = vmatprep.mubr.bf16.mxu0 0
      %4049 = vmatmul.mubr.bf16.gmra.mxu0 %v3963
      %v4050 = vpop.f32.mrf.mxu0
      %v4051 = vadd.f32 0.0, %v4050
      %v4052 = vpop.f32.mrf.mxu0
      %v4053 = vpop.f32.mrf.mxu0
      %v4054 = vadd.f32 0.0, %v4053
      %v4055 = vpop.f32.mrf.mxu0
      %4056 = vmatprep.mubr.bf16.mxu0 0
      %4057 = vmatmul.mubr.bf16.gmra.mxu0 %v3966
      %v4058 = vpop.f32.mrf.mxu0
      %v4059 = vadd.f32 0.0, %v4058
      %v4060 = vpop.f32.mrf.mxu0
      %v4061 = vpop.f32.mrf.mxu0
      %v4062 = vadd.f32 0.0, %v4061
      %v4063 = vpop.f32.mrf.mxu0
      %4064 = vdwg.mxu0
      %v4065 = vadd.f32 %v3760, %v4003
      %v4066 = vadd.f32 %v3761, %v4006
      %v4067 = vadd.f32 %v3762, %v4011
      %v4068 = vadd.f32 %v3763, %v4014
      %v4069 = vadd.f32 %v3764, %v4019
      %v4070 = vadd.f32 %v3765, %v4022
      %v4071 = vadd.f32 %v3766, %v4027
      %v4072 = vadd.f32 %v3767, %v4030
      %v4073 = vadd.f32 %v3768, %v4035
      %v4074 = vadd.f32 %v3769, %v4038
      %v4075 = vadd.f32 %v3770, %v4043
      %v4076 = vadd.f32 %v3771, %v4046
      %v4077 = vadd.f32 %v3772, %v4051
      %v4078 = vadd.f32 %v3773, %v4054
      %v4079 = vadd.f32 %v3774, %v4059
      %v4080 = vadd.f32 %v3775, %v4062
      %v4081 = vld [vmem:[%s367] sm:$0x1]
      %v4083 = vlaneseq
      %v4084 = vshrl.u32 %v4083, 7
      %v4085 = vsub.s32 0, %v4084
      %v4086 = vrot.slane %v4081, %v4085
      %v4088 = vadd.f32 %v4065, %v4086
      %v4089 = vadd.f32 %v4066, %v4086
      %v4090 = vadd.f32 %v4067, %v4086
      %v4091 = vadd.f32 %v4068, %v4086
      %v4092 = vadd.f32 %v4069, %v4086
      %v4093 = vadd.f32 %v4070, %v4086
      %v4094 = vadd.f32 %v4071, %v4086
      %v4095 = vadd.f32 %v4072, %v4086
      %v4096 = vadd.f32 %v4073, %v4086
      %v4097 = vadd.f32 %v4074, %v4086
      %v4098 = vadd.f32 %v4075, %v4086
      %v4099 = vadd.f32 %v4076, %v4086
      %v4100 = vadd.f32 %v4077, %v4086
      %v4101 = vadd.f32 %v4078, %v4086
      %v4102 = vadd.f32 %v4079, %v4086
      %v4103 = vadd.f32 %v4080, %v4086
      %vm4104 = vcmp.ge.f32.partialorder %v4088, 0.0
      %vm4105 = vcmp.ge.f32.partialorder %v4089, 0.0
      %vm4106 = vcmp.ge.f32.partialorder %v4090, 0.0
      %vm4107 = vcmp.ge.f32.partialorder %v4091, 0.0
      %vm4108 = vcmp.ge.f32.partialorder %v4092, 0.0
      %vm4109 = vcmp.ge.f32.partialorder %v4093, 0.0
      %vm4110 = vcmp.ge.f32.partialorder %v4094, 0.0
      %vm4111 = vcmp.ge.f32.partialorder %v4095, 0.0
      %vm4112 = vcmp.ge.f32.partialorder %v4096, 0.0
      %vm4113 = vcmp.ge.f32.partialorder %v4097, 0.0
      %vm4114 = vcmp.ge.f32.partialorder %v4098, 0.0
      %vm4115 = vcmp.ge.f32.partialorder %v4099, 0.0
      %vm4116 = vcmp.ge.f32.partialorder %v4100, 0.0
      %vm4117 = vcmp.ge.f32.partialorder %v4101, 0.0
      %vm4118 = vcmp.ge.f32.partialorder %v4102, 0.0
      %vm4119 = vcmp.ge.f32.partialorder %v4103, 0.0
      %v4120 = vmul.f32 %v4088, 0.5
      %v4121 = vmul.f32 %v4089, 0.5
      %v4122 = vmul.f32 %v4090, 0.5
      %v4123 = vmul.f32 %v4091, 0.5
      %v4124 = vmul.f32 %v4092, 0.5
      %v4125 = vmul.f32 %v4093, 0.5
      %v4126 = vmul.f32 %v4094, 0.5
      %v4127 = vmul.f32 %v4095, 0.5
      %v4128 = vmul.f32 %v4096, 0.5
      %v4129 = vmul.f32 %v4097, 0.5
      %v4130 = vmul.f32 %v4098, 0.5
      %v4131 = vmul.f32 %v4099, 0.5
      %v4132 = vmul.f32 %v4100, 0.5
      %v4133 = vmul.f32 %v4101, 0.5
      %v4134 = vmul.f32 %v4102, 0.5
      %v4135 = vmul.f32 %v4103, 0.5
      %v4136 = vsel %vm4104, %v4088, %v4120
      %v4137 = vsel %vm4105, %v4089, %v4121
      %v4138 = vsel %vm4106, %v4090, %v4122
      %v4139 = vsel %vm4107, %v4091, %v4123
      %v4140 = vsel %vm4108, %v4092, %v4124
      %v4141 = vsel %vm4109, %v4093, %v4125
      %v4142 = vsel %vm4110, %v4094, %v4126
      %v4143 = vsel %vm4111, %v4095, %v4127
      %v4144 = vsel %vm4112, %v4096, %v4128
      %v4145 = vsel %vm4113, %v4097, %v4129
      %v4146 = vsel %vm4114, %v4098, %v4130
      %v4147 = vsel %vm4115, %v4099, %v4131
      %v4148 = vsel %vm4116, %v4100, %v4132
      %v4149 = vsel %vm4117, %v4101, %v4133
      %v4150 = vsel %vm4118, %v4102, %v4134
      %v4151 = vsel %vm4119, %v4103, %v4135
      %v4168 = vcombine.high %v4136, %v4136
      %v4170 = vunpack.c.l.s4 1983009808
      %v4171 = vunpack.c.0.s8 %v4170
      %v4172 = vlaneseq
      %v4173 = vshrl.u32 %v4172, 7
      %v4174 = vsub.s32 %v4171, %v4173
      %v4175 = vrot.slane %v4136, %v4174
      %v4177 = vunpack.c.l.s4 1983009808
      %v4178 = vunpack.c.0.s8 %v4177
      %v4179 = vlaneseq
      %v4180 = vshrl.u32 %v4179, 7
      %v4181 = vsub.s32 %v4178, %v4180
      %v4182 = vrot.slane %v4168, %v4181
      %v4183 = vcombine.high %v4175, %v4175
      %v4184 = vcombine.high %v4182, %v4182
      %v4185 = vcombine.high %v4137, %v4137
      %v4187 = vunpack.c.l.s4 1983009808
      %v4188 = vunpack.c.0.s8 %v4187
      %v4189 = vlaneseq
      %v4190 = vshrl.u32 %v4189, 7
      %v4191 = vsub.s32 %v4188, %v4190
      %v4192 = vrot.slane %v4137, %v4191
      %v4194 = vunpack.c.l.s4 1983009808
      %v4195 = vunpack.c.0.s8 %v4194
      %v4196 = vlaneseq
      %v4197 = vshrl.u32 %v4196, 7
      %v4198 = vsub.s32 %v4195, %v4197
      %v4199 = vrot.slane %v4185, %v4198
      %v4200 = vcombine.high %v4192, %v4192
      %v4201 = vcombine.high %v4199, %v4199
      %v4202 = vcombine.high %v4138, %v4138
      %v4204 = vunpack.c.l.s4 1983009808
      %v4205 = vunpack.c.0.s8 %v4204
      %v4206 = vlaneseq
      %v4207 = vshrl.u32 %v4206, 7
      %v4208 = vsub.s32 %v4205, %v4207
      %v4209 = vrot.slane %v4138, %v4208
      %v4211 = vunpack.c.l.s4 1983009808
      %v4212 = vunpack.c.0.s8 %v4211
      %v4213 = vlaneseq
      %v4214 = vshrl.u32 %v4213, 7
      %v4215 = vsub.s32 %v4212, %v4214
      %v4216 = vrot.slane %v4202, %v4215
      %v4217 = vcombine.high %v4209, %v4209
      %v4218 = vcombine.high %v4216, %v4216
      %v4219 = vcombine.high %v4139, %v4139
      %v4221 = vunpack.c.l.s4 1983009808
      %v4222 = vunpack.c.0.s8 %v4221
      %v4223 = vlaneseq
      %v4224 = vshrl.u32 %v4223, 7
      %v4225 = vsub.s32 %v4222, %v4224
      %v4226 = vrot.slane %v4139, %v4225
      %v4228 = vunpack.c.l.s4 1983009808
      %v4229 = vunpack.c.0.s8 %v4228
      %v4230 = vlaneseq
      %v4231 = vshrl.u32 %v4230, 7
      %v4232 = vsub.s32 %v4229, %v4231
      %v4233 = vrot.slane %v4219, %v4232
      %v4234 = vcombine.high %v4226, %v4226
      %v4235 = vcombine.high %v4233, %v4233
      %v4236 = vcombine.high %v4140, %v4140
      %v4238 = vunpack.c.l.s4 1983009808
      %v4239 = vunpack.c.0.s8 %v4238
      %v4240 = vlaneseq
      %v4241 = vshrl.u32 %v4240, 7
      %v4242 = vsub.s32 %v4239, %v4241
      %v4243 = vrot.slane %v4140, %v4242
      %v4245 = vunpack.c.l.s4 1983009808
      %v4246 = vunpack.c.0.s8 %v4245
      %v4247 = vlaneseq
      %v4248 = vshrl.u32 %v4247, 7
      %v4249 = vsub.s32 %v4246, %v4248
      %v4250 = vrot.slane %v4236, %v4249
      %v4251 = vcombine.high %v4243, %v4243
      %v4252 = vcombine.high %v4250, %v4250
      %v4253 = vcombine.high %v4141, %v4141
      %v4255 = vunpack.c.l.s4 1983009808
      %v4256 = vunpack.c.0.s8 %v4255
      %v4257 = vlaneseq
      %v4258 = vshrl.u32 %v4257, 7
      %v4259 = vsub.s32 %v4256, %v4258
      %v4260 = vrot.slane %v4141, %v4259
      %v4262 = vunpack.c.l.s4 1983009808
      %v4263 = vunpack.c.0.s8 %v4262
      %v4264 = vlaneseq
      %v4265 = vshrl.u32 %v4264, 7
      %v4266 = vsub.s32 %v4263, %v4265
      %v4267 = vrot.slane %v4253, %v4266
      %v4268 = vcombine.high %v4260, %v4260
      %v4269 = vcombine.high %v4267, %v4267
      %v4270 = vcombine.high %v4142, %v4142
      %v4272 = vunpack.c.l.s4 1983009808
      %v4273 = vunpack.c.0.s8 %v4272
      %v4274 = vlaneseq
      %v4275 = vshrl.u32 %v4274, 7
      %v4276 = vsub.s32 %v4273, %v4275
      %v4277 = vrot.slane %v4142, %v4276
      %v4279 = vunpack.c.l.s4 1983009808
      %v4280 = vunpack.c.0.s8 %v4279
      %v4281 = vlaneseq
      %v4282 = vshrl.u32 %v4281, 7
      %v4283 = vsub.s32 %v4280, %v4282
      %v4284 = vrot.slane %v4270, %v4283
      %v4285 = vcombine.high %v4277, %v4277
      %v4286 = vcombine.high %v4284, %v4284
      %v4287 = vcombine.high %v4143, %v4143
      %v4289 = vunpack.c.l.s4 1983009808
      %v4290 = vunpack.c.0.s8 %v4289
      %v4291 = vlaneseq
      %v4292 = vshrl.u32 %v4291, 7
      %v4293 = vsub.s32 %v4290, %v4292
      %v4294 = vrot.slane %v4143, %v4293
      %v4296 = vunpack.c.l.s4 1983009808
      %v4297 = vunpack.c.0.s8 %v4296
      %v4298 = vlaneseq
      %v4299 = vshrl.u32 %v4298, 7
      %v4300 = vsub.s32 %v4297, %v4299
      %v4301 = vrot.slane %v4287, %v4300
      %v4302 = vcombine.high %v4294, %v4294
      %v4303 = vcombine.high %v4301, %v4301
      %v4304 = vcombine.high %v4144, %v4144
      %v4306 = vunpack.c.l.s4 1983009808
      %v4307 = vunpack.c.0.s8 %v4306
      %v4308 = vlaneseq
      %v4309 = vshrl.u32 %v4308, 7
      %v4310 = vsub.s32 %v4307, %v4309
      %v4311 = vrot.slane %v4144, %v4310
      %v4313 = vunpack.c.l.s4 1983009808
      %v4314 = vunpack.c.0.s8 %v4313
      %v4315 = vlaneseq
      %v4316 = vshrl.u32 %v4315, 7
      %v4317 = vsub.s32 %v4314, %v4316
      %v4318 = vrot.slane %v4304, %v4317
      %v4319 = vcombine.high %v4311, %v4311
      %v4320 = vcombine.high %v4318, %v4318
      %v4321 = vcombine.high %v4145, %v4145
      %v4323 = vunpack.c.l.s4 1983009808
      %v4324 = vunpack.c.0.s8 %v4323
      %v4325 = vlaneseq
      %v4326 = vshrl.u32 %v4325, 7
      %v4327 = vsub.s32 %v4324, %v4326
      %v4328 = vrot.slane %v4145, %v4327
      %v4330 = vunpack.c.l.s4 1983009808
      %v4331 = vunpack.c.0.s8 %v4330
      %v4332 = vlaneseq
      %v4333 = vshrl.u32 %v4332, 7
      %v4334 = vsub.s32 %v4331, %v4333
      %v4335 = vrot.slane %v4321, %v4334
      %v4336 = vcombine.high %v4328, %v4328
      %v4337 = vcombine.high %v4335, %v4335
      %v4338 = vcombine.high %v4146, %v4146
      %v4340 = vunpack.c.l.s4 1983009808
      %v4341 = vunpack.c.0.s8 %v4340
      %v4342 = vlaneseq
      %v4343 = vshrl.u32 %v4342, 7
      %v4344 = vsub.s32 %v4341, %v4343
      %v4345 = vrot.slane %v4146, %v4344
      %v4347 = vunpack.c.l.s4 1983009808
      %v4348 = vunpack.c.0.s8 %v4347
      %v4349 = vlaneseq
      %v4350 = vshrl.u32 %v4349, 7
      %v4351 = vsub.s32 %v4348, %v4350
      %v4352 = vrot.slane %v4338, %v4351
      %v4353 = vcombine.high %v4345, %v4345
      %v4354 = vcombine.high %v4352, %v4352
      %v4355 = vcombine.high %v4147, %v4147
      %v4357 = vunpack.c.l.s4 1983009808
      %v4358 = vunpack.c.0.s8 %v4357
      %v4359 = vlaneseq
      %v4360 = vshrl.u32 %v4359, 7
      %v4361 = vsub.s32 %v4358, %v4360
      %v4362 = vrot.slane %v4147, %v4361
      %v4364 = vunpack.c.l.s4 1983009808
      %v4365 = vunpack.c.0.s8 %v4364
      %v4366 = vlaneseq
      %v4367 = vshrl.u32 %v4366, 7
      %v4368 = vsub.s32 %v4365, %v4367
      %v4369 = vrot.slane %v4355, %v4368
      %v4370 = vcombine.high %v4362, %v4362
      %v4371 = vcombine.high %v4369, %v4369
      %v4372 = vcombine.high %v4148, %v4148
      %v4374 = vunpack.c.l.s4 1983009808
      %v4375 = vunpack.c.0.s8 %v4374
      %v4376 = vlaneseq
      %v4377 = vshrl.u32 %v4376, 7
      %v4378 = vsub.s32 %v4375, %v4377
      %v4379 = vrot.slane %v4148, %v4378
      %v4381 = vunpack.c.l.s4 1983009808
      %v4382 = vunpack.c.0.s8 %v4381
      %v4383 = vlaneseq
      %v4384 = vshrl.u32 %v4383, 7
      %v4385 = vsub.s32 %v4382, %v4384
      %v4386 = vrot.slane %v4372, %v4385
      %v4387 = vcombine.high %v4379, %v4379
      %v4388 = vcombine.high %v4386, %v4386
      %v4389 = vcombine.high %v4149, %v4149
      %v4391 = vunpack.c.l.s4 1983009808
      %v4392 = vunpack.c.0.s8 %v4391
      %v4393 = vlaneseq
      %v4394 = vshrl.u32 %v4393, 7
      %v4395 = vsub.s32 %v4392, %v4394
      %v4396 = vrot.slane %v4149, %v4395
      %v4398 = vunpack.c.l.s4 1983009808
      %v4399 = vunpack.c.0.s8 %v4398
      %v4400 = vlaneseq
      %v4401 = vshrl.u32 %v4400, 7
      %v4402 = vsub.s32 %v4399, %v4401
      %v4403 = vrot.slane %v4389, %v4402
      %v4404 = vcombine.high %v4396, %v4396
      %v4405 = vcombine.high %v4403, %v4403
      %v4406 = vcombine.high %v4150, %v4150
      %v4408 = vunpack.c.l.s4 1983009808
      %v4409 = vunpack.c.0.s8 %v4408
      %v4410 = vlaneseq
      %v4411 = vshrl.u32 %v4410, 7
      %v4412 = vsub.s32 %v4409, %v4411
      %v4413 = vrot.slane %v4150, %v4412
      %v4415 = vunpack.c.l.s4 1983009808
      %v4416 = vunpack.c.0.s8 %v4415
      %v4417 = vlaneseq
      %v4418 = vshrl.u32 %v4417, 7
      %v4419 = vsub.s32 %v4416, %v4418
      %v4420 = vrot.slane %v4406, %v4419
      %v4421 = vcombine.high %v4413, %v4413
      %v4422 = vcombine.high %v4420, %v4420
      %v4423 = vcombine.high %v4151, %v4151
      %v4425 = vunpack.c.l.s4 1983009808
      %v4426 = vunpack.c.0.s8 %v4425
      %v4427 = vlaneseq
      %v4428 = vshrl.u32 %v4427, 7
      %v4429 = vsub.s32 %v4426, %v4428
      %v4430 = vrot.slane %v4151, %v4429
      %v4432 = vunpack.c.l.s4 1983009808
      %v4433 = vunpack.c.0.s8 %v4432
      %v4434 = vlaneseq
      %v4435 = vshrl.u32 %v4434, 7
      %v4436 = vsub.s32 %v4433, %v4435
      %v4437 = vrot.slane %v4423, %v4436
      %v4438 = vcombine.high %v4430, %v4430
      %v4439 = vcombine.high %v4437, %v4437
      %v4504 = vrot.slane %v4175, 7
      %v4505 = vrot.slane %v4504, 2
      %v4506 = vrot.slane %v4183, 7
      %v4507 = vrot.slane %v4506, 2
      %v4508 = vrot.slane %v4182, 7
      %v4509 = vrot.slane %v4508, 2
      %v4510 = vrot.slane %v4184, 7
      %v4511 = vrot.slane %v4510, 2
      %v4512 = vrot.slane %v4192, 7
      %v4513 = vrot.slane %v4512, 2
      %v4514 = vrot.slane %v4200, 7
      %v4515 = vrot.slane %v4514, 2
      %v4516 = vrot.slane %v4199, 7
      %v4517 = vrot.slane %v4516, 2
      %v4518 = vrot.slane %v4201, 7
      %v4519 = vrot.slane %v4518, 2
      %v4520 = vrot.slane %v4209, 7
      %v4521 = vrot.slane %v4520, 2
      %v4522 = vrot.slane %v4217, 7
      %v4523 = vrot.slane %v4522, 2
      %v4524 = vrot.slane %v4216, 7
      %v4525 = vrot.slane %v4524, 2
      %v4526 = vrot.slane %v4218, 7
      %v4527 = vrot.slane %v4526, 2
      %v4528 = vrot.slane %v4226, 7
      %v4529 = vrot.slane %v4528, 2
      %v4530 = vrot.slane %v4234, 7
      %v4531 = vrot.slane %v4530, 2
      %v4532 = vrot.slane %v4233, 7
      %v4533 = vrot.slane %v4532, 2
      %v4534 = vrot.slane %v4235, 7
      %v4535 = vrot.slane %v4534, 2
      %v4536 = vrot.slane %v4243, 7
      %v4537 = vrot.slane %v4536, 2
      %v4538 = vrot.slane %v4251, 7
      %v4539 = vrot.slane %v4538, 2
      %v4540 = vrot.slane %v4250, 7
      %v4541 = vrot.slane %v4540, 2
      %v4542 = vrot.slane %v4252, 7
      %v4543 = vrot.slane %v4542, 2
      %v4544 = vrot.slane %v4260, 7
      %v4545 = vrot.slane %v4544, 2
      %v4546 = vrot.slane %v4268, 7
      %v4547 = vrot.slane %v4546, 2
      %v4548 = vrot.slane %v4267, 7
      %v4549 = vrot.slane %v4548, 2
      %v4550 = vrot.slane %v4269, 7
      %v4551 = vrot.slane %v4550, 2
      %v4552 = vrot.slane %v4277, 7
      %v4553 = vrot.slane %v4552, 2
      %v4554 = vrot.slane %v4285, 7
      %v4555 = vrot.slane %v4554, 2
      %v4556 = vrot.slane %v4284, 7
      %v4557 = vrot.slane %v4556, 2
      %v4558 = vrot.slane %v4286, 7
      %v4559 = vrot.slane %v4558, 2
      %v4560 = vrot.slane %v4294, 7
      %v4561 = vrot.slane %v4560, 2
      %v4562 = vrot.slane %v4302, 7
      %v4563 = vrot.slane %v4562, 2
      %v4564 = vrot.slane %v4301, 7
      %v4565 = vrot.slane %v4564, 2
      %v4566 = vrot.slane %v4303, 7
      %v4567 = vrot.slane %v4566, 2
      %v4568 = vrot.slane %v4311, 7
      %v4569 = vrot.slane %v4568, 2
      %v4570 = vrot.slane %v4319, 7
      %v4571 = vrot.slane %v4570, 2
      %v4572 = vrot.slane %v4318, 7
      %v4573 = vrot.slane %v4572, 2
      %v4574 = vrot.slane %v4320, 7
      %v4575 = vrot.slane %v4574, 2
      %v4576 = vrot.slane %v4328, 7
      %v4577 = vrot.slane %v4576, 2
      %v4578 = vrot.slane %v4336, 7
      %v4579 = vrot.slane %v4578, 2
      %v4580 = vrot.slane %v4335, 7
      %v4581 = vrot.slane %v4580, 2
      %v4582 = vrot.slane %v4337, 7
      %v4583 = vrot.slane %v4582, 2
      %v4584 = vrot.slane %v4345, 7
      %v4585 = vrot.slane %v4584, 2
      %v4586 = vrot.slane %v4353, 7
      %v4587 = vrot.slane %v4586, 2
      %v4588 = vrot.slane %v4352, 7
      %v4589 = vrot.slane %v4588, 2
      %v4590 = vrot.slane %v4354, 7
      %v4591 = vrot.slane %v4590, 2
      %v4592 = vrot.slane %v4362, 7
      %v4593 = vrot.slane %v4592, 2
      %v4594 = vrot.slane %v4370, 7
      %v4595 = vrot.slane %v4594, 2
      %v4596 = vrot.slane %v4369, 7
      %v4597 = vrot.slane %v4596, 2
      %v4598 = vrot.slane %v4371, 7
      %v4599 = vrot.slane %v4598, 2
      %v4600 = vrot.slane %v4379, 7
      %v4601 = vrot.slane %v4600, 2
      %v4602 = vrot.slane %v4387, 7
      %v4603 = vrot.slane %v4602, 2
      %v4604 = vrot.slane %v4386, 7
      %v4605 = vrot.slane %v4604, 2
      %v4606 = vrot.slane %v4388, 7
      %v4607 = vrot.slane %v4606, 2
      %v4608 = vrot.slane %v4396, 7
      %v4609 = vrot.slane %v4608, 2
      %v4610 = vrot.slane %v4404, 7
      %v4611 = vrot.slane %v4610, 2
      %v4612 = vrot.slane %v4403, 7
      %v4613 = vrot.slane %v4612, 2
      %v4614 = vrot.slane %v4405, 7
      %v4615 = vrot.slane %v4614, 2
      %v4616 = vrot.slane %v4413, 7
      %v4617 = vrot.slane %v4616, 2
      %v4618 = vrot.slane %v4421, 7
      %v4619 = vrot.slane %v4618, 2
      %v4620 = vrot.slane %v4420, 7
      %v4621 = vrot.slane %v4620, 2
      %v4622 = vrot.slane %v4422, 7
      %v4623 = vrot.slane %v4622, 2
      %v4624 = vrot.slane %v4430, 7
      %v4625 = vrot.slane %v4624, 2
      %v4626 = vrot.slane %v4438, 7
      %v4627 = vrot.slane %v4626, 2
      %v4628 = vrot.slane %v4437, 7
      %v4629 = vrot.slane %v4628, 2
      %v4630 = vrot.slane %v4439, 7
      %v4631 = vrot.slane %v4630, 2
      %v4696 = vmax.f32 %v4175, %v4505
      %v4697 = vmax.f32 %v4183, %v4507
      %v4698 = vmax.f32 %v4182, %v4509
      %v4699 = vmax.f32 %v4184, %v4511
      %v4700 = vmax.f32 %v4192, %v4513
      %v4701 = vmax.f32 %v4200, %v4515
      %v4702 = vmax.f32 %v4199, %v4517
      %v4703 = vmax.f32 %v4201, %v4519
      %v4704 = vmax.f32 %v4209, %v4521
      %v4705 = vmax.f32 %v4217, %v4523
      %v4706 = vmax.f32 %v4216, %v4525
      %v4707 = vmax.f32 %v4218, %v4527
      %v4708 = vmax.f32 %v4226, %v4529
      %v4709 = vmax.f32 %v4234, %v4531
      %v4710 = vmax.f32 %v4233, %v4533
      %v4711 = vmax.f32 %v4235, %v4535
      %v4712 = vmax.f32 %v4243, %v4537
      %v4713 = vmax.f32 %v4251, %v4539
      %v4714 = vmax.f32 %v4250, %v4541
      %v4715 = vmax.f32 %v4252, %v4543
      %v4716 = vmax.f32 %v4260, %v4545
      %v4717 = vmax.f32 %v4268, %v4547
      %v4718 = vmax.f32 %v4267, %v4549
      %v4719 = vmax.f32 %v4269, %v4551
      %v4720 = vmax.f32 %v4277, %v4553
      %v4721 = vmax.f32 %v4285, %v4555
      %v4722 = vmax.f32 %v4284, %v4557
      %v4723 = vmax.f32 %v4286, %v4559
      %v4724 = vmax.f32 %v4294, %v4561
      %v4725 = vmax.f32 %v4302, %v4563
      %v4726 = vmax.f32 %v4301, %v4565
      %v4727 = vmax.f32 %v4303, %v4567
      %v4728 = vmax.f32 %v4311, %v4569
      %v4729 = vmax.f32 %v4319, %v4571
      %v4730 = vmax.f32 %v4318, %v4573
      %v4731 = vmax.f32 %v4320, %v4575
      %v4732 = vmax.f32 %v4328, %v4577
      %v4733 = vmax.f32 %v4336, %v4579
      %v4734 = vmax.f32 %v4335, %v4581
      %v4735 = vmax.f32 %v4337, %v4583
      %v4736 = vmax.f32 %v4345, %v4585
      %v4737 = vmax.f32 %v4353, %v4587
      %v4738 = vmax.f32 %v4352, %v4589
      %v4739 = vmax.f32 %v4354, %v4591
      %v4740 = vmax.f32 %v4362, %v4593
      %v4741 = vmax.f32 %v4370, %v4595
      %v4742 = vmax.f32 %v4369, %v4597
      %v4743 = vmax.f32 %v4371, %v4599
      %v4744 = vmax.f32 %v4379, %v4601
      %v4745 = vmax.f32 %v4387, %v4603
      %v4746 = vmax.f32 %v4386, %v4605
      %v4747 = vmax.f32 %v4388, %v4607
      %v4748 = vmax.f32 %v4396, %v4609
      %v4749 = vmax.f32 %v4404, %v4611
      %v4750 = vmax.f32 %v4403, %v4613
      %v4751 = vmax.f32 %v4405, %v4615
      %v4752 = vmax.f32 %v4413, %v4617
      %v4753 = vmax.f32 %v4421, %v4619
      %v4754 = vmax.f32 %v4420, %v4621
      %v4755 = vmax.f32 %v4422, %v4623
      %v4756 = vmax.f32 %v4430, %v4625
      %v4757 = vmax.f32 %v4438, %v4627
      %v4758 = vmax.f32 %v4437, %v4629
      %v4759 = vmax.f32 %v4439, %v4631
      %v4760 = vmax.f32 %v4696, %v4700
      %v4761 = vmax.f32 %v4697, %v4701
      %v4762 = vmax.f32 %v4698, %v4702
      %v4763 = vmax.f32 %v4699, %v4703
      %v4764 = vmax.f32 %v4704, %v4708
      %v4765 = vmax.f32 %v4705, %v4709
      %v4766 = vmax.f32 %v4706, %v4710
      %v4767 = vmax.f32 %v4707, %v4711
      %v4768 = vmax.f32 %v4712, %v4716
      %v4769 = vmax.f32 %v4713, %v4717
      %v4770 = vmax.f32 %v4714, %v4718
      %v4771 = vmax.f32 %v4715, %v4719
      %v4772 = vmax.f32 %v4720, %v4724
      %v4773 = vmax.f32 %v4721, %v4725
      %v4774 = vmax.f32 %v4722, %v4726
      %v4775 = vmax.f32 %v4723, %v4727
      %v4776 = vmax.f32 %v4728, %v4732
      %v4777 = vmax.f32 %v4729, %v4733
      %v4778 = vmax.f32 %v4730, %v4734
      %v4779 = vmax.f32 %v4731, %v4735
      %v4780 = vmax.f32 %v4736, %v4740
      %v4781 = vmax.f32 %v4737, %v4741
      %v4782 = vmax.f32 %v4738, %v4742
      %v4783 = vmax.f32 %v4739, %v4743
      %v4784 = vmax.f32 %v4744, %v4748
      %v4785 = vmax.f32 %v4745, %v4749
      %v4786 = vmax.f32 %v4746, %v4750
      %v4787 = vmax.f32 %v4747, %v4751
      %v4788 = vmax.f32 %v4752, %v4756
      %v4789 = vmax.f32 %v4753, %v4757
      %v4790 = vmax.f32 %v4754, %v4758
      %v4791 = vmax.f32 %v4755, %v4759
      %vm4792 = vcmp.ge.f32.partialorder %v4760, 0.0
      %vm4793 = vcmp.ge.f32.partialorder %v4761, 0.0
      %vm4794 = vcmp.ge.f32.partialorder %v4762, 0.0
      %vm4795 = vcmp.ge.f32.partialorder %v4763, 0.0
      %vm4796 = vcmp.ge.f32.partialorder %v4764, 0.0
      %vm4797 = vcmp.ge.f32.partialorder %v4765, 0.0
      %vm4798 = vcmp.ge.f32.partialorder %v4766, 0.0
      %vm4799 = vcmp.ge.f32.partialorder %v4767, 0.0
      %vm4800 = vcmp.ge.f32.partialorder %v4768, 0.0
      %vm4801 = vcmp.ge.f32.partialorder %v4769, 0.0
      %vm4802 = vcmp.ge.f32.partialorder %v4770, 0.0
      %vm4803 = vcmp.ge.f32.partialorder %v4771, 0.0
      %vm4804 = vcmp.ge.f32.partialorder %v4772, 0.0
      %vm4805 = vcmp.ge.f32.partialorder %v4773, 0.0
      %vm4806 = vcmp.ge.f32.partialorder %v4774, 0.0
      %vm4807 = vcmp.ge.f32.partialorder %v4775, 0.0
      %vm4808 = vcmp.ge.f32.partialorder %v4776, 0.0
      %vm4809 = vcmp.ge.f32.partialorder %v4777, 0.0
      %vm4810 = vcmp.ge.f32.partialorder %v4778, 0.0
      %vm4811 = vcmp.ge.f32.partialorder %v4779, 0.0
      %vm4812 = vcmp.ge.f32.partialorder %v4780, 0.0
      %vm4813 = vcmp.ge.f32.partialorder %v4781, 0.0
      %vm4814 = vcmp.ge.f32.partialorder %v4782, 0.0
      %vm4815 = vcmp.ge.f32.partialorder %v4783, 0.0
      %vm4816 = vcmp.ge.f32.partialorder %v4784, 0.0
      %vm4817 = vcmp.ge.f32.partialorder %v4785, 0.0
      %vm4818 = vcmp.ge.f32.partialorder %v4786, 0.0
      %vm4819 = vcmp.ge.f32.partialorder %v4787, 0.0
      %vm4820 = vcmp.ge.f32.partialorder %v4788, 0.0
      %vm4821 = vcmp.ge.f32.partialorder %v4789, 0.0
      %vm4822 = vcmp.ge.f32.partialorder %v4790, 0.0
      %vm4823 = vcmp.ge.f32.partialorder %v4791, 0.0
      %v4824 = vmul.f32 %v4760, 0.5
      %v4825 = vmul.f32 %v4761, 0.5
      %v4826 = vmul.f32 %v4762, 0.5
      %v4827 = vmul.f32 %v4763, 0.5
      %v4828 = vmul.f32 %v4764, 0.5
      %v4829 = vmul.f32 %v4765, 0.5
      %v4830 = vmul.f32 %v4766, 0.5
      %v4831 = vmul.f32 %v4767, 0.5
      %v4832 = vmul.f32 %v4768, 0.5
      %v4833 = vmul.f32 %v4769, 0.5
      %v4834 = vmul.f32 %v4770, 0.5
      %v4835 = vmul.f32 %v4771, 0.5
      %v4836 = vmul.f32 %v4772, 0.5
      %v4837 = vmul.f32 %v4773, 0.5
      %v4838 = vmul.f32 %v4774, 0.5
      %v4839 = vmul.f32 %v4775, 0.5
      %v4840 = vmul.f32 %v4776, 0.5
      %v4841 = vmul.f32 %v4777, 0.5
      %v4842 = vmul.f32 %v4778, 0.5
      %v4843 = vmul.f32 %v4779, 0.5
      %v4844 = vmul.f32 %v4780, 0.5
      %v4845 = vmul.f32 %v4781, 0.5
      %v4846 = vmul.f32 %v4782, 0.5
      %v4847 = vmul.f32 %v4783, 0.5
      %v4848 = vmul.f32 %v4784, 0.5
      %v4849 = vmul.f32 %v4785, 0.5
      %v4850 = vmul.f32 %v4786, 0.5
      %v4851 = vmul.f32 %v4787, 0.5
      %v4852 = vmul.f32 %v4788, 0.5
      %v4853 = vmul.f32 %v4789, 0.5
      %v4854 = vmul.f32 %v4790, 0.5
      %v4855 = vmul.f32 %v4791, 0.5
      %v4856 = vsel %vm4792, %v4760, %v4824
      %v4857 = vsel %vm4793, %v4761, %v4825
      %v4858 = vsel %vm4794, %v4762, %v4826
      %v4859 = vsel %vm4795, %v4763, %v4827
      %v4860 = vsel %vm4796, %v4764, %v4828
      %v4861 = vsel %vm4797, %v4765, %v4829
      %v4862 = vsel %vm4798, %v4766, %v4830
      %v4863 = vsel %vm4799, %v4767, %v4831
      %v4864 = vsel %vm4800, %v4768, %v4832
      %v4865 = vsel %vm4801, %v4769, %v4833
      %v4866 = vsel %vm4802, %v4770, %v4834
      %v4867 = vsel %vm4803, %v4771, %v4835
      %v4868 = vsel %vm4804, %v4772, %v4836
      %v4869 = vsel %vm4805, %v4773, %v4837
      %v4870 = vsel %vm4806, %v4774, %v4838
      %v4871 = vsel %vm4807, %v4775, %v4839
      %v4872 = vsel %vm4808, %v4776, %v4840
      %v4873 = vsel %vm4809, %v4777, %v4841
      %v4874 = vsel %vm4810, %v4778, %v4842
      %v4875 = vsel %vm4811, %v4779, %v4843
      %v4876 = vsel %vm4812, %v4780, %v4844
      %v4877 = vsel %vm4813, %v4781, %v4845
      %v4878 = vsel %vm4814, %v4782, %v4846
      %v4879 = vsel %vm4815, %v4783, %v4847
      %v4880 = vsel %vm4816, %v4784, %v4848
      %v4881 = vsel %vm4817, %v4785, %v4849
      %v4882 = vsel %vm4818, %v4786, %v4850
      %v4883 = vsel %vm4819, %v4787, %v4851
      %v4884 = vsel %vm4820, %v4788, %v4852
      %v4885 = vsel %vm4821, %v4789, %v4853
      %v4886 = vsel %vm4822, %v4790, %v4854
      %v4887 = vsel %vm4823, %v4791, %v4855
      %v4888 = vpack.c.bf16 %v4856, %v4856
      %v4889 = vpack.c.bf16 %v4857, %v4857
      %v4890 = vpack.c.bf16 %v4858, %v4858
      %v4891 = vpack.c.bf16 %v4859, %v4859
      %v4892 = vpack.c.bf16 %v4860, %v4860
      %v4893 = vpack.c.bf16 %v4861, %v4861
      %v4894 = vpack.c.bf16 %v4862, %v4862
      %v4895 = vpack.c.bf16 %v4863, %v4863
      %v4896 = vpack.c.bf16 %v4864, %v4864
      %v4897 = vpack.c.bf16 %v4865, %v4865
      %v4898 = vpack.c.bf16 %v4866, %v4866
      %v4899 = vpack.c.bf16 %v4867, %v4867
      %v4900 = vpack.c.bf16 %v4868, %v4868
      %v4901 = vpack.c.bf16 %v4869, %v4869
      %v4902 = vpack.c.bf16 %v4870, %v4870
      %v4903 = vpack.c.bf16 %v4871, %v4871
      %v4904 = vpack.c.bf16 %v4872, %v4872
      %v4905 = vpack.c.bf16 %v4873, %v4873
      %v4906 = vpack.c.bf16 %v4874, %v4874
      %v4907 = vpack.c.bf16 %v4875, %v4875
      %v4908 = vpack.c.bf16 %v4876, %v4876
      %v4909 = vpack.c.bf16 %v4877, %v4877
      %v4910 = vpack.c.bf16 %v4878, %v4878
      %v4911 = vpack.c.bf16 %v4879, %v4879
      %v4912 = vpack.c.bf16 %v4880, %v4880
      %v4913 = vpack.c.bf16 %v4881, %v4881
      %v4914 = vpack.c.bf16 %v4882, %v4882
      %v4915 = vpack.c.bf16 %v4883, %v4883
      %v4916 = vpack.c.bf16 %v4884, %v4884
      %v4917 = vpack.c.bf16 %v4885, %v4885
      %v4918 = vpack.c.bf16 %v4886, %v4886
      %v4919 = vpack.c.bf16 %v4887, %v4887
      %v4952 = vunpack.c.l.b16 %v4888
      %v4953 = vunpack.c.l.b16 %v4889
      %v4954 = vunpack.c.l.b16 %v4890
      %v4955 = vunpack.c.l.b16 %v4891
      %v4956 = vunpack.c.l.b16 %v4892
      %v4957 = vunpack.c.l.b16 %v4893
      %v4958 = vunpack.c.l.b16 %v4894
      %v4959 = vunpack.c.l.b16 %v4895
      %v4960 = vunpack.c.l.b16 %v4896
      %v4961 = vunpack.c.l.b16 %v4897
      %v4962 = vunpack.c.l.b16 %v4898
      %v4963 = vunpack.c.l.b16 %v4899
      %v4964 = vunpack.c.l.b16 %v4900
      %v4965 = vunpack.c.l.b16 %v4901
      %v4966 = vunpack.c.l.b16 %v4902
      %v4967 = vunpack.c.l.b16 %v4903
      %v4968 = vunpack.c.l.b16 %v4904
      %v4969 = vunpack.c.l.b16 %v4905
      %v4970 = vunpack.c.l.b16 %v4906
      %v4971 = vunpack.c.l.b16 %v4907
      %v4972 = vunpack.c.l.b16 %v4908
      %v4973 = vunpack.c.l.b16 %v4909
      %v4974 = vunpack.c.l.b16 %v4910
      %v4975 = vunpack.c.l.b16 %v4911
      %v4976 = vunpack.c.l.b16 %v4912
      %v4977 = vunpack.c.l.b16 %v4913
      %v4978 = vunpack.c.l.b16 %v4914
      %v4979 = vunpack.c.l.b16 %v4915
      %v4980 = vunpack.c.l.b16 %v4916
      %v4981 = vunpack.c.l.b16 %v4917
      %v4982 = vunpack.c.l.b16 %v4918
      %v4983 = vunpack.c.l.b16 %v4919
      %v4984 = vpack.c.b16 %v4952, %v4952
      %v4985 = vpack.c.b16 %v4953, %v4953
      %v4986 = vpack.c.b16 %v4954, %v4954
      %v4987 = vpack.c.b16 %v4955, %v4955
      %v4988 = vpack.c.b16 %v4956, %v4956
      %v4989 = vpack.c.b16 %v4957, %v4957
      %v4990 = vpack.c.b16 %v4958, %v4958
      %v4991 = vpack.c.b16 %v4959, %v4959
      %v4992 = vpack.c.b16 %v4960, %v4960
      %v4993 = vpack.c.b16 %v4961, %v4961
      %v4994 = vpack.c.b16 %v4962, %v4962
      %v4995 = vpack.c.b16 %v4963, %v4963
      %v4996 = vpack.c.b16 %v4964, %v4964
      %v4997 = vpack.c.b16 %v4965, %v4965
      %v4998 = vpack.c.b16 %v4966, %v4966
      %v4999 = vpack.c.b16 %v4967, %v4967
      %v5000 = vpack.c.b16 %v4968, %v4968
      %v5001 = vpack.c.b16 %v4969, %v4969
      %v5002 = vpack.c.b16 %v4970, %v4970
      %v5003 = vpack.c.b16 %v4971, %v4971
      %v5004 = vpack.c.b16 %v4972, %v4972
      %v5005 = vpack.c.b16 %v4973, %v4973
      %v5006 = vpack.c.b16 %v4974, %v4974
      %v5007 = vpack.c.b16 %v4975, %v4975
      %v5008 = vpack.c.b16 %v4976, %v4976
      %v5009 = vpack.c.b16 %v4977, %v4977
      %v5010 = vpack.c.b16 %v4978, %v4978
      %v5011 = vpack.c.b16 %v4979, %v4979
      %v5012 = vpack.c.b16 %v4980, %v4980
      %v5013 = vpack.c.b16 %v4981, %v4981
      %v5014 = vpack.c.b16 %v4982, %v4982
      %v5015 = vpack.c.b16 %v4983, %v4983
      %v5016 = vunpack.c.l.b16 %v4984
      %v5017 = vunpack.c.l.b16 %v4985
      %v5018 = vunpack.c.l.b16 %v4986
      %v5019 = vunpack.c.l.b16 %v4987
      %v5020 = vunpack.c.l.b16 %v4988
      %v5021 = vunpack.c.l.b16 %v4989
      %v5022 = vunpack.c.l.b16 %v4990
      %v5023 = vunpack.c.l.b16 %v4991
      %v5024 = vunpack.c.l.b16 %v4992
      %v5025 = vunpack.c.l.b16 %v4993
      %v5026 = vunpack.c.l.b16 %v4994
      %v5027 = vunpack.c.l.b16 %v4995
      %v5028 = vunpack.c.l.b16 %v4996
      %v5029 = vunpack.c.l.b16 %v4997
      %v5030 = vunpack.c.l.b16 %v4998
      %v5031 = vunpack.c.l.b16 %v4999
      %v5032 = vunpack.c.l.b16 %v5000
      %v5033 = vunpack.c.l.b16 %v5001
      %v5034 = vunpack.c.l.b16 %v5002
      %v5035 = vunpack.c.l.b16 %v5003
      %v5036 = vunpack.c.l.b16 %v5004
      %v5037 = vunpack.c.l.b16 %v5005
      %v5038 = vunpack.c.l.b16 %v5006
      %v5039 = vunpack.c.l.b16 %v5007
      %v5040 = vunpack.c.l.b16 %v5008
      %v5041 = vunpack.c.l.b16 %v5009
      %v5042 = vunpack.c.l.b16 %v5010
      %v5043 = vunpack.c.l.b16 %v5011
      %v5044 = vunpack.c.l.b16 %v5012
      %v5045 = vunpack.c.l.b16 %v5013
      %v5046 = vunpack.c.l.b16 %v5014
      %v5047 = vunpack.c.l.b16 %v5015
      %v5048 = vrot.slane %v5016, 7
      %v5049 = vrot.slane %v5017, 6
      %vm5050 = vcmask 1042434
      %v5051 = vsel %vm5050, %v5049, %v5048
      %v5052 = vrot.slane %v5018, 5
      %vm5053 = vcmask 1043459
      %v5054 = vsel %vm5053, %v5052, %v5051
      %v5055 = vrot.slane %v5019, 4
      %vm5056 = vcmask 1044484
      %v5057 = vsel %vm5056, %v5055, %v5054
      %v5058 = vrot.slane %v5020, 7
      %v5059 = vrot.slane %v5021, 6
      %v5060 = vsel %vm5050, %v5059, %v5058
      %v5061 = vrot.slane %v5022, 5
      %v5062 = vsel %vm5053, %v5061, %v5060
      %v5063 = vrot.slane %v5023, 4
      %v5064 = vsel %vm5056, %v5063, %v5062
      %v5065 = vrot.slane %v5024, 7
      %v5066 = vrot.slane %v5025, 6
      %v5067 = vsel %vm5050, %v5066, %v5065
      %v5068 = vrot.slane %v5026, 5
      %v5069 = vsel %vm5053, %v5068, %v5067
      %v5070 = vrot.slane %v5027, 4
      %v5071 = vsel %vm5056, %v5070, %v5069
      %v5072 = vrot.slane %v5028, 7
      %v5073 = vrot.slane %v5029, 6
      %v5074 = vsel %vm5050, %v5073, %v5072
      %v5075 = vrot.slane %v5030, 5
      %v5076 = vsel %vm5053, %v5075, %v5074
      %v5077 = vrot.slane %v5031, 4
      %v5078 = vsel %vm5056, %v5077, %v5076
      %v5079 = vrot.slane %v5032, 7
      %v5080 = vrot.slane %v5033, 6
      %v5081 = vsel %vm5050, %v5080, %v5079
      %v5082 = vrot.slane %v5034, 5
      %v5083 = vsel %vm5053, %v5082, %v5081
      %v5084 = vrot.slane %v5035, 4
      %v5085 = vsel %vm5056, %v5084, %v5083
      %v5086 = vrot.slane %v5036, 7
      %v5087 = vrot.slane %v5037, 6
      %v5088 = vsel %vm5050, %v5087, %v5086
      %v5089 = vrot.slane %v5038, 5
      %v5090 = vsel %vm5053, %v5089, %v5088
      %v5091 = vrot.slane %v5039, 4
      %v5092 = vsel %vm5056, %v5091, %v5090
      %v5093 = vrot.slane %v5040, 7
      %v5094 = vrot.slane %v5041, 6
      %v5095 = vsel %vm5050, %v5094, %v5093
      %v5096 = vrot.slane %v5042, 5
      %v5097 = vsel %vm5053, %v5096, %v5095
      %v5098 = vrot.slane %v5043, 4
      %v5099 = vsel %vm5056, %v5098, %v5097
      %v5100 = vrot.slane %v5044, 7
      %v5101 = vrot.slane %v5045, 6
      %v5102 = vsel %vm5050, %v5101, %v5100
      %v5103 = vrot.slane %v5046, 5
      %v5104 = vsel %vm5053, %v5103, %v5102
      %v5105 = vrot.slane %v5047, 4
      %v5106 = vsel %vm5056, %v5105, %v5104
      %v5107 = vpack.c.b16 %v5057, %v5057
      %v5108 = vpack.c.b16 %v5064, %v5064
      %v5109 = vpack.c.b16 %v5071, %v5071
      %v5110 = vpack.c.b16 %v5078, %v5078
      %v5111 = vpack.c.b16 %v5085, %v5085
      %v5112 = vpack.c.b16 %v5092, %v5092
      %v5113 = vpack.c.b16 %v5099, %v5099
      %v5114 = vpack.c.b16 %v5106, %v5106
      %s5123 = scalar_lea.vmem [#allocation3], 4
      %vm5124 = vcmask 518144
      %vm5125 = vsmask.f32 2306
      %vm5126 = vmand %vm5124, %vm5125
      %v5127 = vld [vmem:[%s5123] sm:$0x7]
      %v5128 = vsel %vm5126, %v5107, %v5127
      %5129 = vst [vmem:[%s5123] sm:$0x7] %v5128
      %v5130 = vld [vmem:[%s5123 + $0x4] sm:$0x7]
      %v5131 = vsel %vm5126, %v5108, %v5130
      %5132 = vst [vmem:[%s5123 + $0x4] sm:$0x7] %v5131
      %v5133 = vld [vmem:[%s5123 + $0x8] sm:$0x7]
      %v5134 = vsel %vm5126, %v5109, %v5133
      %5135 = vst [vmem:[%s5123 + $0x8] sm:$0x7] %v5134
      %v5136 = vld [vmem:[%s5123 + $0xc] sm:$0x7]
      %v5137 = vsel %vm5126, %v5110, %v5136
      %5138 = vst [vmem:[%s5123 + $0xc] sm:$0x7] %v5137
      %v5139 = vld [vmem:[%s5123 + $0x18] sm:$0x7]
      %v5140 = vsel %vm5126, %v5111, %v5139
      %5141 = vst [vmem:[%s5123 + $0x18] sm:$0x7] %v5140
      %v5142 = vld [vmem:[%s5123 + $0x1c] sm:$0x7]
      %v5143 = vsel %vm5126, %v5112, %v5142
      %5144 = vst [vmem:[%s5123 + $0x1c] sm:$0x7] %v5143
      %v5145 = vld [vmem:[%s5123 + $0x20] sm:$0x7]
      %v5146 = vsel %vm5126, %v5113, %v5145
      %5147 = vst [vmem:[%s5123 + $0x20] sm:$0x7] %v5146
      %v5148 = vld [vmem:[%s5123 + $0x24] sm:$0x7]
      %v5149 = vsel %vm5126, %v5114, %v5148
      %5150 = vst [vmem:[%s5123 + $0x24] sm:$0x7] %v5149
      %v5151 = vld [vmem:[#allocation3] sm:$0x3]
      %v5152 = vld [vmem:[#allocation3 + $0x4] sm:$0x3]
      %v5153 = vld [vmem:[#allocation3 + $0x8] sm:$0x3]
      %v5154 = vld [vmem:[#allocation3 + $0xc] sm:$0x3]
      %v5155 = vld [vmem:[#allocation3 + $0x18] sm:$0x3]
      %v5156 = vld [vmem:[#allocation3 + $0x1c] sm:$0x3]
      %v5157 = vld [vmem:[#allocation3 + $0x20] sm:$0x3]
      %v5158 = vld [vmem:[#allocation3 + $0x24] sm:$0x3]
      %v5159 = vld [vmem:[%s372] sm:$0xf]
      %v5160 = vld [vmem:[%s372 + $0x4] sm:$0xf]
      %v5161 = vld [vmem:[%s372 + $0x8] sm:$0xf]
      %v5162 = vld [vmem:[%s372 + $0xc] sm:$0xf]
      %v5163 = vld [vmem:[%s372 + $0x10] sm:$0xf]
      %v5164 = vld [vmem:[%s372 + $0x14] sm:$0xf]
      %v5165 = vld [vmem:[%s372 + $0x18] sm:$0xf]
      %v5166 = vld [vmem:[%s372 + $0x1c] sm:$0xf]
      %v5167 = vld [vmem:[#allocation3] sm:$0x7]
      %v5168 = vld [vmem:[#allocation3 + $0x4] sm:$0x7]
      %v5169 = vld [vmem:[#allocation3 + $0x8] sm:$0x7]
      %v5170 = vld [vmem:[#allocation3 + $0xc] sm:$0x7]
      %v5171 = vld [vmem:[#allocation3 + $0x18] sm:$0x7]
      %v5172 = vld [vmem:[#allocation3 + $0x1c] sm:$0x7]
      %v5173 = vld [vmem:[#allocation3 + $0x20] sm:$0x7]
      %v5174 = vld [vmem:[#allocation3 + $0x24] sm:$0x7]
      %v5184 = vunpack.c.l.s4 1983009808
      %v5185 = vunpack.c.0.s8 %v5184
      %v5186 = vlaneseq
      %v5187 = vshrl.u32 %v5186, 7
      %v5188 = vsub.s32 %v5185, %v5187
      %v5189 = vrot.slane %v5167, %v5188
      %v5190 = vcombine.high %v5189, %v5189
      %v5192 = vunpack.c.l.s4 1983009808
      %v5193 = vunpack.c.0.s8 %v5192
      %v5194 = vlaneseq
      %v5195 = vshrl.u32 %v5194, 7
      %v5196 = vsub.s32 %v5193, %v5195
      %v5197 = vrot.slane %v5168, %v5196
      %v5198 = vcombine.high %v5197, %v5197
      %v5200 = vunpack.c.l.s4 1983009808
      %v5201 = vunpack.c.0.s8 %v5200
      %v5202 = vlaneseq
      %v5203 = vshrl.u32 %v5202, 7
      %v5204 = vsub.s32 %v5201, %v5203
      %v5205 = vrot.slane %v5169, %v5204
      %v5206 = vcombine.high %v5205, %v5205
      %v5208 = vunpack.c.l.s4 1983009808
      %v5209 = vunpack.c.0.s8 %v5208
      %v5210 = vlaneseq
      %v5211 = vshrl.u32 %v5210, 7
      %v5212 = vsub.s32 %v5209, %v5211
      %v5213 = vrot.slane %v5170, %v5212
      %v5214 = vcombine.high %v5213, %v5213
      %v5216 = vunpack.c.l.s4 1983009808
      %v5217 = vunpack.c.0.s8 %v5216
      %v5218 = vlaneseq
      %v5219 = vshrl.u32 %v5218, 7
      %v5220 = vsub.s32 %v5217, %v5219
      %v5221 = vrot.slane %v5171, %v5220
      %v5222 = vcombine.high %v5221, %v5221
      %v5224 = vunpack.c.l.s4 1983009808
      %v5225 = vunpack.c.0.s8 %v5224
      %v5226 = vlaneseq
      %v5227 = vshrl.u32 %v5226, 7
      %v5228 = vsub.s32 %v5225, %v5227
      %v5229 = vrot.slane %v5172, %v5228
      %v5230 = vcombine.high %v5229, %v5229
      %v5232 = vunpack.c.l.s4 1983009808
      %v5233 = vunpack.c.0.s8 %v5232
      %v5234 = vlaneseq
      %v5235 = vshrl.u32 %v5234, 7
      %v5236 = vsub.s32 %v5233, %v5235
      %v5237 = vrot.slane %v5173, %v5236
      %v5238 = vcombine.high %v5237, %v5237
      %v5240 = vunpack.c.l.s4 1983009808
      %v5241 = vunpack.c.0.s8 %v5240
      %v5242 = vlaneseq
      %v5243 = vshrl.u32 %v5242, 7
      %v5244 = vsub.s32 %v5241, %v5243
      %v5245 = vrot.slane %v5174, %v5244
      %v5246 = vcombine.high %v5245, %v5245
      %vm5247 = vsmask.f32 1280
      %vm5248 = vsmask.f32 3336
      %vm5249 = vmor %vm5247, %vm5248
      %vm5250 = vsmask.f32 5392
      %vm5251 = vmor %vm5249, %vm5250
      %vm5252 = vsmask.f32 7448
      %vm5253 = vmor %vm5251, %vm5252
      %v5255 = vshrl.u32 %v5189, 16
      %v5257 = vrot.slane %v5255, 6
      %v5258 = vshll.u32 %v5189, 16
      %v5260 = vrot.slane %v5258, 7
      %v5261 = vor.u32 %v5257, %v5260
      %v5262 = vrot.slane %v5261, 2
      %v5264 = vshll.u32 %v5190, 16
      %v5266 = vrot.slane %v5264, 7
      %v5267 = vsel %vm5253, %v5262, %v5266
      %v5269 = vshrl.u32 %v5197, 16
      %v5271 = vrot.slane %v5269, 6
      %v5272 = vshll.u32 %v5197, 16
      %v5274 = vrot.slane %v5272, 7
      %v5275 = vor.u32 %v5271, %v5274
      %v5276 = vrot.slane %v5275, 2
      %v5278 = vshll.u32 %v5198, 16
      %v5280 = vrot.slane %v5278, 7
      %v5281 = vsel %vm5253, %v5276, %v5280
      %v5283 = vshrl.u32 %v5205, 16
      %v5285 = vrot.slane %v5283, 6
      %v5286 = vshll.u32 %v5205, 16
      %v5288 = vrot.slane %v5286, 7
      %v5289 = vor.u32 %v5285, %v5288
      %v5290 = vrot.slane %v5289, 2
      %v5292 = vshll.u32 %v5206, 16
      %v5294 = vrot.slane %v5292, 7
      %v5295 = vsel %vm5253, %v5290, %v5294
      %v5297 = vshrl.u32 %v5213, 16
      %v5299 = vrot.slane %v5297, 6
      %v5300 = vshll.u32 %v5213, 16
      %v5302 = vrot.slane %v5300, 7
      %v5303 = vor.u32 %v5299, %v5302
      %v5304 = vrot.slane %v5303, 2
      %v5306 = vshll.u32 %v5214, 16
      %v5308 = vrot.slane %v5306, 7
      %v5309 = vsel %vm5253, %v5304, %v5308
      %v5311 = vshrl.u32 %v5221, 16
      %v5313 = vrot.slane %v5311, 6
      %v5314 = vshll.u32 %v5221, 16
      %v5316 = vrot.slane %v5314, 7
      %v5317 = vor.u32 %v5313, %v5316
      %v5318 = vrot.slane %v5317, 2
      %v5320 = vshll.u32 %v5222, 16
      %v5322 = vrot.slane %v5320, 7
      %v5323 = vsel %vm5253, %v5318, %v5322
      %v5325 = vshrl.u32 %v5229, 16
      %v5327 = vrot.slane %v5325, 6
      %v5328 = vshll.u32 %v5229, 16
      %v5330 = vrot.slane %v5328, 7
      %v5331 = vor.u32 %v5327, %v5330
      %v5332 = vrot.slane %v5331, 2
      %v5334 = vshll.u32 %v5230, 16
      %v5336 = vrot.slane %v5334, 7
      %v5337 = vsel %vm5253, %v5332, %v5336
      %v5339 = vshrl.u32 %v5237, 16
      %v5341 = vrot.slane %v5339, 6
      %v5342 = vshll.u32 %v5237, 16
      %v5344 = vrot.slane %v5342, 7
      %v5345 = vor.u32 %v5341, %v5344
      %v5346 = vrot.slane %v5345, 2
      %v5348 = vshll.u32 %v5238, 16
      %v5350 = vrot.slane %v5348, 7
      %v5351 = vsel %vm5253, %v5346, %v5350
      %v5353 = vshrl.u32 %v5245, 16
      %v5355 = vrot.slane %v5353, 6
      %v5356 = vshll.u32 %v5245, 16
      %v5358 = vrot.slane %v5356, 7
      %v5359 = vor.u32 %v5355, %v5358
      %v5360 = vrot.slane %v5359, 2
      %v5362 = vshll.u32 %v5246, 16
      %v5364 = vrot.slane %v5362, 7
      %v5365 = vsel %vm5253, %v5360, %v5364
      %v5366 = vld [vmem:[%s372 + $0x20] sm:$0xf]
      %v5367 = vld [vmem:[%s372 + $0x24] sm:$0xf]
      %v5368 = vld [vmem:[%s372 + $0x28] sm:$0xf]
      %v5369 = vld [vmem:[%s372 + $0x2c] sm:$0xf]
      %v5370 = vld [vmem:[%s372 + $0x30] sm:$0xf]
      %v5371 = vld [vmem:[%s372 + $0x34] sm:$0xf]
      %v5372 = vld [vmem:[%s372 + $0x38] sm:$0xf]
      %v5373 = vld [vmem:[%s372 + $0x3c] sm:$0xf]
      %v5374 = vcombine.low %v5267, %v5281
      %v5375 = vcombine.low %v5295, %v5309
      %v5377 = vunpack.c.l.s4 1983009808
      %v5378 = vunpack.c.0.s8 %v5377
      %v5379 = vlaneseq
      %v5380 = vshrl.u32 %v5379, 7
      %v5381 = vsub.s32 %v5378, %v5380
      %v5382 = vrot.slane %v5374, %v5381
      %v5384 = vunpack.c.l.s4 1983009808
      %v5385 = vunpack.c.0.s8 %v5384
      %v5386 = vlaneseq
      %v5387 = vshrl.u32 %v5386, 7
      %v5388 = vsub.s32 %v5385, %v5387
      %v5389 = vrot.slane %v5375, %v5388
      %v5390 = vcombine.low %v5382, %v5389
      %v5391 = vcombine.low %v5323, %v5337
      %v5392 = vcombine.low %v5351, %v5365
      %v5394 = vunpack.c.l.s4 1983009808
      %v5395 = vunpack.c.0.s8 %v5394
      %v5396 = vlaneseq
      %v5397 = vshrl.u32 %v5396, 7
      %v5398 = vsub.s32 %v5395, %v5397
      %v5399 = vrot.slane %v5391, %v5398
      %v5401 = vunpack.c.l.s4 1983009808
      %v5402 = vunpack.c.0.s8 %v5401
      %v5403 = vlaneseq
      %v5404 = vshrl.u32 %v5403, 7
      %v5405 = vsub.s32 %v5402, %v5404
      %v5406 = vrot.slane %v5392, %v5405
      %v5407 = vcombine.low %v5399, %v5406
      %v5416 = vunpack.c.l.b16 %v5366
      %v5417 = vunpack.c.l.b16 %v5367
      %v5418 = vunpack.c.l.b16 %v5368
      %v5419 = vunpack.c.l.b16 %v5369
      %v5420 = vunpack.c.l.b16 %v5370
      %v5421 = vunpack.c.l.b16 %v5371
      %v5422 = vunpack.c.l.b16 %v5372
      %v5423 = vunpack.c.l.b16 %v5373
      %v5424 = vpack.c.b16 %v5417, %v5416
      %v5425 = vpack.c.b16 %v5419, %v5418
      %v5426 = vpack.c.b16 %v5421, %v5420
      %v5427 = vpack.c.b16 %v5423, %v5422
      %v5433 = vsel %vm1507, %v5390, 0
      %v5436 = vsel %vm1507, %v5407, 0
      %5438 = vmatprep.subr.bf16.mxu0 0
      %5439 = vmatpush1.bf16.msra.mxu0 0
      %5440 = vmatprep.subr.bf16.mxu0 0
      %5441 = vmatpush1.bf16.msra.mxu0 0
      %5442 = vmatprep.subr.bf16.mxu0 0
      %5443 = vmatpush1.bf16.msra.mxu0 0
      %5444 = vmatprep.subr.bf16.mxu0 0
      %5445 = vmatpush1.bf16.msra.mxu0 0
      %5446 = vmatprep.subr.bf16.mxu0 0
      %5447 = vmatpush1.bf16.msra.mxu0 %v5427
      %5448 = vmatprep.subr.bf16.mxu0 0
      %5449 = vmatpush1.bf16.msra.mxu0 %v5426
      %5450 = vmatprep.subr.bf16.mxu0 0
      %5451 = vmatpush1.bf16.msra.mxu0 %v5425
      %5452 = vmatprep.subr.bf16.mxu0 0
      %5453 = vmatpush1.bf16.msra.mxu0 %v5424
      %5454 = vmatprep.subr.bf16.mxu0 0
      %5455 = vmatpush2.bf16.msra.mxu0 0
      %5456 = vmatprep.subr.bf16.mxu0 0
      %5457 = vmatpush2.bf16.msra.mxu0 0
      %5458 = vmatprep.subr.bf16.mxu0 0
      %5459 = vmatpush2.bf16.msra.mxu0 0
      %5460 = vmatprep.subr.bf16.mxu0 0
      %5461 = vmatpush2.bf16.msra.mxu0 0
      %5462 = vmatprep.subr.bf16.mxu0 0
      %5463 = vmatpush2.bf16.msra.mxu0 0
      %5464 = vmatprep.subr.bf16.mxu0 0
      %5465 = vmatpush2.bf16.msra.mxu0 0
      %5466 = vmatprep.subr.bf16.mxu0 0
      %5467 = vmatpush2.bf16.msra.mxu0 0
      %5468 = vmatprep.subr.bf16.mxu0 0
      %5469 = vmatpush2.bf16.msra.mxu0 0
      %5470 = vmatprep.mubr.bf16.mxu0 0
      %5471 = vmatmul.mubr.bf16.gmra.mxu0 %v5433
      %v5472 = vpop.f32.mrf.mxu0
      %v5473 = vadd.f32 0.0, %v5472
      %v5474 = vpop.f32.mrf.mxu0
      %v5475 = vpop.f32.mrf.mxu0
      %v5476 = vadd.f32 0.0, %v5475
      %v5477 = vpop.f32.mrf.mxu0
      %5478 = vmatprep.mubr.bf16.mxu0 0
      %5479 = vmatmul.mubr.bf16.gmra.mxu0 %v5436
      %v5480 = vpop.f32.mrf.mxu0
      %v5481 = vadd.f32 0.0, %v5480
      %v5482 = vpop.f32.mrf.mxu0
      %v5483 = vpop.f32.mrf.mxu0
      %v5484 = vadd.f32 0.0, %v5483
      %v5485 = vpop.f32.mrf.mxu0
      %5486 = vdwg.mxu0
      %v5495 = vcombine.low %v5151, %v5152
      %v5496 = vcombine.low %v5153, %v5154
      %v5498 = vunpack.c.l.s4 1983009808
      %v5499 = vunpack.c.0.s8 %v5498
      %v5500 = vlaneseq
      %v5501 = vshrl.u32 %v5500, 7
      %v5502 = vsub.s32 %v5499, %v5501
      %v5503 = vrot.slane %v5495, %v5502
      %v5505 = vunpack.c.l.s4 1983009808
      %v5506 = vunpack.c.0.s8 %v5505
      %v5507 = vlaneseq
      %v5508 = vshrl.u32 %v5507, 7
      %v5509 = vsub.s32 %v5506, %v5508
      %v5510 = vrot.slane %v5496, %v5509
      %v5511 = vcombine.low %v5503, %v5510
      %v5512 = vcombine.low %v5155, %v5156
      %v5513 = vcombine.low %v5157, %v5158
      %v5515 = vunpack.c.l.s4 1983009808
      %v5516 = vunpack.c.0.s8 %v5515
      %v5517 = vlaneseq
      %v5518 = vshrl.u32 %v5517, 7
      %v5519 = vsub.s32 %v5516, %v5518
      %v5520 = vrot.slane %v5512, %v5519
      %v5522 = vunpack.c.l.s4 1983009808
      %v5523 = vunpack.c.0.s8 %v5522
      %v5524 = vlaneseq
      %v5525 = vshrl.u32 %v5524, 7
      %v5526 = vsub.s32 %v5523, %v5525
      %v5527 = vrot.slane %v5513, %v5526
      %v5528 = vcombine.low %v5520, %v5527
      %v5537 = vunpack.c.l.b16 %v5159
      %v5538 = vunpack.c.l.b16 %v5160
      %v5539 = vunpack.c.l.b16 %v5161
      %v5540 = vunpack.c.l.b16 %v5162
      %v5541 = vunpack.c.l.b16 %v5163
      %v5542 = vunpack.c.l.b16 %v5164
      %v5543 = vunpack.c.l.b16 %v5165
      %v5544 = vunpack.c.l.b16 %v5166
      %v5545 = vpack.c.b16 %v5538, %v5537
      %v5546 = vpack.c.b16 %v5540, %v5539
      %v5547 = vpack.c.b16 %v5542, %v5541
      %v5548 = vpack.c.b16 %v5544, %v5543
      %v5554 = vsel %vm1507, %v5511, 0
      %v5557 = vsel %vm1507, %v5528, 0
      %5559 = vmatprep.subr.bf16.mxu0 0
      %5560 = vmatpush1.bf16.msra.mxu0 0
      %5561 = vmatprep.subr.bf16.mxu0 0
      %5562 = vmatpush1.bf16.msra.mxu0 0
      %5563 = vmatprep.subr.bf16.mxu0 0
      %5564 = vmatpush1.bf16.msra.mxu0 0
      %5565 = vmatprep.subr.bf16.mxu0 0
      %5566 = vmatpush1.bf16.msra.mxu0 0
      %5567 = vmatprep.subr.bf16.mxu0 0
      %5568 = vmatpush1.bf16.msra.mxu0 %v5548
      %5569 = vmatprep.subr.bf16.mxu0 0
      %5570 = vmatpush1.bf16.msra.mxu0 %v5547
      %5571 = vmatprep.subr.bf16.mxu0 0
      %5572 = vmatpush1.bf16.msra.mxu0 %v5546
      %5573 = vmatprep.subr.bf16.mxu0 0
      %5574 = vmatpush1.bf16.msra.mxu0 %v5545
      %5575 = vmatprep.subr.bf16.mxu0 0
      %5576 = vmatpush2.bf16.msra.mxu0 0
      %5577 = vmatprep.subr.bf16.mxu0 0
      %5578 = vmatpush2.bf16.msra.mxu0 0
      %5579 = vmatprep.subr.bf16.mxu0 0
      %5580 = vmatpush2.bf16.msra.mxu0 0
      %5581 = vmatprep.subr.bf16.mxu0 0
      %5582 = vmatpush2.bf16.msra.mxu0 0
      %5583 = vmatprep.subr.bf16.mxu0 0
      %5584 = vmatpush2.bf16.msra.mxu0 0
      %5585 = vmatprep.subr.bf16.mxu0 0
      %5586 = vmatpush2.bf16.msra.mxu0 0
      %5587 = vmatprep.subr.bf16.mxu0 0
      %5588 = vmatpush2.bf16.msra.mxu0 0
      %5589 = vmatprep.subr.bf16.mxu0 0
      %5590 = vmatpush2.bf16.msra.mxu0 0
      %5591 = vmatprep.mubr.bf16.mxu0 0
      %5592 = vmatmul.mubr.bf16.gmra.mxu0 %v5554
      %v5593 = vpop.f32.mrf.mxu0
      %v5594 = vadd.f32 %v5473, %v5593
      %v5595 = vpop.f32.mrf.mxu0
      %v5596 = vpop.f32.mrf.mxu0
      %v5597 = vadd.f32 %v5476, %v5596
      %v5598 = vpop.f32.mrf.mxu0
      %5599 = vmatprep.mubr.bf16.mxu0 0
      %5600 = vmatmul.mubr.bf16.gmra.mxu0 %v5557
      %v5601 = vpop.f32.mrf.mxu0
      %v5602 = vadd.f32 %v5481, %v5601
      %v5603 = vpop.f32.mrf.mxu0
      %v5604 = vpop.f32.mrf.mxu0
      %v5605 = vadd.f32 %v5484, %v5604
      %v5606 = vpop.f32.mrf.mxu0
      %5607 = vdwg.mxu0
      %v5608 = vld [vmem:[#allocation3] sm:$0x6]
      %v5609 = vld [vmem:[#allocation3 + $0x4] sm:$0x6]
      %v5610 = vld [vmem:[#allocation3 + $0x8] sm:$0x6]
      %v5611 = vld [vmem:[#allocation3 + $0xc] sm:$0x6]
      %v5612 = vld [vmem:[#allocation3 + $0x18] sm:$0x6]
      %v5613 = vld [vmem:[#allocation3 + $0x1c] sm:$0x6]
      %v5614 = vld [vmem:[#allocation3 + $0x20] sm:$0x6]
      %v5615 = vld [vmem:[#allocation3 + $0x24] sm:$0x6]
      %v5625 = vunpack.c.l.s4 1983009808
      %v5626 = vunpack.c.0.s8 %v5625
      %v5627 = vlaneseq
      %v5628 = vshrl.u32 %v5627, 7
      %v5629 = vsub.s32 %v5626, %v5628
      %v5630 = vrot.slane %v5608, %v5629
      %v5631 = vcombine.high %v5630, %v5630
      %v5633 = vunpack.c.l.s4 1983009808
      %v5634 = vunpack.c.0.s8 %v5633
      %v5635 = vlaneseq
      %v5636 = vshrl.u32 %v5635, 7
      %v5637 = vsub.s32 %v5634, %v5636
      %v5638 = vrot.slane %v5609, %v5637
      %v5639 = vcombine.high %v5638, %v5638
      %v5641 = vunpack.c.l.s4 1983009808
      %v5642 = vunpack.c.0.s8 %v5641
      %v5643 = vlaneseq
      %v5644 = vshrl.u32 %v5643, 7
      %v5645 = vsub.s32 %v5642, %v5644
      %v5646 = vrot.slane %v5610, %v5645
      %v5647 = vcombine.high %v5646, %v5646
      %v5649 = vunpack.c.l.s4 1983009808
      %v5650 = vunpack.c.0.s8 %v5649
      %v5651 = vlaneseq
      %v5652 = vshrl.u32 %v5651, 7
      %v5653 = vsub.s32 %v5650, %v5652
      %v5654 = vrot.slane %v5611, %v5653
      %v5655 = vcombine.high %v5654, %v5654
      %v5657 = vunpack.c.l.s4 1983009808
      %v5658 = vunpack.c.0.s8 %v5657
      %v5659 = vlaneseq
      %v5660 = vshrl.u32 %v5659, 7
      %v5661 = vsub.s32 %v5658, %v5660
      %v5662 = vrot.slane %v5612, %v5661
      %v5663 = vcombine.high %v5662, %v5662
      %v5665 = vunpack.c.l.s4 1983009808
      %v5666 = vunpack.c.0.s8 %v5665
      %v5667 = vlaneseq
      %v5668 = vshrl.u32 %v5667, 7
      %v5669 = vsub.s32 %v5666, %v5668
      %v5670 = vrot.slane %v5613, %v5669
      %v5671 = vcombine.high %v5670, %v5670
      %v5673 = vunpack.c.l.s4 1983009808
      %v5674 = vunpack.c.0.s8 %v5673
      %v5675 = vlaneseq
      %v5676 = vshrl.u32 %v5675, 7
      %v5677 = vsub.s32 %v5674, %v5676
      %v5678 = vrot.slane %v5614, %v5677
      %v5679 = vcombine.high %v5678, %v5678
      %v5681 = vunpack.c.l.s4 1983009808
      %v5682 = vunpack.c.0.s8 %v5681
      %v5683 = vlaneseq
      %v5684 = vshrl.u32 %v5683, 7
      %v5685 = vsub.s32 %v5682, %v5684
      %v5686 = vrot.slane %v5615, %v5685
      %v5687 = vcombine.high %v5686, %v5686
      %vm5688 = vcmask 1040384
      %vm5689 = vcmask 1042434
      %vm5690 = vmor %vm5688, %vm5689
      %vm5691 = vcmask 1044484
      %vm5692 = vmor %vm5690, %vm5691
      %vm5693 = vcmask 1046534
      %vm5694 = vmor %vm5692, %vm5693
      %v5695 = vrot.slane %v5630, 7
      %v5696 = vrot.slane %v5695, 2
      %v5697 = vrot.slane %v5631, 7
      %v5698 = vsel %vm5694, %v5696, %v5697
      %v5699 = vrot.slane %v5638, 7
      %v5700 = vrot.slane %v5699, 2
      %v5701 = vrot.slane %v5639, 7
      %v5702 = vsel %vm5694, %v5700, %v5701
      %v5703 = vrot.slane %v5646, 7
      %v5704 = vrot.slane %v5703, 2
      %v5705 = vrot.slane %v5647, 7
      %v5706 = vsel %vm5694, %v5704, %v5705
      %v5707 = vrot.slane %v5654, 7
      %v5708 = vrot.slane %v5707, 2
      %v5709 = vrot.slane %v5655, 7
      %v5710 = vsel %vm5694, %v5708, %v5709
      %v5711 = vrot.slane %v5662, 7
      %v5712 = vrot.slane %v5711, 2
      %v5713 = vrot.slane %v5663, 7
      %v5714 = vsel %vm5694, %v5712, %v5713
      %v5715 = vrot.slane %v5670, 7
      %v5716 = vrot.slane %v5715, 2
      %v5717 = vrot.slane %v5671, 7
      %v5718 = vsel %vm5694, %v5716, %v5717
      %v5719 = vrot.slane %v5678, 7
      %v5720 = vrot.slane %v5719, 2
      %v5721 = vrot.slane %v5679, 7
      %v5722 = vsel %vm5694, %v5720, %v5721
      %v5723 = vrot.slane %v5686, 7
      %v5724 = vrot.slane %v5723, 2
      %v5725 = vrot.slane %v5687, 7
      %v5726 = vsel %vm5694, %v5724, %v5725
      %v5727 = vld [vmem:[%s372 + $0x40] sm:$0xf]
      %v5728 = vld [vmem:[%s372 + $0x44] sm:$0xf]
      %v5729 = vld [vmem:[%s372 + $0x48] sm:$0xf]
      %v5730 = vld [vmem:[%s372 + $0x4c] sm:$0xf]
      %v5731 = vld [vmem:[%s372 + $0x50] sm:$0xf]
      %v5732 = vld [vmem:[%s372 + $0x54] sm:$0xf]
      %v5733 = vld [vmem:[%s372 + $0x58] sm:$0xf]
      %v5734 = vld [vmem:[%s372 + $0x5c] sm:$0xf]
      %v5735 = vcombine.low %v5698, %v5702
      %v5736 = vcombine.low %v5706, %v5710
      %v5738 = vunpack.c.l.s4 1983009808
      %v5739 = vunpack.c.0.s8 %v5738
      %v5740 = vlaneseq
      %v5741 = vshrl.u32 %v5740, 7
      %v5742 = vsub.s32 %v5739, %v5741
      %v5743 = vrot.slane %v5735, %v5742
      %v5745 = vunpack.c.l.s4 1983009808
      %v5746 = vunpack.c.0.s8 %v5745
      %v5747 = vlaneseq
      %v5748 = vshrl.u32 %v5747, 7
      %v5749 = vsub.s32 %v5746, %v5748
      %v5750 = vrot.slane %v5736, %v5749
      %v5751 = vcombine.low %v5743, %v5750
      %v5752 = vcombine.low %v5714, %v5718
      %v5753 = vcombine.low %v5722, %v5726
      %v5755 = vunpack.c.l.s4 1983009808
      %v5756 = vunpack.c.0.s8 %v5755
      %v5757 = vlaneseq
      %v5758 = vshrl.u32 %v5757, 7
      %v5759 = vsub.s32 %v5756, %v5758
      %v5760 = vrot.slane %v5752, %v5759
      %v5762 = vunpack.c.l.s4 1983009808
      %v5763 = vunpack.c.0.s8 %v5762
      %v5764 = vlaneseq
      %v5765 = vshrl.u32 %v5764, 7
      %v5766 = vsub.s32 %v5763, %v5765
      %v5767 = vrot.slane %v5753, %v5766
      %v5768 = vcombine.low %v5760, %v5767
      %v5777 = vunpack.c.l.b16 %v5727
      %v5778 = vunpack.c.l.b16 %v5728
      %v5779 = vunpack.c.l.b16 %v5729
      %v5780 = vunpack.c.l.b16 %v5730
      %v5781 = vunpack.c.l.b16 %v5731
      %v5782 = vunpack.c.l.b16 %v5732
      %v5783 = vunpack.c.l.b16 %v5733
      %v5784 = vunpack.c.l.b16 %v5734
      %v5785 = vpack.c.b16 %v5778, %v5777
      %v5786 = vpack.c.b16 %v5780, %v5779
      %v5787 = vpack.c.b16 %v5782, %v5781
      %v5788 = vpack.c.b16 %v5784, %v5783
      %v5794 = vsel %vm1507, %v5751, 0
      %v5797 = vsel %vm1507, %v5768, 0
      %5799 = vmatprep.subr.bf16.mxu0 0
      %5800 = vmatpush1.bf16.msra.mxu0 0
      %5801 = vmatprep.subr.bf16.mxu0 0
      %5802 = vmatpush1.bf16.msra.mxu0 0
      %5803 = vmatprep.subr.bf16.mxu0 0
      %5804 = vmatpush1.bf16.msra.mxu0 0
      %5805 = vmatprep.subr.bf16.mxu0 0
      %5806 = vmatpush1.bf16.msra.mxu0 0
      %5807 = vmatprep.subr.bf16.mxu0 0
      %5808 = vmatpush1.bf16.msra.mxu0 %v5788
      %5809 = vmatprep.subr.bf16.mxu0 0
      %5810 = vmatpush1.bf16.msra.mxu0 %v5787
      %5811 = vmatprep.subr.bf16.mxu0 0
      %5812 = vmatpush1.bf16.msra.mxu0 %v5786
      %5813 = vmatprep.subr.bf16.mxu0 0
      %5814 = vmatpush1.bf16.msra.mxu0 %v5785
      %5815 = vmatprep.subr.bf16.mxu0 0
      %5816 = vmatpush2.bf16.msra.mxu0 0
      %5817 = vmatprep.subr.bf16.mxu0 0
      %5818 = vmatpush2.bf16.msra.mxu0 0
      %5819 = vmatprep.subr.bf16.mxu0 0
      %5820 = vmatpush2.bf16.msra.mxu0 0
      %5821 = vmatprep.subr.bf16.mxu0 0
      %5822 = vmatpush2.bf16.msra.mxu0 0
      %5823 = vmatprep.subr.bf16.mxu0 0
      %5824 = vmatpush2.bf16.msra.mxu0 0
      %5825 = vmatprep.subr.bf16.mxu0 0
      %5826 = vmatpush2.bf16.msra.mxu0 0
      %5827 = vmatprep.subr.bf16.mxu0 0
      %5828 = vmatpush2.bf16.msra.mxu0 0
      %5829 = vmatprep.subr.bf16.mxu0 0
      %5830 = vmatpush2.bf16.msra.mxu0 0
      %5831 = vmatprep.mubr.bf16.mxu0 0
      %5832 = vmatmul.mubr.bf16.gmra.mxu0 %v5794
      %v5833 = vpop.f32.mrf.mxu0
      %v5834 = vadd.f32 0.0, %v5833
      %v5835 = vpop.f32.mrf.mxu0
      %v5836 = vpop.f32.mrf.mxu0
      %v5837 = vadd.f32 0.0, %v5836
      %v5838 = vpop.f32.mrf.mxu0
      %5839 = vmatprep.mubr.bf16.mxu0 0
      %5840 = vmatmul.mubr.bf16.gmra.mxu0 %v5797
      %v5841 = vpop.f32.mrf.mxu0
      %v5842 = vadd.f32 0.0, %v5841
      %v5843 = vpop.f32.mrf.mxu0
      %v5844 = vpop.f32.mrf.mxu0
      %v5845 = vadd.f32 0.0, %v5844
      %v5846 = vpop.f32.mrf.mxu0
      %5847 = vdwg.mxu0
      %v5848 = vadd.f32 %v5594, %v5834
      %v5849 = vadd.f32 %v5597, %v5837
      %v5850 = vadd.f32 %v5602, %v5842
      %v5851 = vadd.f32 %v5605, %v5845
      %v5852 = vld [vmem:[%s5123] sm:$0x3]
      %v5853 = vld [vmem:[%s5123 + $0x4] sm:$0x3]
      %v5854 = vld [vmem:[%s5123 + $0x8] sm:$0x3]
      %v5855 = vld [vmem:[%s5123 + $0xc] sm:$0x3]
      %v5856 = vld [vmem:[%s5123 + $0x18] sm:$0x3]
      %v5857 = vld [vmem:[%s5123 + $0x1c] sm:$0x3]
      %v5858 = vld [vmem:[%s5123 + $0x20] sm:$0x3]
      %v5859 = vld [vmem:[%s5123 + $0x24] sm:$0x3]
      %v5860 = vld [vmem:[%s372 + $0x60] sm:$0xf]
      %v5861 = vld [vmem:[%s372 + $0x64] sm:$0xf]
      %v5862 = vld [vmem:[%s372 + $0x68] sm:$0xf]
      %v5863 = vld [vmem:[%s372 + $0x6c] sm:$0xf]
      %v5864 = vld [vmem:[%s372 + $0x70] sm:$0xf]
      %v5865 = vld [vmem:[%s372 + $0x74] sm:$0xf]
      %v5866 = vld [vmem:[%s372 + $0x78] sm:$0xf]
      %v5867 = vld [vmem:[%s372 + $0x7c] sm:$0xf]
      %v5876 = vcombine.low %v5852, %v5853
      %v5877 = vcombine.low %v5854, %v5855
      %v5879 = vunpack.c.l.s4 1983009808
      %v5880 = vunpack.c.0.s8 %v5879
      %v5881 = vlaneseq
      %v5882 = vshrl.u32 %v5881, 7
      %v5883 = vsub.s32 %v5880, %v5882
      %v5884 = vrot.slane %v5876, %v5883
      %v5886 = vunpack.c.l.s4 1983009808
      %v5887 = vunpack.c.0.s8 %v5886
      %v5888 = vlaneseq
      %v5889 = vshrl.u32 %v5888, 7
      %v5890 = vsub.s32 %v5887, %v5889
      %v5891 = vrot.slane %v5877, %v5890
      %v5892 = vcombine.low %v5884, %v5891
      %v5893 = vcombine.low %v5856, %v5857
      %v5894 = vcombine.low %v5858, %v5859
      %v5896 = vunpack.c.l.s4 1983009808
      %v5897 = vunpack.c.0.s8 %v5896
      %v5898 = vlaneseq
      %v5899 = vshrl.u32 %v5898, 7
      %v5900 = vsub.s32 %v5897, %v5899
      %v5901 = vrot.slane %v5893, %v5900
      %v5903 = vunpack.c.l.s4 1983009808
      %v5904 = vunpack.c.0.s8 %v5903
      %v5905 = vlaneseq
      %v5906 = vshrl.u32 %v5905, 7
      %v5907 = vsub.s32 %v5904, %v5906
      %v5908 = vrot.slane %v5894, %v5907
      %v5909 = vcombine.low %v5901, %v5908
      %v5918 = vunpack.c.l.b16 %v5860
      %v5919 = vunpack.c.l.b16 %v5861
      %v5920 = vunpack.c.l.b16 %v5862
      %v5921 = vunpack.c.l.b16 %v5863
      %v5922 = vunpack.c.l.b16 %v5864
      %v5923 = vunpack.c.l.b16 %v5865
      %v5924 = vunpack.c.l.b16 %v5866
      %v5925 = vunpack.c.l.b16 %v5867
      %v5926 = vpack.c.b16 %v5919, %v5918
      %v5927 = vpack.c.b16 %v5921, %v5920
      %v5928 = vpack.c.b16 %v5923, %v5922
      %v5929 = vpack.c.b16 %v5925, %v5924
      %v5935 = vsel %vm1507, %v5892, 0
      %v5938 = vsel %vm1507, %v5909, 0
      %5940 = vmatprep.subr.bf16.mxu0 0
      %5941 = vmatpush1.bf16.msra.mxu0 0
      %5942 = vmatprep.subr.bf16.mxu0 0
      %5943 = vmatpush1.bf16.msra.mxu0 0
      %5944 = vmatprep.subr.bf16.mxu0 0
      %5945 = vmatpush1.bf16.msra.mxu0 0
      %5946 = vmatprep.subr.bf16.mxu0 0
      %5947 = vmatpush1.bf16.msra.mxu0 0
      %5948 = vmatprep.subr.bf16.mxu0 0
      %5949 = vmatpush1.bf16.msra.mxu0 %v5929
      %5950 = vmatprep.subr.bf16.mxu0 0
      %5951 = vmatpush1.bf16.msra.mxu0 %v5928
      %5952 = vmatprep.subr.bf16.mxu0 0
      %5953 = vmatpush1.bf16.msra.mxu0 %v5927
      %5954 = vmatprep.subr.bf16.mxu0 0
      %5955 = vmatpush1.bf16.msra.mxu0 %v5926
      %5956 = vmatprep.subr.bf16.mxu0 0
      %5957 = vmatpush2.bf16.msra.mxu0 0
      %5958 = vmatprep.subr.bf16.mxu0 0
      %5959 = vmatpush2.bf16.msra.mxu0 0
      %5960 = vmatprep.subr.bf16.mxu0 0
      %5961 = vmatpush2.bf16.msra.mxu0 0
      %5962 = vmatprep.subr.bf16.mxu0 0
      %5963 = vmatpush2.bf16.msra.mxu0 0
      %5964 = vmatprep.subr.bf16.mxu0 0
      %5965 = vmatpush2.bf16.msra.mxu0 0
      %5966 = vmatprep.subr.bf16.mxu0 0
      %5967 = vmatpush2.bf16.msra.mxu0 0
      %5968 = vmatprep.subr.bf16.mxu0 0
      %5969 = vmatpush2.bf16.msra.mxu0 0
      %5970 = vmatprep.subr.bf16.mxu0 0
      %5971 = vmatpush2.bf16.msra.mxu0 0
      %5972 = vmatprep.mubr.bf16.mxu0 0
      %5973 = vmatmul.mubr.bf16.gmra.mxu0 %v5935
      %v5974 = vpop.f32.mrf.mxu0
      %v5975 = vadd.f32 0.0, %v5974
      %v5976 = vpop.f32.mrf.mxu0
      %v5977 = vpop.f32.mrf.mxu0
      %v5978 = vadd.f32 0.0, %v5977
      %v5979 = vpop.f32.mrf.mxu0
      %5980 = vmatprep.mubr.bf16.mxu0 0
      %5981 = vmatmul.mubr.bf16.gmra.mxu0 %v5938
      %v5982 = vpop.f32.mrf.mxu0
      %v5983 = vadd.f32 0.0, %v5982
      %v5984 = vpop.f32.mrf.mxu0
      %v5985 = vpop.f32.mrf.mxu0
      %v5986 = vadd.f32 0.0, %v5985
      %v5987 = vpop.f32.mrf.mxu0
      %5988 = vdwg.mxu0
      %v5989 = vadd.f32 %v5848, %v5975
      %v5990 = vadd.f32 %v5849, %v5978
      %v5991 = vadd.f32 %v5850, %v5983
      %v5992 = vadd.f32 %v5851, %v5986
      %v5993 = vld [vmem:[%s5123] sm:$0x7]
      %v5994 = vld [vmem:[%s5123 + $0x4] sm:$0x7]
      %v5995 = vld [vmem:[%s5123 + $0x8] sm:$0x7]
      %v5996 = vld [vmem:[%s5123 + $0xc] sm:$0x7]
      %v5997 = vld [vmem:[%s5123 + $0x18] sm:$0x7]
      %v5998 = vld [vmem:[%s5123 + $0x1c] sm:$0x7]
      %v5999 = vld [vmem:[%s5123 + $0x20] sm:$0x7]
      %v6000 = vld [vmem:[%s5123 + $0x24] sm:$0x7]
      %v6010 = vunpack.c.l.s4 1983009808
      %v6011 = vunpack.c.0.s8 %v6010
      %v6012 = vlaneseq
      %v6013 = vshrl.u32 %v6012, 7
      %v6014 = vsub.s32 %v6011, %v6013
      %v6015 = vrot.slane %v5993, %v6014
      %v6016 = vcombine.high %v6015, %v6015
      %v6018 = vunpack.c.l.s4 1983009808
      %v6019 = vunpack.c.0.s8 %v6018
      %v6020 = vlaneseq
      %v6021 = vshrl.u32 %v6020, 7
      %v6022 = vsub.s32 %v6019, %v6021
      %v6023 = vrot.slane %v5994, %v6022
      %v6024 = vcombine.high %v6023, %v6023
      %v6026 = vunpack.c.l.s4 1983009808
      %v6027 = vunpack.c.0.s8 %v6026
      %v6028 = vlaneseq
      %v6029 = vshrl.u32 %v6028, 7
      %v6030 = vsub.s32 %v6027, %v6029
      %v6031 = vrot.slane %v5995, %v6030
      %v6032 = vcombine.high %v6031, %v6031
      %v6034 = vunpack.c.l.s4 1983009808
      %v6035 = vunpack.c.0.s8 %v6034
      %v6036 = vlaneseq
      %v6037 = vshrl.u32 %v6036, 7
      %v6038 = vsub.s32 %v6035, %v6037
      %v6039 = vrot.slane %v5996, %v6038
      %v6040 = vcombine.high %v6039, %v6039
      %v6042 = vunpack.c.l.s4 1983009808
      %v6043 = vunpack.c.0.s8 %v6042
      %v6044 = vlaneseq
      %v6045 = vshrl.u32 %v6044, 7
      %v6046 = vsub.s32 %v6043, %v6045
      %v6047 = vrot.slane %v5997, %v6046
      %v6048 = vcombine.high %v6047, %v6047
      %v6050 = vunpack.c.l.s4 1983009808
      %v6051 = vunpack.c.0.s8 %v6050
      %v6052 = vlaneseq
      %v6053 = vshrl.u32 %v6052, 7
      %v6054 = vsub.s32 %v6051, %v6053
      %v6055 = vrot.slane %v5998, %v6054
      %v6056 = vcombine.high %v6055, %v6055
      %v6058 = vunpack.c.l.s4 1983009808
      %v6059 = vunpack.c.0.s8 %v6058
      %v6060 = vlaneseq
      %v6061 = vshrl.u32 %v6060, 7
      %v6062 = vsub.s32 %v6059, %v6061
      %v6063 = vrot.slane %v5999, %v6062
      %v6064 = vcombine.high %v6063, %v6063
      %v6066 = vunpack.c.l.s4 1983009808
      %v6067 = vunpack.c.0.s8 %v6066
      %v6068 = vlaneseq
      %v6069 = vshrl.u32 %v6068, 7
      %v6070 = vsub.s32 %v6067, %v6069
      %v6071 = vrot.slane %v6000, %v6070
      %v6072 = vcombine.high %v6071, %v6071
      %v6074 = vshrl.u32 %v6015, 16
      %v6076 = vrot.slane %v6074, 6
      %v6077 = vshll.u32 %v6015, 16
      %v6079 = vrot.slane %v6077, 7
      %v6080 = vor.u32 %v6076, %v6079
      %v6081 = vrot.slane %v6080, 2
      %v6083 = vshll.u32 %v6016, 16
      %v6085 = vrot.slane %v6083, 7
      %v6086 = vsel %vm5253, %v6081, %v6085
      %v6088 = vshrl.u32 %v6023, 16
      %v6090 = vrot.slane %v6088, 6
      %v6091 = vshll.u32 %v6023, 16
      %v6093 = vrot.slane %v6091, 7
      %v6094 = vor.u32 %v6090, %v6093
      %v6095 = vrot.slane %v6094, 2
      %v6097 = vshll.u32 %v6024, 16
      %v6099 = vrot.slane %v6097, 7
      %v6100 = vsel %vm5253, %v6095, %v6099
      %v6102 = vshrl.u32 %v6031, 16
      %v6104 = vrot.slane %v6102, 6
      %v6105 = vshll.u32 %v6031, 16
      %v6107 = vrot.slane %v6105, 7
      %v6108 = vor.u32 %v6104, %v6107
      %v6109 = vrot.slane %v6108, 2
      %v6111 = vshll.u32 %v6032, 16
      %v6113 = vrot.slane %v6111, 7
      %v6114 = vsel %vm5253, %v6109, %v6113
      %v6116 = vshrl.u32 %v6039, 16
      %v6118 = vrot.slane %v6116, 6
      %v6119 = vshll.u32 %v6039, 16
      %v6121 = vrot.slane %v6119, 7
      %v6122 = vor.u32 %v6118, %v6121
      %v6123 = vrot.slane %v6122, 2
      %v6125 = vshll.u32 %v6040, 16
      %v6127 = vrot.slane %v6125, 7
      %v6128 = vsel %vm5253, %v6123, %v6127
      %v6130 = vshrl.u32 %v6047, 16
      %v6132 = vrot.slane %v6130, 6
      %v6133 = vshll.u32 %v6047, 16
      %v6135 = vrot.slane %v6133, 7
      %v6136 = vor.u32 %v6132, %v6135
      %v6137 = vrot.slane %v6136, 2
      %v6139 = vshll.u32 %v6048, 16
      %v6141 = vrot.slane %v6139, 7
      %v6142 = vsel %vm5253, %v6137, %v6141
      %v6144 = vshrl.u32 %v6055, 16
      %v6146 = vrot.slane %v6144, 6
      %v6147 = vshll.u32 %v6055, 16
      %v6149 = vrot.slane %v6147, 7
      %v6150 = vor.u32 %v6146, %v6149
      %v6151 = vrot.slane %v6150, 2
      %v6153 = vshll.u32 %v6056, 16
      %v6155 = vrot.slane %v6153, 7
      %v6156 = vsel %vm5253, %v6151, %v6155
      %v6158 = vshrl.u32 %v6063, 16
      %v6160 = vrot.slane %v6158, 6
      %v6161 = vshll.u32 %v6063, 16
      %v6163 = vrot.slane %v6161, 7
      %v6164 = vor.u32 %v6160, %v6163
      %v6165 = vrot.slane %v6164, 2
      %v6167 = vshll.u32 %v6064, 16
      %v6169 = vrot.slane %v6167, 7
      %v6170 = vsel %vm5253, %v6165, %v6169
      %v6172 = vshrl.u32 %v6071, 16
      %v6174 = vrot.slane %v6172, 6
      %v6175 = vshll.u32 %v6071, 16
      %v6177 = vrot.slane %v6175, 7
      %v6178 = vor.u32 %v6174, %v6177
      %v6179 = vrot.slane %v6178, 2
      %v6181 = vshll.u32 %v6072, 16
      %v6183 = vrot.slane %v6181, 7
      %v6184 = vsel %vm5253, %v6179, %v6183
      %v6185 = vld [vmem:[%s372 + $0x80] sm:$0xf]
      %v6186 = vld [vmem:[%s372 + $0x84] sm:$0xf]
      %v6187 = vld [vmem:[%s372 + $0x88] sm:$0xf]
      %v6188 = vld [vmem:[%s372 + $0x8c] sm:$0xf]
      %v6189 = vld [vmem:[%s372 + $0x90] sm:$0xf]
      %v6190 = vld [vmem:[%s372 + $0x94] sm:$0xf]
      %v6191 = vld [vmem:[%s372 + $0x98] sm:$0xf]
      %v6192 = vld [vmem:[%s372 + $0x9c] sm:$0xf]
      %v6193 = vcombine.low %v6086, %v6100
      %v6194 = vcombine.low %v6114, %v6128
      %v6196 = vunpack.c.l.s4 1983009808
      %v6197 = vunpack.c.0.s8 %v6196
      %v6198 = vlaneseq
      %v6199 = vshrl.u32 %v6198, 7
      %v6200 = vsub.s32 %v6197, %v6199
      %v6201 = vrot.slane %v6193, %v6200
      %v6203 = vunpack.c.l.s4 1983009808
      %v6204 = vunpack.c.0.s8 %v6203
      %v6205 = vlaneseq
      %v6206 = vshrl.u32 %v6205, 7
      %v6207 = vsub.s32 %v6204, %v6206
      %v6208 = vrot.slane %v6194, %v6207
      %v6209 = vcombine.low %v6201, %v6208
      %v6210 = vcombine.low %v6142, %v6156
      %v6211 = vcombine.low %v6170, %v6184
      %v6213 = vunpack.c.l.s4 1983009808
      %v6214 = vunpack.c.0.s8 %v6213
      %v6215 = vlaneseq
      %v6216 = vshrl.u32 %v6215, 7
      %v6217 = vsub.s32 %v6214, %v6216
      %v6218 = vrot.slane %v6210, %v6217
      %v6220 = vunpack.c.l.s4 1983009808
      %v6221 = vunpack.c.0.s8 %v6220
      %v6222 = vlaneseq
      %v6223 = vshrl.u32 %v6222, 7
      %v6224 = vsub.s32 %v6221, %v6223
      %v6225 = vrot.slane %v6211, %v6224
      %v6226 = vcombine.low %v6218, %v6225
      %v6235 = vunpack.c.l.b16 %v6185
      %v6236 = vunpack.c.l.b16 %v6186
      %v6237 = vunpack.c.l.b16 %v6187
      %v6238 = vunpack.c.l.b16 %v6188
      %v6239 = vunpack.c.l.b16 %v6189
      %v6240 = vunpack.c.l.b16 %v6190
      %v6241 = vunpack.c.l.b16 %v6191
      %v6242 = vunpack.c.l.b16 %v6192
      %v6243 = vpack.c.b16 %v6236, %v6235
      %v6244 = vpack.c.b16 %v6238, %v6237
      %v6245 = vpack.c.b16 %v6240, %v6239
      %v6246 = vpack.c.b16 %v6242, %v6241
      %v6252 = vsel %vm1507, %v6209, 0
      %v6255 = vsel %vm1507, %v6226, 0
      %6257 = vmatprep.subr.bf16.mxu0 0
      %6258 = vmatpush1.bf16.msra.mxu0 0
      %6259 = vmatprep.subr.bf16.mxu0 0
      %6260 = vmatpush1.bf16.msra.mxu0 0
      %6261 = vmatprep.subr.bf16.mxu0 0
      %6262 = vmatpush1.bf16.msra.mxu0 0
      %6263 = vmatprep.subr.bf16.mxu0 0
      %6264 = vmatpush1.bf16.msra.mxu0 0
      %6265 = vmatprep.subr.bf16.mxu0 0
      %6266 = vmatpush1.bf16.msra.mxu0 %v6246
      %6267 = vmatprep.subr.bf16.mxu0 0
      %6268 = vmatpush1.bf16.msra.mxu0 %v6245
      %6269 = vmatprep.subr.bf16.mxu0 0
      %6270 = vmatpush1.bf16.msra.mxu0 %v6244
      %6271 = vmatprep.subr.bf16.mxu0 0
      %6272 = vmatpush1.bf16.msra.mxu0 %v6243
      %6273 = vmatprep.subr.bf16.mxu0 0
      %6274 = vmatpush2.bf16.msra.mxu0 0
      %6275 = vmatprep.subr.bf16.mxu0 0
      %6276 = vmatpush2.bf16.msra.mxu0 0
      %6277 = vmatprep.subr.bf16.mxu0 0
      %6278 = vmatpush2.bf16.msra.mxu0 0
      %6279 = vmatprep.subr.bf16.mxu0 0
      %6280 = vmatpush2.bf16.msra.mxu0 0
      %6281 = vmatprep.subr.bf16.mxu0 0
      %6282 = vmatpush2.bf16.msra.mxu0 0
      %6283 = vmatprep.subr.bf16.mxu0 0
      %6284 = vmatpush2.bf16.msra.mxu0 0
      %6285 = vmatprep.subr.bf16.mxu0 0
      %6286 = vmatpush2.bf16.msra.mxu0 0
      %6287 = vmatprep.subr.bf16.mxu0 0
      %6288 = vmatpush2.bf16.msra.mxu0 0
      %6289 = vmatprep.mubr.bf16.mxu0 0
      %6290 = vmatmul.mubr.bf16.gmra.mxu0 %v6252
      %v6291 = vpop.f32.mrf.mxu0
      %v6292 = vadd.f32 0.0, %v6291
      %v6293 = vpop.f32.mrf.mxu0
      %v6294 = vpop.f32.mrf.mxu0
      %v6295 = vadd.f32 0.0, %v6294
      %v6296 = vpop.f32.mrf.mxu0
      %6297 = vmatprep.mubr.bf16.mxu0 0
      %6298 = vmatmul.mubr.bf16.gmra.mxu0 %v6255
      %v6299 = vpop.f32.mrf.mxu0
      %v6300 = vadd.f32 0.0, %v6299
      %v6301 = vpop.f32.mrf.mxu0
      %v6302 = vpop.f32.mrf.mxu0
      %v6303 = vadd.f32 0.0, %v6302
      %v6304 = vpop.f32.mrf.mxu0
      %6305 = vdwg.mxu0
      %v6306 = vadd.f32 %v5989, %v6292
      %v6307 = vadd.f32 %v5990, %v6295
      %v6308 = vadd.f32 %v5991, %v6300
      %v6309 = vadd.f32 %v5992, %v6303
      %v6310 = vld [vmem:[%s5123] sm:$0x6]
      %v6311 = vld [vmem:[%s5123 + $0x4] sm:$0x6]
      %v6312 = vld [vmem:[%s5123 + $0x8] sm:$0x6]
      %v6313 = vld [vmem:[%s5123 + $0xc] sm:$0x6]
      %v6314 = vld [vmem:[%s5123 + $0x18] sm:$0x6]
      %v6315 = vld [vmem:[%s5123 + $0x1c] sm:$0x6]
      %v6316 = vld [vmem:[%s5123 + $0x20] sm:$0x6]
      %v6317 = vld [vmem:[%s5123 + $0x24] sm:$0x6]
      %v6327 = vunpack.c.l.s4 1983009808
      %v6328 = vunpack.c.0.s8 %v6327
      %v6329 = vlaneseq
      %v6330 = vshrl.u32 %v6329, 7
      %v6331 = vsub.s32 %v6328, %v6330
      %v6332 = vrot.slane %v6310, %v6331
      %v6333 = vcombine.high %v6332, %v6332
      %v6335 = vunpack.c.l.s4 1983009808
      %v6336 = vunpack.c.0.s8 %v6335
      %v6337 = vlaneseq
      %v6338 = vshrl.u32 %v6337, 7
      %v6339 = vsub.s32 %v6336, %v6338
      %v6340 = vrot.slane %v6311, %v6339
      %v6341 = vcombine.high %v6340, %v6340
      %v6343 = vunpack.c.l.s4 1983009808
      %v6344 = vunpack.c.0.s8 %v6343
      %v6345 = vlaneseq
      %v6346 = vshrl.u32 %v6345, 7
      %v6347 = vsub.s32 %v6344, %v6346
      %v6348 = vrot.slane %v6312, %v6347
      %v6349 = vcombine.high %v6348, %v6348
      %v6351 = vunpack.c.l.s4 1983009808
      %v6352 = vunpack.c.0.s8 %v6351
      %v6353 = vlaneseq
      %v6354 = vshrl.u32 %v6353, 7
      %v6355 = vsub.s32 %v6352, %v6354
      %v6356 = vrot.slane %v6313, %v6355
      %v6357 = vcombine.high %v6356, %v6356
      %v6359 = vunpack.c.l.s4 1983009808
      %v6360 = vunpack.c.0.s8 %v6359
      %v6361 = vlaneseq
      %v6362 = vshrl.u32 %v6361, 7
      %v6363 = vsub.s32 %v6360, %v6362
      %v6364 = vrot.slane %v6314, %v6363
      %v6365 = vcombine.high %v6364, %v6364
      %v6367 = vunpack.c.l.s4 1983009808
      %v6368 = vunpack.c.0.s8 %v6367
      %v6369 = vlaneseq
      %v6370 = vshrl.u32 %v6369, 7
      %v6371 = vsub.s32 %v6368, %v6370
      %v6372 = vrot.slane %v6315, %v6371
      %v6373 = vcombine.high %v6372, %v6372
      %v6375 = vunpack.c.l.s4 1983009808
      %v6376 = vunpack.c.0.s8 %v6375
      %v6377 = vlaneseq
      %v6378 = vshrl.u32 %v6377, 7
      %v6379 = vsub.s32 %v6376, %v6378
      %v6380 = vrot.slane %v6316, %v6379
      %v6381 = vcombine.high %v6380, %v6380
      %v6383 = vunpack.c.l.s4 1983009808
      %v6384 = vunpack.c.0.s8 %v6383
      %v6385 = vlaneseq
      %v6386 = vshrl.u32 %v6385, 7
      %v6387 = vsub.s32 %v6384, %v6386
      %v6388 = vrot.slane %v6317, %v6387
      %v6389 = vcombine.high %v6388, %v6388
      %v6390 = vrot.slane %v6332, 7
      %v6391 = vrot.slane %v6390, 2
      %v6392 = vrot.slane %v6333, 7
      %v6393 = vsel %vm5694, %v6391, %v6392
      %v6394 = vrot.slane %v6340, 7
      %v6395 = vrot.slane %v6394, 2
      %v6396 = vrot.slane %v6341, 7
      %v6397 = vsel %vm5694, %v6395, %v6396
      %v6398 = vrot.slane %v6348, 7
      %v6399 = vrot.slane %v6398, 2
      %v6400 = vrot.slane %v6349, 7
      %v6401 = vsel %vm5694, %v6399, %v6400
      %v6402 = vrot.slane %v6356, 7
      %v6403 = vrot.slane %v6402, 2
      %v6404 = vrot.slane %v6357, 7
      %v6405 = vsel %vm5694, %v6403, %v6404
      %v6406 = vrot.slane %v6364, 7
      %v6407 = vrot.slane %v6406, 2
      %v6408 = vrot.slane %v6365, 7
      %v6409 = vsel %vm5694, %v6407, %v6408
      %v6410 = vrot.slane %v6372, 7
      %v6411 = vrot.slane %v6410, 2
      %v6412 = vrot.slane %v6373, 7
      %v6413 = vsel %vm5694, %v6411, %v6412
      %v6414 = vrot.slane %v6380, 7
      %v6415 = vrot.slane %v6414, 2
      %v6416 = vrot.slane %v6381, 7
      %v6417 = vsel %vm5694, %v6415, %v6416
      %v6418 = vrot.slane %v6388, 7
      %v6419 = vrot.slane %v6418, 2
      %v6420 = vrot.slane %v6389, 7
      %v6421 = vsel %vm5694, %v6419, %v6420
      %v6422 = vld [vmem:[%s372 + $0xa0] sm:$0xf]
      %v6423 = vld [vmem:[%s372 + $0xa4] sm:$0xf]
      %v6424 = vld [vmem:[%s372 + $0xa8] sm:$0xf]
      %v6425 = vld [vmem:[%s372 + $0xac] sm:$0xf]
      %v6426 = vld [vmem:[%s372 + $0xb0] sm:$0xf]
      %v6427 = vld [vmem:[%s372 + $0xb4] sm:$0xf]
      %v6428 = vld [vmem:[%s372 + $0xb8] sm:$0xf]
      %v6429 = vld [vmem:[%s372 + $0xbc] sm:$0xf]
      %v6430 = vcombine.low %v6393, %v6397
      %v6431 = vcombine.low %v6401, %v6405
      %v6433 = vunpack.c.l.s4 1983009808
      %v6434 = vunpack.c.0.s8 %v6433
      %v6435 = vlaneseq
      %v6436 = vshrl.u32 %v6435, 7
      %v6437 = vsub.s32 %v6434, %v6436
      %v6438 = vrot.slane %v6430, %v6437
      %v6440 = vunpack.c.l.s4 1983009808
      %v6441 = vunpack.c.0.s8 %v6440
      %v6442 = vlaneseq
      %v6443 = vshrl.u32 %v6442, 7
      %v6444 = vsub.s32 %v6441, %v6443
      %v6445 = vrot.slane %v6431, %v6444
      %v6446 = vcombine.low %v6438, %v6445
      %v6447 = vcombine.low %v6409, %v6413
      %v6448 = vcombine.low %v6417, %v6421
      %v6450 = vunpack.c.l.s4 1983009808
      %v6451 = vunpack.c.0.s8 %v6450
      %v6452 = vlaneseq
      %v6453 = vshrl.u32 %v6452, 7
      %v6454 = vsub.s32 %v6451, %v6453
      %v6455 = vrot.slane %v6447, %v6454
      %v6457 = vunpack.c.l.s4 1983009808
      %v6458 = vunpack.c.0.s8 %v6457
      %v6459 = vlaneseq
      %v6460 = vshrl.u32 %v6459, 7
      %v6461 = vsub.s32 %v6458, %v6460
      %v6462 = vrot.slane %v6448, %v6461
      %v6463 = vcombine.low %v6455, %v6462
      %v6472 = vunpack.c.l.b16 %v6422
      %v6473 = vunpack.c.l.b16 %v6423
      %v6474 = vunpack.c.l.b16 %v6424
      %v6475 = vunpack.c.l.b16 %v6425
      %v6476 = vunpack.c.l.b16 %v6426
      %v6477 = vunpack.c.l.b16 %v6427
      %v6478 = vunpack.c.l.b16 %v6428
      %v6479 = vunpack.c.l.b16 %v6429
      %v6480 = vpack.c.b16 %v6473, %v6472
      %v6481 = vpack.c.b16 %v6475, %v6474
      %v6482 = vpack.c.b16 %v6477, %v6476
      %v6483 = vpack.c.b16 %v6479, %v6478
      %v6489 = vsel %vm1507, %v6446, 0
      %v6492 = vsel %vm1507, %v6463, 0
      %6494 = vmatprep.subr.bf16.mxu0 0
      %6495 = vmatpush1.bf16.msra.mxu0 0
      %6496 = vmatprep.subr.bf16.mxu0 0
      %6497 = vmatpush1.bf16.msra.mxu0 0
      %6498 = vmatprep.subr.bf16.mxu0 0
      %6499 = vmatpush1.bf16.msra.mxu0 0
      %6500 = vmatprep.subr.bf16.mxu0 0
      %6501 = vmatpush1.bf16.msra.mxu0 0
      %6502 = vmatprep.subr.bf16.mxu0 0
      %6503 = vmatpush1.bf16.msra.mxu0 %v6483
      %6504 = vmatprep.subr.bf16.mxu0 0
      %6505 = vmatpush1.bf16.msra.mxu0 %v6482
      %6506 = vmatprep.subr.bf16.mxu0 0
      %6507 = vmatpush1.bf16.msra.mxu0 %v6481
      %6508 = vmatprep.subr.bf16.mxu0 0
      %6509 = vmatpush1.bf16.msra.mxu0 %v6480
      %6510 = vmatprep.subr.bf16.mxu0 0
      %6511 = vmatpush2.bf16.msra.mxu0 0
      %6512 = vmatprep.subr.bf16.mxu0 0
      %6513 = vmatpush2.bf16.msra.mxu0 0
      %6514 = vmatprep.subr.bf16.mxu0 0
      %6515 = vmatpush2.bf16.msra.mxu0 0
      %6516 = vmatprep.subr.bf16.mxu0 0
      %6517 = vmatpush2.bf16.msra.mxu0 0
      %6518 = vmatprep.subr.bf16.mxu0 0
      %6519 = vmatpush2.bf16.msra.mxu0 0
      %6520 = vmatprep.subr.bf16.mxu0 0
      %6521 = vmatpush2.bf16.msra.mxu0 0
      %6522 = vmatprep.subr.bf16.mxu0 0
      %6523 = vmatpush2.bf16.msra.mxu0 0
      %6524 = vmatprep.subr.bf16.mxu0 0
      %6525 = vmatpush2.bf16.msra.mxu0 0
      %6526 = vmatprep.mubr.bf16.mxu0 0
      %6527 = vmatmul.mubr.bf16.gmra.mxu0 %v6489
      %v6528 = vpop.f32.mrf.mxu0
      %v6529 = vadd.f32 0.0, %v6528
      %v6530 = vpop.f32.mrf.mxu0
      %v6531 = vpop.f32.mrf.mxu0
      %v6532 = vadd.f32 0.0, %v6531
      %v6533 = vpop.f32.mrf.mxu0
      %6534 = vmatprep.mubr.bf16.mxu0 0
      %6535 = vmatmul.mubr.bf16.gmra.mxu0 %v6492
      %v6536 = vpop.f32.mrf.mxu0
      %v6537 = vadd.f32 0.0, %v6536
      %v6538 = vpop.f32.mrf.mxu0
      %v6539 = vpop.f32.mrf.mxu0
      %v6540 = vadd.f32 0.0, %v6539
      %v6541 = vpop.f32.mrf.mxu0
      %6542 = vdwg.mxu0
      %v6543 = vadd.f32 %v6306, %v6529
      %v6544 = vadd.f32 %v6307, %v6532
      %v6545 = vadd.f32 %v6308, %v6537
      %v6546 = vadd.f32 %v6309, %v6540
      %s6547 = scalar_lea.vmem [#allocation3], 8
      %v6548 = vld [vmem:[%s6547] sm:$0x3]
      %v6549 = vld [vmem:[%s6547 + $0x4] sm:$0x3]
      %v6550 = vld [vmem:[%s6547 + $0x8] sm:$0x3]
      %v6551 = vld [vmem:[%s6547 + $0xc] sm:$0x3]
      %v6552 = vld [vmem:[%s6547 + $0x18] sm:$0x3]
      %v6553 = vld [vmem:[%s6547 + $0x1c] sm:$0x3]
      %v6554 = vld [vmem:[%s6547 + $0x20] sm:$0x3]
      %v6555 = vld [vmem:[%s6547 + $0x24] sm:$0x3]
      %v6556 = vld [vmem:[%s372 + $0xc0] sm:$0xf]
      %v6557 = vld [vmem:[%s372 + $0xc4] sm:$0xf]
      %v6558 = vld [vmem:[%s372 + $0xc8] sm:$0xf]
      %v6559 = vld [vmem:[%s372 + $0xcc] sm:$0xf]
      %v6560 = vld [vmem:[%s372 + $0xd0] sm:$0xf]
      %v6561 = vld [vmem:[%s372 + $0xd4] sm:$0xf]
      %v6562 = vld [vmem:[%s372 + $0xd8] sm:$0xf]
      %v6563 = vld [vmem:[%s372 + $0xdc] sm:$0xf]
      %v6572 = vcombine.low %v6548, %v6549
      %v6573 = vcombine.low %v6550, %v6551
      %v6575 = vunpack.c.l.s4 1983009808
      %v6576 = vunpack.c.0.s8 %v6575
      %v6577 = vlaneseq
      %v6578 = vshrl.u32 %v6577, 7
      %v6579 = vsub.s32 %v6576, %v6578
      %v6580 = vrot.slane %v6572, %v6579
      %v6582 = vunpack.c.l.s4 1983009808
      %v6583 = vunpack.c.0.s8 %v6582
      %v6584 = vlaneseq
      %v6585 = vshrl.u32 %v6584, 7
      %v6586 = vsub.s32 %v6583, %v6585
      %v6587 = vrot.slane %v6573, %v6586
      %v6588 = vcombine.low %v6580, %v6587
      %v6589 = vcombine.low %v6552, %v6553
      %v6590 = vcombine.low %v6554, %v6555
      %v6592 = vunpack.c.l.s4 1983009808
      %v6593 = vunpack.c.0.s8 %v6592
      %v6594 = vlaneseq
      %v6595 = vshrl.u32 %v6594, 7
      %v6596 = vsub.s32 %v6593, %v6595
      %v6597 = vrot.slane %v6589, %v6596
      %v6599 = vunpack.c.l.s4 1983009808
      %v6600 = vunpack.c.0.s8 %v6599
      %v6601 = vlaneseq
      %v6602 = vshrl.u32 %v6601, 7
      %v6603 = vsub.s32 %v6600, %v6602
      %v6604 = vrot.slane %v6590, %v6603
      %v6605 = vcombine.low %v6597, %v6604
      %v6614 = vunpack.c.l.b16 %v6556
      %v6615 = vunpack.c.l.b16 %v6557
      %v6616 = vunpack.c.l.b16 %v6558
      %v6617 = vunpack.c.l.b16 %v6559
      %v6618 = vunpack.c.l.b16 %v6560
      %v6619 = vunpack.c.l.b16 %v6561
      %v6620 = vunpack.c.l.b16 %v6562
      %v6621 = vunpack.c.l.b16 %v6563
      %v6622 = vpack.c.b16 %v6615, %v6614
      %v6623 = vpack.c.b16 %v6617, %v6616
      %v6624 = vpack.c.b16 %v6619, %v6618
      %v6625 = vpack.c.b16 %v6621, %v6620
      %v6631 = vsel %vm1507, %v6588, 0
      %v6634 = vsel %vm1507, %v6605, 0
      %6636 = vmatprep.subr.bf16.mxu0 0
      %6637 = vmatpush1.bf16.msra.mxu0 0
      %6638 = vmatprep.subr.bf16.mxu0 0
      %6639 = vmatpush1.bf16.msra.mxu0 0
      %6640 = vmatprep.subr.bf16.mxu0 0
      %6641 = vmatpush1.bf16.msra.mxu0 0
      %6642 = vmatprep.subr.bf16.mxu0 0
      %6643 = vmatpush1.bf16.msra.mxu0 0
      %6644 = vmatprep.subr.bf16.mxu0 0
      %6645 = vmatpush1.bf16.msra.mxu0 %v6625
      %6646 = vmatprep.subr.bf16.mxu0 0
      %6647 = vmatpush1.bf16.msra.mxu0 %v6624
      %6648 = vmatprep.subr.bf16.mxu0 0
      %6649 = vmatpush1.bf16.msra.mxu0 %v6623
      %6650 = vmatprep.subr.bf16.mxu0 0
      %6651 = vmatpush1.bf16.msra.mxu0 %v6622
      %6652 = vmatprep.subr.bf16.mxu0 0
      %6653 = vmatpush2.bf16.msra.mxu0 0
      %6654 = vmatprep.subr.bf16.mxu0 0
      %6655 = vmatpush2.bf16.msra.mxu0 0
      %6656 = vmatprep.subr.bf16.mxu0 0
      %6657 = vmatpush2.bf16.msra.mxu0 0
      %6658 = vmatprep.subr.bf16.mxu0 0
      %6659 = vmatpush2.bf16.msra.mxu0 0
      %6660 = vmatprep.subr.bf16.mxu0 0
      %6661 = vmatpush2.bf16.msra.mxu0 0
      %6662 = vmatprep.subr.bf16.mxu0 0
      %6663 = vmatpush2.bf16.msra.mxu0 0
      %6664 = vmatprep.subr.bf16.mxu0 0
      %6665 = vmatpush2.bf16.msra.mxu0 0
      %6666 = vmatprep.subr.bf16.mxu0 0
      %6667 = vmatpush2.bf16.msra.mxu0 0
      %6668 = vmatprep.mubr.bf16.mxu0 0
      %6669 = vmatmul.mubr.bf16.gmra.mxu0 %v6631
      %v6670 = vpop.f32.mrf.mxu0
      %v6671 = vadd.f32 0.0, %v6670
      %v6672 = vpop.f32.mrf.mxu0
      %v6673 = vpop.f32.mrf.mxu0
      %v6674 = vadd.f32 0.0, %v6673
      %v6675 = vpop.f32.mrf.mxu0
      %6676 = vmatprep.mubr.bf16.mxu0 0
      %6677 = vmatmul.mubr.bf16.gmra.mxu0 %v6634
      %v6678 = vpop.f32.mrf.mxu0
      %v6679 = vadd.f32 0.0, %v6678
      %v6680 = vpop.f32.mrf.mxu0
      %v6681 = vpop.f32.mrf.mxu0
      %v6682 = vadd.f32 0.0, %v6681
      %v6683 = vpop.f32.mrf.mxu0
      %6684 = vdwg.mxu0
      %v6685 = vadd.f32 %v6543, %v6671
      %v6686 = vadd.f32 %v6544, %v6674
      %v6687 = vadd.f32 %v6545, %v6679
      %v6688 = vadd.f32 %v6546, %v6682
      %v6689 = vld [vmem:[%s6547] sm:$0x7]
      %v6690 = vld [vmem:[%s6547 + $0x4] sm:$0x7]
      %v6691 = vld [vmem:[%s6547 + $0x8] sm:$0x7]
      %v6692 = vld [vmem:[%s6547 + $0xc] sm:$0x7]
      %v6693 = vld [vmem:[%s6547 + $0x18] sm:$0x7]
      %v6694 = vld [vmem:[%s6547 + $0x1c] sm:$0x7]
      %v6695 = vld [vmem:[%s6547 + $0x20] sm:$0x7]
      %v6696 = vld [vmem:[%s6547 + $0x24] sm:$0x7]
      %v6706 = vunpack.c.l.s4 1983009808
      %v6707 = vunpack.c.0.s8 %v6706
      %v6708 = vlaneseq
      %v6709 = vshrl.u32 %v6708, 7
      %v6710 = vsub.s32 %v6707, %v6709
      %v6711 = vrot.slane %v6689, %v6710
      %v6712 = vcombine.high %v6711, %v6711
      %v6714 = vunpack.c.l.s4 1983009808
      %v6715 = vunpack.c.0.s8 %v6714
      %v6716 = vlaneseq
      %v6717 = vshrl.u32 %v6716, 7
      %v6718 = vsub.s32 %v6715, %v6717
      %v6719 = vrot.slane %v6690, %v6718
      %v6720 = vcombine.high %v6719, %v6719
      %v6722 = vunpack.c.l.s4 1983009808
      %v6723 = vunpack.c.0.s8 %v6722
      %v6724 = vlaneseq
      %v6725 = vshrl.u32 %v6724, 7
      %v6726 = vsub.s32 %v6723, %v6725
      %v6727 = vrot.slane %v6691, %v6726
      %v6728 = vcombine.high %v6727, %v6727
      %v6730 = vunpack.c.l.s4 1983009808
      %v6731 = vunpack.c.0.s8 %v6730
      %v6732 = vlaneseq
      %v6733 = vshrl.u32 %v6732, 7
      %v6734 = vsub.s32 %v6731, %v6733
      %v6735 = vrot.slane %v6692, %v6734
      %v6736 = vcombine.high %v6735, %v6735
      %v6738 = vunpack.c.l.s4 1983009808
      %v6739 = vunpack.c.0.s8 %v6738
      %v6740 = vlaneseq
      %v6741 = vshrl.u32 %v6740, 7
      %v6742 = vsub.s32 %v6739, %v6741
      %v6743 = vrot.slane %v6693, %v6742
      %v6744 = vcombine.high %v6743, %v6743
      %v6746 = vunpack.c.l.s4 1983009808
      %v6747 = vunpack.c.0.s8 %v6746
      %v6748 = vlaneseq
      %v6749 = vshrl.u32 %v6748, 7
      %v6750 = vsub.s32 %v6747, %v6749
      %v6751 = vrot.slane %v6694, %v6750
      %v6752 = vcombine.high %v6751, %v6751
      %v6754 = vunpack.c.l.s4 1983009808
      %v6755 = vunpack.c.0.s8 %v6754
      %v6756 = vlaneseq
      %v6757 = vshrl.u32 %v6756, 7
      %v6758 = vsub.s32 %v6755, %v6757
      %v6759 = vrot.slane %v6695, %v6758
      %v6760 = vcombine.high %v6759, %v6759
      %v6762 = vunpack.c.l.s4 1983009808
      %v6763 = vunpack.c.0.s8 %v6762
      %v6764 = vlaneseq
      %v6765 = vshrl.u32 %v6764, 7
      %v6766 = vsub.s32 %v6763, %v6765
      %v6767 = vrot.slane %v6696, %v6766
      %v6768 = vcombine.high %v6767, %v6767
      %v6770 = vshrl.u32 %v6711, 16
      %v6772 = vrot.slane %v6770, 6
      %v6773 = vshll.u32 %v6711, 16
      %v6775 = vrot.slane %v6773, 7
      %v6776 = vor.u32 %v6772, %v6775
      %v6777 = vrot.slane %v6776, 2
      %v6779 = vshll.u32 %v6712, 16
      %v6781 = vrot.slane %v6779, 7
      %v6782 = vsel %vm5253, %v6777, %v6781
      %v6784 = vshrl.u32 %v6719, 16
      %v6786 = vrot.slane %v6784, 6
      %v6787 = vshll.u32 %v6719, 16
      %v6789 = vrot.slane %v6787, 7
      %v6790 = vor.u32 %v6786, %v6789
      %v6791 = vrot.slane %v6790, 2
      %v6793 = vshll.u32 %v6720, 16
      %v6795 = vrot.slane %v6793, 7
      %v6796 = vsel %vm5253, %v6791, %v6795
      %v6798 = vshrl.u32 %v6727, 16
      %v6800 = vrot.slane %v6798, 6
      %v6801 = vshll.u32 %v6727, 16
      %v6803 = vrot.slane %v6801, 7
      %v6804 = vor.u32 %v6800, %v6803
      %v6805 = vrot.slane %v6804, 2
      %v6807 = vshll.u32 %v6728, 16
      %v6809 = vrot.slane %v6807, 7
      %v6810 = vsel %vm5253, %v6805, %v6809
      %v6812 = vshrl.u32 %v6735, 16
      %v6814 = vrot.slane %v6812, 6
      %v6815 = vshll.u32 %v6735, 16
      %v6817 = vrot.slane %v6815, 7
      %v6818 = vor.u32 %v6814, %v6817
      %v6819 = vrot.slane %v6818, 2
      %v6821 = vshll.u32 %v6736, 16
      %v6823 = vrot.slane %v6821, 7
      %v6824 = vsel %vm5253, %v6819, %v6823
      %v6826 = vshrl.u32 %v6743, 16
      %v6828 = vrot.slane %v6826, 6
      %v6829 = vshll.u32 %v6743, 16
      %v6831 = vrot.slane %v6829, 7
      %v6832 = vor.u32 %v6828, %v6831
      %v6833 = vrot.slane %v6832, 2
      %v6835 = vshll.u32 %v6744, 16
      %v6837 = vrot.slane %v6835, 7
      %v6838 = vsel %vm5253, %v6833, %v6837
      %v6840 = vshrl.u32 %v6751, 16
      %v6842 = vrot.slane %v6840, 6
      %v6843 = vshll.u32 %v6751, 16
      %v6845 = vrot.slane %v6843, 7
      %v6846 = vor.u32 %v6842, %v6845
      %v6847 = vrot.slane %v6846, 2
      %v6849 = vshll.u32 %v6752, 16
      %v6851 = vrot.slane %v6849, 7
      %v6852 = vsel %vm5253, %v6847, %v6851
      %v6854 = vshrl.u32 %v6759, 16
      %v6856 = vrot.slane %v6854, 6
      %v6857 = vshll.u32 %v6759, 16
      %v6859 = vrot.slane %v6857, 7
      %v6860 = vor.u32 %v6856, %v6859
      %v6861 = vrot.slane %v6860, 2
      %v6863 = vshll.u32 %v6760, 16
      %v6865 = vrot.slane %v6863, 7
      %v6866 = vsel %vm5253, %v6861, %v6865
      %v6868 = vshrl.u32 %v6767, 16
      %v6870 = vrot.slane %v6868, 6
      %v6871 = vshll.u32 %v6767, 16
      %v6873 = vrot.slane %v6871, 7
      %v6874 = vor.u32 %v6870, %v6873
      %v6875 = vrot.slane %v6874, 2
      %v6877 = vshll.u32 %v6768, 16
      %v6879 = vrot.slane %v6877, 7
      %v6880 = vsel %vm5253, %v6875, %v6879
      %v6881 = vld [vmem:[%s372 + $0xe0] sm:$0xf]
      %v6882 = vld [vmem:[%s372 + $0xe4] sm:$0xf]
      %v6883 = vld [vmem:[%s372 + $0xe8] sm:$0xf]
      %v6884 = vld [vmem:[%s372 + $0xec] sm:$0xf]
      %v6885 = vld [vmem:[%s372 + $0xf0] sm:$0xf]
      %v6886 = vld [vmem:[%s372 + $0xf4] sm:$0xf]
      %v6887 = vld [vmem:[%s372 + $0xf8] sm:$0xf]
      %v6888 = vld [vmem:[%s372 + $0xfc] sm:$0xf]
      %v6889 = vcombine.low %v6782, %v6796
      %v6890 = vcombine.low %v6810, %v6824
      %v6892 = vunpack.c.l.s4 1983009808
      %v6893 = vunpack.c.0.s8 %v6892
      %v6894 = vlaneseq
      %v6895 = vshrl.u32 %v6894, 7
      %v6896 = vsub.s32 %v6893, %v6895
      %v6897 = vrot.slane %v6889, %v6896
      %v6899 = vunpack.c.l.s4 1983009808
      %v6900 = vunpack.c.0.s8 %v6899
      %v6901 = vlaneseq
      %v6902 = vshrl.u32 %v6901, 7
      %v6903 = vsub.s32 %v6900, %v6902
      %v6904 = vrot.slane %v6890, %v6903
      %v6905 = vcombine.low %v6897, %v6904
      %v6906 = vcombine.low %v6838, %v6852
      %v6907 = vcombine.low %v6866, %v6880
      %v6909 = vunpack.c.l.s4 1983009808
      %v6910 = vunpack.c.0.s8 %v6909
      %v6911 = vlaneseq
      %v6912 = vshrl.u32 %v6911, 7
      %v6913 = vsub.s32 %v6910, %v6912
      %v6914 = vrot.slane %v6906, %v6913
      %v6916 = vunpack.c.l.s4 1983009808
      %v6917 = vunpack.c.0.s8 %v6916
      %v6918 = vlaneseq
      %v6919 = vshrl.u32 %v6918, 7
      %v6920 = vsub.s32 %v6917, %v6919
      %v6921 = vrot.slane %v6907, %v6920
      %v6922 = vcombine.low %v6914, %v6921
      %v6931 = vunpack.c.l.b16 %v6881
      %v6932 = vunpack.c.l.b16 %v6882
      %v6933 = vunpack.c.l.b16 %v6883
      %v6934 = vunpack.c.l.b16 %v6884
      %v6935 = vunpack.c.l.b16 %v6885
      %v6936 = vunpack.c.l.b16 %v6886
      %v6937 = vunpack.c.l.b16 %v6887
      %v6938 = vunpack.c.l.b16 %v6888
      %v6939 = vpack.c.b16 %v6932, %v6931
      %v6940 = vpack.c.b16 %v6934, %v6933
      %v6941 = vpack.c.b16 %v6936, %v6935
      %v6942 = vpack.c.b16 %v6938, %v6937
      %v6948 = vsel %vm1507, %v6905, 0
      %v6951 = vsel %vm1507, %v6922, 0
      %6953 = vmatprep.subr.bf16.mxu0 0
      %6954 = vmatpush1.bf16.msra.mxu0 0
      %6955 = vmatprep.subr.bf16.mxu0 0
      %6956 = vmatpush1.bf16.msra.mxu0 0
      %6957 = vmatprep.subr.bf16.mxu0 0
      %6958 = vmatpush1.bf16.msra.mxu0 0
      %6959 = vmatprep.subr.bf16.mxu0 0
      %6960 = vmatpush1.bf16.msra.mxu0 0
      %6961 = vmatprep.subr.bf16.mxu0 0
      %6962 = vmatpush1.bf16.msra.mxu0 %v6942
      %6963 = vmatprep.subr.bf16.mxu0 0
      %6964 = vmatpush1.bf16.msra.mxu0 %v6941
      %6965 = vmatprep.subr.bf16.mxu0 0
      %6966 = vmatpush1.bf16.msra.mxu0 %v6940
      %6967 = vmatprep.subr.bf16.mxu0 0
      %6968 = vmatpush1.bf16.msra.mxu0 %v6939
      %6969 = vmatprep.subr.bf16.mxu0 0
      %6970 = vmatpush2.bf16.msra.mxu0 0
      %6971 = vmatprep.subr.bf16.mxu0 0
      %6972 = vmatpush2.bf16.msra.mxu0 0
      %6973 = vmatprep.subr.bf16.mxu0 0
      %6974 = vmatpush2.bf16.msra.mxu0 0
      %6975 = vmatprep.subr.bf16.mxu0 0
      %6976 = vmatpush2.bf16.msra.mxu0 0
      %6977 = vmatprep.subr.bf16.mxu0 0
      %6978 = vmatpush2.bf16.msra.mxu0 0
      %6979 = vmatprep.subr.bf16.mxu0 0
      %6980 = vmatpush2.bf16.msra.mxu0 0
      %6981 = vmatprep.subr.bf16.mxu0 0
      %6982 = vmatpush2.bf16.msra.mxu0 0
      %6983 = vmatprep.subr.bf16.mxu0 0
      %6984 = vmatpush2.bf16.msra.mxu0 0
      %6985 = vmatprep.mubr.bf16.mxu0 0
      %6986 = vmatmul.mubr.bf16.gmra.mxu0 %v6948
      %v6987 = vpop.f32.mrf.mxu0
      %v6988 = vadd.f32 0.0, %v6987
      %v6989 = vpop.f32.mrf.mxu0
      %v6990 = vpop.f32.mrf.mxu0
      %v6991 = vadd.f32 0.0, %v6990
      %v6992 = vpop.f32.mrf.mxu0
      %6993 = vmatprep.mubr.bf16.mxu0 0
      %6994 = vmatmul.mubr.bf16.gmra.mxu0 %v6951
      %v6995 = vpop.f32.mrf.mxu0
      %v6996 = vadd.f32 0.0, %v6995
      %v6997 = vpop.f32.mrf.mxu0
      %v6998 = vpop.f32.mrf.mxu0
      %v6999 = vadd.f32 0.0, %v6998
      %v7000 = vpop.f32.mrf.mxu0
      %7001 = vdwg.mxu0
      %v7002 = vadd.f32 %v6685, %v6988
      %v7003 = vadd.f32 %v6686, %v6991
      %v7004 = vadd.f32 %v6687, %v6996
      %v7005 = vadd.f32 %v6688, %v6999
      %v7006 = vld [vmem:[%s6547] sm:$0x6]
      %v7007 = vld [vmem:[%s6547 + $0x4] sm:$0x6]
      %v7008 = vld [vmem:[%s6547 + $0x8] sm:$0x6]
      %v7009 = vld [vmem:[%s6547 + $0xc] sm:$0x6]
      %v7010 = vld [vmem:[%s6547 + $0x18] sm:$0x6]
      %v7011 = vld [vmem:[%s6547 + $0x1c] sm:$0x6]
      %v7012 = vld [vmem:[%s6547 + $0x20] sm:$0x6]
      %v7013 = vld [vmem:[%s6547 + $0x24] sm:$0x6]
      %v7023 = vunpack.c.l.s4 1983009808
      %v7024 = vunpack.c.0.s8 %v7023
      %v7025 = vlaneseq
      %v7026 = vshrl.u32 %v7025, 7
      %v7027 = vsub.s32 %v7024, %v7026
      %v7028 = vrot.slane %v7006, %v7027
      %v7029 = vcombine.high %v7028, %v7028
      %v7031 = vunpack.c.l.s4 1983009808
      %v7032 = vunpack.c.0.s8 %v7031
      %v7033 = vlaneseq
      %v7034 = vshrl.u32 %v7033, 7
      %v7035 = vsub.s32 %v7032, %v7034
      %v7036 = vrot.slane %v7007, %v7035
      %v7037 = vcombine.high %v7036, %v7036
      %v7039 = vunpack.c.l.s4 1983009808
      %v7040 = vunpack.c.0.s8 %v7039
      %v7041 = vlaneseq
      %v7042 = vshrl.u32 %v7041, 7
      %v7043 = vsub.s32 %v7040, %v7042
      %v7044 = vrot.slane %v7008, %v7043
      %v7045 = vcombine.high %v7044, %v7044
      %v7047 = vunpack.c.l.s4 1983009808
      %v7048 = vunpack.c.0.s8 %v7047
      %v7049 = vlaneseq
      %v7050 = vshrl.u32 %v7049, 7
      %v7051 = vsub.s32 %v7048, %v7050
      %v7052 = vrot.slane %v7009, %v7051
      %v7053 = vcombine.high %v7052, %v7052
      %v7055 = vunpack.c.l.s4 1983009808
      %v7056 = vunpack.c.0.s8 %v7055
      %v7057 = vlaneseq
      %v7058 = vshrl.u32 %v7057, 7
      %v7059 = vsub.s32 %v7056, %v7058
      %v7060 = vrot.slane %v7010, %v7059
      %v7061 = vcombine.high %v7060, %v7060
      %v7063 = vunpack.c.l.s4 1983009808
      %v7064 = vunpack.c.0.s8 %v7063
      %v7065 = vlaneseq
      %v7066 = vshrl.u32 %v7065, 7
      %v7067 = vsub.s32 %v7064, %v7066
      %v7068 = vrot.slane %v7011, %v7067
      %v7069 = vcombine.high %v7068, %v7068
      %v7071 = vunpack.c.l.s4 1983009808
      %v7072 = vunpack.c.0.s8 %v7071
      %v7073 = vlaneseq
      %v7074 = vshrl.u32 %v7073, 7
      %v7075 = vsub.s32 %v7072, %v7074
      %v7076 = vrot.slane %v7012, %v7075
      %v7077 = vcombine.high %v7076, %v7076
      %v7079 = vunpack.c.l.s4 1983009808
      %v7080 = vunpack.c.0.s8 %v7079
      %v7081 = vlaneseq
      %v7082 = vshrl.u32 %v7081, 7
      %v7083 = vsub.s32 %v7080, %v7082
      %v7084 = vrot.slane %v7013, %v7083
      %v7085 = vcombine.high %v7084, %v7084
      %v7086 = vrot.slane %v7028, 7
      %v7087 = vrot.slane %v7086, 2
      %v7088 = vrot.slane %v7029, 7
      %v7089 = vsel %vm5694, %v7087, %v7088
      %v7090 = vrot.slane %v7036, 7
      %v7091 = vrot.slane %v7090, 2
      %v7092 = vrot.slane %v7037, 7
      %v7093 = vsel %vm5694, %v7091, %v7092
      %v7094 = vrot.slane %v7044, 7
      %v7095 = vrot.slane %v7094, 2
      %v7096 = vrot.slane %v7045, 7
      %v7097 = vsel %vm5694, %v7095, %v7096
      %v7098 = vrot.slane %v7052, 7
      %v7099 = vrot.slane %v7098, 2
      %v7100 = vrot.slane %v7053, 7
      %v7101 = vsel %vm5694, %v7099, %v7100
      %v7102 = vrot.slane %v7060, 7
      %v7103 = vrot.slane %v7102, 2
      %v7104 = vrot.slane %v7061, 7
      %v7105 = vsel %vm5694, %v7103, %v7104
      %v7106 = vrot.slane %v7068, 7
      %v7107 = vrot.slane %v7106, 2
      %v7108 = vrot.slane %v7069, 7
      %v7109 = vsel %vm5694, %v7107, %v7108
      %v7110 = vrot.slane %v7076, 7
      %v7111 = vrot.slane %v7110, 2
      %v7112 = vrot.slane %v7077, 7
      %v7113 = vsel %vm5694, %v7111, %v7112
      %v7114 = vrot.slane %v7084, 7
      %v7115 = vrot.slane %v7114, 2
      %v7116 = vrot.slane %v7085, 7
      %v7117 = vsel %vm5694, %v7115, %v7116
      %v7118 = vld [vmem:[%s372 + $0x100] sm:$0xf]
      %v7119 = vld [vmem:[%s372 + $0x104] sm:$0xf]
      %v7120 = vld [vmem:[%s372 + $0x108] sm:$0xf]
      %v7121 = vld [vmem:[%s372 + $0x10c] sm:$0xf]
      %v7122 = vld [vmem:[%s372 + $0x110] sm:$0xf]
      %v7123 = vld [vmem:[%s372 + $0x114] sm:$0xf]
      %v7124 = vld [vmem:[%s372 + $0x118] sm:$0xf]
      %v7125 = vld [vmem:[%s372 + $0x11c] sm:$0xf]
      %v7126 = vcombine.low %v7089, %v7093
      %v7127 = vcombine.low %v7097, %v7101
      %v7129 = vunpack.c.l.s4 1983009808
      %v7130 = vunpack.c.0.s8 %v7129
      %v7131 = vlaneseq
      %v7132 = vshrl.u32 %v7131, 7
      %v7133 = vsub.s32 %v7130, %v7132
      %v7134 = vrot.slane %v7126, %v7133
      %v7136 = vunpack.c.l.s4 1983009808
      %v7137 = vunpack.c.0.s8 %v7136
      %v7138 = vlaneseq
      %v7139 = vshrl.u32 %v7138, 7
      %v7140 = vsub.s32 %v7137, %v7139
      %v7141 = vrot.slane %v7127, %v7140
      %v7142 = vcombine.low %v7134, %v7141
      %v7143 = vcombine.low %v7105, %v7109
      %v7144 = vcombine.low %v7113, %v7117
      %v7146 = vunpack.c.l.s4 1983009808
      %v7147 = vunpack.c.0.s8 %v7146
      %v7148 = vlaneseq
      %v7149 = vshrl.u32 %v7148, 7
      %v7150 = vsub.s32 %v7147, %v7149
      %v7151 = vrot.slane %v7143, %v7150
      %v7153 = vunpack.c.l.s4 1983009808
      %v7154 = vunpack.c.0.s8 %v7153
      %v7155 = vlaneseq
      %v7156 = vshrl.u32 %v7155, 7
      %v7157 = vsub.s32 %v7154, %v7156
      %v7158 = vrot.slane %v7144, %v7157
      %v7159 = vcombine.low %v7151, %v7158
      %v7168 = vunpack.c.l.b16 %v7118
      %v7169 = vunpack.c.l.b16 %v7119
      %v7170 = vunpack.c.l.b16 %v7120
      %v7171 = vunpack.c.l.b16 %v7121
      %v7172 = vunpack.c.l.b16 %v7122
      %v7173 = vunpack.c.l.b16 %v7123
      %v7174 = vunpack.c.l.b16 %v7124
      %v7175 = vunpack.c.l.b16 %v7125
      %v7176 = vpack.c.b16 %v7169, %v7168
      %v7177 = vpack.c.b16 %v7171, %v7170
      %v7178 = vpack.c.b16 %v7173, %v7172
      %v7179 = vpack.c.b16 %v7175, %v7174
      %v7185 = vsel %vm1507, %v7142, 0
      %v7188 = vsel %vm1507, %v7159, 0
      %7190 = vmatprep.subr.bf16.mxu0 0
      %7191 = vmatpush1.bf16.msra.mxu0 0
      %7192 = vmatprep.subr.bf16.mxu0 0
      %7193 = vmatpush1.bf16.msra.mxu0 0
      %7194 = vmatprep.subr.bf16.mxu0 0
      %7195 = vmatpush1.bf16.msra.mxu0 0
      %7196 = vmatprep.subr.bf16.mxu0 0
      %7197 = vmatpush1.bf16.msra.mxu0 0
      %7198 = vmatprep.subr.bf16.mxu0 0
      %7199 = vmatpush1.bf16.msra.mxu0 %v7179
      %7200 = vmatprep.subr.bf16.mxu0 0
      %7201 = vmatpush1.bf16.msra.mxu0 %v7178
      %7202 = vmatprep.subr.bf16.mxu0 0
      %7203 = vmatpush1.bf16.msra.mxu0 %v7177
      %7204 = vmatprep.subr.bf16.mxu0 0
      %7205 = vmatpush1.bf16.msra.mxu0 %v7176
      %7206 = vmatprep.subr.bf16.mxu0 0
      %7207 = vmatpush2.bf16.msra.mxu0 0
      %7208 = vmatprep.subr.bf16.mxu0 0
      %7209 = vmatpush2.bf16.msra.mxu0 0
      %7210 = vmatprep.subr.bf16.mxu0 0
      %7211 = vmatpush2.bf16.msra.mxu0 0
      %7212 = vmatprep.subr.bf16.mxu0 0
      %7213 = vmatpush2.bf16.msra.mxu0 0
      %7214 = vmatprep.subr.bf16.mxu0 0
      %7215 = vmatpush2.bf16.msra.mxu0 0
      %7216 = vmatprep.subr.bf16.mxu0 0
      %7217 = vmatpush2.bf16.msra.mxu0 0
      %7218 = vmatprep.subr.bf16.mxu0 0
      %7219 = vmatpush2.bf16.msra.mxu0 0
      %7220 = vmatprep.subr.bf16.mxu0 0
      %7221 = vmatpush2.bf16.msra.mxu0 0
      %7222 = vmatprep.mubr.bf16.mxu0 0
      %7223 = vmatmul.mubr.bf16.gmra.mxu0 %v7185
      %v7224 = vpop.f32.mrf.mxu0
      %v7225 = vadd.f32 0.0, %v7224
      %v7226 = vpop.f32.mrf.mxu0
      %v7227 = vpop.f32.mrf.mxu0
      %v7228 = vadd.f32 0.0, %v7227
      %v7229 = vpop.f32.mrf.mxu0
      %7230 = vmatprep.mubr.bf16.mxu0 0
      %7231 = vmatmul.mubr.bf16.gmra.mxu0 %v7188
      %v7232 = vpop.f32.mrf.mxu0
      %v7233 = vadd.f32 0.0, %v7232
      %v7234 = vpop.f32.mrf.mxu0
      %v7235 = vpop.f32.mrf.mxu0
      %v7236 = vadd.f32 0.0, %v7235
      %v7237 = vpop.f32.mrf.mxu0
      %7238 = vdwg.mxu0
      %v7239 = vadd.f32 %v7002, %v7225
      %v7240 = vadd.f32 %v7003, %v7228
      %v7241 = vadd.f32 %v7004, %v7233
      %v7242 = vadd.f32 %v7005, %v7236
      %v7243 = vld [vmem:[%s375] sm:$0x1]
      %v7245 = vlaneseq
      %v7246 = vshrl.u32 %v7245, 7
      %v7247 = vsub.s32 0, %v7246
      %v7248 = vrot.slane %v7243, %v7247
      %v7250 = vadd.f32 %v7239, %v7248
      %v7251 = vadd.f32 %v7240, %v7248
      %v7252 = vadd.f32 %v7241, %v7248
      %v7253 = vadd.f32 %v7242, %v7248
      %vm7254 = vcmp.ge.f32.partialorder %v7250, 0.0
      %vm7255 = vcmp.ge.f32.partialorder %v7251, 0.0
      %vm7256 = vcmp.ge.f32.partialorder %v7252, 0.0
      %vm7257 = vcmp.ge.f32.partialorder %v7253, 0.0
      %v7258 = vmul.f32 %v7250, 0.5
      %v7259 = vmul.f32 %v7251, 0.5
      %v7260 = vmul.f32 %v7252, 0.5
      %v7261 = vmul.f32 %v7253, 0.5
      %v7262 = vsel %vm7254, %v7250, %v7258
      %v7263 = vsel %vm7255, %v7251, %v7259
      %v7264 = vsel %vm7256, %v7252, %v7260
      %v7265 = vsel %vm7257, %v7253, %v7261
      %v7270 = vcombine.high %v7262, %v7262
      %v7271 = vcombine.high %v7263, %v7263
      %v7272 = vcombine.high %v7264, %v7264
      %v7273 = vcombine.high %v7265, %v7265
      %v7274 = vlaneseq
      %v7275 = vshrl.u32 %v7274, 7
      %v7276 = vsub.s32 0, %v7275
      %v7277 = vrot.slane %v7262, %v7276
      %v7278 = vlaneseq
      %v7279 = vshrl.u32 %v7278, 7
      %v7280 = vsub.s32 0, %v7279
      %v7281 = vrot.slane %v7270, %v7280
      %v7282 = vlaneseq
      %v7283 = vshrl.u32 %v7282, 7
      %v7284 = vsub.s32 0, %v7283
      %v7285 = vrot.slane %v7263, %v7284
      %v7286 = vlaneseq
      %v7287 = vshrl.u32 %v7286, 7
      %v7288 = vsub.s32 0, %v7287
      %v7289 = vrot.slane %v7271, %v7288
      %v7290 = vlaneseq
      %v7291 = vshrl.u32 %v7290, 7
      %v7292 = vsub.s32 0, %v7291
      %v7293 = vrot.slane %v7264, %v7292
      %v7294 = vlaneseq
      %v7295 = vshrl.u32 %v7294, 7
      %v7296 = vsub.s32 0, %v7295
      %v7297 = vrot.slane %v7272, %v7296
      %v7298 = vlaneseq
      %v7299 = vshrl.u32 %v7298, 7
      %v7300 = vsub.s32 0, %v7299
      %v7301 = vrot.slane %v7265, %v7300
      %v7302 = vlaneseq
      %v7303 = vshrl.u32 %v7302, 7
      %v7304 = vsub.s32 0, %v7303
      %v7305 = vrot.slane %v7273, %v7304
      %vm7306 = vcmask 1041409
      %v7307 = vsel %vm7306, %v7281, %v7277
      %v7308 = vsel %vm5050, %v7285, %v7307
      %v7309 = vsel %vm5053, %v7289, %v7308
      %v7310 = vsel %vm7306, %v7297, %v7293
      %v7311 = vsel %vm5050, %v7301, %v7310
      %v7312 = vsel %vm5053, %v7305, %v7311
      %7315 = vst [vmem:[%s380] sm:$0xf] %v7309
      %7316 = vst [vmem:[%s380 + $0x4] sm:$0xf] %v7312
      %v7317 = vlaneseq
      %v7318 = vshrl.u32 %v7317, 7
      %v7319 = vsub.s32 1, %v7318
      %v7320 = vrot.slane %v7262, %v7319
      %v7321 = vlaneseq
      %v7322 = vshrl.u32 %v7321, 7
      %v7323 = vsub.s32 1, %v7322
      %v7324 = vrot.slane %v7270, %v7323
      %v7325 = vlaneseq
      %v7326 = vshrl.u32 %v7325, 7
      %v7327 = vsub.s32 1, %v7326
      %v7328 = vrot.slane %v7263, %v7327
      %v7329 = vlaneseq
      %v7330 = vshrl.u32 %v7329, 7
      %v7331 = vsub.s32 1, %v7330
      %v7332 = vrot.slane %v7271, %v7331
      %v7333 = vlaneseq
      %v7334 = vshrl.u32 %v7333, 7
      %v7335 = vsub.s32 1, %v7334
      %v7336 = vrot.slane %v7264, %v7335
      %v7337 = vlaneseq
      %v7338 = vshrl.u32 %v7337, 7
      %v7339 = vsub.s32 1, %v7338
      %v7340 = vrot.slane %v7272, %v7339
      %v7341 = vlaneseq
      %v7342 = vshrl.u32 %v7341, 7
      %v7343 = vsub.s32 1, %v7342
      %v7344 = vrot.slane %v7265, %v7343
      %v7345 = vlaneseq
      %v7346 = vshrl.u32 %v7345, 7
      %v7347 = vsub.s32 1, %v7346
      %v7348 = vrot.slane %v7273, %v7347
      %v7349 = vsel %vm5050, %v7324, %v7320
      %v7350 = vsel %vm5053, %v7328, %v7349
      %v7351 = vsel %vm5056, %v7332, %v7350
      %v7352 = vsel %vm5050, %v7340, %v7336
      %v7353 = vsel %vm5053, %v7344, %v7352
      %v7354 = vsel %vm5056, %v7348, %v7353
      %s7357 = scalar_lea.vmem %s380, 8
      %7358 = vst [vmem:[%s7357 - $0x1] sm:$0x1e] %v7351
      %7359 = vst [vmem:[%s7357 + $0x3] sm:$0x1e] %v7354
      %v7360 = vlaneseq
      %v7361 = vshrl.u32 %v7360, 7
      %v7362 = vsub.s32 2, %v7361
      %v7363 = vrot.slane %v7262, %v7362
      %v7364 = vlaneseq
      %v7365 = vshrl.u32 %v7364, 7
      %v7366 = vsub.s32 2, %v7365
      %v7367 = vrot.slane %v7270, %v7366
      %v7368 = vlaneseq
      %v7369 = vshrl.u32 %v7368, 7
      %v7370 = vsub.s32 2, %v7369
      %v7371 = vrot.slane %v7263, %v7370
      %v7372 = vlaneseq
      %v7373 = vshrl.u32 %v7372, 7
      %v7374 = vsub.s32 2, %v7373
      %v7375 = vrot.slane %v7271, %v7374
      %v7376 = vlaneseq
      %v7377 = vshrl.u32 %v7376, 7
      %v7378 = vsub.s32 2, %v7377
      %v7379 = vrot.slane %v7264, %v7378
      %v7380 = vlaneseq
      %v7381 = vshrl.u32 %v7380, 7
      %v7382 = vsub.s32 2, %v7381
      %v7383 = vrot.slane %v7272, %v7382
      %v7384 = vlaneseq
      %v7385 = vshrl.u32 %v7384, 7
      %v7386 = vsub.s32 2, %v7385
      %v7387 = vrot.slane %v7265, %v7386
      %v7388 = vlaneseq
      %v7389 = vshrl.u32 %v7388, 7
      %v7390 = vsub.s32 2, %v7389
      %v7391 = vrot.slane %v7273, %v7390
      %v7392 = vsel %vm5053, %v7367, %v7363
      %v7393 = vsel %vm5056, %v7371, %v7392
      %vm7394 = vcmask 1045509
      %v7395 = vsel %vm7394, %v7375, %v7393
      %v7396 = vsel %vm5053, %v7383, %v7379
      %v7397 = vsel %vm5056, %v7387, %v7396
      %v7398 = vsel %vm7394, %v7391, %v7397
      %s7401 = scalar_lea.vmem %s380, 16
      %7402 = vst [vmem:[%s7401 - $0x2] sm:$0x3c] %v7395
      %7403 = vst [vmem:[%s7401 + $0x2] sm:$0x3c] %v7398
      %p7404 = scmp.lt.s32.totalorder %s18, 1
      %s7405 = scalar_select %p7404, %s18, 1
      %s7406 = smul.addr %s7405, 6
      %s7407 = smul.addr %s7406, 4
      %s7408 = scalar_lea.vmem %s7, %s7407
      // Predicated region
      $region49: #{forward.2} parent=47 // pred_check
        %p7409 = pneg %p218
      $region50: #{forward.2} parent=47 // pred_check_branch
        %7411 = sbr.rel (%p7409) target = $region52
      $region51: #{forward.2} parent=47 // pred_region
        _
      $region52: #{forward.2} parent=47 // pred_fallthru
        _
    $region48: #{forward.2} parent=5 // pred_fallthru
      _
    %p7412 = scmp.le.s32.totalorder 2, %s13
    // Predicated region
    $region53: #{forward.2} parent=5 // pred_check
      %p7413 = pneg %p7412
    $region54: #{forward.2} parent=5 // pred_check_branch
      %7415 = sbr.rel (%p7413) target = $region56
    $region55: #{forward.2} parent=5 // pred_region
      %s7416 = ssub.s32 %s13, 2
      // Predicated region
      $region57: #{forward.2} parent=55 // pred_check
        %p7417 = pneg %p224
      $region58: #{forward.2} parent=55 // pred_check_branch
        %7419 = sbr.rel (%p7417) target = $region60
      $region59: #{forward.2} parent=55 // pred_region
        %p7420 = scmp.lt.s32.totalorder %s19, 1
        %s7421 = scalar_select %p7420, %s19, 1
        %s7422 = smul.addr %s7421, 6
        %s7423 = smul.addr %s7422, 4
        %s7424 = scalar_lea.vmem %s7, %s7423
      $region60: #{forward.2} parent=55 // pred_fallthru
        _
    $region56: #{forward.2} parent=5 // pred_fallthru
      _
  $region6: #{forward.2} parent=0 // loop_footer
    %s17 = sadd.s32 1, %s13
  $region7: #{forward.2} parent=0 // loop_footer_branch
    %12 = sbr.rel target = $region3
  $region8: #{forward.2} parent=0 // loop_exit
    _

</llo_original>
